<compile_context>
chip_gen: v7x
topology: tpu7x:2x2x1
jax: 0.10.0
libtpu: 0.0.40
codegen_flags: <defaults>
</compile_context>

<pallas_src>
import functools
import math

import jax
import jax.numpy as jnp
from jax.experimental import pallas as pl

# ----------------------------- configuration -------------------------------
BATCH = 2
SEQ = 8
HIDDEN = 128          # stands in for 768 at small scale
NUM_HEADS = 4
HEAD_DIM = HIDDEN // NUM_HEADS
INTERMEDIATE = 256
NUM_LAYERS = 2
VOCAB = 64
MAX_POS = 32
NUM_LABELS = 6
LN_EPS = 1e-12

HP = 128              # per-head lane padding (full lane tile)
TP = 128              # lane-dense padding for NUM_LABELS
NEG = -1e30           # finite "-inf" so 0 * NEG == 0 (no NaNs)


# --------------------------- in-kernel helpers ------------------------------
def _layernorm(x, g, b):
    mu = jnp.mean(x, axis=-1, keepdims=True)
    xc = x - mu
    var = jnp.mean(xc * xc, axis=-1, keepdims=True)
    return xc * jax.lax.rsqrt(var + LN_EPS) * g + b


def _gelu(x):
    c = math.sqrt(2.0 / math.pi)
    return 0.5 * x * (1.0 + jnp.tanh(c * (x + 0.044715 * x * x * x)))


def _spec(shape):
    zeros = (0,) * len(shape)
    return pl.BlockSpec(shape, lambda i: zeros)


# ------------------------------ Pallas kernels ------------------------------
def layernorm_kernel(x_ref, g_ref, b_ref, o_ref):
    o_ref[...] = _layernorm(x_ref[...], g_ref[...], b_ref[...])


def encoder_layer_kernel(h_ref, wqkv_ref, bqkv_ref, wo_ref, bo_ref,
                         ln1g_ref, ln1b_ref, wi_ref, bi_ref,
                         wo2_ref, bo2_ref, ln2g_ref, ln2b_ref, bias_ref,
                         o_ref, *, B, S, nH, Dh):
    """One full BERT layer, VMEM-resident.  h: (B*S,H).  bias: (B,1,S)."""
    x = h_ref[...]                                                # (B*S, H) f32
    H = nH * Dh

    # fused QKV projection; every head's q/k/v lives in its own 128-lane tile.
    qkv = jnp.dot(x.astype(jnp.bfloat16), wqkv_ref[...],
                  preferred_element_type=jnp.float32) + bqkv_ref[...]

    scale = 1.0 / math.sqrt(Dh)
    attn_rows = []
    for b in range(B):                     # B, nH are tiny & static -> unroll
        r0 = b * S
        brow = bias_ref[b]                 # (1, S) additive key mask
        acc = jnp.zeros((S, H), jnp.float32)
        for hh in range(nH):
            base = 3 * hh * HP
            q = qkv[r0:r0 + S, base:base + HP]                    # (S, HP)
            k = qkv[r0:r0 + S, base + HP:base + 2 * HP]
            v = qkv[r0:r0 + S, base + 2 * HP:base + 3 * HP]
            s = jax.lax.dot_general(
                q.astype(jnp.bfloat16), k.astype(jnp.bfloat16),
                (((1,), (1,)), ((), ())),
                preferred_element_type=jnp.float32)               # (S, S)
            s = s * scale + brow
            m = jnp.max(s, axis=-1, keepdims=True)
            p = jnp.exp(s - m)
            p = p * pl.reciprocal(jnp.sum(p, axis=-1, keepdims=True), approx=True)
            ctx = jnp.dot(p, v, preferred_element_type=jnp.float32)  # (S, HP)
            # fold the output projection in per head (padded rows of Wo are 0)
            acc = acc + jnp.dot(ctx.astype(jnp.bfloat16),
                                wo_ref[hh * HP:(hh + 1) * HP, :],
                                preferred_element_type=jnp.float32)  # (S, H)
        attn_rows.append(acc)

    attn_out = jnp.concatenate(attn_rows, axis=0) + bo_ref[...]   # (B*S, H)
    h1 = _layernorm(x + attn_out, ln1g_ref[...], ln1b_ref[...])

    inter = jnp.dot(h1.astype(jnp.bfloat16), wi_ref[...],
                    preferred_element_type=jnp.float32) + bi_ref[...]
    inter = _gelu(inter)
    ffn = jnp.dot(inter.astype(jnp.bfloat16), wo2_ref[...],
                  preferred_element_type=jnp.float32) + bo2_ref[...]
    o_ref[...] = _layernorm(h1 + ffn, ln2g_ref[...], ln2b_ref[...])


def crf_head_kernel(h_ref, gw_ref, gb_ref, labels_ref, start_ref, end_ref,
                    trans_ref, tags_ref, llh_ref, *, B, S, T):
    """Classifier + CRF Viterbi decode + CRF log-likelihood, fused.

    h: (B*S,H); gw: (H,T) bf16; labels: (B,S) i32; start/end: (1,T);
    trans: (T,T).  T is lane-padded (padded tags carry NEG scores).
    Outputs: tags (B,S) i32, llh (B,1) f32.  All-ones CRF mask.
    """
    em = jnp.dot(h_ref[...].astype(jnp.bfloat16), gw_ref[...],
                 preferred_element_type=jnp.float32) + gb_ref[...]   # (B*S, T)
    labels = labels_ref[...]                                         # (B, S)
    trans = trans_ref[...]                                           # (T, T)
    start = start_ref[...]                                           # (1, T)
    end = end_ref[...]

    # hoisted iotas / broadcasts (reused every unrolled step)
    iota_bt = jax.lax.broadcasted_iota(jnp.int32, (B, T), 1)
    iota3 = jax.lax.broadcasted_iota(jnp.int32, (B, T, T), 1)        # prev-tag
    iota_bs = jax.lax.broadcasted_iota(jnp.int32, (B, S), 1)
    row_b = jax.lax.broadcasted_iota(jnp.int32, (B, B * S), 0)
    row_r = jax.lax.broadcasted_iota(jnp.int32, (B, B * S), 1)
    trans_b = trans[None, :, :]                                      # (1, T, T)

    def em_at(t):   # rows {b*S+t} of em gathered via a one-hot selector matmul
        sel = (row_r == row_b * S + t).astype(jnp.float32)           # (B, B*S)
        return jnp.dot(sel, em, preferred_element_type=jnp.float32)  # (B, T)

    def label_at(t):                                                 # (B, 1)
        return jnp.sum(jnp.where(iota_bs == t, labels, 0), axis=1, keepdims=True)

    # ---------- t = 0 ----------
    em_t = em_at(0)
    score = start + em_t                       # Viterbi scores        (B, T)
    alpha = score                              # forward-algo scores   (B, T)
    oh_prev = (iota_bt == label_at(0)).astype(jnp.float32)
    num = jnp.sum(score * oh_prev, axis=1, keepdims=True)            # (B, 1)

    history = []
    for t in range(1, S):                      # fully unrolled (S static, small)
        em_t = em_at(t)
        # --- Viterbi (emission term is constant over prev tag -> add after max)
        cand = score[:, :, None] + trans_b                           # (B, T, T)
        best = jnp.max(cand, axis=1)                                 # (B, T)
        bp = jnp.min(jnp.where(cand >= best[:, None, :], iota3, T), axis=1)
        history.append(bp)
        score = best + em_t
        # --- forward algorithm (log-sum-exp over prev tag)
        fcand = alpha[:, :, None] + trans_b
        m = jnp.max(fcand, axis=1)                                   # (B, T)
        alpha = m + jnp.log(jnp.sum(jnp.exp(fcand - m[:, None, :]), axis=1)) + em_t
        # --- gold-path (numerator) score via one-hot matmul
        oh_cur = (iota_bt == label_at(t)).astype(jnp.float32)
        trans_row = jnp.dot(oh_prev, trans, preferred_element_type=jnp.float32)
        num = num + jnp.sum((trans_row + em_t) * oh_cur, axis=1, keepdims=True)
        oh_prev = oh_cur

    # ---------- terminate: log-likelihood ----------
    num = num + jnp.sum(end * oh_prev, axis=1, keepdims=True)
    final_f = alpha + end
    mf = jnp.max(final_f, axis=1, keepdims=True)
    den = mf + jnp.log(jnp.sum(jnp.exp(final_f - mf), axis=1, keepdims=True))
    llh_ref[...] = num - den

    # ---------- terminate: Viterbi backtrace ----------
    final_v = score + end
    bl = jnp.max(final_v, axis=1, keepdims=True)
    tag = jnp.min(jnp.where(final_v >= bl, iota_bt, T), axis=1, keepdims=True)
    tags = [None] * S
    tags[S - 1] = tag
    for t in range(S - 2, -1, -1):
        tag = jnp.sum(jnp.where(iota_bt == tag, history[t], 0), axis=1,
                      keepdims=True)
        tags[t] = tag
    out = jnp.zeros((B, S), jnp.int32)
    for t in range(S):
        out = out + jnp.where(iota_bs == t, tags[t], 0)
    tags_ref[...] = out


# ------------------------------ thin wrappers -------------------------------
def emb_layernorm(x, g, b):
    M, H = x.shape
    return pl.pallas_call(
        layernorm_kernel,
        out_shape=jax.ShapeDtypeStruct((M, H), jnp.float32),
        grid=(1,),
        in_specs=[_spec((M, H)), _spec((1, H)), _spec((1, H))],
        out_specs=_spec((M, H)),
    )(x, g.reshape(1, H), b.reshape(1, H))


def encoder_layer(h, lp, mask_bias3, B, S):
    H = HIDDEN
    WQKV_N = NUM_HEADS * 3 * HP
    kern = functools.partial(encoder_layer_kernel, B=B, S=S, nH=NUM_HEADS,
                             Dh=HEAD_DIM)
    return pl.pallas_call(
        kern,
        out_shape=jax.ShapeDtypeStruct((B * S, H), jnp.float32),
        grid=(1,),
        in_specs=[_spec((B * S, H)),
                  _spec((H, WQKV_N)), _spec((1, WQKV_N)),
                  _spec((NUM_HEADS * HP, H)), _spec((1, H)),
                  _spec((1, H)), _spec((1, H)),
                  _spec((H, INTERMEDIATE)), _spec((1, INTERMEDIATE)),
                  _spec((INTERMEDIATE, H)), _spec((1, H)),
                  _spec((1, H)), _spec((1, H)),
                  _spec((B, 1, S))],
        out_specs=_spec((B * S, H)),
    )(h, lp["wqkv"], lp["bqkv"], lp["wo"], lp["bo"], lp["ln1g"], lp["ln1b"],
      lp["wi"], lp["bi"], lp["wo2"], lp["bo2"], lp["ln2g"], lp["ln2b"],
      mask_bias3)


def crf_head(h, labels, gw, gb, start, end, trans, B, S):
    kern = functools.partial(crf_head_kernel, B=B, S=S, T=TP)
    tags, llh = pl.pallas_call(
        kern,
        out_shape=(jax.ShapeDtypeStruct((B, S), jnp.int32),
                   jax.ShapeDtypeStruct((B, 1), jnp.float32)),
        grid=(1,),
        in_specs=[_spec((B * S, HIDDEN)), _spec((HIDDEN, TP)), _spec((1, TP)),
                  _spec((B, S)), _spec((1, TP)), _spec((1, TP)),
                  _spec((TP, TP))],
        out_specs=(_spec((B, S)), _spec((B, 1))),
    )(h, gw, gb, labels.astype(jnp.int32), start, end, trans)
    return tags, llh


# ------------------------ parameter layout / padding -------------------------
def _prep_layer(p):
    """Pad each head's Q/K/V/Wo slice to a full 128-lane tile; cast to bf16."""
    H = HIDDEN
    wcols, bcols = [], []
    for h in range(NUM_HEADS):
        sl = slice(h * HEAD_DIM, (h + 1) * HEAD_DIM)
        for w, b in ((p["q_w"], p["q_b"]), (p["k_w"], p["k_b"]),
                     (p["v_w"], p["v_b"])):
            wcols.append(jnp.pad(w[:, sl], ((0, 0), (0, HP - HEAD_DIM))))
            bcols.append(jnp.pad(b[sl], (0, HP - HEAD_DIM)))
    wqkv = jnp.concatenate(wcols, axis=1).astype(jnp.bfloat16)   # (H, nH*3*HP)
    bqkv = jnp.concatenate(bcols).reshape(1, -1)                 # (1, nH*3*HP)
    wo_blocks = [jnp.pad(p["ao_w"][h * HEAD_DIM:(h + 1) * HEAD_DIM, :],
                         ((0, HP - HEAD_DIM), (0, 0)))
                 for h in range(NUM_HEADS)]
    wo = jnp.concatenate(wo_blocks, axis=0).astype(jnp.bfloat16)  # (nH*HP, H)
    return dict(
        wqkv=wqkv, bqkv=bqkv, wo=wo, bo=p["ao_b"].reshape(1, H),
        ln1g=p["ln1_g"].reshape(1, H), ln1b=p["ln1_b"].reshape(1, H),
        wi=p["i_w"].astype(jnp.bfloat16), bi=p["i_b"].reshape(1, INTERMEDIATE),
        wo2=p["o_w"].astype(jnp.bfloat16), bo2=p["o_b"].reshape(1, H),
        ln2g=p["ln2_g"].reshape(1, H), ln2b=p["ln2_b"].reshape(1, H),
    )


def _prep_crf(params):
    """Pad NUM_LABELS -> TP=128 lanes; padded tags get NEG scores (never win)."""
    pad = TP - NUM_LABELS
    gw = jnp.pad(params["gen_w"], ((0, 0), (0, pad))).astype(jnp.bfloat16)
    gb = jnp.pad(params["gen_b"], (0, pad)).reshape(1, TP)
    start = jnp.pad(params["crf_start"], (0, pad), constant_values=NEG).reshape(1, TP)
    end = jnp.pad(params["crf_end"], (0, pad), constant_values=NEG).reshape(1, TP)
    trans = jnp.pad(params["crf_trans"], ((0, pad), (0, pad)), constant_values=NEG)
    return gw, gb, start, end, trans


# ------------------------------ model forward -------------------------------
@jax.jit
def bert_crf_forward(params, input_ids, attention_mask, labels):
    B, S = input_ids.shape
    H = HIDDEN
    # --- embeddings (gather is plain-JAX glue) ---
    pos_ids = jnp.arange(S)
    h = (params["word_emb"][input_ids]
         + params["pos_emb"][pos_ids][None, :, :]
         + params["type_emb"][0][None, None, :])
    h = emb_layernorm(h.reshape(B * S, H), params["emb_ln_g"], params["emb_ln_b"])

    mask_bias3 = ((1.0 - attention_mask.astype(jnp.float32)) * -10000.0
                  ).reshape(B, 1, S)
    for layer_p in params["layers"]:
        h = encoder_layer(h, _prep_layer(layer_p), mask_bias3, B, S)

    # BertModel's pooled_output is dead code in BERT_CRF.forward -> omitted.
    # bert_dropout: identity (eval mode).

    gw, gb, start, end, trans = _prep_crf(params)
    tags, llh = crf_head(h, labels, gw, gb, start, end, trans, B, S)
    loss = -jnp.mean(llh)                                     # reduction='mean'
    return loss, tags


# ----------------------------- parameter init --------------------------------
def init_params(key):
    n_rand = 7 + 6 * NUM_LAYERS
    keys = jax.random.split(key, n_rand)
    it = iter(range(n_rand))

    def nrm(shape):
        return (jax.random.normal(keys[next(it)], shape) * 0.02).astype(jnp.float32)

    def uni(shape):
        return jax.random.uniform(keys[next(it)], shape, minval=-0.1,
                                  maxval=0.1).astype(jnp.float32)

    params = {
        "word_emb": nrm((VOCAB, HIDDEN)),
        "pos_emb": nrm((MAX_POS, HIDDEN)),
        "type_emb": nrm((2, HIDDEN)),
        "emb_ln_g": jnp.ones((HIDDEN,), jnp.float32),
        "emb_ln_b": jnp.zeros((HIDDEN,), jnp.float32),
        "gen_w": nrm((HIDDEN, NUM_LABELS)),
        "gen_b": jnp.zeros((NUM_LABELS,), jnp.float32),
        "crf_start": uni((NUM_LABELS,)),
        "crf_end": uni((NUM_LABELS,)),
        "crf_trans": uni((NUM_LABELS, NUM_LABELS)),
        "layers": [],
    }
    for _ in range(NUM_LAYERS):
        params["layers"].append({
            "q_w": nrm((HIDDEN, HIDDEN)), "q_b": jnp.zeros((HIDDEN,), jnp.float32),
            "k_w": nrm((HIDDEN, HIDDEN)), "k_b": jnp.zeros((HIDDEN,), jnp.float32),
            "v_w": nrm((HIDDEN, HIDDEN)), "v_b": jnp.zeros((HIDDEN,), jnp.float32),
            "ao_w": nrm((HIDDEN, HIDDEN)), "ao_b": jnp.zeros((HIDDEN,), jnp.float32),
            "ln1_g": jnp.ones((HIDDEN,), jnp.float32),
            "ln1_b": jnp.zeros((HIDDEN,), jnp.float32),
            "i_w": nrm((HIDDEN, INTERMEDIATE)),
            "i_b": jnp.zeros((INTERMEDIATE,), jnp.float32),
            "o_w": nrm((INTERMEDIATE, HIDDEN)),
            "o_b": jnp.zeros((HIDDEN,), jnp.float32),
            "ln2_g": jnp.ones((HIDDEN,), jnp.float32),
            "ln2_b": jnp.zeros((HIDDEN,), jnp.float32),
        })
    return params


# ---------------------------------- main -------------------------------------
if __name__ == "__main__":
    key = jax.random.PRNGKey(0)
    pkey, ikey, lkey = jax.random.split(key, 3)
    params = init_params(pkey)

    input_ids = jax.random.randint(ikey, (BATCH, SEQ), 0, VOCAB, dtype=jnp.int32)
    attention_mask = jnp.ones((BATCH, SEQ), dtype=jnp.int32)
    labels = jax.random.randint(lkey, (BATCH, SEQ), 0, NUM_LABELS, dtype=jnp.int32)

    loss, tags = bert_crf_forward(params, input_ids, attention_mask, labels)
    jax.block_until_ready((loss, tags))
    assert tags.shape == (BATCH, SEQ)
    assert loss.shape == ()
    print("KERNEL_OK")
</pallas_src>

<mosaic_0001>
module attributes {stable_mosaic.version = 11 : i64} {
  func.func @layernorm_kernel(%arg0: i32, %arg1: memref<16x128xf32, #tpu.memory_space<vmem>>, %arg2: memref<1x128xf32, #tpu.memory_space<vmem>>, %arg3: memref<1x128xf32, #tpu.memory_space<vmem>>, %arg4: memref<16x128xf32, #tpu.memory_space<vmem>>) attributes {dimension_semantics = [#tpu.dimension_semantics<arbitrary>], iteration_bounds = array<i64: 1>, scalar_prefetch = 0 : i64, scratch_operands = 0 : i64, tpu.core_type = #tpu.core_type<tc>, window_params = [{pipeline_mode = #tpu.pipeline_mode<synchronous>, transform_indices = @transform_0, window_bounds = array<i64: 16, 128>}, {pipeline_mode = #tpu.pipeline_mode<synchronous>, transform_indices = @transform_1, window_bounds = array<i64: 1, 128>}, {pipeline_mode = #tpu.pipeline_mode<synchronous>, transform_indices = @transform_2, window_bounds = array<i64: 1, 128>}, {pipeline_mode = #tpu.pipeline_mode<synchronous>, transform_indices = @transform_3, window_bounds = array<i64: 16, 128>}]} {
    %c0 = arith.constant 0 : index
    %c0_0 = arith.constant 0 : index
    %0 = vector.load %arg1[%c0, %c0_0] : memref<16x128xf32, #tpu.memory_space<vmem>>, vector<16x128xf32>
    %c0_1 = arith.constant 0 : index
    %c0_2 = arith.constant 0 : index
    %1 = vector.load %arg2[%c0_1, %c0_2] : memref<1x128xf32, #tpu.memory_space<vmem>>, vector<1x128xf32>
    %c0_3 = arith.constant 0 : index
    %c0_4 = arith.constant 0 : index
    %2 = vector.load %arg3[%c0_3, %c0_4] : memref<1x128xf32, #tpu.memory_space<vmem>>, vector<1x128xf32>
    %cst = arith.constant dense<0.000000e+00> : vector<16xf32>
    %3 = vector.multi_reduction <add>, %0, %cst [1] : vector<16x128xf32> to vector<16xf32>
    %4 = vector.shape_cast %3 : vector<16xf32> to vector<16x1xf32>
    %cst_5 = arith.constant 1.280000e+02 : f32
    %5 = vector.broadcast %cst_5 : f32 to vector<16x1xf32>
    %6 = arith.divf %4, %5 : vector<16x1xf32>
    %7 = vector.broadcast %6 : vector<16x1xf32> to vector<16x128xf32>
    %8 = arith.subf %0, %7 : vector<16x128xf32>
    %9 = arith.mulf %8, %8 : vector<16x128xf32>
    %cst_6 = arith.constant dense<0.000000e+00> : vector<16xf32>
    %10 = vector.multi_reduction <add>, %9, %cst_6 [1] : vector<16x128xf32> to vector<16xf32>
    %11 = vector.shape_cast %10 : vector<16xf32> to vector<16x1xf32>
    %cst_7 = arith.constant 1.280000e+02 : f32
    %12 = vector.broadcast %cst_7 : f32 to vector<16x1xf32>
    %13 = arith.divf %11, %12 : vector<16x1xf32>
    %cst_8 = arith.constant 9.99999996E-13 : f32
    %14 = vector.broadcast %cst_8 : f32 to vector<16x1xf32>
    %15 = arith.addf %13, %14 : vector<16x1xf32>
    %16 = math.rsqrt %15 : vector<16x1xf32>
    %17 = vector.broadcast %16 : vector<16x1xf32> to vector<16x128xf32>
    %18 = arith.mulf %8, %17 : vector<16x128xf32>
    %19 = vector.broadcast %1 : vector<1x128xf32> to vector<16x128xf32>
    %20 = arith.mulf %18, %19 : vector<16x128xf32>
    %21 = vector.broadcast %2 : vector<1x128xf32> to vector<16x128xf32>
    %22 = arith.addf %20, %21 : vector<16x128xf32>
    %c0_9 = arith.constant 0 : index
    %c0_10 = arith.constant 0 : index
    %23 = vector.load %arg4[%c0_9, %c0_10] : memref<16x128xf32, #tpu.memory_space<vmem>>, vector<16x128xf32>
    tpu.vector_store %arg4[%c0_9, %c0_10], %22 {strides = array<i32>} : memref<16x128xf32, #tpu.memory_space<vmem>>, vector<16x128xf32>,
    return
  }
  func.func @transform_0(%arg0: i32) -> (i32, i32) {
    %c0_i32 = arith.constant 0 : i32
    %c0_i32_0 = arith.constant 0 : i32
    %c0_i32_1 = arith.constant 0 : i32
    return %c0_i32, %c0_i32_0 : i32, i32
  }
  func.func @transform_1(%arg0: i32) -> (i32, i32) {
    %c0_i32 = arith.constant 0 : i32
    %c0_i32_0 = arith.constant 0 : i32
    %c0_i32_1 = arith.constant 0 : i32
    return %c0_i32, %c0_i32_0 : i32, i32
  }
  func.func @transform_2(%arg0: i32) -> (i32, i32) {
    %c0_i32 = arith.constant 0 : i32
    %c0_i32_0 = arith.constant 0 : i32
    %c0_i32_1 = arith.constant 0 : i32
    return %c0_i32, %c0_i32_0 : i32, i32
  }
  func.func @transform_3(%arg0: i32) -> (i32, i32) {
    %c0_i32 = arith.constant 0 : i32
    %c0_i32_0 = arith.constant 0 : i32
    %c0_i32_1 = arith.constant 0 : i32
    return %c0_i32, %c0_i32_0 : i32, i32
  }
}

module attributes {stable_mosaic.version = 11 : i64} {
  func.func @encoder_layer_kernel(%arg0: i32, %arg1: memref<16x128xf32, #tpu.memory_space<vmem>>, %arg2: memref<128x1536xbf16, #tpu.memory_space<vmem>>, %arg3: memref<1x1536xf32, #tpu.memory_space<vmem>>, %arg4: memref<512x128xbf16, #tpu.memory_space<vmem>>, %arg5: memref<1x128xf32, #tpu.memory_space<vmem>>, %arg6: memref<1x128xf32, #tpu.memory_space<vmem>>, %arg7: memref<1x128xf32, #tpu.memory_space<vmem>>, %arg8: memref<128x256xbf16, #tpu.memory_space<vmem>>, %arg9: memref<1x256xf32, #tpu.memory_space<vmem>>, %arg10: memref<256x128xbf16, #tpu.memory_space<vmem>>, %arg11: memref<1x128xf32, #tpu.memory_space<vmem>>, %arg12: memref<1x128xf32, #tpu.memory_space<vmem>>, %arg13: memref<1x128xf32, #tpu.memory_space<vmem>>, %arg14: memref<2x1x8xf32, #tpu.memory_space<vmem>>, %arg15: memref<16x128xf32, #tpu.memory_space<vmem>>) attributes {dimension_semantics = [#tpu.dimension_semantics<arbitrary>], iteration_bounds = array<i64: 1>, scalar_prefetch = 0 : i64, scratch_operands = 0 : i64, tpu.core_type = #tpu.core_type<tc>, window_params = [{pipeline_mode = #tpu.pipeline_mode<synchronous>, transform_indices = @transform_0, window_bounds = array<i64: 16, 128>}, {pipeline_mode = #tpu.pipeline_mode<synchronous>, transform_indices = @transform_1, window_bounds = array<i64: 128, 1536>}, {pipeline_mode = #tpu.pipeline_mode<synchronous>, transform_indices = @transform_2, window_bounds = array<i64: 1, 1536>}, {pipeline_mode = #tpu.pipeline_mode<synchronous>, transform_indices = @transform_3, window_bounds = array<i64: 512, 128>}, {pipeline_mode = #tpu.pipeline_mode<synchronous>, transform_indices = @transform_4, window_bounds = array<i64: 1, 128>}, {pipeline_mode = #tpu.pipeline_mode<synchronous>, transform_indices = @transform_5, window_bounds = array<i64: 1, 128>}, {pipeline_mode = #tpu.pipeline_mode<synchronous>, transform_indices = @transform_6, window_bounds = array<i64: 1, 128>}, {pipeline_mode = #tpu.pipeline_mode<synchronous>, transform_indices = @transform_7, window_bounds = array<i64: 128, 256>}, {pipeline_mode = #tpu.pipeline_mode<synchronous>, transform_indices = @transform_8, window_bounds = array<i64: 1, 256>}, {pipeline_mode = #tpu.pipeline_mode<synchronous>, transform_indices = @transform_9, window_bounds = array<i64: 256, 128>}, {pipeline_mode = #tpu.pipeline_mode<synchronous>, transform_indices = @transform_10, window_bounds = array<i64: 1, 128>}, {pipeline_mode = #tpu.pipeline_mode<synchronous>, transform_indices = @transform_11, window_bounds = array<i64: 1, 128>}, {pipeline_mode = #tpu.pipeline_mode<synchronous>, transform_indices = @transform_12, window_bounds = array<i64: 1, 128>}, {pipeline_mode = #tpu.pipeline_mode<synchronous>, transform_indices = @transform_13, window_bounds = array<i64: 2, 1, 8>}, {pipeline_mode = #tpu.pipeline_mode<synchronous>, transform_indices = @transform_14, window_bounds = array<i64: 16, 128>}]} {
    %c0 = arith.constant 0 : index
    %c0_0 = arith.constant 0 : index
    %0 = vector.load %arg1[%c0, %c0_0] : memref<16x128xf32, #tpu.memory_space<vmem>>, vector<16x128xf32>
    %1 = arith.truncf %0 : vector<16x128xf32> to vector<16x128xbf16>
    %c0_1 = arith.constant 0 : index
    %c0_2 = arith.constant 0 : index
    %2 = vector.load %arg2[%c0_1, %c0_2] : memref<128x1536xbf16, #tpu.memory_space<vmem>>, vector<128x1536xbf16>
    %cst = arith.constant dense<0.000000e+00> : vector<16x1536xf32>
    %3 = tpu.matmul %1, %2, %cst {dimension_numbers = #tpu.dot_dimension_numbers<[1], [0], [0], [1], [0, 0, 1, 1], [], []>} : vector<16x128xbf16>, vector<128x1536xbf16>, vector<16x1536xf32> -> vector<16x1536xf32>
    %c0_3 = arith.constant 0 : index
    %c0_4 = arith.constant 0 : index
    %4 = vector.load %arg3[%c0_3, %c0_4] : memref<1x1536xf32, #tpu.memory_space<vmem>>, vector<1x1536xf32>
    %5 = vector.broadcast %4 : vector<1x1536xf32> to vector<16x1536xf32>
    %6 = arith.addf %3, %5 : vector<16x1536xf32>
    %c0_5 = arith.constant 0 : index
    %c0_6 = arith.constant 0 : index
    %c0_7 = arith.constant 0 : index
    %7 = vector.load %arg14[%c0_5, %c0_6, %c0_7] : memref<2x1x8xf32, #tpu.memory_space<vmem>>, vector<1x1x8xf32>
    %8 = vector.shape_cast %7 : vector<1x1x8xf32> to vector<1x8xf32>
    %cst_8 = arith.constant 0.000000e+00 : f32
    %9 = vector.broadcast %cst_8 : f32 to vector<8x128xf32>
    %10 = vector.extract_strided_slice %6 {offsets = [0, 0], sizes = [8, 128], strides = [1, 1]} : vector<16x1536xf32> to vector<8x128xf32>
    %11 = vector.extract_strided_slice %6 {offsets = [0, 128], sizes = [8, 128], strides = [1, 1]} : vector<16x1536xf32> to vector<8x128xf32>
    %12 = vector.extract_strided_slice %6 {offsets = [0, 256], sizes = [8, 128], strides = [1, 1]} : vector<16x1536xf32> to vector<8x128xf32>
    %13 = arith.truncf %10 : vector<8x128xf32> to vector<8x128xbf16>
    %14 = arith.truncf %11 : vector<8x128xf32> to vector<8x128xbf16>
    %cst_9 = arith.constant dense<0.000000e+00> : vector<8x8xf32>
    %15 = tpu.matmul %13, %14, %cst_9 {dimension_numbers = #tpu.dot_dimension_numbers<[1], [1], [0], [0], [0, 0, 1, 0], [], []>} : vector<8x128xbf16>, vector<8x128xbf16>, vector<8x8xf32> -> vector<8x8xf32>
    %cst_10 = arith.constant 0.176776692 : f32
    %16 = vector.broadcast %cst_10 : f32 to vector<8x8xf32>
    %17 = arith.mulf %15, %16 : vector<8x8xf32>
    %18 = vector.broadcast %8 : vector<1x8xf32> to vector<8x8xf32>
    %19 = arith.addf %17, %18 : vector<8x8xf32>
    %cst_11 = arith.constant dense<0xFF800000> : vector<8xf32>
    %20 = vector.multi_reduction <maximumf>, %19, %cst_11 [1] : vector<8x8xf32> to vector<8xf32>
    %21 = vector.shape_cast %20 : vector<8xf32> to vector<8x1xf32>
    %22 = vector.broadcast %21 : vector<8x1xf32> to vector<8x8xf32>
    %23 = arith.subf %19, %22 : vector<8x8xf32>
    %24 = math.exp %23 : vector<8x8xf32>
    %cst_12 = arith.constant dense<0.000000e+00> : vector<8xf32>
    %25 = vector.multi_reduction <add>, %24, %cst_12 [1] : vector<8x8xf32> to vector<8xf32>
    %26 = vector.shape_cast %25 : vector<8xf32> to vector<8x1xf32>
    %27 = tpu.reciprocal %26 {approx = true} : vector<8x1xf32> -> vector<8x1xf32>
    %28 = vector.broadcast %27 : vector<8x1xf32> to vector<8x8xf32>
    %29 = arith.mulf %24, %28 : vector<8x8xf32>
    %cst_13 = arith.constant dense<0.000000e+00> : vector<8x128xf32>
    %30 = tpu.matmul %29, %12, %cst_13 {dimension_numbers = #tpu.dot_dimension_numbers<[1], [0], [0], [1], [0, 0, 1, 1], [], []>} : vector<8x8xf32>, vector<8x128xf32>, vector<8x128xf32> -> vector<8x128xf32>
    %31 = arith.truncf %30 : vector<8x128xf32> to vector<8x128xbf16>
    %c0_14 = arith.constant 0 : index
    %c0_15 = arith.constant 0 : index
    %32 = vector.load %arg4[%c0_14, %c0_15] : memref<512x128xbf16, #tpu.memory_space<vmem>>, vector<128x128xbf16>
    %cst_16 = arith.constant dense<0.000000e+00> : vector<8x128xf32>
    %33 = tpu.matmul %31, %32, %cst_16 {dimension_numbers = #tpu.dot_dimension_numbers<[1], [0], [0], [1], [0, 0, 1, 1], [], []>} : vector<8x128xbf16>, vector<128x128xbf16>, vector<8x128xf32> -> vector<8x128xf32>
    %34 = arith.addf %9, %33 : vector<8x128xf32>
    %35 = vector.extract_strided_slice %6 {offsets = [0, 384], sizes = [8, 128], strides = [1, 1]} : vector<16x1536xf32> to vector<8x128xf32>
    %36 = vector.extract_strided_slice %6 {offsets = [0, 512], sizes = [8, 128], strides = [1, 1]} : vector<16x1536xf32> to vector<8x128xf32>
    %37 = vector.extract_strided_slice %6 {offsets = [0, 640], sizes = [8, 128], strides = [1, 1]} : vector<16x1536xf32> to vector<8x128xf32>
    %38 = arith.truncf %35 : vector<8x128xf32> to vector<8x128xbf16>
    %39 = arith.truncf %36 : vector<8x128xf32> to vector<8x128xbf16>
    %cst_17 = arith.constant dense<0.000000e+00> : vector<8x8xf32>
    %40 = tpu.matmul %38, %39, %cst_17 {dimension_numbers = #tpu.dot_dimension_numbers<[1], [1], [0], [0], [0, 0, 1, 0], [], []>} : vector<8x128xbf16>, vector<8x128xbf16>, vector<8x8xf32> -> vector<8x8xf32>
    %cst_18 = arith.constant 0.176776692 : f32
    %41 = vector.broadcast %cst_18 : f32 to vector<8x8xf32>
    %42 = arith.mulf %40, %41 : vector<8x8xf32>
    %43 = vector.broadcast %8 : vector<1x8xf32> to vector<8x8xf32>
    %44 = arith.addf %42, %43 : vector<8x8xf32>
    %cst_19 = arith.constant dense<0xFF800000> : vector<8xf32>
    %45 = vector.multi_reduction <maximumf>, %44, %cst_19 [1] : vector<8x8xf32> to vector<8xf32>
    %46 = vector.shape_cast %45 : vector<8xf32> to vector<8x1xf32>
    %47 = vector.broadcast %46 : vector<8x1xf32> to vector<8x8xf32>
    %48 = arith.subf %44, %47 : vector<8x8xf32>
    %49 = math.exp %48 : vector<8x8xf32>
    %cst_20 = arith.constant dense<0.000000e+00> : vector<8xf32>
    %50 = vector.multi_reduction <add>, %49, %cst_20 [1] : vector<8x8xf32> to vector<8xf32>
    %51 = vector.shape_cast %50 : vector<8xf32> to vector<8x1xf32>
    %52 = tpu.reciprocal %51 {approx = true} : vector<8x1xf32> -> vector<8x1xf32>
    %53 = vector.broadcast %52 : vector<8x1xf32> to vector<8x8xf32>
    %54 = arith.mulf %49, %53 : vector<8x8xf32>
    %cst_21 = arith.constant dense<0.000000e+00> : vector<8x128xf32>
    %55 = tpu.matmul %54, %37, %cst_21 {dimension_numbers = #tpu.dot_dimension_numbers<[1], [0], [0], [1], [0, 0, 1, 1], [], []>} : vector<8x8xf32>, vector<8x128xf32>, vector<8x128xf32> -> vector<8x128xf32>
    %56 = arith.truncf %55 : vector<8x128xf32> to vector<8x128xbf16>
    %c128 = arith.constant 128 : index
    %c0_22 = arith.constant 0 : index
    %57 = vector.load %arg4[%c128, %c0_22] : memref<512x128xbf16, #tpu.memory_space<vmem>>, vector<128x128xbf16>
    %cst_23 = arith.constant dense<0.000000e+00> : vector<8x128xf32>
    %58 = tpu.matmul %56, %57, %cst_23 {dimension_numbers = #tpu.dot_dimension_numbers<[1], [0], [0], [1], [0, 0, 1, 1], [], []>} : vector<8x128xbf16>, vector<128x128xbf16>, vector<8x128xf32> -> vector<8x128xf32>
    %59 = arith.addf %34, %58 : vector<8x128xf32>
    %60 = vector.extract_strided_slice %6 {offsets = [0, 768], sizes = [8, 128], strides = [1, 1]} : vector<16x1536xf32> to vector<8x128xf32>
    %61 = vector.extract_strided_slice %6 {offsets = [0, 896], sizes = [8, 128], strides = [1, 1]} : vector<16x1536xf32> to vector<8x128xf32>
    %62 = vector.extract_strided_slice %6 {offsets = [0, 1024], sizes = [8, 128], strides = [1, 1]} : vector<16x1536xf32> to vector<8x128xf32>
    %63 = arith.truncf %60 : vector<8x128xf32> to vector<8x128xbf16>
    %64 = arith.truncf %61 : vector<8x128xf32> to vector<8x128xbf16>
    %cst_24 = arith.constant dense<0.000000e+00> : vector<8x8xf32>
    %65 = tpu.matmul %63, %64, %cst_24 {dimension_numbers = #tpu.dot_dimension_numbers<[1], [1], [0], [0], [0, 0, 1, 0], [], []>} : vector<8x128xbf16>, vector<8x128xbf16>, vector<8x8xf32> -> vector<8x8xf32>
    %cst_25 = arith.constant 0.176776692 : f32
    %66 = vector.broadcast %cst_25 : f32 to vector<8x8xf32>
    %67 = arith.mulf %65, %66 : vector<8x8xf32>
    %68 = vector.broadcast %8 : vector<1x8xf32> to vector<8x8xf32>
    %69 = arith.addf %67, %68 : vector<8x8xf32>
    %cst_26 = arith.constant dense<0xFF800000> : vector<8xf32>
    %70 = vector.multi_reduction <maximumf>, %69, %cst_26 [1] : vector<8x8xf32> to vector<8xf32>
    %71 = vector.shape_cast %70 : vector<8xf32> to vector<8x1xf32>
    %72 = vector.broadcast %71 : vector<8x1xf32> to vector<8x8xf32>
    %73 = arith.subf %69, %72 : vector<8x8xf32>
    %74 = math.exp %73 : vector<8x8xf32>
    %cst_27 = arith.constant dense<0.000000e+00> : vector<8xf32>
    %75 = vector.multi_reduction <add>, %74, %cst_27 [1] : vector<8x8xf32> to vector<8xf32>
    %76 = vector.shape_cast %75 : vector<8xf32> to vector<8x1xf32>
    %77 = tpu.reciprocal %76 {approx = true} : vector<8x1xf32> -> vector<8x1xf32>
    %78 = vector.broadcast %77 : vector<8x1xf32> to vector<8x8xf32>
    %79 = arith.mulf %74, %78 : vector<8x8xf32>
    %cst_28 = arith.constant dense<0.000000e+00> : vector<8x128xf32>
    %80 = tpu.matmul %79, %62, %cst_28 {dimension_numbers = #tpu.dot_dimension_numbers<[1], [0], [0], [1], [0, 0, 1, 1], [], []>} : vector<8x8xf32>, vector<8x128xf32>, vector<8x128xf32> -> vector<8x128xf32>
    %81 = arith.truncf %80 : vector<8x128xf32> to vector<8x128xbf16>
    %c256 = arith.constant 256 : index
    %c0_29 = arith.constant 0 : index
    %82 = vector.load %arg4[%c256, %c0_29] : memref<512x128xbf16, #tpu.memory_space<vmem>>, vector<128x128xbf16>
    %cst_30 = arith.constant dense<0.000000e+00> : vector<8x128xf32>
    %83 = tpu.matmul %81, %82, %cst_30 {dimension_numbers = #tpu.dot_dimension_numbers<[1], [0], [0], [1], [0, 0, 1, 1], [], []>} : vector<8x128xbf16>, vector<128x128xbf16>, vector<8x128xf32> -> vector<8x128xf32>
    %84 = arith.addf %59, %83 : vector<8x128xf32>
    %85 = vector.extract_strided_slice %6 {offsets = [0, 1152], sizes = [8, 128], strides = [1, 1]} : vector<16x1536xf32> to vector<8x128xf32>
    %86 = vector.extract_strided_slice %6 {offsets = [0, 1280], sizes = [8, 128], strides = [1, 1]} : vector<16x1536xf32> to vector<8x128xf32>
    %87 = vector.extract_strided_slice %6 {offsets = [0, 1408], sizes = [8, 128], strides = [1, 1]} : vector<16x1536xf32> to vector<8x128xf32>
    %88 = arith.truncf %85 : vector<8x128xf32> to vector<8x128xbf16>
    %89 = arith.truncf %86 : vector<8x128xf32> to vector<8x128xbf16>
    %cst_31 = arith.constant dense<0.000000e+00> : vector<8x8xf32>
    %90 = tpu.matmul %88, %89, %cst_31 {dimension_numbers = #tpu.dot_dimension_numbers<[1], [1], [0], [0], [0, 0, 1, 0], [], []>} : vector<8x128xbf16>, vector<8x128xbf16>, vector<8x8xf32> -> vector<8x8xf32>
    %cst_32 = arith.constant 0.176776692 : f32
    %91 = vector.broadcast %cst_32 : f32 to vector<8x8xf32>
    %92 = arith.mulf %90, %91 : vector<8x8xf32>
    %93 = vector.broadcast %8 : vector<1x8xf32> to vector<8x8xf32>
    %94 = arith.addf %92, %93 : vector<8x8xf32>
    %cst_33 = arith.constant dense<0xFF800000> : vector<8xf32>
    %95 = vector.multi_reduction <maximumf>, %94, %cst_33 [1] : vector<8x8xf32> to vector<8xf32>
    %96 = vector.shape_cast %95 : vector<8xf32> to vector<8x1xf32>
    %97 = vector.broadcast %96 : vector<8x1xf32> to vector<8x8xf32>
    %98 = arith.subf %94, %97 : vector<8x8xf32>
    %99 = math.exp %98 : vector<8x8xf32>
    %cst_34 = arith.constant dense<0.000000e+00> : vector<8xf32>
    %100 = vector.multi_reduction <add>, %99, %cst_34 [1] : vector<8x8xf32> to vector<8xf32>
    %101 = vector.shape_cast %100 : vector<8xf32> to vector<8x1xf32>
    %102 = tpu.reciprocal %101 {approx = true} : vector<8x1xf32> -> vector<8x1xf32>
    %103 = vector.broadcast %102 : vector<8x1xf32> to vector<8x8xf32>
    %104 = arith.mulf %99, %103 : vector<8x8xf32>
    %cst_35 = arith.constant dense<0.000000e+00> : vector<8x128xf32>
    %105 = tpu.matmul %104, %87, %cst_35 {dimension_numbers = #tpu.dot_dimension_numbers<[1], [0], [0], [1], [0, 0, 1, 1], [], []>} : vector<8x8xf32>, vector<8x128xf32>, vector<8x128xf32> -> vector<8x128xf32>
    %106 = arith.truncf %105 : vector<8x128xf32> to vector<8x128xbf16>
    %c384 = arith.constant 384 : index
    %c0_36 = arith.constant 0 : index
    %107 = vector.load %arg4[%c384, %c0_36] : memref<512x128xbf16, #tpu.memory_space<vmem>>, vector<128x128xbf16>
    %cst_37 = arith.constant dense<0.000000e+00> : vector<8x128xf32>
    %108 = tpu.matmul %106, %107, %cst_37 {dimension_numbers = #tpu.dot_dimension_numbers<[1], [0], [0], [1], [0, 0, 1, 1], [], []>} : vector<8x128xbf16>, vector<128x128xbf16>, vector<8x128xf32> -> vector<8x128xf32>
    %109 = arith.addf %84, %108 : vector<8x128xf32>
    %c1 = arith.constant 1 : index
    %c0_38 = arith.constant 0 : index
    %c0_39 = arith.constant 0 : index
    %110 = vector.load %arg14[%c1, %c0_38, %c0_39] : memref<2x1x8xf32, #tpu.memory_space<vmem>>, vector<1x1x8xf32>
    %111 = vector.shape_cast %110 : vector<1x1x8xf32> to vector<1x8xf32>
    %cst_40 = arith.constant 0.000000e+00 : f32
    %112 = vector.broadcast %cst_40 : f32 to vector<8x128xf32>
    %113 = vector.extract_strided_slice %6 {offsets = [8, 0], sizes = [8, 128], strides = [1, 1]} : vector<16x1536xf32> to vector<8x128xf32>
    %114 = vector.extract_strided_slice %6 {offsets = [8, 128], sizes = [8, 128], strides = [1, 1]} : vector<16x1536xf32> to vector<8x128xf32>
    %115 = vector.extract_strided_slice %6 {offsets = [8, 256], sizes = [8, 128], strides = [1, 1]} : vector<16x1536xf32> to vector<8x128xf32>
    %116 = arith.truncf %113 : vector<8x128xf32> to vector<8x128xbf16>
    %117 = arith.truncf %114 : vector<8x128xf32> to vector<8x128xbf16>
    %cst_41 = arith.constant dense<0.000000e+00> : vector<8x8xf32>
    %118 = tpu.matmul %116, %117, %cst_41 {dimension_numbers = #tpu.dot_dimension_numbers<[1], [1], [0], [0], [0, 0, 1, 0], [], []>} : vector<8x128xbf16>, vector<8x128xbf16>, vector<8x8xf32> -> vector<8x8xf32>
    %cst_42 = arith.constant 0.176776692 : f32
    %119 = vector.broadcast %cst_42 : f32 to vector<8x8xf32>
    %120 = arith.mulf %118, %119 : vector<8x8xf32>
    %121 = vector.broadcast %111 : vector<1x8xf32> to vector<8x8xf32>
    %122 = arith.addf %120, %121 : vector<8x8xf32>
    %cst_43 = arith.constant dense<0xFF800000> : vector<8xf32>
    %123 = vector.multi_reduction <maximumf>, %122, %cst_43 [1] : vector<8x8xf32> to vector<8xf32>
    %124 = vector.shape_cast %123 : vector<8xf32> to vector<8x1xf32>
    %125 = vector.broadcast %124 : vector<8x1xf32> to vector<8x8xf32>
    %126 = arith.subf %122, %125 : vector<8x8xf32>
    %127 = math.exp %126 : vector<8x8xf32>
    %cst_44 = arith.constant dense<0.000000e+00> : vector<8xf32>
    %128 = vector.multi_reduction <add>, %127, %cst_44 [1] : vector<8x8xf32> to vector<8xf32>
    %129 = vector.shape_cast %128 : vector<8xf32> to vector<8x1xf32>
    %130 = tpu.reciprocal %129 {approx = true} : vector<8x1xf32> -> vector<8x1xf32>
    %131 = vector.broadcast %130 : vector<8x1xf32> to vector<8x8xf32>
    %132 = arith.mulf %127, %131 : vector<8x8xf32>
    %cst_45 = arith.constant dense<0.000000e+00> : vector<8x128xf32>
    %133 = tpu.matmul %132, %115, %cst_45 {dimension_numbers = #tpu.dot_dimension_numbers<[1], [0], [0], [1], [0, 0, 1, 1], [], []>} : vector<8x8xf32>, vector<8x128xf32>, vector<8x128xf32> -> vector<8x128xf32>
    %134 = arith.truncf %133 : vector<8x128xf32> to vector<8x128xbf16>
    %c0_46 = arith.constant 0 : index
    %c0_47 = arith.constant 0 : index
    %135 = vector.load %arg4[%c0_46, %c0_47] : memref<512x128xbf16, #tpu.memory_space<vmem>>, vector<128x128xbf16>
    %cst_48 = arith.constant dense<0.000000e+00> : vector<8x128xf32>
    %136 = tpu.matmul %134, %135, %cst_48 {dimension_numbers = #tpu.dot_dimension_numbers<[1], [0], [0], [1], [0, 0, 1, 1], [], []>} : vector<8x128xbf16>, vector<128x128xbf16>, vector<8x128xf32> -> vector<8x128xf32>
    %137 = arith.addf %112, %136 : vector<8x128xf32>
    %138 = vector.extract_strided_slice %6 {offsets = [8, 384], sizes = [8, 128], strides = [1, 1]} : vector<16x1536xf32> to vector<8x128xf32>
    %139 = vector.extract_strided_slice %6 {offsets = [8, 512], sizes = [8, 128], strides = [1, 1]} : vector<16x1536xf32> to vector<8x128xf32>
    %140 = vector.extract_strided_slice %6 {offsets = [8, 640], sizes = [8, 128], strides = [1, 1]} : vector<16x1536xf32> to vector<8x128xf32>
    %141 = arith.truncf %138 : vector<8x128xf32> to vector<8x128xbf16>
    %142 = arith.truncf %139 : vector<8x128xf32> to vector<8x128xbf16>
    %cst_49 = arith.constant dense<0.000000e+00> : vector<8x8xf32>
    %143 = tpu.matmul %141, %142, %cst_49 {dimension_numbers = #tpu.dot_dimension_numbers<[1], [1], [0], [0], [0, 0, 1, 0], [], []>} : vector<8x128xbf16>, vector<8x128xbf16>, vector<8x8xf32> -> vector<8x8xf32>
    %cst_50 = arith.constant 0.176776692 : f32
    %144 = vector.broadcast %cst_50 : f32 to vector<8x8xf32>
    %145 = arith.mulf %143, %144 : vector<8x8xf32>
    %146 = vector.broadcast %111 : vector<1x8xf32> to vector<8x8xf32>
    %147 = arith.addf %145, %146 : vector<8x8xf32>
    %cst_51 = arith.constant dense<0xFF800000> : vector<8xf32>
    %148 = vector.multi_reduction <maximumf>, %147, %cst_51 [1] : vector<8x8xf32> to vector<8xf32>
    %149 = vector.shape_cast %148 : vector<8xf32> to vector<8x1xf32>
    %150 = vector.broadcast %149 : vector<8x1xf32> to vector<8x8xf32>
    %151 = arith.subf %147, %150 : vector<8x8xf32>
    %152 = math.exp %151 : vector<8x8xf32>
    %cst_52 = arith.constant dense<0.000000e+00> : vector<8xf32>
    %153 = vector.multi_reduction <add>, %152, %cst_52 [1] : vector<8x8xf32> to vector<8xf32>
    %154 = vector.shape_cast %153 : vector<8xf32> to vector<8x1xf32>
    %155 = tpu.reciprocal %154 {approx = true} : vector<8x1xf32> -> vector<8x1xf32>
    %156 = vector.broadcast %155 : vector<8x1xf32> to vector<8x8xf32>
    %157 = arith.mulf %152, %156 : vector<8x8xf32>
    %cst_53 = arith.constant dense<0.000000e+00> : vector<8x128xf32>
    %158 = tpu.matmul %157, %140, %cst_53 {dimension_numbers = #tpu.dot_dimension_numbers<[1], [0], [0], [1], [0, 0, 1, 1], [], []>} : vector<8x8xf32>, vector<8x128xf32>, vector<8x128xf32> -> vector<8x128xf32>
    %159 = arith.truncf %158 : vector<8x128xf32> to vector<8x128xbf16>
    %c128_54 = arith.constant 128 : index
    %c0_55 = arith.constant 0 : index
    %160 = vector.load %arg4[%c128_54, %c0_55] : memref<512x128xbf16, #tpu.memory_space<vmem>>, vector<128x128xbf16>
    %cst_56 = arith.constant dense<0.000000e+00> : vector<8x128xf32>
    %161 = tpu.matmul %159, %160, %cst_56 {dimension_numbers = #tpu.dot_dimension_numbers<[1], [0], [0], [1], [0, 0, 1, 1], [], []>} : vector<8x128xbf16>, vector<128x128xbf16>, vector<8x128xf32> -> vector<8x128xf32>
    %162 = arith.addf %137, %161 : vector<8x128xf32>
    %163 = vector.extract_strided_slice %6 {offsets = [8, 768], sizes = [8, 128], strides = [1, 1]} : vector<16x1536xf32> to vector<8x128xf32>
    %164 = vector.extract_strided_slice %6 {offsets = [8, 896], sizes = [8, 128], strides = [1, 1]} : vector<16x1536xf32> to vector<8x128xf32>
    %165 = vector.extract_strided_slice %6 {offsets = [8, 1024], sizes = [8, 128], strides = [1, 1]} : vector<16x1536xf32> to vector<8x128xf32>
    %166 = arith.truncf %163 : vector<8x128xf32> to vector<8x128xbf16>
    %167 = arith.truncf %164 : vector<8x128xf32> to vector<8x128xbf16>
    %cst_57 = arith.constant dense<0.000000e+00> : vector<8x8xf32>
    %168 = tpu.matmul %166, %167, %cst_57 {dimension_numbers = #tpu.dot_dimension_numbers<[1], [1], [0], [0], [0, 0, 1, 0], [], []>} : vector<8x128xbf16>, vector<8x128xbf16>, vector<8x8xf32> -> vector<8x8xf32>
    %cst_58 = arith.constant 0.176776692 : f32
    %169 = vector.broadcast %cst_58 : f32 to vector<8x8xf32>
    %170 = arith.mulf %168, %169 : vector<8x8xf32>
    %171 = vector.broadcast %111 : vector<1x8xf32> to vector<8x8xf32>
    %172 = arith.addf %170, %171 : vector<8x8xf32>
    %cst_59 = arith.constant dense<0xFF800000> : vector<8xf32>
    %173 = vector.multi_reduction <maximumf>, %172, %cst_59 [1] : vector<8x8xf32> to vector<8xf32>
    %174 = vector.shape_cast %173 : vector<8xf32> to vector<8x1xf32>
    %175 = vector.broadcast %174 : vector<8x1xf32> to vector<8x8xf32>
    %176 = arith.subf %172, %175 : vector<8x8xf32>
    %177 = math.exp %176 : vector<8x8xf32>
    %cst_60 = arith.constant dense<0.000000e+00> : vector<8xf32>
    %178 = vector.multi_reduction <add>, %177, %cst_60 [1] : vector<8x8xf32> to vector<8xf32>
    %179 = vector.shape_cast %178 : vector<8xf32> to vector<8x1xf32>
    %180 = tpu.reciprocal %179 {approx = true} : vector<8x1xf32> -> vector<8x1xf32>
    %181 = vector.broadcast %180 : vector<8x1xf32> to vector<8x8xf32>
    %182 = arith.mulf %177, %181 : vector<8x8xf32>
    %cst_61 = arith.constant dense<0.000000e+00> : vector<8x128xf32>
    %183 = tpu.matmul %182, %165, %cst_61 {dimension_numbers = #tpu.dot_dimension_numbers<[1], [0], [0], [1], [0, 0, 1, 1], [], []>} : vector<8x8xf32>, vector<8x128xf32>, vector<8x128xf32> -> vector<8x128xf32>
    %184 = arith.truncf %183 : vector<8x128xf32> to vector<8x128xbf16>
    %c256_62 = arith.constant 256 : index
    %c0_63 = arith.constant 0 : index
    %185 = vector.load %arg4[%c256_62, %c0_63] : memref<512x128xbf16, #tpu.memory_space<vmem>>, vector<128x128xbf16>
    %cst_64 = arith.constant dense<0.000000e+00> : vector<8x128xf32>
    %186 = tpu.matmul %184, %185, %cst_64 {dimension_numbers = #tpu.dot_dimension_numbers<[1], [0], [0], [1], [0, 0, 1, 1], [], []>} : vector<8x128xbf16>, vector<128x128xbf16>, vector<8x128xf32> -> vector<8x128xf32>
    %187 = arith.addf %162, %186 : vector<8x128xf32>
    %188 = vector.extract_strided_slice %6 {offsets = [8, 1152], sizes = [8, 128], strides = [1, 1]} : vector<16x1536xf32> to vector<8x128xf32>
    %189 = vector.extract_strided_slice %6 {offsets = [8, 1280], sizes = [8, 128], strides = [1, 1]} : vector<16x1536xf32> to vector<8x128xf32>
    %190 = vector.extract_strided_slice %6 {offsets = [8, 1408], sizes = [8, 128], strides = [1, 1]} : vector<16x1536xf32> to vector<8x128xf32>
    %191 = arith.truncf %188 : vector<8x128xf32> to vector<8x128xbf16>
    %192 = arith.truncf %189 : vector<8x128xf32> to vector<8x128xbf16>
    %cst_65 = arith.constant dense<0.000000e+00> : vector<8x8xf32>
    %193 = tpu.matmul %191, %192, %cst_65 {dimension_numbers = #tpu.dot_dimension_numbers<[1], [1], [0], [0], [0, 0, 1, 0], [], []>} : vector<8x128xbf16>, vector<8x128xbf16>, vector<8x8xf32> -> vector<8x8xf32>
    %cst_66 = arith.constant 0.176776692 : f32
    %194 = vector.broadcast %cst_66 : f32 to vector<8x8xf32>
    %195 = arith.mulf %193, %194 : vector<8x8xf32>
    %196 = vector.broadcast %111 : vector<1x8xf32> to vector<8x8xf32>
    %197 = arith.addf %195, %196 : vector<8x8xf32>
    %cst_67 = arith.constant dense<0xFF800000> : vector<8xf32>
    %198 = vector.multi_reduction <maximumf>, %197, %cst_67 [1] : vector<8x8xf32> to vector<8xf32>
    %199 = vector.shape_cast %198 : vector<8xf32> to vector<8x1xf32>
    %200 = vector.broadcast %199 : vector<8x1xf32> to vector<8x8xf32>
    %201 = arith.subf %197, %200 : vector<8x8xf32>
    %202 = math.exp %201 : vector<8x8xf32>
    %cst_68 = arith.constant dense<0.000000e+00> : vector<8xf32>
    %203 = vector.multi_reduction <add>, %202, %cst_68 [1] : vector<8x8xf32> to vector<8xf32>
    %204 = vector.shape_cast %203 : vector<8xf32> to vector<8x1xf32>
    %205 = tpu.reciprocal %204 {approx = true} : vector<8x1xf32> -> vector<8x1xf32>
    %206 = vector.broadcast %205 : vector<8x1xf32> to vector<8x8xf32>
    %207 = arith.mulf %202, %206 : vector<8x8xf32>
    %cst_69 = arith.constant dense<0.000000e+00> : vector<8x128xf32>
    %208 = tpu.matmul %207, %190, %cst_69 {dimension_numbers = #tpu.dot_dimension_numbers<[1], [0], [0], [1], [0, 0, 1, 1], [], []>} : vector<8x8xf32>, vector<8x128xf32>, vector<8x128xf32> -> vector<8x128xf32>
    %209 = arith.truncf %208 : vector<8x128xf32> to vector<8x128xbf16>
    %c384_70 = arith.constant 384 : index
    %c0_71 = arith.constant 0 : index
    %210 = vector.load %arg4[%c384_70, %c0_71] : memref<512x128xbf16, #tpu.memory_space<vmem>>, vector<128x128xbf16>
    %cst_72 = arith.constant dense<0.000000e+00> : vector<8x128xf32>
    %211 = tpu.matmul %209, %210, %cst_72 {dimension_numbers = #tpu.dot_dimension_numbers<[1], [0], [0], [1], [0, 0, 1, 1], [], []>} : vector<8x128xbf16>, vector<128x128xbf16>, vector<8x128xf32> -> vector<8x128xf32>
    %212 = arith.addf %187, %211 : vector<8x128xf32>
    %213 = tpu.concatenate %109, %212 in 0 : vector<8x128xf32>, vector<8x128xf32> -> vector<16x128xf32>
    %c0_73 = arith.constant 0 : index
    %c0_74 = arith.constant 0 : index
    %214 = vector.load %arg5[%c0_73, %c0_74] : memref<1x128xf32, #tpu.memory_space<vmem>>, vector<1x128xf32>
    %215 = vector.broadcast %214 : vector<1x128xf32> to vector<16x128xf32>
    %216 = arith.addf %213, %215 : vector<16x128xf32>
    %217 = arith.addf %0, %216 : vector<16x128xf32>
    %c0_75 = arith.constant 0 : index
    %c0_76 = arith.constant 0 : index
    %218 = vector.load %arg6[%c0_75, %c0_76] : memref<1x128xf32, #tpu.memory_space<vmem>>, vector<1x128xf32>
    %c0_77 = arith.constant 0 : index
    %c0_78 = arith.constant 0 : index
    %219 = vector.load %arg7[%c0_77, %c0_78] : memref<1x128xf32, #tpu.memory_space<vmem>>, vector<1x128xf32>
    %cst_79 = arith.constant dense<0.000000e+00> : vector<16xf32>
    %220 = vector.multi_reduction <add>, %217, %cst_79 [1] : vector<16x128xf32> to vector<16xf32>
    %221 = vector.shape_cast %220 : vector<16xf32> to vector<16x1xf32>
    %cst_80 = arith.constant 1.280000e+02 : f32
    %222 = vector.broadcast %cst_80 : f32 to vector<16x1xf32>
    %223 = arith.divf %221, %222 : vector<16x1xf32>
    %224 = vector.broadcast %223 : vector<16x1xf32> to vector<16x128xf32>
    %225 = arith.subf %217, %224 : vector<16x128xf32>
    %226 = arith.mulf %225, %225 : vector<16x128xf32>
    %cst_81 = arith.constant dense<0.000000e+00> : vector<16xf32>
    %227 = vector.multi_reduction <add>, %226, %cst_81 [1] : vector<16x128xf32> to vector<16xf32>
    %228 = vector.shape_cast %227 : vector<16xf32> to vector<16x1xf32>
    %cst_82 = arith.constant 1.280000e+02 : f32
    %229 = vector.broadcast %cst_82 : f32 to vector<16x1xf32>
    %230 = arith.divf %228, %229 : vector<16x1xf32>
    %cst_83 = arith.constant 9.99999996E-13 : f32
    %231 = vector.broadcast %cst_83 : f32 to vector<16x1xf32>
    %232 = arith.addf %230, %231 : vector<16x1xf32>
    %233 = math.rsqrt %232 : vector<16x1xf32>
    %234 = vector.broadcast %233 : vector<16x1xf32> to vector<16x128xf32>
    %235 = arith.mulf %225, %234 : vector<16x128xf32>
    %236 = vector.broadcast %218 : vector<1x128xf32> to vector<16x128xf32>
    %237 = arith.mulf %235, %236 : vector<16x128xf32>
    %238 = vector.broadcast %219 : vector<1x128xf32> to vector<16x128xf32>
    %239 = arith.addf %237, %238 : vector<16x128xf32>
    %240 = arith.truncf %239 : vector<16x128xf32> to vector<16x128xbf16>
    %c0_84 = arith.constant 0 : index
    %c0_85 = arith.constant 0 : index
    %241 = vector.load %arg8[%c0_84, %c0_85] : memref<128x256xbf16, #tpu.memory_space<vmem>>, vector<128x256xbf16>
    %cst_86 = arith.constant dense<0.000000e+00> : vector<16x256xf32>
    %242 = tpu.matmul %240, %241, %cst_86 {dimension_numbers = #tpu.dot_dimension_numbers<[1], [0], [0], [1], [0, 0, 1, 1], [], []>} : vector<16x128xbf16>, vector<128x256xbf16>, vector<16x256xf32> -> vector<16x256xf32>
    %c0_87 = arith.constant 0 : index
    %c0_88 = arith.constant 0 : index
    %243 = vector.load %arg9[%c0_87, %c0_88] : memref<1x256xf32, #tpu.memory_space<vmem>>, vector<1x256xf32>
    %244 = vector.broadcast %243 : vector<1x256xf32> to vector<16x256xf32>
    %245 = arith.addf %242, %244 : vector<16x256xf32>
    %cst_89 = arith.constant 5.000000e-01 : f32
    %246 = vector.broadcast %cst_89 : f32 to vector<16x256xf32>
    %247 = arith.mulf %246, %245 : vector<16x256xf32>
    %cst_90 = arith.constant 4.471500e-02 : f32
    %248 = vector.broadcast %cst_90 : f32 to vector<16x256xf32>
    %249 = arith.mulf %248, %245 : vector<16x256xf32>
    %250 = arith.mulf %249, %245 : vector<16x256xf32>
    %251 = arith.mulf %250, %245 : vector<16x256xf32>
    %252 = arith.addf %245, %251 : vector<16x256xf32>
    %cst_91 = arith.constant 0.797884583 : f32
    %253 = vector.broadcast %cst_91 : f32 to vector<16x256xf32>
    %254 = arith.mulf %253, %252 : vector<16x256xf32>
    %255 = math.tanh %254 : vector<16x256xf32>
    %cst_92 = arith.constant 1.000000e+00 : f32
    %256 = vector.broadcast %cst_92 : f32 to vector<16x256xf32>
    %257 = arith.addf %256, %255 : vector<16x256xf32>
    %258 = arith.mulf %247, %257 : vector<16x256xf32>
    %259 = arith.truncf %258 : vector<16x256xf32> to vector<16x256xbf16>
    %c0_93 = arith.constant 0 : index
    %c0_94 = arith.constant 0 : index
    %260 = vector.load %arg10[%c0_93, %c0_94] : memref<256x128xbf16, #tpu.memory_space<vmem>>, vector<256x128xbf16>
    %cst_95 = arith.constant dense<0.000000e+00> : vector<16x128xf32>
    %261 = tpu.matmul %259, %260, %cst_95 {dimension_numbers = #tpu.dot_dimension_numbers<[1], [0], [0], [1], [0, 0, 1, 1], [], []>} : vector<16x256xbf16>, vector<256x128xbf16>, vector<16x128xf32> -> vector<16x128xf32>
    %c0_96 = arith.constant 0 : index
    %c0_97 = arith.constant 0 : index
    %262 = vector.load %arg11[%c0_96, %c0_97] : memref<1x128xf32, #tpu.memory_space<vmem>>, vector<1x128xf32>
    %263 = vector.broadcast %262 : vector<1x128xf32> to vector<16x128xf32>
    %264 = arith.addf %261, %263 : vector<16x128xf32>
    %265 = arith.addf %239, %264 : vector<16x128xf32>
    %c0_98 = arith.constant 0 : index
    %c0_99 = arith.constant 0 : index
    %266 = vector.load %arg12[%c0_98, %c0_99] : memref<1x128xf32, #tpu.memory_space<vmem>>, vector<1x128xf32>
    %c0_100 = arith.constant 0 : index
    %c0_101 = arith.constant 0 : index
    %267 = vector.load %arg13[%c0_100, %c0_101] : memref<1x128xf32, #tpu.memory_space<vmem>>, vector<1x128xf32>
    %cst_102 = arith.constant dense<0.000000e+00> : vector<16xf32>
    %268 = vector.multi_reduction <add>, %265, %cst_102 [1] : vector<16x128xf32> to vector<16xf32>
    %269 = vector.shape_cast %268 : vector<16xf32> to vector<16x1xf32>
    %cst_103 = arith.constant 1.280000e+02 : f32
    %270 = vector.broadcast %cst_103 : f32 to vector<16x1xf32>
    %271 = arith.divf %269, %270 : vector<16x1xf32>
    %272 = vector.broadcast %271 : vector<16x1xf32> to vector<16x128xf32>
    %273 = arith.subf %265, %272 : vector<16x128xf32>
    %274 = arith.mulf %273, %273 : vector<16x128xf32>
    %cst_104 = arith.constant dense<0.000000e+00> : vector<16xf32>
    %275 = vector.multi_reduction <add>, %274, %cst_104 [1] : vector<16x128xf32> to vector<16xf32>
    %276 = vector.shape_cast %275 : vector<16xf32> to vector<16x1xf32>
    %cst_105 = arith.constant 1.280000e+02 : f32
    %277 = vector.broadcast %cst_105 : f32 to vector<16x1xf32>
    %278 = arith.divf %276, %277 : vector<16x1xf32>
    %cst_106 = arith.constant 9.99999996E-13 : f32
    %279 = vector.broadcast %cst_106 : f32 to vector<16x1xf32>
    %280 = arith.addf %278, %279 : vector<16x1xf32>
    %281 = math.rsqrt %280 : vector<16x1xf32>
    %282 = vector.broadcast %281 : vector<16x1xf32> to vector<16x128xf32>
    %283 = arith.mulf %273, %282 : vector<16x128xf32>
    %284 = vector.broadcast %266 : vector<1x128xf32> to vector<16x128xf32>
    %285 = arith.mulf %283, %284 : vector<16x128xf32>
    %286 = vector.broadcast %267 : vector<1x128xf32> to vector<16x128xf32>
    %287 = arith.addf %285, %286 : vector<16x128xf32>
    %c0_107 = arith.constant 0 : index
    %c0_108 = arith.constant 0 : index
    %288 = vector.load %arg15[%c0_107, %c0_108] : memref<16x128xf32, #tpu.memory_space<vmem>>, vector<16x128xf32>
    tpu.vector_store %arg15[%c0_107, %c0_108], %287 {strides = array<i32>} : memref<16x128xf32, #tpu.memory_space<vmem>>, vector<16x128xf32>,
    return
  }
  func.func @transform_0(%arg0: i32) -> (i32, i32) {
    %c0_i32 = arith.constant 0 : i32
    %c0_i32_0 = arith.constant 0 : i32
    %c0_i32_1 = arith.constant 0 : i32
    return %c0_i32, %c0_i32_0 : i32, i32
  }
  func.func @transform_1(%arg0: i32) -> (i32, i32) {
    %c0_i32 = arith.constant 0 : i32
    %c0_i32_0 = arith.constant 0 : i32
    %c0_i32_1 = arith.constant 0 : i32
    return %c0_i32, %c0_i32_0 : i32, i32
  }
  func.func @transform_2(%arg0: i32) -> (i32, i32) {
    %c0_i32 = arith.constant 0 : i32
    %c0_i32_0 = arith.constant 0 : i32
    %c0_i32_1 = arith.constant 0 : i32
    return %c0_i32, %c0_i32_0 : i32, i32
  }
  func.func @transform_3(%arg0: i32) -> (i32, i32) {
    %c0_i32 = arith.constant 0 : i32
    %c0_i32_0 = arith.constant 0 : i32
    %c0_i32_1 = arith.constant 0 : i32
    return %c0_i32, %c0_i32_0 : i32, i32
  }
  func.func @transform_4(%arg0: i32) -> (i32, i32) {
    %c0_i32 = arith.constant 0 : i32
    %c0_i32_0 = arith.constant 0 : i32
    %c0_i32_1 = arith.constant 0 : i32
    return %c0_i32, %c0_i32_0 : i32, i32
  }
  func.func @transform_5(%arg0: i32) -> (i32, i32) {
    %c0_i32 = arith.constant 0 : i32
    %c0_i32_0 = arith.constant 0 : i32
    %c0_i32_1 = arith.constant 0 : i32
    return %c0_i32, %c0_i32_0 : i32, i32
  }
  func.func @transform_6(%arg0: i32) -> (i32, i32) {
    %c0_i32 = arith.constant 0 : i32
    %c0_i32_0 = arith.constant 0 : i32
    %c0_i32_1 = arith.constant 0 : i32
    return %c0_i32, %c0_i32_0 : i32, i32
  }
  func.func @transform_7(%arg0: i32) -> (i32, i32) {
    %c0_i32 = arith.constant 0 : i32
    %c0_i32_0 = arith.constant 0 : i32
    %c0_i32_1 = arith.constant 0 : i32
    return %c0_i32, %c0_i32_0 : i32, i32
  }
  func.func @transform_8(%arg0: i32) -> (i32, i32) {
    %c0_i32 = arith.constant 0 : i32
    %c0_i32_0 = arith.constant 0 : i32
    %c0_i32_1 = arith.constant 0 : i32
    return %c0_i32, %c0_i32_0 : i32, i32
  }
  func.func @transform_9(%arg0: i32) -> (i32, i32) {
    %c0_i32 = arith.constant 0 : i32
    %c0_i32_0 = arith.constant 0 : i32
    %c0_i32_1 = arith.constant 0 : i32
    return %c0_i32, %c0_i32_0 : i32, i32
  }
  func.func @transform_10(%arg0: i32) -> (i32, i32) {
    %c0_i32 = arith.constant 0 : i32
    %c0_i32_0 = arith.constant 0 : i32
    %c0_i32_1 = arith.constant 0 : i32
    return %c0_i32, %c0_i32_0 : i32, i32
  }
  func.func @transform_11(%arg0: i32) -> (i32, i32) {
    %c0_i32 = arith.constant 0 : i32
    %c0_i32_0 = arith.constant 0 : i32
    %c0_i32_1 = arith.constant 0 : i32
    return %c0_i32, %c0_i32_0 : i32, i32
  }
  func.func @transform_12(%arg0: i32) -> (i32, i32) {
    %c0_i32 = arith.constant 0 : i32
    %c0_i32_0 = arith.constant 0 : i32
    %c0_i32_1 = arith.constant 0 : i32
    return %c0_i32, %c0_i32_0 : i32, i32
  }
  func.func @transform_13(%arg0: i32) -> (i32, i32, i32) {
    %c0_i32 = arith.constant 0 : i32
    %c0_i32_0 = arith.constant 0 : i32
    %c0_i32_1 = arith.constant 0 : i32
    %c0_i32_2 = arith.constant 0 : i32
    return %c0_i32, %c0_i32_0, %c0_i32_1 : i32, i32, i32
  }
  func.func @transform_14(%arg0: i32) -> (i32, i32) {
    %c0_i32 = arith.constant 0 : i32
    %c0_i32_0 = arith.constant 0 : i32
    %c0_i32_1 = arith.constant 0 : i32
    return %c0_i32, %c0_i32_0 : i32, i32
  }
}

module attributes {stable_mosaic.version = 11 : i64} {
  func.func @crf_head_kernel(%arg0: i32, %arg1: memref<16x128xf32, #tpu.memory_space<vmem>>, %arg2: memref<128x128xbf16, #tpu.memory_space<vmem>>, %arg3: memref<1x128xf32, #tpu.memory_space<vmem>>, %arg4: memref<2x8xi32, #tpu.memory_space<vmem>>, %arg5: memref<1x128xf32, #tpu.memory_space<vmem>>, %arg6: memref<1x128xf32, #tpu.memory_space<vmem>>, %arg7: memref<128x128xf32, #tpu.memory_space<vmem>>, %arg8: memref<2x8xi32, #tpu.memory_space<vmem>>, %arg9: memref<2x1xf32, #tpu.memory_space<vmem>>) attributes {dimension_semantics = [#tpu.dimension_semantics<arbitrary>], iteration_bounds = array<i64: 1>, scalar_prefetch = 0 : i64, scratch_operands = 0 : i64, tpu.core_type = #tpu.core_type<tc>, window_params = [{pipeline_mode = #tpu.pipeline_mode<synchronous>, transform_indices = @transform_0, window_bounds = array<i64: 16, 128>}, {pipeline_mode = #tpu.pipeline_mode<synchronous>, transform_indices = @transform_1, window_bounds = array<i64: 128, 128>}, {pipeline_mode = #tpu.pipeline_mode<synchronous>, transform_indices = @transform_2, window_bounds = array<i64: 1, 128>}, {pipeline_mode = #tpu.pipeline_mode<synchronous>, transform_indices = @transform_3, window_bounds = array<i64: 2, 8>}, {pipeline_mode = #tpu.pipeline_mode<synchronous>, transform_indices = @transform_4, window_bounds = array<i64: 1, 128>}, {pipeline_mode = #tpu.pipeline_mode<synchronous>, transform_indices = @transform_5, window_bounds = array<i64: 1, 128>}, {pipeline_mode = #tpu.pipeline_mode<synchronous>, transform_indices = @transform_6, window_bounds = array<i64: 128, 128>}, {pipeline_mode = #tpu.pipeline_mode<synchronous>, transform_indices = @transform_7, window_bounds = array<i64: 2, 8>}, {pipeline_mode = #tpu.pipeline_mode<synchronous>, transform_indices = @transform_8, window_bounds = array<i64: 2, 1>}]} {
    %c0 = arith.constant 0 : index
    %c0_0 = arith.constant 0 : index
    %0 = vector.load %arg1[%c0, %c0_0] : memref<16x128xf32, #tpu.memory_space<vmem>>, vector<16x128xf32>
    %1 = arith.truncf %0 : vector<16x128xf32> to vector<16x128xbf16>
    %c0_1 = arith.constant 0 : index
    %c0_2 = arith.constant 0 : index
    %2 = vector.load %arg2[%c0_1, %c0_2] : memref<128x128xbf16, #tpu.memory_space<vmem>>, vector<128x128xbf16>
    %cst = arith.constant dense<0.000000e+00> : vector<16x128xf32>
    %3 = tpu.matmul %1, %2, %cst {dimension_numbers = #tpu.dot_dimension_numbers<[1], [0], [0], [1], [0, 0, 1, 1], [], []>} : vector<16x128xbf16>, vector<128x128xbf16>, vector<16x128xf32> -> vector<16x128xf32>
    %c0_3 = arith.constant 0 : index
    %c0_4 = arith.constant 0 : index
    %4 = vector.load %arg3[%c0_3, %c0_4] : memref<1x128xf32, #tpu.memory_space<vmem>>, vector<1x128xf32>
    %5 = vector.broadcast %4 : vector<1x128xf32> to vector<16x128xf32>
    %6 = arith.addf %3, %5 : vector<16x128xf32>
    %c0_5 = arith.constant 0 : index
    %c0_6 = arith.constant 0 : index
    %7 = vector.load %arg4[%c0_5, %c0_6] : memref<2x8xi32, #tpu.memory_space<vmem>>, vector<2x8xi32>
    %c0_7 = arith.constant 0 : index
    %c0_8 = arith.constant 0 : index
    %8 = vector.load %arg7[%c0_7, %c0_8] : memref<128x128xf32, #tpu.memory_space<vmem>>, vector<128x128xf32>
    %c0_9 = arith.constant 0 : index
    %c0_10 = arith.constant 0 : index
    %9 = vector.load %arg5[%c0_9, %c0_10] : memref<1x128xf32, #tpu.memory_space<vmem>>, vector<1x128xf32>
    %c0_11 = arith.constant 0 : index
    %c0_12 = arith.constant 0 : index
    %10 = vector.load %arg6[%c0_11, %c0_12] : memref<1x128xf32, #tpu.memory_space<vmem>>, vector<1x128xf32>
    %11 = tpu.iota {dimensions = array<i32: 1>} : vector<2x128xi32>
    %12 = tpu.iota {dimensions = array<i32: 1>} : vector<2x128x128xi32>
    %13 = tpu.iota {dimensions = array<i32: 1>} : vector<2x8xi32>
    %14 = tpu.iota {dimensions = array<i32: 0>} : vector<2x16xi32>
    %15 = tpu.iota {dimensions = array<i32: 1>} : vector<2x16xi32>
    %16 = vector.shape_cast %8 : vector<128x128xf32> to vector<1x128x128xf32>
    %c8_i32 = arith.constant 8 : i32
    %17 = vector.broadcast %c8_i32 : i32 to vector<2x16xi32>
    %18 = arith.muli %14, %17 : vector<2x16xi32>
    %c0_i32 = arith.constant 0 : i32
    %19 = vector.broadcast %c0_i32 : i32 to vector<2x16xi32>
    %20 = arith.addi %18, %19 : vector<2x16xi32>
    %21 = arith.cmpi eq, %15, %20 : vector<2x16xi32>
    %22 = arith.extui %21 : vector<2x16xi1> to vector<2x16xi32>
    %23 = arith.sitofp %22 : vector<2x16xi32> to vector<2x16xf32>
    %cst_13 = arith.constant dense<0.000000e+00> : vector<2x128xf32>
    %24 = tpu.matmul %23, %6, %cst_13 {dimension_numbers = #tpu.dot_dimension_numbers<[1], [0], [0], [1], [0, 0, 1, 1], [], []>} : vector<2x16xf32>, vector<16x128xf32>, vector<2x128xf32> -> vector<2x128xf32>
    %25 = vector.broadcast %9 : vector<1x128xf32> to vector<2x128xf32>
    %26 = arith.addf %25, %24 : vector<2x128xf32>
    %c0_i32_14 = arith.constant 0 : i32
    %27 = vector.broadcast %c0_i32_14 : i32 to vector<2x8xi32>
    %28 = arith.cmpi eq, %13, %27 : vector<2x8xi32>
    %c0_i32_15 = arith.constant 0 : i32
    %29 = vector.broadcast %c0_i32_15 : i32 to vector<2x8xi32>
    %30 = arith.select %28, %7, %29 : vector<2x8xi1>, vector<2x8xi32>
    %cst_16 = arith.constant dense<0> : vector<2xi32>
    %31 = vector.multi_reduction <add>, %30, %cst_16 [1] : vector<2x8xi32> to vector<2xi32>
    %32 = vector.shape_cast %31 : vector<2xi32> to vector<2x1xi32>
    %33 = vector.broadcast %32 : vector<2x1xi32> to vector<2x128xi32>
    %34 = arith.cmpi eq, %11, %33 : vector<2x128xi32>
    %35 = arith.extui %34 : vector<2x128xi1> to vector<2x128xi32>
    %36 = arith.sitofp %35 : vector<2x128xi32> to vector<2x128xf32>
    %37 = arith.mulf %26, %36 : vector<2x128xf32>
    %cst_17 = arith.constant dense<0.000000e+00> : vector<2xf32>
    %38 = vector.multi_reduction <add>, %37, %cst_17 [1] : vector<2x128xf32> to vector<2xf32>
    %39 = vector.shape_cast %38 : vector<2xf32> to vector<2x1xf32>
    %c8_i32_18 = arith.constant 8 : i32
    %40 = vector.broadcast %c8_i32_18 : i32 to vector<2x16xi32>
    %41 = arith.muli %14, %40 : vector<2x16xi32>
    %c1_i32 = arith.constant 1 : i32
    %42 = vector.broadcast %c1_i32 : i32 to vector<2x16xi32>
    %43 = arith.addi %41, %42 : vector<2x16xi32>
    %44 = arith.cmpi eq, %15, %43 : vector<2x16xi32>
    %45 = arith.extui %44 : vector<2x16xi1> to vector<2x16xi32>
    %46 = arith.sitofp %45 : vector<2x16xi32> to vector<2x16xf32>
    %cst_19 = arith.constant dense<0.000000e+00> : vector<2x128xf32>
    %47 = tpu.matmul %46, %6, %cst_19 {dimension_numbers = #tpu.dot_dimension_numbers<[1], [0], [0], [1], [0, 0, 1, 1], [], []>} : vector<2x16xf32>, vector<16x128xf32>, vector<2x128xf32> -> vector<2x128xf32>
    %48 = vector.shape_cast %26 : vector<2x128xf32> to vector<2x128x1xf32>
    %49 = vector.broadcast %48 : vector<2x128x1xf32> to vector<2x128x128xf32>
    %50 = vector.broadcast %16 : vector<1x128x128xf32> to vector<2x128x128xf32>
    %51 = arith.addf %49, %50 : vector<2x128x128xf32>
    %cst_20 = arith.constant dense<0xFF800000> : vector<2x128xf32>
    %52 = vector.multi_reduction <maximumf>, %51, %cst_20 [1] : vector<2x128x128xf32> to vector<2x128xf32>
    %53 = vector.shape_cast %52 : vector<2x128xf32> to vector<2x1x128xf32>
    %54 = vector.broadcast %53 : vector<2x1x128xf32> to vector<2x128x128xf32>
    %55 = arith.cmpf oge, %51, %54 : vector<2x128x128xf32>
    %c128_i32 = arith.constant 128 : i32
    %56 = vector.broadcast %c128_i32 : i32 to vector<2x128x128xi32>
    %57 = arith.select %55, %12, %56 : vector<2x128x128xi1>, vector<2x128x128xi32>
    %cst_21 = arith.constant dense<2147483647> : vector<2x128xi32>
    %58 = vector.multi_reduction <minsi>, %57, %cst_21 [1] : vector<2x128x128xi32> to vector<2x128xi32>
    %59 = arith.addf %52, %47 : vector<2x128xf32>
    %60 = vector.shape_cast %26 : vector<2x128xf32> to vector<2x128x1xf32>
    %61 = vector.broadcast %60 : vector<2x128x1xf32> to vector<2x128x128xf32>
    %62 = vector.broadcast %16 : vector<1x128x128xf32> to vector<2x128x128xf32>
    %63 = arith.addf %61, %62 : vector<2x128x128xf32>
    %cst_22 = arith.constant dense<0xFF800000> : vector<2x128xf32>
    %64 = vector.multi_reduction <maximumf>, %63, %cst_22 [1] : vector<2x128x128xf32> to vector<2x128xf32>
    %65 = vector.shape_cast %64 : vector<2x128xf32> to vector<2x1x128xf32>
    %66 = vector.broadcast %65 : vector<2x1x128xf32> to vector<2x128x128xf32>
    %67 = arith.subf %63, %66 : vector<2x128x128xf32>
    %68 = math.exp %67 : vector<2x128x128xf32>
    %cst_23 = arith.constant dense<0.000000e+00> : vector<2x128xf32>
    %69 = vector.multi_reduction <add>, %68, %cst_23 [1] : vector<2x128x128xf32> to vector<2x128xf32>
    %70 = math.log %69 : vector<2x128xf32>
    %71 = arith.addf %64, %70 : vector<2x128xf32>
    %72 = arith.addf %71, %47 : vector<2x128xf32>
    %c1_i32_24 = arith.constant 1 : i32
    %73 = vector.broadcast %c1_i32_24 : i32 to vector<2x8xi32>
    %74 = arith.cmpi eq, %13, %73 : vector<2x8xi32>
    %c0_i32_25 = arith.constant 0 : i32
    %75 = vector.broadcast %c0_i32_25 : i32 to vector<2x8xi32>
    %76 = arith.select %74, %7, %75 : vector<2x8xi1>, vector<2x8xi32>
    %cst_26 = arith.constant dense<0> : vector<2xi32>
    %77 = vector.multi_reduction <add>, %76, %cst_26 [1] : vector<2x8xi32> to vector<2xi32>
    %78 = vector.shape_cast %77 : vector<2xi32> to vector<2x1xi32>
    %79 = vector.broadcast %78 : vector<2x1xi32> to vector<2x128xi32>
    %80 = arith.cmpi eq, %11, %79 : vector<2x128xi32>
    %81 = arith.extui %80 : vector<2x128xi1> to vector<2x128xi32>
    %82 = arith.sitofp %81 : vector<2x128xi32> to vector<2x128xf32>
    %cst_27 = arith.constant dense<0.000000e+00> : vector<2x128xf32>
    %83 = tpu.matmul %36, %8, %cst_27 {dimension_numbers = #tpu.dot_dimension_numbers<[1], [0], [0], [1], [0, 0, 1, 1], [], []>} : vector<2x128xf32>, vector<128x128xf32>, vector<2x128xf32> -> vector<2x128xf32>
    %84 = arith.addf %83, %47 : vector<2x128xf32>
    %85 = arith.mulf %84, %82 : vector<2x128xf32>
    %cst_28 = arith.constant dense<0.000000e+00> : vector<2xf32>
    %86 = vector.multi_reduction <add>, %85, %cst_28 [1] : vector<2x128xf32> to vector<2xf32>
    %87 = vector.shape_cast %86 : vector<2xf32> to vector<2x1xf32>
    %88 = arith.addf %39, %87 : vector<2x1xf32>
    %c8_i32_29 = arith.constant 8 : i32
    %89 = vector.broadcast %c8_i32_29 : i32 to vector<2x16xi32>
    %90 = arith.muli %14, %89 : vector<2x16xi32>
    %c2_i32 = arith.constant 2 : i32
    %91 = vector.broadcast %c2_i32 : i32 to vector<2x16xi32>
    %92 = arith.addi %90, %91 : vector<2x16xi32>
    %93 = arith.cmpi eq, %15, %92 : vector<2x16xi32>
    %94 = arith.extui %93 : vector<2x16xi1> to vector<2x16xi32>
    %95 = arith.sitofp %94 : vector<2x16xi32> to vector<2x16xf32>
    %cst_30 = arith.constant dense<0.000000e+00> : vector<2x128xf32>
    %96 = tpu.matmul %95, %6, %cst_30 {dimension_numbers = #tpu.dot_dimension_numbers<[1], [0], [0], [1], [0, 0, 1, 1], [], []>} : vector<2x16xf32>, vector<16x128xf32>, vector<2x128xf32> -> vector<2x128xf32>
    %97 = vector.shape_cast %59 : vector<2x128xf32> to vector<2x128x1xf32>
    %98 = vector.broadcast %97 : vector<2x128x1xf32> to vector<2x128x128xf32>
    %99 = vector.broadcast %16 : vector<1x128x128xf32> to vector<2x128x128xf32>
    %100 = arith.addf %98, %99 : vector<2x128x128xf32>
    %cst_31 = arith.constant dense<0xFF800000> : vector<2x128xf32>
    %101 = vector.multi_reduction <maximumf>, %100, %cst_31 [1] : vector<2x128x128xf32> to vector<2x128xf32>
    %102 = vector.shape_cast %101 : vector<2x128xf32> to vector<2x1x128xf32>
    %103 = vector.broadcast %102 : vector<2x1x128xf32> to vector<2x128x128xf32>
    %104 = arith.cmpf oge, %100, %103 : vector<2x128x128xf32>
    %c128_i32_32 = arith.constant 128 : i32
    %105 = vector.broadcast %c128_i32_32 : i32 to vector<2x128x128xi32>
    %106 = arith.select %104, %12, %105 : vector<2x128x128xi1>, vector<2x128x128xi32>
    %cst_33 = arith.constant dense<2147483647> : vector<2x128xi32>
    %107 = vector.multi_reduction <minsi>, %106, %cst_33 [1] : vector<2x128x128xi32> to vector<2x128xi32>
    %108 = arith.addf %101, %96 : vector<2x128xf32>
    %109 = vector.shape_cast %72 : vector<2x128xf32> to vector<2x128x1xf32>
    %110 = vector.broadcast %109 : vector<2x128x1xf32> to vector<2x128x128xf32>
    %111 = vector.broadcast %16 : vector<1x128x128xf32> to vector<2x128x128xf32>
    %112 = arith.addf %110, %111 : vector<2x128x128xf32>
    %cst_34 = arith.constant dense<0xFF800000> : vector<2x128xf32>
    %113 = vector.multi_reduction <maximumf>, %112, %cst_34 [1] : vector<2x128x128xf32> to vector<2x128xf32>
    %114 = vector.shape_cast %113 : vector<2x128xf32> to vector<2x1x128xf32>
    %115 = vector.broadcast %114 : vector<2x1x128xf32> to vector<2x128x128xf32>
    %116 = arith.subf %112, %115 : vector<2x128x128xf32>
    %117 = math.exp %116 : vector<2x128x128xf32>
    %cst_35 = arith.constant dense<0.000000e+00> : vector<2x128xf32>
    %118 = vector.multi_reduction <add>, %117, %cst_35 [1] : vector<2x128x128xf32> to vector<2x128xf32>
    %119 = math.log %118 : vector<2x128xf32>
    %120 = arith.addf %113, %119 : vector<2x128xf32>
    %121 = arith.addf %120, %96 : vector<2x128xf32>
    %c2_i32_36 = arith.constant 2 : i32
    %122 = vector.broadcast %c2_i32_36 : i32 to vector<2x8xi32>
    %123 = arith.cmpi eq, %13, %122 : vector<2x8xi32>
    %c0_i32_37 = arith.constant 0 : i32
    %124 = vector.broadcast %c0_i32_37 : i32 to vector<2x8xi32>
    %125 = arith.select %123, %7, %124 : vector<2x8xi1>, vector<2x8xi32>
    %cst_38 = arith.constant dense<0> : vector<2xi32>
    %126 = vector.multi_reduction <add>, %125, %cst_38 [1] : vector<2x8xi32> to vector<2xi32>
    %127 = vector.shape_cast %126 : vector<2xi32> to vector<2x1xi32>
    %128 = vector.broadcast %127 : vector<2x1xi32> to vector<2x128xi32>
    %129 = arith.cmpi eq, %11, %128 : vector<2x128xi32>
    %130 = arith.extui %129 : vector<2x128xi1> to vector<2x128xi32>
    %131 = arith.sitofp %130 : vector<2x128xi32> to vector<2x128xf32>
    %cst_39 = arith.constant dense<0.000000e+00> : vector<2x128xf32>
    %132 = tpu.matmul %82, %8, %cst_39 {dimension_numbers = #tpu.dot_dimension_numbers<[1], [0], [0], [1], [0, 0, 1, 1], [], []>} : vector<2x128xf32>, vector<128x128xf32>, vector<2x128xf32> -> vector<2x128xf32>
    %133 = arith.addf %132, %96 : vector<2x128xf32>
    %134 = arith.mulf %133, %131 : vector<2x128xf32>
    %cst_40 = arith.constant dense<0.000000e+00> : vector<2xf32>
    %135 = vector.multi_reduction <add>, %134, %cst_40 [1] : vector<2x128xf32> to vector<2xf32>
    %136 = vector.shape_cast %135 : vector<2xf32> to vector<2x1xf32>
    %137 = arith.addf %88, %136 : vector<2x1xf32>
    %c8_i32_41 = arith.constant 8 : i32
    %138 = vector.broadcast %c8_i32_41 : i32 to vector<2x16xi32>
    %139 = arith.muli %14, %138 : vector<2x16xi32>
    %c3_i32 = arith.constant 3 : i32
    %140 = vector.broadcast %c3_i32 : i32 to vector<2x16xi32>
    %141 = arith.addi %139, %140 : vector<2x16xi32>
    %142 = arith.cmpi eq, %15, %141 : vector<2x16xi32>
    %143 = arith.extui %142 : vector<2x16xi1> to vector<2x16xi32>
    %144 = arith.sitofp %143 : vector<2x16xi32> to vector<2x16xf32>
    %cst_42 = arith.constant dense<0.000000e+00> : vector<2x128xf32>
    %145 = tpu.matmul %144, %6, %cst_42 {dimension_numbers = #tpu.dot_dimension_numbers<[1], [0], [0], [1], [0, 0, 1, 1], [], []>} : vector<2x16xf32>, vector<16x128xf32>, vector<2x128xf32> -> vector<2x128xf32>
    %146 = vector.shape_cast %108 : vector<2x128xf32> to vector<2x128x1xf32>
    %147 = vector.broadcast %146 : vector<2x128x1xf32> to vector<2x128x128xf32>
    %148 = vector.broadcast %16 : vector<1x128x128xf32> to vector<2x128x128xf32>
    %149 = arith.addf %147, %148 : vector<2x128x128xf32>
    %cst_43 = arith.constant dense<0xFF800000> : vector<2x128xf32>
    %150 = vector.multi_reduction <maximumf>, %149, %cst_43 [1] : vector<2x128x128xf32> to vector<2x128xf32>
    %151 = vector.shape_cast %150 : vector<2x128xf32> to vector<2x1x128xf32>
    %152 = vector.broadcast %151 : vector<2x1x128xf32> to vector<2x128x128xf32>
    %153 = arith.cmpf oge, %149, %152 : vector<2x128x128xf32>
    %c128_i32_44 = arith.constant 128 : i32
    %154 = vector.broadcast %c128_i32_44 : i32 to vector<2x128x128xi32>
    %155 = arith.select %153, %12, %154 : vector<2x128x128xi1>, vector<2x128x128xi32>
    %cst_45 = arith.constant dense<2147483647> : vector<2x128xi32>
    %156 = vector.multi_reduction <minsi>, %155, %cst_45 [1] : vector<2x128x128xi32> to vector<2x128xi32>
    %157 = arith.addf %150, %145 : vector<2x128xf32>
    %158 = vector.shape_cast %121 : vector<2x128xf32> to vector<2x128x1xf32>
    %159 = vector.broadcast %158 : vector<2x128x1xf32> to vector<2x128x128xf32>
    %160 = vector.broadcast %16 : vector<1x128x128xf32> to vector<2x128x128xf32>
    %161 = arith.addf %159, %160 : vector<2x128x128xf32>
    %cst_46 = arith.constant dense<0xFF800000> : vector<2x128xf32>
    %162 = vector.multi_reduction <maximumf>, %161, %cst_46 [1] : vector<2x128x128xf32> to vector<2x128xf32>
    %163 = vector.shape_cast %162 : vector<2x128xf32> to vector<2x1x128xf32>
    %164 = vector.broadcast %163 : vector<2x1x128xf32> to vector<2x128x128xf32>
    %165 = arith.subf %161, %164 : vector<2x128x128xf32>
    %166 = math.exp %165 : vector<2x128x128xf32>
    %cst_47 = arith.constant dense<0.000000e+00> : vector<2x128xf32>
    %167 = vector.multi_reduction <add>, %166, %cst_47 [1] : vector<2x128x128xf32> to vector<2x128xf32>
    %168 = math.log %167 : vector<2x128xf32>
    %169 = arith.addf %162, %168 : vector<2x128xf32>
    %170 = arith.addf %169, %145 : vector<2x128xf32>
    %c3_i32_48 = arith.constant 3 : i32
    %171 = vector.broadcast %c3_i32_48 : i32 to vector<2x8xi32>
    %172 = arith.cmpi eq, %13, %171 : vector<2x8xi32>
    %c0_i32_49 = arith.constant 0 : i32
    %173 = vector.broadcast %c0_i32_49 : i32 to vector<2x8xi32>
    %174 = arith.select %172, %7, %173 : vector<2x8xi1>, vector<2x8xi32>
    %cst_50 = arith.constant dense<0> : vector<2xi32>
    %175 = vector.multi_reduction <add>, %174, %cst_50 [1] : vector<2x8xi32> to vector<2xi32>
    %176 = vector.shape_cast %175 : vector<2xi32> to vector<2x1xi32>
    %177 = vector.broadcast %176 : vector<2x1xi32> to vector<2x128xi32>
    %178 = arith.cmpi eq, %11, %177 : vector<2x128xi32>
    %179 = arith.extui %178 : vector<2x128xi1> to vector<2x128xi32>
    %180 = arith.sitofp %179 : vector<2x128xi32> to vector<2x128xf32>
    %cst_51 = arith.constant dense<0.000000e+00> : vector<2x128xf32>
    %181 = tpu.matmul %131, %8, %cst_51 {dimension_numbers = #tpu.dot_dimension_numbers<[1], [0], [0], [1], [0, 0, 1, 1], [], []>} : vector<2x128xf32>, vector<128x128xf32>, vector<2x128xf32> -> vector<2x128xf32>
    %182 = arith.addf %181, %145 : vector<2x128xf32>
    %183 = arith.mulf %182, %180 : vector<2x128xf32>
    %cst_52 = arith.constant dense<0.000000e+00> : vector<2xf32>
    %184 = vector.multi_reduction <add>, %183, %cst_52 [1] : vector<2x128xf32> to vector<2xf32>
    %185 = vector.shape_cast %184 : vector<2xf32> to vector<2x1xf32>
    %186 = arith.addf %137, %185 : vector<2x1xf32>
    %c8_i32_53 = arith.constant 8 : i32
    %187 = vector.broadcast %c8_i32_53 : i32 to vector<2x16xi32>
    %188 = arith.muli %14, %187 : vector<2x16xi32>
    %c4_i32 = arith.constant 4 : i32
    %189 = vector.broadcast %c4_i32 : i32 to vector<2x16xi32>
    %190 = arith.addi %188, %189 : vector<2x16xi32>
    %191 = arith.cmpi eq, %15, %190 : vector<2x16xi32>
    %192 = arith.extui %191 : vector<2x16xi1> to vector<2x16xi32>
    %193 = arith.sitofp %192 : vector<2x16xi32> to vector<2x16xf32>
    %cst_54 = arith.constant dense<0.000000e+00> : vector<2x128xf32>
    %194 = tpu.matmul %193, %6, %cst_54 {dimension_numbers = #tpu.dot_dimension_numbers<[1], [0], [0], [1], [0, 0, 1, 1], [], []>} : vector<2x16xf32>, vector<16x128xf32>, vector<2x128xf32> -> vector<2x128xf32>
    %195 = vector.shape_cast %157 : vector<2x128xf32> to vector<2x128x1xf32>
    %196 = vector.broadcast %195 : vector<2x128x1xf32> to vector<2x128x128xf32>
    %197 = vector.broadcast %16 : vector<1x128x128xf32> to vector<2x128x128xf32>
    %198 = arith.addf %196, %197 : vector<2x128x128xf32>
    %cst_55 = arith.constant dense<0xFF800000> : vector<2x128xf32>
    %199 = vector.multi_reduction <maximumf>, %198, %cst_55 [1] : vector<2x128x128xf32> to vector<2x128xf32>
    %200 = vector.shape_cast %199 : vector<2x128xf32> to vector<2x1x128xf32>
    %201 = vector.broadcast %200 : vector<2x1x128xf32> to vector<2x128x128xf32>
    %202 = arith.cmpf oge, %198, %201 : vector<2x128x128xf32>
    %c128_i32_56 = arith.constant 128 : i32
    %203 = vector.broadcast %c128_i32_56 : i32 to vector<2x128x128xi32>
    %204 = arith.select %202, %12, %203 : vector<2x128x128xi1>, vector<2x128x128xi32>
    %cst_57 = arith.constant dense<2147483647> : vector<2x128xi32>
    %205 = vector.multi_reduction <minsi>, %204, %cst_57 [1] : vector<2x128x128xi32> to vector<2x128xi32>
    %206 = arith.addf %199, %194 : vector<2x128xf32>
    %207 = vector.shape_cast %170 : vector<2x128xf32> to vector<2x128x1xf32>
    %208 = vector.broadcast %207 : vector<2x128x1xf32> to vector<2x128x128xf32>
    %209 = vector.broadcast %16 : vector<1x128x128xf32> to vector<2x128x128xf32>
    %210 = arith.addf %208, %209 : vector<2x128x128xf32>
    %cst_58 = arith.constant dense<0xFF800000> : vector<2x128xf32>
    %211 = vector.multi_reduction <maximumf>, %210, %cst_58 [1] : vector<2x128x128xf32> to vector<2x128xf32>
    %212 = vector.shape_cast %211 : vector<2x128xf32> to vector<2x1x128xf32>
    %213 = vector.broadcast %212 : vector<2x1x128xf32> to vector<2x128x128xf32>
    %214 = arith.subf %210, %213 : vector<2x128x128xf32>
    %215 = math.exp %214 : vector<2x128x128xf32>
    %cst_59 = arith.constant dense<0.000000e+00> : vector<2x128xf32>
    %216 = vector.multi_reduction <add>, %215, %cst_59 [1] : vector<2x128x128xf32> to vector<2x128xf32>
    %217 = math.log %216 : vector<2x128xf32>
    %218 = arith.addf %211, %217 : vector<2x128xf32>
    %219 = arith.addf %218, %194 : vector<2x128xf32>
    %c4_i32_60 = arith.constant 4 : i32
    %220 = vector.broadcast %c4_i32_60 : i32 to vector<2x8xi32>
    %221 = arith.cmpi eq, %13, %220 : vector<2x8xi32>
    %c0_i32_61 = arith.constant 0 : i32
    %222 = vector.broadcast %c0_i32_61 : i32 to vector<2x8xi32>
    %223 = arith.select %221, %7, %222 : vector<2x8xi1>, vector<2x8xi32>
    %cst_62 = arith.constant dense<0> : vector<2xi32>
    %224 = vector.multi_reduction <add>, %223, %cst_62 [1] : vector<2x8xi32> to vector<2xi32>
    %225 = vector.shape_cast %224 : vector<2xi32> to vector<2x1xi32>
    %226 = vector.broadcast %225 : vector<2x1xi32> to vector<2x128xi32>
    %227 = arith.cmpi eq, %11, %226 : vector<2x128xi32>
    %228 = arith.extui %227 : vector<2x128xi1> to vector<2x128xi32>
    %229 = arith.sitofp %228 : vector<2x128xi32> to vector<2x128xf32>
    %cst_63 = arith.constant dense<0.000000e+00> : vector<2x128xf32>
    %230 = tpu.matmul %180, %8, %cst_63 {dimension_numbers = #tpu.dot_dimension_numbers<[1], [0], [0], [1], [0, 0, 1, 1], [], []>} : vector<2x128xf32>, vector<128x128xf32>, vector<2x128xf32> -> vector<2x128xf32>
    %231 = arith.addf %230, %194 : vector<2x128xf32>
    %232 = arith.mulf %231, %229 : vector<2x128xf32>
    %cst_64 = arith.constant dense<0.000000e+00> : vector<2xf32>
    %233 = vector.multi_reduction <add>, %232, %cst_64 [1] : vector<2x128xf32> to vector<2xf32>
    %234 = vector.shape_cast %233 : vector<2xf32> to vector<2x1xf32>
    %235 = arith.addf %186, %234 : vector<2x1xf32>
    %c8_i32_65 = arith.constant 8 : i32
    %236 = vector.broadcast %c8_i32_65 : i32 to vector<2x16xi32>
    %237 = arith.muli %14, %236 : vector<2x16xi32>
    %c5_i32 = arith.constant 5 : i32
    %238 = vector.broadcast %c5_i32 : i32 to vector<2x16xi32>
    %239 = arith.addi %237, %238 : vector<2x16xi32>
    %240 = arith.cmpi eq, %15, %239 : vector<2x16xi32>
    %241 = arith.extui %240 : vector<2x16xi1> to vector<2x16xi32>
    %242 = arith.sitofp %241 : vector<2x16xi32> to vector<2x16xf32>
    %cst_66 = arith.constant dense<0.000000e+00> : vector<2x128xf32>
    %243 = tpu.matmul %242, %6, %cst_66 {dimension_numbers = #tpu.dot_dimension_numbers<[1], [0], [0], [1], [0, 0, 1, 1], [], []>} : vector<2x16xf32>, vector<16x128xf32>, vector<2x128xf32> -> vector<2x128xf32>
    %244 = vector.shape_cast %206 : vector<2x128xf32> to vector<2x128x1xf32>
    %245 = vector.broadcast %244 : vector<2x128x1xf32> to vector<2x128x128xf32>
    %246 = vector.broadcast %16 : vector<1x128x128xf32> to vector<2x128x128xf32>
    %247 = arith.addf %245, %246 : vector<2x128x128xf32>
    %cst_67 = arith.constant dense<0xFF800000> : vector<2x128xf32>
    %248 = vector.multi_reduction <maximumf>, %247, %cst_67 [1] : vector<2x128x128xf32> to vector<2x128xf32>
    %249 = vector.shape_cast %248 : vector<2x128xf32> to vector<2x1x128xf32>
    %250 = vector.broadcast %249 : vector<2x1x128xf32> to vector<2x128x128xf32>
    %251 = arith.cmpf oge, %247, %250 : vector<2x128x128xf32>
    %c128_i32_68 = arith.constant 128 : i32
    %252 = vector.broadcast %c128_i32_68 : i32 to vector<2x128x128xi32>
    %253 = arith.select %251, %12, %252 : vector<2x128x128xi1>, vector<2x128x128xi32>
    %cst_69 = arith.constant dense<2147483647> : vector<2x128xi32>
    %254 = vector.multi_reduction <minsi>, %253, %cst_69 [1] : vector<2x128x128xi32> to vector<2x128xi32>
    %255 = arith.addf %248, %243 : vector<2x128xf32>
    %256 = vector.shape_cast %219 : vector<2x128xf32> to vector<2x128x1xf32>
    %257 = vector.broadcast %256 : vector<2x128x1xf32> to vector<2x128x128xf32>
    %258 = vector.broadcast %16 : vector<1x128x128xf32> to vector<2x128x128xf32>
    %259 = arith.addf %257, %258 : vector<2x128x128xf32>
    %cst_70 = arith.constant dense<0xFF800000> : vector<2x128xf32>
    %260 = vector.multi_reduction <maximumf>, %259, %cst_70 [1] : vector<2x128x128xf32> to vector<2x128xf32>
    %261 = vector.shape_cast %260 : vector<2x128xf32> to vector<2x1x128xf32>
    %262 = vector.broadcast %261 : vector<2x1x128xf32> to vector<2x128x128xf32>
    %263 = arith.subf %259, %262 : vector<2x128x128xf32>
    %264 = math.exp %263 : vector<2x128x128xf32>
    %cst_71 = arith.constant dense<0.000000e+00> : vector<2x128xf32>
    %265 = vector.multi_reduction <add>, %264, %cst_71 [1] : vector<2x128x128xf32> to vector<2x128xf32>
    %266 = math.log %265 : vector<2x128xf32>
    %267 = arith.addf %260, %266 : vector<2x128xf32>
    %268 = arith.addf %267, %243 : vector<2x128xf32>
    %c5_i32_72 = arith.constant 5 : i32
    %269 = vector.broadcast %c5_i32_72 : i32 to vector<2x8xi32>
    %270 = arith.cmpi eq, %13, %269 : vector<2x8xi32>
    %c0_i32_73 = arith.constant 0 : i32
    %271 = vector.broadcast %c0_i32_73 : i32 to vector<2x8xi32>
    %272 = arith.select %270, %7, %271 : vector<2x8xi1>, vector<2x8xi32>
    %cst_74 = arith.constant dense<0> : vector<2xi32>
    %273 = vector.multi_reduction <add>, %272, %cst_74 [1] : vector<2x8xi32> to vector<2xi32>
    %274 = vector.shape_cast %273 : vector<2xi32> to vector<2x1xi32>
    %275 = vector.broadcast %274 : vector<2x1xi32> to vector<2x128xi32>
    %276 = arith.cmpi eq, %11, %275 : vector<2x128xi32>
    %277 = arith.extui %276 : vector<2x128xi1> to vector<2x128xi32>
    %278 = arith.sitofp %277 : vector<2x128xi32> to vector<2x128xf32>
    %cst_75 = arith.constant dense<0.000000e+00> : vector<2x128xf32>
    %279 = tpu.matmul %229, %8, %cst_75 {dimension_numbers = #tpu.dot_dimension_numbers<[1], [0], [0], [1], [0, 0, 1, 1], [], []>} : vector<2x128xf32>, vector<128x128xf32>, vector<2x128xf32> -> vector<2x128xf32>
    %280 = arith.addf %279, %243 : vector<2x128xf32>
    %281 = arith.mulf %280, %278 : vector<2x128xf32>
    %cst_76 = arith.constant dense<0.000000e+00> : vector<2xf32>
    %282 = vector.multi_reduction <add>, %281, %cst_76 [1] : vector<2x128xf32> to vector<2xf32>
    %283 = vector.shape_cast %282 : vector<2xf32> to vector<2x1xf32>
    %284 = arith.addf %235, %283 : vector<2x1xf32>
    %c8_i32_77 = arith.constant 8 : i32
    %285 = vector.broadcast %c8_i32_77 : i32 to vector<2x16xi32>
    %286 = arith.muli %14, %285 : vector<2x16xi32>
    %c6_i32 = arith.constant 6 : i32
    %287 = vector.broadcast %c6_i32 : i32 to vector<2x16xi32>
    %288 = arith.addi %286, %287 : vector<2x16xi32>
    %289 = arith.cmpi eq, %15, %288 : vector<2x16xi32>
    %290 = arith.extui %289 : vector<2x16xi1> to vector<2x16xi32>
    %291 = arith.sitofp %290 : vector<2x16xi32> to vector<2x16xf32>
    %cst_78 = arith.constant dense<0.000000e+00> : vector<2x128xf32>
    %292 = tpu.matmul %291, %6, %cst_78 {dimension_numbers = #tpu.dot_dimension_numbers<[1], [0], [0], [1], [0, 0, 1, 1], [], []>} : vector<2x16xf32>, vector<16x128xf32>, vector<2x128xf32> -> vector<2x128xf32>
    %293 = vector.shape_cast %255 : vector<2x128xf32> to vector<2x128x1xf32>
    %294 = vector.broadcast %293 : vector<2x128x1xf32> to vector<2x128x128xf32>
    %295 = vector.broadcast %16 : vector<1x128x128xf32> to vector<2x128x128xf32>
    %296 = arith.addf %294, %295 : vector<2x128x128xf32>
    %cst_79 = arith.constant dense<0xFF800000> : vector<2x128xf32>
    %297 = vector.multi_reduction <maximumf>, %296, %cst_79 [1] : vector<2x128x128xf32> to vector<2x128xf32>
    %298 = vector.shape_cast %297 : vector<2x128xf32> to vector<2x1x128xf32>
    %299 = vector.broadcast %298 : vector<2x1x128xf32> to vector<2x128x128xf32>
    %300 = arith.cmpf oge, %296, %299 : vector<2x128x128xf32>
    %c128_i32_80 = arith.constant 128 : i32
    %301 = vector.broadcast %c128_i32_80 : i32 to vector<2x128x128xi32>
    %302 = arith.select %300, %12, %301 : vector<2x128x128xi1>, vector<2x128x128xi32>
    %cst_81 = arith.constant dense<2147483647> : vector<2x128xi32>
    %303 = vector.multi_reduction <minsi>, %302, %cst_81 [1] : vector<2x128x128xi32> to vector<2x128xi32>
    %304 = arith.addf %297, %292 : vector<2x128xf32>
    %305 = vector.shape_cast %268 : vector<2x128xf32> to vector<2x128x1xf32>
    %306 = vector.broadcast %305 : vector<2x128x1xf32> to vector<2x128x128xf32>
    %307 = vector.broadcast %16 : vector<1x128x128xf32> to vector<2x128x128xf32>
    %308 = arith.addf %306, %307 : vector<2x128x128xf32>
    %cst_82 = arith.constant dense<0xFF800000> : vector<2x128xf32>
    %309 = vector.multi_reduction <maximumf>, %308, %cst_82 [1] : vector<2x128x128xf32> to vector<2x128xf32>
    %310 = vector.shape_cast %309 : vector<2x128xf32> to vector<2x1x128xf32>
    %311 = vector.broadcast %310 : vector<2x1x128xf32> to vector<2x128x128xf32>
    %312 = arith.subf %308, %311 : vector<2x128x128xf32>
    %313 = math.exp %312 : vector<2x128x128xf32>
    %cst_83 = arith.constant dense<0.000000e+00> : vector<2x128xf32>
    %314 = vector.multi_reduction <add>, %313, %cst_83 [1] : vector<2x128x128xf32> to vector<2x128xf32>
    %315 = math.log %314 : vector<2x128xf32>
    %316 = arith.addf %309, %315 : vector<2x128xf32>
    %317 = arith.addf %316, %292 : vector<2x128xf32>
    %c6_i32_84 = arith.constant 6 : i32
    %318 = vector.broadcast %c6_i32_84 : i32 to vector<2x8xi32>
    %319 = arith.cmpi eq, %13, %318 : vector<2x8xi32>
    %c0_i32_85 = arith.constant 0 : i32
    %320 = vector.broadcast %c0_i32_85 : i32 to vector<2x8xi32>
    %321 = arith.select %319, %7, %320 : vector<2x8xi1>, vector<2x8xi32>
    %cst_86 = arith.constant dense<0> : vector<2xi32>
    %322 = vector.multi_reduction <add>, %321, %cst_86 [1] : vector<2x8xi32> to vector<2xi32>
    %323 = vector.shape_cast %322 : vector<2xi32> to vector<2x1xi32>
    %324 = vector.broadcast %323 : vector<2x1xi32> to vector<2x128xi32>
    %325 = arith.cmpi eq, %11, %324 : vector<2x128xi32>
    %326 = arith.extui %325 : vector<2x128xi1> to vector<2x128xi32>
    %327 = arith.sitofp %326 : vector<2x128xi32> to vector<2x128xf32>
    %cst_87 = arith.constant dense<0.000000e+00> : vector<2x128xf32>
    %328 = tpu.matmul %278, %8, %cst_87 {dimension_numbers = #tpu.dot_dimension_numbers<[1], [0], [0], [1], [0, 0, 1, 1], [], []>} : vector<2x128xf32>, vector<128x128xf32>, vector<2x128xf32> -> vector<2x128xf32>
    %329 = arith.addf %328, %292 : vector<2x128xf32>
    %330 = arith.mulf %329, %327 : vector<2x128xf32>
    %cst_88 = arith.constant dense<0.000000e+00> : vector<2xf32>
    %331 = vector.multi_reduction <add>, %330, %cst_88 [1] : vector<2x128xf32> to vector<2xf32>
    %332 = vector.shape_cast %331 : vector<2xf32> to vector<2x1xf32>
    %333 = arith.addf %284, %332 : vector<2x1xf32>
    %c8_i32_89 = arith.constant 8 : i32
    %334 = vector.broadcast %c8_i32_89 : i32 to vector<2x16xi32>
    %335 = arith.muli %14, %334 : vector<2x16xi32>
    %c7_i32 = arith.constant 7 : i32
    %336 = vector.broadcast %c7_i32 : i32 to vector<2x16xi32>
    %337 = arith.addi %335, %336 : vector<2x16xi32>
    %338 = arith.cmpi eq, %15, %337 : vector<2x16xi32>
    %339 = arith.extui %338 : vector<2x16xi1> to vector<2x16xi32>
    %340 = arith.sitofp %339 : vector<2x16xi32> to vector<2x16xf32>
    %cst_90 = arith.constant dense<0.000000e+00> : vector<2x128xf32>
    %341 = tpu.matmul %340, %6, %cst_90 {dimension_numbers = #tpu.dot_dimension_numbers<[1], [0], [0], [1], [0, 0, 1, 1], [], []>} : vector<2x16xf32>, vector<16x128xf32>, vector<2x128xf32> -> vector<2x128xf32>
    %342 = vector.shape_cast %304 : vector<2x128xf32> to vector<2x128x1xf32>
    %343 = vector.broadcast %342 : vector<2x128x1xf32> to vector<2x128x128xf32>
    %344 = vector.broadcast %16 : vector<1x128x128xf32> to vector<2x128x128xf32>
    %345 = arith.addf %343, %344 : vector<2x128x128xf32>
    %cst_91 = arith.constant dense<0xFF800000> : vector<2x128xf32>
    %346 = vector.multi_reduction <maximumf>, %345, %cst_91 [1] : vector<2x128x128xf32> to vector<2x128xf32>
    %347 = vector.shape_cast %346 : vector<2x128xf32> to vector<2x1x128xf32>
    %348 = vector.broadcast %347 : vector<2x1x128xf32> to vector<2x128x128xf32>
    %349 = arith.cmpf oge, %345, %348 : vector<2x128x128xf32>
    %c128_i32_92 = arith.constant 128 : i32
    %350 = vector.broadcast %c128_i32_92 : i32 to vector<2x128x128xi32>
    %351 = arith.select %349, %12, %350 : vector<2x128x128xi1>, vector<2x128x128xi32>
    %cst_93 = arith.constant dense<2147483647> : vector<2x128xi32>
    %352 = vector.multi_reduction <minsi>, %351, %cst_93 [1] : vector<2x128x128xi32> to vector<2x128xi32>
    %353 = arith.addf %346, %341 : vector<2x128xf32>
    %354 = vector.shape_cast %317 : vector<2x128xf32> to vector<2x128x1xf32>
    %355 = vector.broadcast %354 : vector<2x128x1xf32> to vector<2x128x128xf32>
    %356 = vector.broadcast %16 : vector<1x128x128xf32> to vector<2x128x128xf32>
    %357 = arith.addf %355, %356 : vector<2x128x128xf32>
    %cst_94 = arith.constant dense<0xFF800000> : vector<2x128xf32>
    %358 = vector.multi_reduction <maximumf>, %357, %cst_94 [1] : vector<2x128x128xf32> to vector<2x128xf32>
    %359 = vector.shape_cast %358 : vector<2x128xf32> to vector<2x1x128xf32>
    %360 = vector.broadcast %359 : vector<2x1x128xf32> to vector<2x128x128xf32>
    %361 = arith.subf %357, %360 : vector<2x128x128xf32>
    %362 = math.exp %361 : vector<2x128x128xf32>
    %cst_95 = arith.constant dense<0.000000e+00> : vector<2x128xf32>
    %363 = vector.multi_reduction <add>, %362, %cst_95 [1] : vector<2x128x128xf32> to vector<2x128xf32>
    %364 = math.log %363 : vector<2x128xf32>
    %365 = arith.addf %358, %364 : vector<2x128xf32>
    %366 = arith.addf %365, %341 : vector<2x128xf32>
    %c7_i32_96 = arith.constant 7 : i32
    %367 = vector.broadcast %c7_i32_96 : i32 to vector<2x8xi32>
    %368 = arith.cmpi eq, %13, %367 : vector<2x8xi32>
    %c0_i32_97 = arith.constant 0 : i32
    %369 = vector.broadcast %c0_i32_97 : i32 to vector<2x8xi32>
    %370 = arith.select %368, %7, %369 : vector<2x8xi1>, vector<2x8xi32>
    %cst_98 = arith.constant dense<0> : vector<2xi32>
    %371 = vector.multi_reduction <add>, %370, %cst_98 [1] : vector<2x8xi32> to vector<2xi32>
    %372 = vector.shape_cast %371 : vector<2xi32> to vector<2x1xi32>
    %373 = vector.broadcast %372 : vector<2x1xi32> to vector<2x128xi32>
    %374 = arith.cmpi eq, %11, %373 : vector<2x128xi32>
    %375 = arith.extui %374 : vector<2x128xi1> to vector<2x128xi32>
    %376 = arith.sitofp %375 : vector<2x128xi32> to vector<2x128xf32>
    %cst_99 = arith.constant dense<0.000000e+00> : vector<2x128xf32>
    %377 = tpu.matmul %327, %8, %cst_99 {dimension_numbers = #tpu.dot_dimension_numbers<[1], [0], [0], [1], [0, 0, 1, 1], [], []>} : vector<2x128xf32>, vector<128x128xf32>, vector<2x128xf32> -> vector<2x128xf32>
    %378 = arith.addf %377, %341 : vector<2x128xf32>
    %379 = arith.mulf %378, %376 : vector<2x128xf32>
    %cst_100 = arith.constant dense<0.000000e+00> : vector<2xf32>
    %380 = vector.multi_reduction <add>, %379, %cst_100 [1] : vector<2x128xf32> to vector<2xf32>
    %381 = vector.shape_cast %380 : vector<2xf32> to vector<2x1xf32>
    %382 = arith.addf %333, %381 : vector<2x1xf32>
    %383 = vector.broadcast %10 : vector<1x128xf32> to vector<2x128xf32>
    %384 = arith.mulf %383, %376 : vector<2x128xf32>
    %cst_101 = arith.constant dense<0.000000e+00> : vector<2xf32>
    %385 = vector.multi_reduction <add>, %384, %cst_101 [1] : vector<2x128xf32> to vector<2xf32>
    %386 = vector.shape_cast %385 : vector<2xf32> to vector<2x1xf32>
    %387 = arith.addf %382, %386 : vector<2x1xf32>
    %388 = vector.broadcast %10 : vector<1x128xf32> to vector<2x128xf32>
    %389 = arith.addf %366, %388 : vector<2x128xf32>
    %cst_102 = arith.constant dense<0xFF800000> : vector<2xf32>
    %390 = vector.multi_reduction <maximumf>, %389, %cst_102 [1] : vector<2x128xf32> to vector<2xf32>
    %391 = vector.shape_cast %390 : vector<2xf32> to vector<2x1xf32>
    %392 = vector.broadcast %391 : vector<2x1xf32> to vector<2x128xf32>
    %393 = arith.subf %389, %392 : vector<2x128xf32>
    %394 = math.exp %393 : vector<2x128xf32>
    %cst_103 = arith.constant dense<0.000000e+00> : vector<2xf32>
    %395 = vector.multi_reduction <add>, %394, %cst_103 [1] : vector<2x128xf32> to vector<2xf32>
    %396 = vector.shape_cast %395 : vector<2xf32> to vector<2x1xf32>
    %397 = math.log %396 : vector<2x1xf32>
    %398 = arith.addf %391, %397 : vector<2x1xf32>
    %399 = arith.subf %387, %398 : vector<2x1xf32>
    %c0_104 = arith.constant 0 : index
    %c0_105 = arith.constant 0 : index
    %400 = vector.load %arg9[%c0_104, %c0_105] : memref<2x1xf32, #tpu.memory_space<vmem>>, vector<2x1xf32>
    tpu.vector_store %arg9[%c0_104, %c0_105], %399 {strides = array<i32>} : memref<2x1xf32, #tpu.memory_space<vmem>>, vector<2x1xf32>,
    %401 = vector.broadcast %10 : vector<1x128xf32> to vector<2x128xf32>
    %402 = arith.addf %353, %401 : vector<2x128xf32>
    %cst_106 = arith.constant dense<0xFF800000> : vector<2xf32>
    %403 = vector.multi_reduction <maximumf>, %402, %cst_106 [1] : vector<2x128xf32> to vector<2xf32>
    %404 = vector.shape_cast %403 : vector<2xf32> to vector<2x1xf32>
    %405 = vector.broadcast %404 : vector<2x1xf32> to vector<2x128xf32>
    %406 = arith.cmpf oge, %402, %405 : vector<2x128xf32>
    %c128_i32_107 = arith.constant 128 : i32
    %407 = vector.broadcast %c128_i32_107 : i32 to vector<2x128xi32>
    %408 = arith.select %406, %11, %407 : vector<2x128xi1>, vector<2x128xi32>
    %cst_108 = arith.constant dense<2147483647> : vector<2xi32>
    %409 = vector.multi_reduction <minsi>, %408, %cst_108 [1] : vector<2x128xi32> to vector<2xi32>
    %410 = vector.shape_cast %409 : vector<2xi32> to vector<2x1xi32>
    %411 = vector.broadcast %410 : vector<2x1xi32> to vector<2x128xi32>
    %412 = arith.cmpi eq, %11, %411 : vector<2x128xi32>
    %c0_i32_109 = arith.constant 0 : i32
    %413 = vector.broadcast %c0_i32_109 : i32 to vector<2x128xi32>
    %414 = arith.select %412, %352, %413 : vector<2x128xi1>, vector<2x128xi32>
    %cst_110 = arith.constant dense<0> : vector<2xi32>
    %415 = vector.multi_reduction <add>, %414, %cst_110 [1] : vector<2x128xi32> to vector<2xi32>
    %416 = vector.shape_cast %415 : vector<2xi32> to vector<2x1xi32>
    %417 = vector.broadcast %416 : vector<2x1xi32> to vector<2x128xi32>
    %418 = arith.cmpi eq, %11, %417 : vector<2x128xi32>
    %c0_i32_111 = arith.constant 0 : i32
    %419 = vector.broadcast %c0_i32_111 : i32 to vector<2x128xi32>
    %420 = arith.select %418, %303, %419 : vector<2x128xi1>, vector<2x128xi32>
    %cst_112 = arith.constant dense<0> : vector<2xi32>
    %421 = vector.multi_reduction <add>, %420, %cst_112 [1] : vector<2x128xi32> to vector<2xi32>
    %422 = vector.shape_cast %421 : vector<2xi32> to vector<2x1xi32>
    %423 = vector.broadcast %422 : vector<2x1xi32> to vector<2x128xi32>
    %424 = arith.cmpi eq, %11, %423 : vector<2x128xi32>
    %c0_i32_113 = arith.constant 0 : i32
    %425 = vector.broadcast %c0_i32_113 : i32 to vector<2x128xi32>
    %426 = arith.select %424, %254, %425 : vector<2x128xi1>, vector<2x128xi32>
    %cst_114 = arith.constant dense<0> : vector<2xi32>
    %427 = vector.multi_reduction <add>, %426, %cst_114 [1] : vector<2x128xi32> to vector<2xi32>
    %428 = vector.shape_cast %427 : vector<2xi32> to vector<2x1xi32>
    %429 = vector.broadcast %428 : vector<2x1xi32> to vector<2x128xi32>
    %430 = arith.cmpi eq, %11, %429 : vector<2x128xi32>
    %c0_i32_115 = arith.constant 0 : i32
    %431 = vector.broadcast %c0_i32_115 : i32 to vector<2x128xi32>
    %432 = arith.select %430, %205, %431 : vector<2x128xi1>, vector<2x128xi32>
    %cst_116 = arith.constant dense<0> : vector<2xi32>
    %433 = vector.multi_reduction <add>, %432, %cst_116 [1] : vector<2x128xi32> to vector<2xi32>
    %434 = vector.shape_cast %433 : vector<2xi32> to vector<2x1xi32>
    %435 = vector.broadcast %434 : vector<2x1xi32> to vector<2x128xi32>
    %436 = arith.cmpi eq, %11, %435 : vector<2x128xi32>
    %c0_i32_117 = arith.constant 0 : i32
    %437 = vector.broadcast %c0_i32_117 : i32 to vector<2x128xi32>
    %438 = arith.select %436, %156, %437 : vector<2x128xi1>, vector<2x128xi32>
    %cst_118 = arith.constant dense<0> : vector<2xi32>
    %439 = vector.multi_reduction <add>, %438, %cst_118 [1] : vector<2x128xi32> to vector<2xi32>
    %440 = vector.shape_cast %439 : vector<2xi32> to vector<2x1xi32>
    %441 = vector.broadcast %440 : vector<2x1xi32> to vector<2x128xi32>
    %442 = arith.cmpi eq, %11, %441 : vector<2x128xi32>
    %c0_i32_119 = arith.constant 0 : i32
    %443 = vector.broadcast %c0_i32_119 : i32 to vector<2x128xi32>
    %444 = arith.select %442, %107, %443 : vector<2x128xi1>, vector<2x128xi32>
    %cst_120 = arith.constant dense<0> : vector<2xi32>
    %445 = vector.multi_reduction <add>, %444, %cst_120 [1] : vector<2x128xi32> to vector<2xi32>
    %446 = vector.shape_cast %445 : vector<2xi32> to vector<2x1xi32>
    %447 = vector.broadcast %446 : vector<2x1xi32> to vector<2x128xi32>
    %448 = arith.cmpi eq, %11, %447 : vector<2x128xi32>
    %c0_i32_121 = arith.constant 0 : i32
    %449 = vector.broadcast %c0_i32_121 : i32 to vector<2x128xi32>
    %450 = arith.select %448, %58, %449 : vector<2x128xi1>, vector<2x128xi32>
    %cst_122 = arith.constant dense<0> : vector<2xi32>
    %451 = vector.multi_reduction <add>, %450, %cst_122 [1] : vector<2x128xi32> to vector<2xi32>
    %452 = vector.shape_cast %451 : vector<2xi32> to vector<2x1xi32>
    %c0_i32_123 = arith.constant 0 : i32
    %453 = vector.broadcast %c0_i32_123 : i32 to vector<2x8xi32>
    %c0_i32_124 = arith.constant 0 : i32
    %454 = vector.broadcast %c0_i32_124 : i32 to vector<2x8xi32>
    %455 = arith.cmpi eq, %13, %454 : vector<2x8xi32>
    %c0_i32_125 = arith.constant 0 : i32
    %456 = vector.shape_cast %452 : vector<2x1xi32> to vector<2x1xi32>
    %457 = vector.broadcast %456 : vector<2x1xi32> to vector<2x8xi32>
    %458 = vector.broadcast %c0_i32_125 : i32 to vector<2x8xi32>
    %459 = arith.select %455, %457, %458 : vector<2x8xi1>, vector<2x8xi32>
    %460 = arith.addi %453, %459 : vector<2x8xi32>
    %c1_i32_126 = arith.constant 1 : i32
    %461 = vector.broadcast %c1_i32_126 : i32 to vector<2x8xi32>
    %462 = arith.cmpi eq, %13, %461 : vector<2x8xi32>
    %c0_i32_127 = arith.constant 0 : i32
    %463 = vector.shape_cast %446 : vector<2x1xi32> to vector<2x1xi32>
    %464 = vector.broadcast %463 : vector<2x1xi32> to vector<2x8xi32>
    %465 = vector.broadcast %c0_i32_127 : i32 to vector<2x8xi32>
    %466 = arith.select %462, %464, %465 : vector<2x8xi1>, vector<2x8xi32>
    %467 = arith.addi %460, %466 : vector<2x8xi32>
    %c2_i32_128 = arith.constant 2 : i32
    %468 = vector.broadcast %c2_i32_128 : i32 to vector<2x8xi32>
    %469 = arith.cmpi eq, %13, %468 : vector<2x8xi32>
    %c0_i32_129 = arith.constant 0 : i32
    %470 = vector.shape_cast %440 : vector<2x1xi32> to vector<2x1xi32>
    %471 = vector.broadcast %470 : vector<2x1xi32> to vector<2x8xi32>
    %472 = vector.broadcast %c0_i32_129 : i32 to vector<2x8xi32>
    %473 = arith.select %469, %471, %472 : vector<2x8xi1>, vector<2x8xi32>
    %474 = arith.addi %467, %473 : vector<2x8xi32>
    %c3_i32_130 = arith.constant 3 : i32
    %475 = vector.broadcast %c3_i32_130 : i32 to vector<2x8xi32>
    %476 = arith.cmpi eq, %13, %475 : vector<2x8xi32>
    %c0_i32_131 = arith.constant 0 : i32
    %477 = vector.shape_cast %434 : vector<2x1xi32> to vector<2x1xi32>
    %478 = vector.broadcast %477 : vector<2x1xi32> to vector<2x8xi32>
    %479 = vector.broadcast %c0_i32_131 : i32 to vector<2x8xi32>
    %480 = arith.select %476, %478, %479 : vector<2x8xi1>, vector<2x8xi32>
    %481 = arith.addi %474, %480 : vector<2x8xi32>
    %c4_i32_132 = arith.constant 4 : i32
    %482 = vector.broadcast %c4_i32_132 : i32 to vector<2x8xi32>
    %483 = arith.cmpi eq, %13, %482 : vector<2x8xi32>
    %c0_i32_133 = arith.constant 0 : i32
    %484 = vector.shape_cast %428 : vector<2x1xi32> to vector<2x1xi32>
    %485 = vector.broadcast %484 : vector<2x1xi32> to vector<2x8xi32>
    %486 = vector.broadcast %c0_i32_133 : i32 to vector<2x8xi32>
    %487 = arith.select %483, %485, %486 : vector<2x8xi1>, vector<2x8xi32>
    %488 = arith.addi %481, %487 : vector<2x8xi32>
    %c5_i32_134 = arith.constant 5 : i32
    %489 = vector.broadcast %c5_i32_134 : i32 to vector<2x8xi32>
    %490 = arith.cmpi eq, %13, %489 : vector<2x8xi32>
    %c0_i32_135 = arith.constant 0 : i32
    %491 = vector.shape_cast %422 : vector<2x1xi32> to vector<2x1xi32>
    %492 = vector.broadcast %491 : vector<2x1xi32> to vector<2x8xi32>
    %493 = vector.broadcast %c0_i32_135 : i32 to vector<2x8xi32>
    %494 = arith.select %490, %492, %493 : vector<2x8xi1>, vector<2x8xi32>
    %495 = arith.addi %488, %494 : vector<2x8xi32>
    %c6_i32_136 = arith.constant 6 : i32
    %496 = vector.broadcast %c6_i32_136 : i32 to vector<2x8xi32>
    %497 = arith.cmpi eq, %13, %496 : vector<2x8xi32>
    %c0_i32_137 = arith.constant 0 : i32
    %498 = vector.shape_cast %416 : vector<2x1xi32> to vector<2x1xi32>
    %499 = vector.broadcast %498 : vector<2x1xi32> to vector<2x8xi32>
    %500 = vector.broadcast %c0_i32_137 : i32 to vector<2x8xi32>
    %501 = arith.select %497, %499, %500 : vector<2x8xi1>, vector<2x8xi32>
    %502 = arith.addi %495, %501 : vector<2x8xi32>
    %c7_i32_138 = arith.constant 7 : i32
    %503 = vector.broadcast %c7_i32_138 : i32 to vector<2x8xi32>
    %504 = arith.cmpi eq, %13, %503 : vector<2x8xi32>
    %c0_i32_139 = arith.constant 0 : i32
    %505 = vector.shape_cast %410 : vector<2x1xi32> to vector<2x1xi32>
    %506 = vector.broadcast %505 : vector<2x1xi32> to vector<2x8xi32>
    %507 = vector.broadcast %c0_i32_139 : i32 to vector<2x8xi32>
    %508 = arith.select %504, %506, %507 : vector<2x8xi1>, vector<2x8xi32>
    %509 = arith.addi %502, %508 : vector<2x8xi32>
    %c0_140 = arith.constant 0 : index
    %c0_141 = arith.constant 0 : index
    %510 = vector.load %arg8[%c0_140, %c0_141] : memref<2x8xi32, #tpu.memory_space<vmem>>, vector<2x8xi32>
    tpu.vector_store %arg8[%c0_140, %c0_141], %509 {strides = array<i32>} : memref<2x8xi32, #tpu.memory_space<vmem>>, vector<2x8xi32>,
    return
  }
  func.func @transform_0(%arg0: i32) -> (i32, i32) {
    %c0_i32 = arith.constant 0 : i32
    %c0_i32_0 = arith.constant 0 : i32
    %c0_i32_1 = arith.constant 0 : i32
    return %c0_i32, %c0_i32_0 : i32, i32
  }
  func.func @transform_1(%arg0: i32) -> (i32, i32) {
    %c0_i32 = arith.constant 0 : i32
    %c0_i32_0 = arith.constant 0 : i32
    %c0_i32_1 = arith.constant 0 : i32
    return %c0_i32, %c0_i32_0 : i32, i32
  }
  func.func @transform_2(%arg0: i32) -> (i32, i32) {
    %c0_i32 = arith.constant 0 : i32
    %c0_i32_0 = arith.constant 0 : i32
    %c0_i32_1 = arith.constant 0 : i32
    return %c0_i32, %c0_i32_0 : i32, i32
  }
  func.func @transform_3(%arg0: i32) -> (i32, i32) {
    %c0_i32 = arith.constant 0 : i32
    %c0_i32_0 = arith.constant 0 : i32
    %c0_i32_1 = arith.constant 0 : i32
    return %c0_i32, %c0_i32_0 : i32, i32
  }
  func.func @transform_4(%arg0: i32) -> (i32, i32) {
    %c0_i32 = arith.constant 0 : i32
    %c0_i32_0 = arith.constant 0 : i32
    %c0_i32_1 = arith.constant 0 : i32
    return %c0_i32, %c0_i32_0 : i32, i32
  }
  func.func @transform_5(%arg0: i32) -> (i32, i32) {
    %c0_i32 = arith.constant 0 : i32
    %c0_i32_0 = arith.constant 0 : i32
    %c0_i32_1 = arith.constant 0 : i32
    return %c0_i32, %c0_i32_0 : i32, i32
  }
  func.func @transform_6(%arg0: i32) -> (i32, i32) {
    %c0_i32 = arith.constant 0 : i32
    %c0_i32_0 = arith.constant 0 : i32
    %c0_i32_1 = arith.constant 0 : i32
    return %c0_i32, %c0_i32_0 : i32, i32
  }
  func.func @transform_7(%arg0: i32) -> (i32, i32) {
    %c0_i32 = arith.constant 0 : i32
    %c0_i32_0 = arith.constant 0 : i32
    %c0_i32_1 = arith.constant 0 : i32
    return %c0_i32, %c0_i32_0 : i32, i32
  }
  func.func @transform_8(%arg0: i32) -> (i32, i32) {
    %c0_i32 = arith.constant 0 : i32
    %c0_i32_0 = arith.constant 0 : i32
    %c0_i32_1 = arith.constant 0 : i32
    return %c0_i32, %c0_i32_0 : i32, i32
  }
}

</mosaic_0001>

<llo_original>
// kernel: custom-call
$region0: #{custom-call}
  %s0 = inlined_call_operand.vmem [shape: f32[1536], index: 0, kind: output, shape index: {}]

// kernel: bert_crf_forward.4
$region0: #{bert_crf_forward.4}
  #allocation0 [shape = 'u32[]', space=smem, size = 0x4, offset = 0x4, fixed_abs, tag = 'smem constant byte address 0x4 - core index']
  #allocation1 [shape = 'u32[144,128]{1,0:T(1,128)}', space=vmem, size = 0x12000, scoped, tag = 'internal scratch']
  %s0 = inlined_call_operand.vmem [shape: f32[16,128], index: 0, kind: input, shape index: {}]
  %s1 = inlined_call_operand.vmem [shape: f32[1,128], index: 1, kind: input, shape index: {}]
  %s2 = inlined_call_operand.vmem [shape: f32[1,128], index: 2, kind: input, shape index: {}]
  %s3 = inlined_call_operand.vmem [shape: f32[16,128], index: 3, kind: output, shape index: {}]
  %s4 = sld [smem:[#allocation0]]
  $region22: #{bert_crf_forward.4} parent=0
    _
  %s6 = ssub.s32 1, %s4
  %s7 = scalar_select 0, %s6, %s4
  // Predicated region
  $region2: #{bert_crf_forward.4} parent=0 // pred_check
    _
  $region3: #{bert_crf_forward.4} parent=0 // pred_check_branch
    %9 = sbr.rel (0) target = $region5
  $region4: #{bert_crf_forward.4} parent=0 // pred_region
    _
  $region5: #{bert_crf_forward.4} parent=0 // pred_fallthru
    _
  // Predicated region
  $region6: #{bert_crf_forward.4} parent=0 // pred_check
    _
  $region7: #{bert_crf_forward.4} parent=0 // pred_check_branch
    %11 = sbr.rel (0) target = $region9
  $region8: #{bert_crf_forward.4} parent=0 // pred_region
    _
  $region9: #{bert_crf_forward.4} parent=0 // pred_fallthru
    _
  // Predicated region
  $region10: #{bert_crf_forward.4} parent=0 // pred_check
    _
  $region11: #{bert_crf_forward.4} parent=0 // pred_check_branch
    %13 = sbr.rel (0) target = $region13
  $region12: #{bert_crf_forward.4} parent=0 // pred_region
    _
  $region13: #{bert_crf_forward.4} parent=0 // pred_fallthru
    _
  %v14 = vld [vmem:[%s0] sm:$0xff]
  %v15 = vld [vmem:[%s0 + $0x8] sm:$0xff]
  %v16 = vld [vmem:[%s1] sm:$0x1]
  %v17 = vld [vmem:[%s2] sm:$0x1]
  %18 = vadd.xlane.f32.xlu0 %v14
  %v19 = vpop.xlane.xlu0 %18
  %20 = vadd.xlane.f32.xlu0 %v15
  %v21 = vpop.xlane.xlu0 %20
  %v22 = vrcp.pop 128.0
  %v23 = vmul.f32 %v19, %v22
  %v24 = vmul.f32 %v21, %v22
  %v25 = vsub.f32 %v14, %v23
  %v26 = vsub.f32 %v15, %v24
  %v27 = vmul.f32 %v25, %v25
  %v28 = vmul.f32 %v26, %v26
  %29 = vadd.xlane.f32.xlu0 %v27
  %v30 = vpop.xlane.xlu0 %29
  %31 = vadd.xlane.f32.xlu0 %v28
  %v32 = vpop.xlane.xlu0 %31
  %v33 = vmul.f32 %v30, %v22
  %v34 = vmul.f32 %v32, %v22
  %v35 = vadd.f32 %v33, 1e-12
  %v36 = vadd.f32 %v34, 1e-12
  %v37 = vrsqrt.pop %v35
  %v38 = vrsqrt.pop %v36
  %v39 = vmul.f32 %v25, %v37
  %v40 = vmul.f32 %v26, %v38
  %v42 = vlaneseq
  %v43 = vshrl.u32 %v42, 7
  %v44 = vsub.s32 0, %v43
  %v45 = vrot.slane %v16, %v44
  %v47 = vmul.f32 %v39, %v45
  %v48 = vmul.f32 %v40, %v45
  %v50 = vlaneseq
  %v51 = vshrl.u32 %v50, 7
  %v52 = vsub.s32 0, %v51
  %v53 = vrot.slane %v17, %v52
  %v55 = vadd.f32 %v47, %v53
  %v56 = vadd.f32 %v48, %v53
  %57 = vst [vmem:[%s3] sm:$0xff] %v55
  %58 = vst [vmem:[%s3 + $0x8] sm:$0xff] %v56
  // Predicated region
  $region14: #{bert_crf_forward.4} parent=0 // pred_check
    _
  $region15: #{bert_crf_forward.4} parent=0 // pred_check_branch
    %60 = sbr.rel (0) target = $region17
  $region16: #{bert_crf_forward.4} parent=0 // pred_region
    _
  $region17: #{bert_crf_forward.4} parent=0 // pred_fallthru
    _
  // Predicated region
  $region18: #{bert_crf_forward.4} parent=0 // pred_check
    _
  $region19: #{bert_crf_forward.4} parent=0 // pred_check_branch
    %62 = sbr.rel (0) target = $region21
  $region20: #{bert_crf_forward.4} parent=0 // pred_region
    _
  $region21: #{bert_crf_forward.4} parent=0 // pred_fallthru
    _

// kernel: bert_crf_forward.5
$region0: #{bert_crf_forward.5}
  #allocation0 [shape = 'u32[]', space=smem, size = 0x4, offset = 0x4, fixed_abs, tag = 'smem constant byte address 0x4 - core index']
  #allocation1 [shape = 'u32[144,128]{1,0:T(1,128)}', space=vmem, size = 0x12000, scoped, tag = 'internal scratch']
  %s0 = inlined_call_operand.vmem [shape: f32[16,128], index: 0, kind: input, shape index: {}]
  %s1 = inlined_call_operand.vmem [shape: bf16[128,1536], index: 1, kind: input, shape index: {}]
  %s2 = inlined_call_operand.vmem [shape: f32[1,1536], index: 2, kind: input, shape index: {}]
  %s3 = inlined_call_operand.vmem [shape: bf16[512,128], index: 3, kind: input, shape index: {}]
  %s4 = inlined_call_operand.vmem [shape: f32[1,128], index: 4, kind: input, shape index: {}]
  %s5 = inlined_call_operand.vmem [shape: f32[1,128], index: 5, kind: input, shape index: {}]
  %s6 = inlined_call_operand.vmem [shape: f32[1,128], index: 6, kind: input, shape index: {}]
  %s7 = inlined_call_operand.vmem [shape: bf16[128,256], index: 7, kind: input, shape index: {}]
  %s8 = inlined_call_operand.vmem [shape: f32[1,256], index: 8, kind: input, shape index: {}]
  %s9 = inlined_call_operand.vmem [shape: bf16[256,128], index: 9, kind: input, shape index: {}]
  %s10 = inlined_call_operand.vmem [shape: f32[1,128], index: 10, kind: input, shape index: {}]
  %s11 = inlined_call_operand.vmem [shape: f32[1,128], index: 11, kind: input, shape index: {}]
  %s12 = inlined_call_operand.vmem [shape: f32[1,128], index: 12, kind: input, shape index: {}]
  %s13 = inlined_call_operand.vmem [shape: f32[2,1,8], index: 13, kind: input, shape index: {}]
  %s14 = inlined_call_operand.vmem [shape: f32[16,128], index: 14, kind: output, shape index: {}]
  %s15 = sld [smem:[#allocation0]]
  $region66: #{bert_crf_forward.5} parent=0
    _
  %s17 = ssub.s32 1, %s15
  %s18 = scalar_select 0, %s17, %s15
  // Predicated region
  $region2: #{bert_crf_forward.5} parent=0 // pred_check
    _
  $region3: #{bert_crf_forward.5} parent=0 // pred_check_branch
    %20 = sbr.rel (0) target = $region5
  $region4: #{bert_crf_forward.5} parent=0 // pred_region
    _
  $region5: #{bert_crf_forward.5} parent=0 // pred_fallthru
    _
  // Predicated region
  $region6: #{bert_crf_forward.5} parent=0 // pred_check
    _
  $region7: #{bert_crf_forward.5} parent=0 // pred_check_branch
    %22 = sbr.rel (0) target = $region9
  $region8: #{bert_crf_forward.5} parent=0 // pred_region
    _
  $region9: #{bert_crf_forward.5} parent=0 // pred_fallthru
    _
  // Predicated region
  $region10: #{bert_crf_forward.5} parent=0 // pred_check
    _
  $region11: #{bert_crf_forward.5} parent=0 // pred_check_branch
    %24 = sbr.rel (0) target = $region13
  $region12: #{bert_crf_forward.5} parent=0 // pred_region
    _
  $region13: #{bert_crf_forward.5} parent=0 // pred_fallthru
    _
  // Predicated region
  $region14: #{bert_crf_forward.5} parent=0 // pred_check
    _
  $region15: #{bert_crf_forward.5} parent=0 // pred_check_branch
    %26 = sbr.rel (0) target = $region17
  $region16: #{bert_crf_forward.5} parent=0 // pred_region
    _
  $region17: #{bert_crf_forward.5} parent=0 // pred_fallthru
    _
  // Predicated region
  $region18: #{bert_crf_forward.5} parent=0 // pred_check
    _
  $region19: #{bert_crf_forward.5} parent=0 // pred_check_branch
    %28 = sbr.rel (0) target = $region21
  $region20: #{bert_crf_forward.5} parent=0 // pred_region
    _
  $region21: #{bert_crf_forward.5} parent=0 // pred_fallthru
    _
  // Predicated region
  $region22: #{bert_crf_forward.5} parent=0 // pred_check
    _
  $region23: #{bert_crf_forward.5} parent=0 // pred_check_branch
    %30 = sbr.rel (0) target = $region25
  $region24: #{bert_crf_forward.5} parent=0 // pred_region
    _
  $region25: #{bert_crf_forward.5} parent=0 // pred_fallthru
    _
  // Predicated region
  $region26: #{bert_crf_forward.5} parent=0 // pred_check
    _
  $region27: #{bert_crf_forward.5} parent=0 // pred_check_branch
    %32 = sbr.rel (0) target = $region29
  $region28: #{bert_crf_forward.5} parent=0 // pred_region
    _
  $region29: #{bert_crf_forward.5} parent=0 // pred_fallthru
    _
  // Predicated region
  $region30: #{bert_crf_forward.5} parent=0 // pred_check
    _
  $region31: #{bert_crf_forward.5} parent=0 // pred_check_branch
    %34 = sbr.rel (0) target = $region33
  $region32: #{bert_crf_forward.5} parent=0 // pred_region
    _
  $region33: #{bert_crf_forward.5} parent=0 // pred_fallthru
    _
  // Predicated region
  $region34: #{bert_crf_forward.5} parent=0 // pred_check
    _
  $region35: #{bert_crf_forward.5} parent=0 // pred_check_branch
    %36 = sbr.rel (0) target = $region37
  $region36: #{bert_crf_forward.5} parent=0 // pred_region
    _
  $region37: #{bert_crf_forward.5} parent=0 // pred_fallthru
    _
  // Predicated region
  $region38: #{bert_crf_forward.5} parent=0 // pred_check
    _
  $region39: #{bert_crf_forward.5} parent=0 // pred_check_branch
    %38 = sbr.rel (0) target = $region41
  $region40: #{bert_crf_forward.5} parent=0 // pred_region
    _
  $region41: #{bert_crf_forward.5} parent=0 // pred_fallthru
    _
  // Predicated region
  $region42: #{bert_crf_forward.5} parent=0 // pred_check
    _
  $region43: #{bert_crf_forward.5} parent=0 // pred_check_branch
    %40 = sbr.rel (0) target = $region45
  $region44: #{bert_crf_forward.5} parent=0 // pred_region
    _
  $region45: #{bert_crf_forward.5} parent=0 // pred_fallthru
    _
  // Predicated region
  $region46: #{bert_crf_forward.5} parent=0 // pred_check
    _
  $region47: #{bert_crf_forward.5} parent=0 // pred_check_branch
    %42 = sbr.rel (0) target = $region49
  $region48: #{bert_crf_forward.5} parent=0 // pred_region
    _
  $region49: #{bert_crf_forward.5} parent=0 // pred_fallthru
    _
  // Predicated region
  $region50: #{bert_crf_forward.5} parent=0 // pred_check
    _
  $region51: #{bert_crf_forward.5} parent=0 // pred_check_branch
    %44 = sbr.rel (0) target = $region53
  $region52: #{bert_crf_forward.5} parent=0 // pred_region
    _
  $region53: #{bert_crf_forward.5} parent=0 // pred_fallthru
    _
  // Predicated region
  $region54: #{bert_crf_forward.5} parent=0 // pred_check
    _
  $region55: #{bert_crf_forward.5} parent=0 // pred_check_branch
    %46 = sbr.rel (0) target = $region57
  $region56: #{bert_crf_forward.5} parent=0 // pred_region
    _
  $region57: #{bert_crf_forward.5} parent=0 // pred_fallthru
    _
  %v48 = vld [vmem:[%s0] sm:$0xff]
  %v49 = vld [vmem:[%s0 + $0x8] sm:$0xff]
  %v50 = vpack.c.bf16 %v49, %v48
  %v51 = vld [vmem:[%s1] sm:$0xff]
  %v52 = vld [vmem:[%s1 + $0x8] sm:$0xff]
  %v53 = vld [vmem:[%s1 + $0x10] sm:$0xff]
  %v54 = vld [vmem:[%s1 + $0x18] sm:$0xff]
  %v55 = vld [vmem:[%s1 + $0x20] sm:$0xff]
  %v56 = vld [vmem:[%s1 + $0x28] sm:$0xff]
  %v57 = vld [vmem:[%s1 + $0x30] sm:$0xff]
  %v58 = vld [vmem:[%s1 + $0x38] sm:$0xff]
  %v59 = vld [vmem:[%s1 + $0x40] sm:$0xff]
  %v60 = vld [vmem:[%s1 + $0x48] sm:$0xff]
  %v61 = vld [vmem:[%s1 + $0x50] sm:$0xff]
  %v62 = vld [vmem:[%s1 + $0x58] sm:$0xff]
  %v63 = vld [vmem:[%s1 + $0x60] sm:$0xff]
  %v64 = vld [vmem:[%s1 + $0x68] sm:$0xff]
  %v65 = vld [vmem:[%s1 + $0x70] sm:$0xff]
  %v66 = vld [vmem:[%s1 + $0x78] sm:$0xff]
  %v67 = vld [vmem:[%s1 + $0x80] sm:$0xff]
  %v68 = vld [vmem:[%s1 + $0x88] sm:$0xff]
  %v69 = vld [vmem:[%s1 + $0x90] sm:$0xff]
  %v70 = vld [vmem:[%s1 + $0x98] sm:$0xff]
  %v71 = vld [vmem:[%s1 + $0xa0] sm:$0xff]
  %v72 = vld [vmem:[%s1 + $0xa8] sm:$0xff]
  %v73 = vld [vmem:[%s1 + $0xb0] sm:$0xff]
  %v74 = vld [vmem:[%s1 + $0xb8] sm:$0xff]
  %v75 = vld [vmem:[%s1 + $0xc0] sm:$0xff]
  %v76 = vld [vmem:[%s1 + $0xc8] sm:$0xff]
  %v77 = vld [vmem:[%s1 + $0xd0] sm:$0xff]
  %v78 = vld [vmem:[%s1 + $0xd8] sm:$0xff]
  %v79 = vld [vmem:[%s1 + $0xe0] sm:$0xff]
  %v80 = vld [vmem:[%s1 + $0xe8] sm:$0xff]
  %v81 = vld [vmem:[%s1 + $0xf0] sm:$0xff]
  %v82 = vld [vmem:[%s1 + $0xf8] sm:$0xff]
  %v83 = vld [vmem:[%s1 + $0x100] sm:$0xff]
  %v84 = vld [vmem:[%s1 + $0x108] sm:$0xff]
  %v85 = vld [vmem:[%s1 + $0x110] sm:$0xff]
  %v86 = vld [vmem:[%s1 + $0x118] sm:$0xff]
  %v87 = vld [vmem:[%s1 + $0x120] sm:$0xff]
  %v88 = vld [vmem:[%s1 + $0x128] sm:$0xff]
  %v89 = vld [vmem:[%s1 + $0x130] sm:$0xff]
  %v90 = vld [vmem:[%s1 + $0x138] sm:$0xff]
  %v91 = vld [vmem:[%s1 + $0x140] sm:$0xff]
  %v92 = vld [vmem:[%s1 + $0x148] sm:$0xff]
  %v93 = vld [vmem:[%s1 + $0x150] sm:$0xff]
  %v94 = vld [vmem:[%s1 + $0x158] sm:$0xff]
  %v95 = vld [vmem:[%s1 + $0x160] sm:$0xff]
  %v96 = vld [vmem:[%s1 + $0x168] sm:$0xff]
  %v97 = vld [vmem:[%s1 + $0x170] sm:$0xff]
  %v98 = vld [vmem:[%s1 + $0x178] sm:$0xff]
  %v99 = vld [vmem:[%s1 + $0x180] sm:$0xff]
  %v100 = vld [vmem:[%s1 + $0x188] sm:$0xff]
  %v101 = vld [vmem:[%s1 + $0x190] sm:$0xff]
  %v102 = vld [vmem:[%s1 + $0x198] sm:$0xff]
  %v103 = vld [vmem:[%s1 + $0x1a0] sm:$0xff]
  %v104 = vld [vmem:[%s1 + $0x1a8] sm:$0xff]
  %v105 = vld [vmem:[%s1 + $0x1b0] sm:$0xff]
  %v106 = vld [vmem:[%s1 + $0x1b8] sm:$0xff]
  %v107 = vld [vmem:[%s1 + $0x1c0] sm:$0xff]
  %v108 = vld [vmem:[%s1 + $0x1c8] sm:$0xff]
  %v109 = vld [vmem:[%s1 + $0x1d0] sm:$0xff]
  %v110 = vld [vmem:[%s1 + $0x1d8] sm:$0xff]
  %v111 = vld [vmem:[%s1 + $0x1e0] sm:$0xff]
  %v112 = vld [vmem:[%s1 + $0x1e8] sm:$0xff]
  %v113 = vld [vmem:[%s1 + $0x1f0] sm:$0xff]
  %v114 = vld [vmem:[%s1 + $0x1f8] sm:$0xff]
  %v115 = vld [vmem:[%s1 + $0x200] sm:$0xff]
  %v116 = vld [vmem:[%s1 + $0x208] sm:$0xff]
  %v117 = vld [vmem:[%s1 + $0x210] sm:$0xff]
  %v118 = vld [vmem:[%s1 + $0x218] sm:$0xff]
  %v119 = vld [vmem:[%s1 + $0x220] sm:$0xff]
  %v120 = vld [vmem:[%s1 + $0x228] sm:$0xff]
  %v121 = vld [vmem:[%s1 + $0x230] sm:$0xff]
  %v122 = vld [vmem:[%s1 + $0x238] sm:$0xff]
  %v123 = vld [vmem:[%s1 + $0x240] sm:$0xff]
  %v124 = vld [vmem:[%s1 + $0x248] sm:$0xff]
  %v125 = vld [vmem:[%s1 + $0x250] sm:$0xff]
  %v126 = vld [vmem:[%s1 + $0x258] sm:$0xff]
  %v127 = vld [vmem:[%s1 + $0x260] sm:$0xff]
  %v128 = vld [vmem:[%s1 + $0x268] sm:$0xff]
  %v129 = vld [vmem:[%s1 + $0x270] sm:$0xff]
  %v130 = vld [vmem:[%s1 + $0x278] sm:$0xff]
  %v131 = vld [vmem:[%s1 + $0x280] sm:$0xff]
  %v132 = vld [vmem:[%s1 + $0x288] sm:$0xff]
  %v133 = vld [vmem:[%s1 + $0x290] sm:$0xff]
  %v134 = vld [vmem:[%s1 + $0x298] sm:$0xff]
  %v135 = vld [vmem:[%s1 + $0x2a0] sm:$0xff]
  %v136 = vld [vmem:[%s1 + $0x2a8] sm:$0xff]
  %v137 = vld [vmem:[%s1 + $0x2b0] sm:$0xff]
  %v138 = vld [vmem:[%s1 + $0x2b8] sm:$0xff]
  %v139 = vld [vmem:[%s1 + $0x2c0] sm:$0xff]
  %v140 = vld [vmem:[%s1 + $0x2c8] sm:$0xff]
  %v141 = vld [vmem:[%s1 + $0x2d0] sm:$0xff]
  %v142 = vld [vmem:[%s1 + $0x2d8] sm:$0xff]
  %v143 = vld [vmem:[%s1 + $0x2e0] sm:$0xff]
  %v144 = vld [vmem:[%s1 + $0x2e8] sm:$0xff]
  %v145 = vld [vmem:[%s1 + $0x2f0] sm:$0xff]
  %v146 = vld [vmem:[%s1 + $0x2f8] sm:$0xff]
  %v147 = vld [vmem:[%s2] sm:$0xff]
  %v148 = vld [vmem:[%s2 + $0x8] sm:$0xf]
  %v151 = vlaneseq
  %v152 = vshrl.u32 %v151, 7
  %v153 = vsub.s32 0, %v152
  %v154 = vrot.slane %v147, %v153
  %v155 = vlaneseq
  %v156 = vshrl.u32 %v155, 7
  %v157 = vsub.s32 1, %v156
  %v158 = vrot.slane %v147, %v157
  %v159 = vlaneseq
  %v160 = vshrl.u32 %v159, 7
  %v161 = vsub.s32 2, %v160
  %v162 = vrot.slane %v147, %v161
  %v163 = vlaneseq
  %v164 = vshrl.u32 %v163, 7
  %v165 = vsub.s32 3, %v164
  %v166 = vrot.slane %v147, %v165
  %v167 = vlaneseq
  %v168 = vshrl.u32 %v167, 7
  %v169 = vsub.s32 4, %v168
  %v170 = vrot.slane %v147, %v169
  %v171 = vlaneseq
  %v172 = vshrl.u32 %v171, 7
  %v173 = vsub.s32 5, %v172
  %v174 = vrot.slane %v147, %v173
  %v175 = vlaneseq
  %v176 = vshrl.u32 %v175, 7
  %v177 = vsub.s32 6, %v176
  %v178 = vrot.slane %v147, %v177
  %v179 = vlaneseq
  %v180 = vshrl.u32 %v179, 7
  %v181 = vsub.s32 7, %v180
  %v182 = vrot.slane %v147, %v181
  %v183 = vlaneseq
  %v184 = vshrl.u32 %v183, 7
  %v185 = vsub.s32 0, %v184
  %v186 = vrot.slane %v148, %v185
  %v187 = vlaneseq
  %v188 = vshrl.u32 %v187, 7
  %v189 = vsub.s32 1, %v188
  %v190 = vrot.slane %v148, %v189
  %v191 = vlaneseq
  %v192 = vshrl.u32 %v191, 7
  %v193 = vsub.s32 2, %v192
  %v194 = vrot.slane %v148, %v193
  %v195 = vlaneseq
  %v196 = vshrl.u32 %v195, 7
  %v197 = vsub.s32 3, %v196
  %v198 = vrot.slane %v148, %v197
  %v307 = vunpack.c.l.b16 %v51
  %v308 = vunpack.c.h.b16 %v51
  %v309 = vunpack.c.l.b16 %v52
  %v310 = vunpack.c.h.b16 %v52
  %v311 = vunpack.c.l.b16 %v53
  %v312 = vunpack.c.h.b16 %v53
  %v313 = vunpack.c.l.b16 %v54
  %v314 = vunpack.c.h.b16 %v54
  %v315 = vunpack.c.l.b16 %v55
  %v316 = vunpack.c.h.b16 %v55
  %v317 = vunpack.c.l.b16 %v56
  %v318 = vunpack.c.h.b16 %v56
  %v319 = vunpack.c.l.b16 %v57
  %v320 = vunpack.c.h.b16 %v57
  %v321 = vunpack.c.l.b16 %v58
  %v322 = vunpack.c.h.b16 %v58
  %v323 = vunpack.c.l.b16 %v59
  %v324 = vunpack.c.h.b16 %v59
  %v325 = vunpack.c.l.b16 %v60
  %v326 = vunpack.c.h.b16 %v60
  %v327 = vunpack.c.l.b16 %v61
  %v328 = vunpack.c.h.b16 %v61
  %v329 = vunpack.c.l.b16 %v62
  %v330 = vunpack.c.h.b16 %v62
  %v331 = vunpack.c.l.b16 %v63
  %v332 = vunpack.c.h.b16 %v63
  %v333 = vunpack.c.l.b16 %v64
  %v334 = vunpack.c.h.b16 %v64
  %v335 = vunpack.c.l.b16 %v65
  %v336 = vunpack.c.h.b16 %v65
  %v337 = vunpack.c.l.b16 %v66
  %v338 = vunpack.c.h.b16 %v66
  %v339 = vunpack.c.l.b16 %v67
  %v340 = vunpack.c.h.b16 %v67
  %v341 = vunpack.c.l.b16 %v68
  %v342 = vunpack.c.h.b16 %v68
  %v343 = vunpack.c.l.b16 %v69
  %v344 = vunpack.c.h.b16 %v69
  %v345 = vunpack.c.l.b16 %v70
  %v346 = vunpack.c.h.b16 %v70
  %v347 = vunpack.c.l.b16 %v71
  %v348 = vunpack.c.h.b16 %v71
  %v349 = vunpack.c.l.b16 %v72
  %v350 = vunpack.c.h.b16 %v72
  %v351 = vunpack.c.l.b16 %v73
  %v352 = vunpack.c.h.b16 %v73
  %v353 = vunpack.c.l.b16 %v74
  %v354 = vunpack.c.h.b16 %v74
  %v355 = vunpack.c.l.b16 %v75
  %v356 = vunpack.c.h.b16 %v75
  %v357 = vunpack.c.l.b16 %v76
  %v358 = vunpack.c.h.b16 %v76
  %v359 = vunpack.c.l.b16 %v77
  %v360 = vunpack.c.h.b16 %v77
  %v361 = vunpack.c.l.b16 %v78
  %v362 = vunpack.c.h.b16 %v78
  %v363 = vunpack.c.l.b16 %v79
  %v364 = vunpack.c.h.b16 %v79
  %v365 = vunpack.c.l.b16 %v80
  %v366 = vunpack.c.h.b16 %v80
  %v367 = vunpack.c.l.b16 %v81
  %v368 = vunpack.c.h.b16 %v81
  %v369 = vunpack.c.l.b16 %v82
  %v370 = vunpack.c.h.b16 %v82
  %v371 = vunpack.c.l.b16 %v83
  %v372 = vunpack.c.h.b16 %v83
  %v373 = vunpack.c.l.b16 %v84
  %v374 = vunpack.c.h.b16 %v84
  %v375 = vunpack.c.l.b16 %v85
  %v376 = vunpack.c.h.b16 %v85
  %v377 = vunpack.c.l.b16 %v86
  %v378 = vunpack.c.h.b16 %v86
  %v379 = vunpack.c.l.b16 %v87
  %v380 = vunpack.c.h.b16 %v87
  %v381 = vunpack.c.l.b16 %v88
  %v382 = vunpack.c.h.b16 %v88
  %v383 = vunpack.c.l.b16 %v89
  %v384 = vunpack.c.h.b16 %v89
  %v385 = vunpack.c.l.b16 %v90
  %v386 = vunpack.c.h.b16 %v90
  %v387 = vunpack.c.l.b16 %v91
  %v388 = vunpack.c.h.b16 %v91
  %v389 = vunpack.c.l.b16 %v92
  %v390 = vunpack.c.h.b16 %v92
  %v391 = vunpack.c.l.b16 %v93
  %v392 = vunpack.c.h.b16 %v93
  %v393 = vunpack.c.l.b16 %v94
  %v394 = vunpack.c.h.b16 %v94
  %v395 = vunpack.c.l.b16 %v95
  %v396 = vunpack.c.h.b16 %v95
  %v397 = vunpack.c.l.b16 %v96
  %v398 = vunpack.c.h.b16 %v96
  %v399 = vunpack.c.l.b16 %v97
  %v400 = vunpack.c.h.b16 %v97
  %v401 = vunpack.c.l.b16 %v98
  %v402 = vunpack.c.h.b16 %v98
  %v403 = vunpack.c.l.b16 %v99
  %v404 = vunpack.c.h.b16 %v99
  %v405 = vunpack.c.l.b16 %v100
  %v406 = vunpack.c.h.b16 %v100
  %v407 = vunpack.c.l.b16 %v101
  %v408 = vunpack.c.h.b16 %v101
  %v409 = vunpack.c.l.b16 %v102
  %v410 = vunpack.c.h.b16 %v102
  %v411 = vunpack.c.l.b16 %v103
  %v412 = vunpack.c.h.b16 %v103
  %v413 = vunpack.c.l.b16 %v104
  %v414 = vunpack.c.h.b16 %v104
  %v415 = vunpack.c.l.b16 %v105
  %v416 = vunpack.c.h.b16 %v105
  %v417 = vunpack.c.l.b16 %v106
  %v418 = vunpack.c.h.b16 %v106
  %v419 = vunpack.c.l.b16 %v107
  %v420 = vunpack.c.h.b16 %v107
  %v421 = vunpack.c.l.b16 %v108
  %v422 = vunpack.c.h.b16 %v108
  %v423 = vunpack.c.l.b16 %v109
  %v424 = vunpack.c.h.b16 %v109
  %v425 = vunpack.c.l.b16 %v110
  %v426 = vunpack.c.h.b16 %v110
  %v427 = vunpack.c.l.b16 %v111
  %v428 = vunpack.c.h.b16 %v111
  %v429 = vunpack.c.l.b16 %v112
  %v430 = vunpack.c.h.b16 %v112
  %v431 = vunpack.c.l.b16 %v113
  %v432 = vunpack.c.h.b16 %v113
  %v433 = vunpack.c.l.b16 %v114
  %v434 = vunpack.c.h.b16 %v114
  %v435 = vunpack.c.l.b16 %v115
  %v436 = vunpack.c.h.b16 %v115
  %v437 = vunpack.c.l.b16 %v116
  %v438 = vunpack.c.h.b16 %v116
  %v439 = vunpack.c.l.b16 %v117
  %v440 = vunpack.c.h.b16 %v117
  %v441 = vunpack.c.l.b16 %v118
  %v442 = vunpack.c.h.b16 %v118
  %v443 = vunpack.c.l.b16 %v119
  %v444 = vunpack.c.h.b16 %v119
  %v445 = vunpack.c.l.b16 %v120
  %v446 = vunpack.c.h.b16 %v120
  %v447 = vunpack.c.l.b16 %v121
  %v448 = vunpack.c.h.b16 %v121
  %v449 = vunpack.c.l.b16 %v122
  %v450 = vunpack.c.h.b16 %v122
  %v451 = vunpack.c.l.b16 %v123
  %v452 = vunpack.c.h.b16 %v123
  %v453 = vunpack.c.l.b16 %v124
  %v454 = vunpack.c.h.b16 %v124
  %v455 = vunpack.c.l.b16 %v125
  %v456 = vunpack.c.h.b16 %v125
  %v457 = vunpack.c.l.b16 %v126
  %v458 = vunpack.c.h.b16 %v126
  %v459 = vunpack.c.l.b16 %v127
  %v460 = vunpack.c.h.b16 %v127
  %v461 = vunpack.c.l.b16 %v128
  %v462 = vunpack.c.h.b16 %v128
  %v463 = vunpack.c.l.b16 %v129
  %v464 = vunpack.c.h.b16 %v129
  %v465 = vunpack.c.l.b16 %v130
  %v466 = vunpack.c.h.b16 %v130
  %v467 = vunpack.c.l.b16 %v131
  %v468 = vunpack.c.h.b16 %v131
  %v469 = vunpack.c.l.b16 %v132
  %v470 = vunpack.c.h.b16 %v132
  %v471 = vunpack.c.l.b16 %v133
  %v472 = vunpack.c.h.b16 %v133
  %v473 = vunpack.c.l.b16 %v134
  %v474 = vunpack.c.h.b16 %v134
  %v475 = vunpack.c.l.b16 %v135
  %v476 = vunpack.c.h.b16 %v135
  %v477 = vunpack.c.l.b16 %v136
  %v478 = vunpack.c.h.b16 %v136
  %v479 = vunpack.c.l.b16 %v137
  %v480 = vunpack.c.h.b16 %v137
  %v481 = vunpack.c.l.b16 %v138
  %v482 = vunpack.c.h.b16 %v138
  %v483 = vunpack.c.l.b16 %v139
  %v484 = vunpack.c.h.b16 %v139
  %v485 = vunpack.c.l.b16 %v140
  %v486 = vunpack.c.h.b16 %v140
  %v487 = vunpack.c.l.b16 %v141
  %v488 = vunpack.c.h.b16 %v141
  %v489 = vunpack.c.l.b16 %v142
  %v490 = vunpack.c.h.b16 %v142
  %v491 = vunpack.c.l.b16 %v143
  %v492 = vunpack.c.h.b16 %v143
  %v493 = vunpack.c.l.b16 %v144
  %v494 = vunpack.c.h.b16 %v144
  %v495 = vunpack.c.l.b16 %v145
  %v496 = vunpack.c.h.b16 %v145
  %v497 = vunpack.c.l.b16 %v146
  %v498 = vunpack.c.h.b16 %v146
  %v499 = vpack.c.b16 %v319, %v307
  %v500 = vpack.c.b16 %v320, %v308
  %v501 = vpack.c.b16 %v321, %v309
  %v502 = vpack.c.b16 %v322, %v310
  %v503 = vpack.c.b16 %v323, %v311
  %v504 = vpack.c.b16 %v324, %v312
  %v505 = vpack.c.b16 %v325, %v313
  %v506 = vpack.c.b16 %v326, %v314
  %v507 = vpack.c.b16 %v327, %v315
  %v508 = vpack.c.b16 %v328, %v316
  %v509 = vpack.c.b16 %v329, %v317
  %v510 = vpack.c.b16 %v330, %v318
  %v511 = vpack.c.b16 %v343, %v331
  %v512 = vpack.c.b16 %v344, %v332
  %v513 = vpack.c.b16 %v345, %v333
  %v514 = vpack.c.b16 %v346, %v334
  %v515 = vpack.c.b16 %v347, %v335
  %v516 = vpack.c.b16 %v348, %v336
  %v517 = vpack.c.b16 %v349, %v337
  %v518 = vpack.c.b16 %v350, %v338
  %v519 = vpack.c.b16 %v351, %v339
  %v520 = vpack.c.b16 %v352, %v340
  %v521 = vpack.c.b16 %v353, %v341
  %v522 = vpack.c.b16 %v354, %v342
  %v523 = vpack.c.b16 %v367, %v355
  %v524 = vpack.c.b16 %v368, %v356
  %v525 = vpack.c.b16 %v369, %v357
  %v526 = vpack.c.b16 %v370, %v358
  %v527 = vpack.c.b16 %v371, %v359
  %v528 = vpack.c.b16 %v372, %v360
  %v529 = vpack.c.b16 %v373, %v361
  %v530 = vpack.c.b16 %v374, %v362
  %v531 = vpack.c.b16 %v375, %v363
  %v532 = vpack.c.b16 %v376, %v364
  %v533 = vpack.c.b16 %v377, %v365
  %v534 = vpack.c.b16 %v378, %v366
  %v535 = vpack.c.b16 %v391, %v379
  %v536 = vpack.c.b16 %v392, %v380
  %v537 = vpack.c.b16 %v393, %v381
  %v538 = vpack.c.b16 %v394, %v382
  %v539 = vpack.c.b16 %v395, %v383
  %v540 = vpack.c.b16 %v396, %v384
  %v541 = vpack.c.b16 %v397, %v385
  %v542 = vpack.c.b16 %v398, %v386
  %v543 = vpack.c.b16 %v399, %v387
  %v544 = vpack.c.b16 %v400, %v388
  %v545 = vpack.c.b16 %v401, %v389
  %v546 = vpack.c.b16 %v402, %v390
  %v547 = vpack.c.b16 %v415, %v403
  %v548 = vpack.c.b16 %v416, %v404
  %v549 = vpack.c.b16 %v417, %v405
  %v550 = vpack.c.b16 %v418, %v406
  %v551 = vpack.c.b16 %v419, %v407
  %v552 = vpack.c.b16 %v420, %v408
  %v553 = vpack.c.b16 %v421, %v409
  %v554 = vpack.c.b16 %v422, %v410
  %v555 = vpack.c.b16 %v423, %v411
  %v556 = vpack.c.b16 %v424, %v412
  %v557 = vpack.c.b16 %v425, %v413
  %v558 = vpack.c.b16 %v426, %v414
  %v559 = vpack.c.b16 %v439, %v427
  %v560 = vpack.c.b16 %v440, %v428
  %v561 = vpack.c.b16 %v441, %v429
  %v562 = vpack.c.b16 %v442, %v430
  %v563 = vpack.c.b16 %v443, %v431
  %v564 = vpack.c.b16 %v444, %v432
  %v565 = vpack.c.b16 %v445, %v433
  %v566 = vpack.c.b16 %v446, %v434
  %v567 = vpack.c.b16 %v447, %v435
  %v568 = vpack.c.b16 %v448, %v436
  %v569 = vpack.c.b16 %v449, %v437
  %v570 = vpack.c.b16 %v450, %v438
  %v571 = vpack.c.b16 %v463, %v451
  %v572 = vpack.c.b16 %v464, %v452
  %v573 = vpack.c.b16 %v465, %v453
  %v574 = vpack.c.b16 %v466, %v454
  %v575 = vpack.c.b16 %v467, %v455
  %v576 = vpack.c.b16 %v468, %v456
  %v577 = vpack.c.b16 %v469, %v457
  %v578 = vpack.c.b16 %v470, %v458
  %v579 = vpack.c.b16 %v471, %v459
  %v580 = vpack.c.b16 %v472, %v460
  %v581 = vpack.c.b16 %v473, %v461
  %v582 = vpack.c.b16 %v474, %v462
  %v583 = vpack.c.b16 %v487, %v475
  %v584 = vpack.c.b16 %v488, %v476
  %v585 = vpack.c.b16 %v489, %v477
  %v586 = vpack.c.b16 %v490, %v478
  %v587 = vpack.c.b16 %v491, %v479
  %v588 = vpack.c.b16 %v492, %v480
  %v589 = vpack.c.b16 %v493, %v481
  %v590 = vpack.c.b16 %v494, %v482
  %v591 = vpack.c.b16 %v495, %v483
  %v592 = vpack.c.b16 %v496, %v484
  %v593 = vpack.c.b16 %v497, %v485
  %v594 = vpack.c.b16 %v498, %v486
  %691 = vmatprep.subr.bf16.mxu0 %v500
  %692 = vmatpush1.bf16.msra.mxu0 %v499
  %693 = vmatprep.subr.bf16.mxu0 %v512
  %694 = vmatpush1.bf16.msra.mxu0 %v511
  %695 = vmatprep.subr.bf16.mxu0 %v524
  %696 = vmatpush1.bf16.msra.mxu0 %v523
  %697 = vmatprep.subr.bf16.mxu0 %v536
  %698 = vmatpush1.bf16.msra.mxu0 %v535
  %699 = vmatprep.subr.bf16.mxu0 %v548
  %700 = vmatpush1.bf16.msra.mxu0 %v547
  %701 = vmatprep.subr.bf16.mxu0 %v560
  %702 = vmatpush1.bf16.msra.mxu0 %v559
  %703 = vmatprep.subr.bf16.mxu0 %v572
  %704 = vmatpush1.bf16.msra.mxu0 %v571
  %705 = vmatprep.subr.bf16.mxu0 %v584
  %706 = vmatpush1.bf16.msra.mxu0 %v583
  %707 = vmatprep.subr.bf16.mxu0 0
  %708 = vmatpush1.bf16.msra.mxu0 0
  %709 = vmatprep.subr.bf16.mxu0 0
  %710 = vmatpush1.bf16.msra.mxu0 0
  %711 = vmatprep.subr.bf16.mxu0 0
  %712 = vmatpush1.bf16.msra.mxu0 0
  %713 = vmatprep.subr.bf16.mxu0 0
  %714 = vmatpush1.bf16.msra.mxu0 0
  %715 = vmatprep.subr.bf16.mxu0 0
  %716 = vmatpush1.bf16.msra.mxu0 0
  %717 = vmatprep.subr.bf16.mxu0 0
  %718 = vmatpush1.bf16.msra.mxu0 0
  %719 = vmatprep.subr.bf16.mxu0 0
  %720 = vmatpush1.bf16.msra.mxu0 0
  %721 = vmatprep.subr.bf16.mxu0 0
  %722 = vmatpush1.bf16.msra.mxu0 0
  %723 = vmatprep.mubr.bf16.mxu0 0
  %724 = vmatmul.mubr.bf16.gmra.mrb[0].mxu0 %v50
  %v725 = vpop.f32.mrb[0].mxu0
  %v726 = vadd.f32 %v154, %v725
  %v727 = vpop.f32.mrb[0].mxu0
  %v728 = vadd.f32 %v158, %v727
  %v729 = vpop.f32.mrb[0].mxu0
  %v730 = vadd.f32 %v154, %v729
  %v731 = vpop.f32.mrb[0].mxu0
  %v732 = vadd.f32 %v158, %v731
  %733 = vdwg.mxu0
  %734 = vmatprep.subr.bf16.mxu0 %v502
  %735 = vmatpush1.bf16.msra.mxu0 %v501
  %736 = vmatprep.subr.bf16.mxu0 %v514
  %737 = vmatpush1.bf16.msra.mxu0 %v513
  %738 = vmatprep.subr.bf16.mxu0 %v526
  %739 = vmatpush1.bf16.msra.mxu0 %v525
  %740 = vmatprep.subr.bf16.mxu0 %v538
  %741 = vmatpush1.bf16.msra.mxu0 %v537
  %742 = vmatprep.subr.bf16.mxu0 %v550
  %743 = vmatpush1.bf16.msra.mxu0 %v549
  %744 = vmatprep.subr.bf16.mxu0 %v562
  %745 = vmatpush1.bf16.msra.mxu0 %v561
  %746 = vmatprep.subr.bf16.mxu0 %v574
  %747 = vmatpush1.bf16.msra.mxu0 %v573
  %748 = vmatprep.subr.bf16.mxu0 %v586
  %749 = vmatpush1.bf16.msra.mxu0 %v585
  %750 = vmatprep.subr.bf16.mxu0 0
  %751 = vmatpush1.bf16.msra.mxu0 0
  %752 = vmatprep.subr.bf16.mxu0 0
  %753 = vmatpush1.bf16.msra.mxu0 0
  %754 = vmatprep.subr.bf16.mxu0 0
  %755 = vmatpush1.bf16.msra.mxu0 0
  %756 = vmatprep.subr.bf16.mxu0 0
  %757 = vmatpush1.bf16.msra.mxu0 0
  %758 = vmatprep.subr.bf16.mxu0 0
  %759 = vmatpush1.bf16.msra.mxu0 0
  %760 = vmatprep.subr.bf16.mxu0 0
  %761 = vmatpush1.bf16.msra.mxu0 0
  %762 = vmatprep.subr.bf16.mxu0 0
  %763 = vmatpush1.bf16.msra.mxu0 0
  %764 = vmatprep.subr.bf16.mxu0 0
  %765 = vmatpush1.bf16.msra.mxu0 0
  %766 = vmatprep.mubr.bf16.mxu0 0
  %767 = vmatmul.mubr.bf16.gmra.mrb[0].mxu0 %v50
  %v768 = vpop.f32.mrb[0].mxu0
  %v769 = vadd.f32 %v162, %v768
  %v770 = vpop.f32.mrb[0].mxu0
  %v771 = vadd.f32 %v166, %v770
  %v772 = vpop.f32.mrb[0].mxu0
  %v773 = vadd.f32 %v162, %v772
  %v774 = vpop.f32.mrb[0].mxu0
  %v775 = vadd.f32 %v166, %v774
  %776 = vdwg.mxu0
  %777 = vmatprep.subr.bf16.mxu0 %v504
  %778 = vmatpush1.bf16.msra.mxu0 %v503
  %779 = vmatprep.subr.bf16.mxu0 %v516
  %780 = vmatpush1.bf16.msra.mxu0 %v515
  %781 = vmatprep.subr.bf16.mxu0 %v528
  %782 = vmatpush1.bf16.msra.mxu0 %v527
  %783 = vmatprep.subr.bf16.mxu0 %v540
  %784 = vmatpush1.bf16.msra.mxu0 %v539
  %785 = vmatprep.subr.bf16.mxu0 %v552
  %786 = vmatpush1.bf16.msra.mxu0 %v551
  %787 = vmatprep.subr.bf16.mxu0 %v564
  %788 = vmatpush1.bf16.msra.mxu0 %v563
  %789 = vmatprep.subr.bf16.mxu0 %v576
  %790 = vmatpush1.bf16.msra.mxu0 %v575
  %791 = vmatprep.subr.bf16.mxu0 %v588
  %792 = vmatpush1.bf16.msra.mxu0 %v587
  %793 = vmatprep.subr.bf16.mxu0 0
  %794 = vmatpush1.bf16.msra.mxu0 0
  %795 = vmatprep.subr.bf16.mxu0 0
  %796 = vmatpush1.bf16.msra.mxu0 0
  %797 = vmatprep.subr.bf16.mxu0 0
  %798 = vmatpush1.bf16.msra.mxu0 0
  %799 = vmatprep.subr.bf16.mxu0 0
  %800 = vmatpush1.bf16.msra.mxu0 0
  %801 = vmatprep.subr.bf16.mxu0 0
  %802 = vmatpush1.bf16.msra.mxu0 0
  %803 = vmatprep.subr.bf16.mxu0 0
  %804 = vmatpush1.bf16.msra.mxu0 0
  %805 = vmatprep.subr.bf16.mxu0 0
  %806 = vmatpush1.bf16.msra.mxu0 0
  %807 = vmatprep.subr.bf16.mxu0 0
  %808 = vmatpush1.bf16.msra.mxu0 0
  %809 = vmatprep.mubr.bf16.mxu0 0
  %810 = vmatmul.mubr.bf16.gmra.mrb[0].mxu0 %v50
  %v811 = vpop.f32.mrb[0].mxu0
  %v812 = vadd.f32 %v170, %v811
  %v813 = vpop.f32.mrb[0].mxu0
  %v814 = vadd.f32 %v174, %v813
  %v815 = vpop.f32.mrb[0].mxu0
  %v816 = vadd.f32 %v170, %v815
  %v817 = vpop.f32.mrb[0].mxu0
  %v818 = vadd.f32 %v174, %v817
  %819 = vdwg.mxu0
  %820 = vmatprep.subr.bf16.mxu0 %v506
  %821 = vmatpush1.bf16.msra.mxu0 %v505
  %822 = vmatprep.subr.bf16.mxu0 %v518
  %823 = vmatpush1.bf16.msra.mxu0 %v517
  %824 = vmatprep.subr.bf16.mxu0 %v530
  %825 = vmatpush1.bf16.msra.mxu0 %v529
  %826 = vmatprep.subr.bf16.mxu0 %v542
  %827 = vmatpush1.bf16.msra.mxu0 %v541
  %828 = vmatprep.subr.bf16.mxu0 %v554
  %829 = vmatpush1.bf16.msra.mxu0 %v553
  %830 = vmatprep.subr.bf16.mxu0 %v566
  %831 = vmatpush1.bf16.msra.mxu0 %v565
  %832 = vmatprep.subr.bf16.mxu0 %v578
  %833 = vmatpush1.bf16.msra.mxu0 %v577
  %834 = vmatprep.subr.bf16.mxu0 %v590
  %835 = vmatpush1.bf16.msra.mxu0 %v589
  %836 = vmatprep.subr.bf16.mxu0 0
  %837 = vmatpush1.bf16.msra.mxu0 0
  %838 = vmatprep.subr.bf16.mxu0 0
  %839 = vmatpush1.bf16.msra.mxu0 0
  %840 = vmatprep.subr.bf16.mxu0 0
  %841 = vmatpush1.bf16.msra.mxu0 0
  %842 = vmatprep.subr.bf16.mxu0 0
  %843 = vmatpush1.bf16.msra.mxu0 0
  %844 = vmatprep.subr.bf16.mxu0 0
  %845 = vmatpush1.bf16.msra.mxu0 0
  %846 = vmatprep.subr.bf16.mxu0 0
  %847 = vmatpush1.bf16.msra.mxu0 0
  %848 = vmatprep.subr.bf16.mxu0 0
  %849 = vmatpush1.bf16.msra.mxu0 0
  %850 = vmatprep.subr.bf16.mxu0 0
  %851 = vmatpush1.bf16.msra.mxu0 0
  %852 = vmatprep.mubr.bf16.mxu0 0
  %853 = vmatmul.mubr.bf16.gmra.mrb[0].mxu0 %v50
  %v854 = vpop.f32.mrb[0].mxu0
  %v855 = vadd.f32 %v178, %v854
  %v856 = vpop.f32.mrb[0].mxu0
  %v857 = vadd.f32 %v182, %v856
  %v858 = vpop.f32.mrb[0].mxu0
  %v859 = vadd.f32 %v178, %v858
  %v860 = vpop.f32.mrb[0].mxu0
  %v861 = vadd.f32 %v182, %v860
  %862 = vdwg.mxu0
  %863 = vmatprep.subr.bf16.mxu0 %v508
  %864 = vmatpush1.bf16.msra.mxu0 %v507
  %865 = vmatprep.subr.bf16.mxu0 %v520
  %866 = vmatpush1.bf16.msra.mxu0 %v519
  %867 = vmatprep.subr.bf16.mxu0 %v532
  %868 = vmatpush1.bf16.msra.mxu0 %v531
  %869 = vmatprep.subr.bf16.mxu0 %v544
  %870 = vmatpush1.bf16.msra.mxu0 %v543
  %871 = vmatprep.subr.bf16.mxu0 %v556
  %872 = vmatpush1.bf16.msra.mxu0 %v555
  %873 = vmatprep.subr.bf16.mxu0 %v568
  %874 = vmatpush1.bf16.msra.mxu0 %v567
  %875 = vmatprep.subr.bf16.mxu0 %v580
  %876 = vmatpush1.bf16.msra.mxu0 %v579
  %877 = vmatprep.subr.bf16.mxu0 %v592
  %878 = vmatpush1.bf16.msra.mxu0 %v591
  %879 = vmatprep.subr.bf16.mxu0 0
  %880 = vmatpush1.bf16.msra.mxu0 0
  %881 = vmatprep.subr.bf16.mxu0 0
  %882 = vmatpush1.bf16.msra.mxu0 0
  %883 = vmatprep.subr.bf16.mxu0 0
  %884 = vmatpush1.bf16.msra.mxu0 0
  %885 = vmatprep.subr.bf16.mxu0 0
  %886 = vmatpush1.bf16.msra.mxu0 0
  %887 = vmatprep.subr.bf16.mxu0 0
  %888 = vmatpush1.bf16.msra.mxu0 0
  %889 = vmatprep.subr.bf16.mxu0 0
  %890 = vmatpush1.bf16.msra.mxu0 0
  %891 = vmatprep.subr.bf16.mxu0 0
  %892 = vmatpush1.bf16.msra.mxu0 0
  %893 = vmatprep.subr.bf16.mxu0 0
  %894 = vmatpush1.bf16.msra.mxu0 0
  %895 = vmatprep.mubr.bf16.mxu0 0
  %896 = vmatmul.mubr.bf16.gmra.mrb[0].mxu0 %v50
  %v897 = vpop.f32.mrb[0].mxu0
  %v898 = vadd.f32 %v186, %v897
  %v899 = vpop.f32.mrb[0].mxu0
  %v900 = vadd.f32 %v190, %v899
  %v901 = vpop.f32.mrb[0].mxu0
  %v902 = vadd.f32 %v186, %v901
  %v903 = vpop.f32.mrb[0].mxu0
  %v904 = vadd.f32 %v190, %v903
  %905 = vdwg.mxu0
  %906 = vmatprep.subr.bf16.mxu0 %v510
  %907 = vmatpush1.bf16.msra.mxu0 %v509
  %908 = vmatprep.subr.bf16.mxu0 %v522
  %909 = vmatpush1.bf16.msra.mxu0 %v521
  %910 = vmatprep.subr.bf16.mxu0 %v534
  %911 = vmatpush1.bf16.msra.mxu0 %v533
  %912 = vmatprep.subr.bf16.mxu0 %v546
  %913 = vmatpush1.bf16.msra.mxu0 %v545
  %914 = vmatprep.subr.bf16.mxu0 %v558
  %915 = vmatpush1.bf16.msra.mxu0 %v557
  %916 = vmatprep.subr.bf16.mxu0 %v570
  %917 = vmatpush1.bf16.msra.mxu0 %v569
  %918 = vmatprep.subr.bf16.mxu0 %v582
  %919 = vmatpush1.bf16.msra.mxu0 %v581
  %920 = vmatprep.subr.bf16.mxu0 %v594
  %921 = vmatpush1.bf16.msra.mxu0 %v593
  %922 = vmatprep.subr.bf16.mxu0 0
  %923 = vmatpush1.bf16.msra.mxu0 0
  %924 = vmatprep.subr.bf16.mxu0 0
  %925 = vmatpush1.bf16.msra.mxu0 0
  %926 = vmatprep.subr.bf16.mxu0 0
  %927 = vmatpush1.bf16.msra.mxu0 0
  %928 = vmatprep.subr.bf16.mxu0 0
  %929 = vmatpush1.bf16.msra.mxu0 0
  %930 = vmatprep.subr.bf16.mxu0 0
  %931 = vmatpush1.bf16.msra.mxu0 0
  %932 = vmatprep.subr.bf16.mxu0 0
  %933 = vmatpush1.bf16.msra.mxu0 0
  %934 = vmatprep.subr.bf16.mxu0 0
  %935 = vmatpush1.bf16.msra.mxu0 0
  %936 = vmatprep.subr.bf16.mxu0 0
  %937 = vmatpush1.bf16.msra.mxu0 0
  %938 = vmatprep.mubr.bf16.mxu0 0
  %939 = vmatmul.mubr.bf16.gmra.mrb[0].mxu0 %v50
  %v940 = vpop.f32.mrb[0].mxu0
  %v941 = vadd.f32 %v194, %v940
  %v942 = vpop.f32.mrb[0].mxu0
  %v943 = vadd.f32 %v198, %v942
  %v944 = vpop.f32.mrb[0].mxu0
  %v945 = vadd.f32 %v194, %v944
  %v946 = vpop.f32.mrb[0].mxu0
  %v947 = vadd.f32 %v198, %v946
  %948 = vdwg.mxu0
  %v949 = vld [vmem:[%s13] sm:$0x1]
  %v950 = vpack.c.bf16 %v726, %v726
  %v951 = vpack.c.bf16 %v728, %v728
  %952 = vmatprep.subr.bf16.mxu0 0
  %953 = vmatpush1.bf16.xpose.msra.mxu0 %v951
  %954 = vmatprep.subr.bf16.mxu0 0
  %955 = vmatpush1.bf16.xpose.msra.mxu0 0
  %956 = vmatprep.subr.bf16.mxu0 0
  %957 = vmatpush1.bf16.xpose.msra.mxu0 0
  %958 = vmatprep.subr.bf16.mxu0 0
  %959 = vmatpush1.bf16.xpose.msra.mxu0 0
  %960 = vmatprep.subr.bf16.mxu0 0
  %961 = vmatpush1.bf16.xpose.msra.mxu0 0
  %962 = vmatprep.subr.bf16.mxu0 0
  %963 = vmatpush1.bf16.xpose.msra.mxu0 0
  %964 = vmatprep.subr.bf16.mxu0 0
  %965 = vmatpush1.bf16.xpose.msra.mxu0 0
  %966 = vmatprep.subr.bf16.mxu0 0
  %967 = vmatpush1.bf16.xpose.msra.mxu0 0
  %968 = vmatprep.subr.bf16.mxu0 0
  %969 = vmatpush1.bf16.xpose.msra.mxu0 0
  %970 = vmatprep.subr.bf16.mxu0 0
  %971 = vmatpush1.bf16.xpose.msra.mxu0 0
  %972 = vmatprep.subr.bf16.mxu0 0
  %973 = vmatpush1.bf16.xpose.msra.mxu0 0
  %974 = vmatprep.subr.bf16.mxu0 0
  %975 = vmatpush1.bf16.xpose.msra.mxu0 0
  %976 = vmatprep.subr.bf16.mxu0 0
  %977 = vmatpush1.bf16.xpose.msra.mxu0 0
  %978 = vmatprep.subr.bf16.mxu0 0
  %979 = vmatpush1.bf16.xpose.msra.mxu0 0
  %980 = vmatprep.subr.bf16.mxu0 0
  %981 = vmatpush1.bf16.xpose.msra.mxu0 0
  %982 = vmatprep.subr.bf16.mxu0 0
  %983 = vmatpush1.bf16.xpose.msra.mxu0 0
  %984 = vmatprep.mubr.bf16.mxu0 0
  %985 = vmatmul.mubr.bf16.gmra.mrb[0].mxu0 %v950
  %v986 = vpop.f32.mrb[0].mxu0
  %v987 = vadd.f32 0.0, %v986
  %v988 = vpop.f32.mrb[0].mxu0
  %v989 = vpop.f32.mrb[0].mxu0
  %v990 = vpop.f32.mrb[0].mxu0
  %991 = vdwg.mxu0
  %v992 = vmul.f32 %v987, 0.17677669
  %v994 = vlaneseq
  %v995 = vshrl.u32 %v994, 7
  %v996 = vsub.s32 0, %v995
  %v997 = vrot.slane %v949, %v996
  %v999 = vadd.f32 %v992, %v997
  %vm1000 = vcmask 64512
  %v1001 = vsel %vm1000, %v999, -inf
  %1002 = vmax.xlane.f32.xlu0 %v1001
  %v1003 = vpop.xlane.xlu0 %1002
  %v1004 = vsub.f32 %v999, %v1003
  %v1005 = vmul.f32 %v1004, 1.442695
  %v1006 = vpow.pop %v1005
  %v1007 = vsel %vm1000, %v1006, 0.0
  %1008 = vadd.xlane.f32.xlu0 %v1007
  %v1009 = vpop.xlane.xlu0 %1008
  %v1010 = vrcp.pop %v1009
  %v1011 = vmul.f32 %v1006, %v1010
  %v1013 = vsel %vm1000, %v1011, 0
  %1015 = vmatprep.subr.mxu0 0.0
  %1016 = vmatpush1.msra.mxu0 %v769
  %1017 = vmatprep.subr.mxu0 0.0
  %1018 = vmatpush1.msra.mxu0 0.0
  %1019 = vmatprep.subr.mxu0 0.0
  %1020 = vmatpush1.msra.mxu0 0.0
  %1021 = vmatprep.subr.mxu0 0.0
  %1022 = vmatpush1.msra.mxu0 0.0
  %1023 = vmatprep.subr.mxu0 0.0
  %1024 = vmatpush1.msra.mxu0 0.0
  %1025 = vmatprep.subr.mxu0 0.0
  %1026 = vmatpush1.msra.mxu0 0.0
  %1027 = vmatprep.subr.mxu0 0.0
  %1028 = vmatpush1.msra.mxu0 0.0
  %1029 = vmatprep.subr.mxu0 0.0
  %1030 = vmatpush1.msra.mxu0 0.0
  %1031 = vmatprep.subr.mxu0 0.0
  %1032 = vmatpush1.msra.mxu0 0.0
  %1033 = vmatprep.subr.mxu0 0.0
  %1034 = vmatpush1.msra.mxu0 0.0
  %1035 = vmatprep.subr.mxu0 0.0
  %1036 = vmatpush1.msra.mxu0 0.0
  %1037 = vmatprep.subr.mxu0 0.0
  %1038 = vmatpush1.msra.mxu0 0.0
  %1039 = vmatprep.subr.mxu0 0.0
  %1040 = vmatpush1.msra.mxu0 0.0
  %1041 = vmatprep.subr.mxu0 0.0
  %1042 = vmatpush1.msra.mxu0 0.0
  %1043 = vmatprep.subr.mxu0 0.0
  %1044 = vmatpush1.msra.mxu0 0.0
  %1045 = vmatprep.subr.mxu0 0.0
  %1046 = vmatpush1.msra.mxu0 0.0
  %1047 = vmatprep.subr.mxu0 0.0
  %1048 = vmatpush1.msra.mxu0 0.0
  %1049 = vmatprep.subr.mxu0 0.0
  %1050 = vmatpush1.msra.mxu0 0.0
  %1051 = vmatprep.subr.mxu0 0.0
  %1052 = vmatpush1.msra.mxu0 0.0
  %1053 = vmatprep.subr.mxu0 0.0
  %1054 = vmatpush1.msra.mxu0 0.0
  %1055 = vmatprep.subr.mxu0 0.0
  %1056 = vmatpush1.msra.mxu0 0.0
  %1057 = vmatprep.subr.mxu0 0.0
  %1058 = vmatpush1.msra.mxu0 0.0
  %1059 = vmatprep.subr.mxu0 0.0
  %1060 = vmatpush1.msra.mxu0 0.0
  %1061 = vmatprep.subr.mxu0 0.0
  %1062 = vmatpush1.msra.mxu0 0.0
  %1063 = vmatprep.subr.mxu0 0.0
  %1064 = vmatpush1.msra.mxu0 0.0
  %1065 = vmatprep.subr.mxu0 0.0
  %1066 = vmatpush1.msra.mxu0 0.0
  %1067 = vmatprep.subr.mxu0 0.0
  %1068 = vmatpush1.msra.mxu0 0.0
  %1069 = vmatprep.subr.mxu0 0.0
  %1070 = vmatpush1.msra.mxu0 0.0
  %1071 = vmatprep.subr.mxu0 0.0
  %1072 = vmatpush1.msra.mxu0 0.0
  %1073 = vmatprep.subr.mxu0 0.0
  %1074 = vmatpush1.msra.mxu0 0.0
  %1075 = vmatprep.subr.mxu0 0.0
  %1076 = vmatpush1.msra.mxu0 0.0
  %1077 = vmatprep.subr.mxu0 0.0
  %1078 = vmatpush1.msra.mxu0 0.0
  %1079 = vmatprep.mubr.f32.mxu0 0.0
  %1080 = vmatmul.mubr.f32.gmra.mrb[0].mxu0 %v1013
  %v1081 = vpop.f32.mrb[0].mxu0
  %v1082 = vadd.f32 0.0, %v1081
  %v1083 = vpop.f32.mrb[0].mxu0
  %1084 = vdwg.mxu0
  %v1085 = vpack.c.bf16 %v1082, %v1082
  %v1086 = vld [vmem:[%s3] sm:$0xf]
  %v1087 = vld [vmem:[%s3 + $0x4] sm:$0xf]
  %v1088 = vld [vmem:[%s3 + $0x8] sm:$0xf]
  %v1089 = vld [vmem:[%s3 + $0xc] sm:$0xf]
  %v1090 = vld [vmem:[%s3 + $0x10] sm:$0xf]
  %v1091 = vld [vmem:[%s3 + $0x14] sm:$0xf]
  %v1092 = vld [vmem:[%s3 + $0x18] sm:$0xf]
  %v1093 = vld [vmem:[%s3 + $0x1c] sm:$0xf]
  %v1094 = vld [vmem:[%s3 + $0x20] sm:$0xf]
  %v1095 = vld [vmem:[%s3 + $0x24] sm:$0xf]
  %v1096 = vld [vmem:[%s3 + $0x28] sm:$0xf]
  %v1097 = vld [vmem:[%s3 + $0x2c] sm:$0xf]
  %v1098 = vld [vmem:[%s3 + $0x30] sm:$0xf]
  %v1099 = vld [vmem:[%s3 + $0x34] sm:$0xf]
  %v1100 = vld [vmem:[%s3 + $0x38] sm:$0xf]
  %v1101 = vld [vmem:[%s3 + $0x3c] sm:$0xf]
  %v1102 = vpack.c.bf16 %v771, %v771
  %v1103 = vpack.c.bf16 %v812, %v812
  %1104 = vmatprep.subr.bf16.mxu0 0
  %1105 = vmatpush1.bf16.xpose.msra.mxu0 %v1103
  %1106 = vmatprep.subr.bf16.mxu0 0
  %1107 = vmatpush1.bf16.xpose.msra.mxu0 0
  %1108 = vmatprep.subr.bf16.mxu0 0
  %1109 = vmatpush1.bf16.xpose.msra.mxu0 0
  %1110 = vmatprep.subr.bf16.mxu0 0
  %1111 = vmatpush1.bf16.xpose.msra.mxu0 0
  %1112 = vmatprep.subr.bf16.mxu0 0
  %1113 = vmatpush1.bf16.xpose.msra.mxu0 0
  %1114 = vmatprep.subr.bf16.mxu0 0
  %1115 = vmatpush1.bf16.xpose.msra.mxu0 0
  %1116 = vmatprep.subr.bf16.mxu0 0
  %1117 = vmatpush1.bf16.xpose.msra.mxu0 0
  %1118 = vmatprep.subr.bf16.mxu0 0
  %1119 = vmatpush1.bf16.xpose.msra.mxu0 0
  %1120 = vmatprep.subr.bf16.mxu0 0
  %1121 = vmatpush1.bf16.xpose.msra.mxu0 0
  %1122 = vmatprep.subr.bf16.mxu0 0
  %1123 = vmatpush1.bf16.xpose.msra.mxu0 0
  %1124 = vmatprep.subr.bf16.mxu0 0
  %1125 = vmatpush1.bf16.xpose.msra.mxu0 0
  %1126 = vmatprep.subr.bf16.mxu0 0
  %1127 = vmatpush1.bf16.xpose.msra.mxu0 0
  %1128 = vmatprep.subr.bf16.mxu0 0
  %1129 = vmatpush1.bf16.xpose.msra.mxu0 0
  %1130 = vmatprep.subr.bf16.mxu0 0
  %1131 = vmatpush1.bf16.xpose.msra.mxu0 0
  %1132 = vmatprep.subr.bf16.mxu0 0
  %1133 = vmatpush1.bf16.xpose.msra.mxu0 0
  %1134 = vmatprep.subr.bf16.mxu0 0
  %1135 = vmatpush1.bf16.xpose.msra.mxu0 0
  %1136 = vmatprep.mubr.bf16.mxu0 0
  %1137 = vmatmul.mubr.bf16.gmra.mrb[0].mxu0 %v1102
  %v1138 = vpop.f32.mrb[0].mxu0
  %v1139 = vadd.f32 0.0, %v1138
  %v1140 = vpop.f32.mrb[0].mxu0
  %v1141 = vpop.f32.mrb[0].mxu0
  %v1142 = vpop.f32.mrb[0].mxu0
  %1143 = vdwg.mxu0
  %v1144 = vmul.f32 %v1139, 0.17677669
  %v1145 = vadd.f32 %v1144, %v997
  %v1146 = vsel %vm1000, %v1145, -inf
  %1147 = vmax.xlane.f32.xlu0 %v1146
  %v1148 = vpop.xlane.xlu0 %1147
  %v1149 = vsub.f32 %v1145, %v1148
  %v1150 = vmul.f32 %v1149, 1.442695
  %v1151 = vpow.pop %v1150
  %v1152 = vsel %vm1000, %v1151, 0.0
  %1153 = vadd.xlane.f32.xlu0 %v1152
  %v1154 = vpop.xlane.xlu0 %1153
  %v1155 = vrcp.pop %v1154
  %v1156 = vmul.f32 %v1151, %v1155
  %v1158 = vsel %vm1000, %v1156, 0
  %1160 = vmatprep.subr.mxu0 0.0
  %1161 = vmatpush1.msra.mxu0 %v814
  %1162 = vmatprep.subr.mxu0 0.0
  %1163 = vmatpush1.msra.mxu0 0.0
  %1164 = vmatprep.subr.mxu0 0.0
  %1165 = vmatpush1.msra.mxu0 0.0
  %1166 = vmatprep.subr.mxu0 0.0
  %1167 = vmatpush1.msra.mxu0 0.0
  %1168 = vmatprep.subr.mxu0 0.0
  %1169 = vmatpush1.msra.mxu0 0.0
  %1170 = vmatprep.subr.mxu0 0.0
  %1171 = vmatpush1.msra.mxu0 0.0
  %1172 = vmatprep.subr.mxu0 0.0
  %1173 = vmatpush1.msra.mxu0 0.0
  %1174 = vmatprep.subr.mxu0 0.0
  %1175 = vmatpush1.msra.mxu0 0.0
  %1176 = vmatprep.subr.mxu0 0.0
  %1177 = vmatpush1.msra.mxu0 0.0
  %1178 = vmatprep.subr.mxu0 0.0
  %1179 = vmatpush1.msra.mxu0 0.0
  %1180 = vmatprep.subr.mxu0 0.0
  %1181 = vmatpush1.msra.mxu0 0.0
  %1182 = vmatprep.subr.mxu0 0.0
  %1183 = vmatpush1.msra.mxu0 0.0
  %1184 = vmatprep.subr.mxu0 0.0
  %1185 = vmatpush1.msra.mxu0 0.0
  %1186 = vmatprep.subr.mxu0 0.0
  %1187 = vmatpush1.msra.mxu0 0.0
  %1188 = vmatprep.subr.mxu0 0.0
  %1189 = vmatpush1.msra.mxu0 0.0
  %1190 = vmatprep.subr.mxu0 0.0
  %1191 = vmatpush1.msra.mxu0 0.0
  %1192 = vmatprep.subr.mxu0 0.0
  %1193 = vmatpush1.msra.mxu0 0.0
  %1194 = vmatprep.subr.mxu0 0.0
  %1195 = vmatpush1.msra.mxu0 0.0
  %1196 = vmatprep.subr.mxu0 0.0
  %1197 = vmatpush1.msra.mxu0 0.0
  %1198 = vmatprep.subr.mxu0 0.0
  %1199 = vmatpush1.msra.mxu0 0.0
  %1200 = vmatprep.subr.mxu0 0.0
  %1201 = vmatpush1.msra.mxu0 0.0
  %1202 = vmatprep.subr.mxu0 0.0
  %1203 = vmatpush1.msra.mxu0 0.0
  %1204 = vmatprep.subr.mxu0 0.0
  %1205 = vmatpush1.msra.mxu0 0.0
  %1206 = vmatprep.subr.mxu0 0.0
  %1207 = vmatpush1.msra.mxu0 0.0
  %1208 = vmatprep.subr.mxu0 0.0
  %1209 = vmatpush1.msra.mxu0 0.0
  %1210 = vmatprep.subr.mxu0 0.0
  %1211 = vmatpush1.msra.mxu0 0.0
  %1212 = vmatprep.subr.mxu0 0.0
  %1213 = vmatpush1.msra.mxu0 0.0
  %1214 = vmatprep.subr.mxu0 0.0
  %1215 = vmatpush1.msra.mxu0 0.0
  %1216 = vmatprep.subr.mxu0 0.0
  %1217 = vmatpush1.msra.mxu0 0.0
  %1218 = vmatprep.subr.mxu0 0.0
  %1219 = vmatpush1.msra.mxu0 0.0
  %1220 = vmatprep.subr.mxu0 0.0
  %1221 = vmatpush1.msra.mxu0 0.0
  %1222 = vmatprep.subr.mxu0 0.0
  %1223 = vmatpush1.msra.mxu0 0.0
  %1224 = vmatprep.mubr.f32.mxu0 0.0
  %1225 = vmatmul.mubr.f32.gmra.mrb[0].mxu0 %v1158
  %v1226 = vpop.f32.mrb[0].mxu0
  %v1227 = vadd.f32 0.0, %v1226
  %v1228 = vpop.f32.mrb[0].mxu0
  %1229 = vdwg.mxu0
  %v1230 = vpack.c.bf16 %v1227, %v1227
  %v1231 = vld [vmem:[%s3 + $0x40] sm:$0xf]
  %v1232 = vld [vmem:[%s3 + $0x44] sm:$0xf]
  %v1233 = vld [vmem:[%s3 + $0x48] sm:$0xf]
  %v1234 = vld [vmem:[%s3 + $0x4c] sm:$0xf]
  %v1235 = vld [vmem:[%s3 + $0x50] sm:$0xf]
  %v1236 = vld [vmem:[%s3 + $0x54] sm:$0xf]
  %v1237 = vld [vmem:[%s3 + $0x58] sm:$0xf]
  %v1238 = vld [vmem:[%s3 + $0x5c] sm:$0xf]
  %v1239 = vld [vmem:[%s3 + $0x60] sm:$0xf]
  %v1240 = vld [vmem:[%s3 + $0x64] sm:$0xf]
  %v1241 = vld [vmem:[%s3 + $0x68] sm:$0xf]
  %v1242 = vld [vmem:[%s3 + $0x6c] sm:$0xf]
  %v1243 = vld [vmem:[%s3 + $0x70] sm:$0xf]
  %v1244 = vld [vmem:[%s3 + $0x74] sm:$0xf]
  %v1245 = vld [vmem:[%s3 + $0x78] sm:$0xf]
  %v1246 = vld [vmem:[%s3 + $0x7c] sm:$0xf]
  %v1263 = vunpack.c.l.b16 %v1231
  %v1264 = vunpack.c.l.b16 %v1232
  %v1265 = vunpack.c.l.b16 %v1233
  %v1266 = vunpack.c.l.b16 %v1234
  %v1267 = vunpack.c.l.b16 %v1235
  %v1268 = vunpack.c.l.b16 %v1236
  %v1269 = vunpack.c.l.b16 %v1237
  %v1270 = vunpack.c.l.b16 %v1238
  %v1271 = vunpack.c.l.b16 %v1239
  %v1272 = vunpack.c.l.b16 %v1240
  %v1273 = vunpack.c.l.b16 %v1241
  %v1274 = vunpack.c.l.b16 %v1242
  %v1275 = vunpack.c.l.b16 %v1243
  %v1276 = vunpack.c.l.b16 %v1244
  %v1277 = vunpack.c.l.b16 %v1245
  %v1278 = vunpack.c.l.b16 %v1246
  %v1279 = vpack.c.b16 %v1264, %v1263
  %v1280 = vpack.c.b16 %v1266, %v1265
  %v1281 = vpack.c.b16 %v1268, %v1267
  %v1282 = vpack.c.b16 %v1270, %v1269
  %v1283 = vpack.c.b16 %v1272, %v1271
  %v1284 = vpack.c.b16 %v1274, %v1273
  %v1285 = vpack.c.b16 %v1276, %v1275
  %v1286 = vpack.c.b16 %v1278, %v1277
  %1295 = vmatprep.subr.bf16.mxu0 0
  %1296 = vmatpush1.bf16.msra.mxu0 %v1279
  %1297 = vmatprep.subr.bf16.mxu0 0
  %1298 = vmatpush1.bf16.msra.mxu0 %v1280
  %1299 = vmatprep.subr.bf16.mxu0 0
  %1300 = vmatpush1.bf16.msra.mxu0 %v1281
  %1301 = vmatprep.subr.bf16.mxu0 0
  %1302 = vmatpush1.bf16.msra.mxu0 %v1282
  %1303 = vmatprep.subr.bf16.mxu0 0
  %1304 = vmatpush1.bf16.msra.mxu0 %v1283
  %1305 = vmatprep.subr.bf16.mxu0 0
  %1306 = vmatpush1.bf16.msra.mxu0 %v1284
  %1307 = vmatprep.subr.bf16.mxu0 0
  %1308 = vmatpush1.bf16.msra.mxu0 %v1285
  %1309 = vmatprep.subr.bf16.mxu0 0
  %1310 = vmatpush1.bf16.msra.mxu0 %v1286
  %1311 = vmatprep.subr.bf16.mxu0 0
  %1312 = vmatpush1.bf16.msra.mxu0 0
  %1313 = vmatprep.subr.bf16.mxu0 0
  %1314 = vmatpush1.bf16.msra.mxu0 0
  %1315 = vmatprep.subr.bf16.mxu0 0
  %1316 = vmatpush1.bf16.msra.mxu0 0
  %1317 = vmatprep.subr.bf16.mxu0 0
  %1318 = vmatpush1.bf16.msra.mxu0 0
  %1319 = vmatprep.subr.bf16.mxu0 0
  %1320 = vmatpush1.bf16.msra.mxu0 0
  %1321 = vmatprep.subr.bf16.mxu0 0
  %1322 = vmatpush1.bf16.msra.mxu0 0
  %1323 = vmatprep.subr.bf16.mxu0 0
  %1324 = vmatpush1.bf16.msra.mxu0 0
  %1325 = vmatprep.subr.bf16.mxu0 0
  %1326 = vmatpush1.bf16.msra.mxu0 0
  %1327 = vmatprep.mubr.bf16.mxu0 0
  %1328 = vmatmul.mubr.bf16.gmra.mrb[0].mxu0 %v1230
  %v1329 = vpop.f32.mrb[0].mxu0
  %v1330 = vadd.f32 0.0, %v1329
  %v1331 = vpop.f32.mrb[0].mxu0
  %v1332 = vpop.f32.mrb[0].mxu0
  %v1333 = vpop.f32.mrb[0].mxu0
  %1334 = vdwg.mxu0
  %v1351 = vunpack.c.l.b16 %v1086
  %v1352 = vunpack.c.l.b16 %v1087
  %v1353 = vunpack.c.l.b16 %v1088
  %v1354 = vunpack.c.l.b16 %v1089
  %v1355 = vunpack.c.l.b16 %v1090
  %v1356 = vunpack.c.l.b16 %v1091
  %v1357 = vunpack.c.l.b16 %v1092
  %v1358 = vunpack.c.l.b16 %v1093
  %v1359 = vunpack.c.l.b16 %v1094
  %v1360 = vunpack.c.l.b16 %v1095
  %v1361 = vunpack.c.l.b16 %v1096
  %v1362 = vunpack.c.l.b16 %v1097
  %v1363 = vunpack.c.l.b16 %v1098
  %v1364 = vunpack.c.l.b16 %v1099
  %v1365 = vunpack.c.l.b16 %v1100
  %v1366 = vunpack.c.l.b16 %v1101
  %v1367 = vpack.c.b16 %v1352, %v1351
  %v1368 = vpack.c.b16 %v1354, %v1353
  %v1369 = vpack.c.b16 %v1356, %v1355
  %v1370 = vpack.c.b16 %v1358, %v1357
  %v1371 = vpack.c.b16 %v1360, %v1359
  %v1372 = vpack.c.b16 %v1362, %v1361
  %v1373 = vpack.c.b16 %v1364, %v1363
  %v1374 = vpack.c.b16 %v1366, %v1365
  %1383 = vmatprep.subr.bf16.mxu0 0
  %1384 = vmatpush1.bf16.msra.mxu0 %v1367
  %1385 = vmatprep.subr.bf16.mxu0 0
  %1386 = vmatpush1.bf16.msra.mxu0 %v1368
  %1387 = vmatprep.subr.bf16.mxu0 0
  %1388 = vmatpush1.bf16.msra.mxu0 %v1369
  %1389 = vmatprep.subr.bf16.mxu0 0
  %1390 = vmatpush1.bf16.msra.mxu0 %v1370
  %1391 = vmatprep.subr.bf16.mxu0 0
  %1392 = vmatpush1.bf16.msra.mxu0 %v1371
  %1393 = vmatprep.subr.bf16.mxu0 0
  %1394 = vmatpush1.bf16.msra.mxu0 %v1372
  %1395 = vmatprep.subr.bf16.mxu0 0
  %1396 = vmatpush1.bf16.msra.mxu0 %v1373
  %1397 = vmatprep.subr.bf16.mxu0 0
  %1398 = vmatpush1.bf16.msra.mxu0 %v1374
  %1399 = vmatprep.subr.bf16.mxu0 0
  %1400 = vmatpush1.bf16.msra.mxu0 0
  %1401 = vmatprep.subr.bf16.mxu0 0
  %1402 = vmatpush1.bf16.msra.mxu0 0
  %1403 = vmatprep.subr.bf16.mxu0 0
  %1404 = vmatpush1.bf16.msra.mxu0 0
  %1405 = vmatprep.subr.bf16.mxu0 0
  %1406 = vmatpush1.bf16.msra.mxu0 0
  %1407 = vmatprep.subr.bf16.mxu0 0
  %1408 = vmatpush1.bf16.msra.mxu0 0
  %1409 = vmatprep.subr.bf16.mxu0 0
  %1410 = vmatpush1.bf16.msra.mxu0 0
  %1411 = vmatprep.subr.bf16.mxu0 0
  %1412 = vmatpush1.bf16.msra.mxu0 0
  %1413 = vmatprep.subr.bf16.mxu0 0
  %1414 = vmatpush1.bf16.msra.mxu0 0
  %1415 = vmatprep.mubr.bf16.mxu0 0
  %1416 = vmatmul.mubr.bf16.gmra.mrb[0].mxu0 %v1085
  %v1417 = vpop.f32.mrb[0].mxu0
  %v1418 = vadd.f32 %v1330, %v1417
  %v1419 = vpop.f32.mrb[0].mxu0
  %v1420 = vpop.f32.mrb[0].mxu0
  %v1421 = vpop.f32.mrb[0].mxu0
  %1422 = vdwg.mxu0
  %v1423 = vpack.c.bf16 %v855, %v855
  %v1424 = vpack.c.bf16 %v857, %v857
  %1425 = vmatprep.subr.bf16.mxu0 0
  %1426 = vmatpush1.bf16.xpose.msra.mxu0 %v1424
  %1427 = vmatprep.subr.bf16.mxu0 0
  %1428 = vmatpush1.bf16.xpose.msra.mxu0 0
  %1429 = vmatprep.subr.bf16.mxu0 0
  %1430 = vmatpush1.bf16.xpose.msra.mxu0 0
  %1431 = vmatprep.subr.bf16.mxu0 0
  %1432 = vmatpush1.bf16.xpose.msra.mxu0 0
  %1433 = vmatprep.subr.bf16.mxu0 0
  %1434 = vmatpush1.bf16.xpose.msra.mxu0 0
  %1435 = vmatprep.subr.bf16.mxu0 0
  %1436 = vmatpush1.bf16.xpose.msra.mxu0 0
  %1437 = vmatprep.subr.bf16.mxu0 0
  %1438 = vmatpush1.bf16.xpose.msra.mxu0 0
  %1439 = vmatprep.subr.bf16.mxu0 0
  %1440 = vmatpush1.bf16.xpose.msra.mxu0 0
  %1441 = vmatprep.subr.bf16.mxu0 0
  %1442 = vmatpush1.bf16.xpose.msra.mxu0 0
  %1443 = vmatprep.subr.bf16.mxu0 0
  %1444 = vmatpush1.bf16.xpose.msra.mxu0 0
  %1445 = vmatprep.subr.bf16.mxu0 0
  %1446 = vmatpush1.bf16.xpose.msra.mxu0 0
  %1447 = vmatprep.subr.bf16.mxu0 0
  %1448 = vmatpush1.bf16.xpose.msra.mxu0 0
  %1449 = vmatprep.subr.bf16.mxu0 0
  %1450 = vmatpush1.bf16.xpose.msra.mxu0 0
  %1451 = vmatprep.subr.bf16.mxu0 0
  %1452 = vmatpush1.bf16.xpose.msra.mxu0 0
  %1453 = vmatprep.subr.bf16.mxu0 0
  %1454 = vmatpush1.bf16.xpose.msra.mxu0 0
  %1455 = vmatprep.subr.bf16.mxu0 0
  %1456 = vmatpush1.bf16.xpose.msra.mxu0 0
  %1457 = vmatprep.mubr.bf16.mxu0 0
  %1458 = vmatmul.mubr.bf16.gmra.mrb[0].mxu0 %v1423
  %v1459 = vpop.f32.mrb[0].mxu0
  %v1460 = vadd.f32 0.0, %v1459
  %v1461 = vpop.f32.mrb[0].mxu0
  %v1462 = vpop.f32.mrb[0].mxu0
  %v1463 = vpop.f32.mrb[0].mxu0
  %1464 = vdwg.mxu0
  %v1465 = vmul.f32 %v1460, 0.17677669
  %v1466 = vadd.f32 %v1465, %v997
  %v1467 = vsel %vm1000, %v1466, -inf
  %1468 = vmax.xlane.f32.xlu0 %v1467
  %v1469 = vpop.xlane.xlu0 %1468
  %v1470 = vsub.f32 %v1466, %v1469
  %v1471 = vmul.f32 %v1470, 1.442695
  %v1472 = vpow.pop %v1471
  %v1473 = vsel %vm1000, %v1472, 0.0
  %1474 = vadd.xlane.f32.xlu0 %v1473
  %v1475 = vpop.xlane.xlu0 %1474
  %v1476 = vrcp.pop %v1475
  %v1477 = vmul.f32 %v1472, %v1476
  %v1479 = vsel %vm1000, %v1477, 0
  %1481 = vmatprep.subr.mxu0 0.0
  %1482 = vmatpush1.msra.mxu0 %v898
  %1483 = vmatprep.subr.mxu0 0.0
  %1484 = vmatpush1.msra.mxu0 0.0
  %1485 = vmatprep.subr.mxu0 0.0
  %1486 = vmatpush1.msra.mxu0 0.0
  %1487 = vmatprep.subr.mxu0 0.0
  %1488 = vmatpush1.msra.mxu0 0.0
  %1489 = vmatprep.subr.mxu0 0.0
  %1490 = vmatpush1.msra.mxu0 0.0
  %1491 = vmatprep.subr.mxu0 0.0
  %1492 = vmatpush1.msra.mxu0 0.0
  %1493 = vmatprep.subr.mxu0 0.0
  %1494 = vmatpush1.msra.mxu0 0.0
  %1495 = vmatprep.subr.mxu0 0.0
  %1496 = vmatpush1.msra.mxu0 0.0
  %1497 = vmatprep.subr.mxu0 0.0
  %1498 = vmatpush1.msra.mxu0 0.0
  %1499 = vmatprep.subr.mxu0 0.0
  %1500 = vmatpush1.msra.mxu0 0.0
  %1501 = vmatprep.subr.mxu0 0.0
  %1502 = vmatpush1.msra.mxu0 0.0
  %1503 = vmatprep.subr.mxu0 0.0
  %1504 = vmatpush1.msra.mxu0 0.0
  %1505 = vmatprep.subr.mxu0 0.0
  %1506 = vmatpush1.msra.mxu0 0.0
  %1507 = vmatprep.subr.mxu0 0.0
  %1508 = vmatpush1.msra.mxu0 0.0
  %1509 = vmatprep.subr.mxu0 0.0
  %1510 = vmatpush1.msra.mxu0 0.0
  %1511 = vmatprep.subr.mxu0 0.0
  %1512 = vmatpush1.msra.mxu0 0.0
  %1513 = vmatprep.subr.mxu0 0.0
  %1514 = vmatpush1.msra.mxu0 0.0
  %1515 = vmatprep.subr.mxu0 0.0
  %1516 = vmatpush1.msra.mxu0 0.0
  %1517 = vmatprep.subr.mxu0 0.0
  %1518 = vmatpush1.msra.mxu0 0.0
  %1519 = vmatprep.subr.mxu0 0.0
  %1520 = vmatpush1.msra.mxu0 0.0
  %1521 = vmatprep.subr.mxu0 0.0
  %1522 = vmatpush1.msra.mxu0 0.0
  %1523 = vmatprep.subr.mxu0 0.0
  %1524 = vmatpush1.msra.mxu0 0.0
  %1525 = vmatprep.subr.mxu0 0.0
  %1526 = vmatpush1.msra.mxu0 0.0
  %1527 = vmatprep.subr.mxu0 0.0
  %1528 = vmatpush1.msra.mxu0 0.0
  %1529 = vmatprep.subr.mxu0 0.0
  %1530 = vmatpush1.msra.mxu0 0.0
  %1531 = vmatprep.subr.mxu0 0.0
  %1532 = vmatpush1.msra.mxu0 0.0
  %1533 = vmatprep.subr.mxu0 0.0
  %1534 = vmatpush1.msra.mxu0 0.0
  %1535 = vmatprep.subr.mxu0 0.0
  %1536 = vmatpush1.msra.mxu0 0.0
  %1537 = vmatprep.subr.mxu0 0.0
  %1538 = vmatpush1.msra.mxu0 0.0
  %1539 = vmatprep.subr.mxu0 0.0
  %1540 = vmatpush1.msra.mxu0 0.0
  %1541 = vmatprep.subr.mxu0 0.0
  %1542 = vmatpush1.msra.mxu0 0.0
  %1543 = vmatprep.subr.mxu0 0.0
  %1544 = vmatpush1.msra.mxu0 0.0
  %1545 = vmatprep.mubr.f32.mxu0 0.0
  %1546 = vmatmul.mubr.f32.gmra.mrb[0].mxu0 %v1479
  %v1547 = vpop.f32.mrb[0].mxu0
  %v1548 = vadd.f32 0.0, %v1547
  %v1549 = vpop.f32.mrb[0].mxu0
  %1550 = vdwg.mxu0
  %v1551 = vpack.c.bf16 %v1548, %v1548
  %v1552 = vld [vmem:[%s3 + $0x80] sm:$0xf]
  %v1553 = vld [vmem:[%s3 + $0x84] sm:$0xf]
  %v1554 = vld [vmem:[%s3 + $0x88] sm:$0xf]
  %v1555 = vld [vmem:[%s3 + $0x8c] sm:$0xf]
  %v1556 = vld [vmem:[%s3 + $0x90] sm:$0xf]
  %v1557 = vld [vmem:[%s3 + $0x94] sm:$0xf]
  %v1558 = vld [vmem:[%s3 + $0x98] sm:$0xf]
  %v1559 = vld [vmem:[%s3 + $0x9c] sm:$0xf]
  %v1560 = vld [vmem:[%s3 + $0xa0] sm:$0xf]
  %v1561 = vld [vmem:[%s3 + $0xa4] sm:$0xf]
  %v1562 = vld [vmem:[%s3 + $0xa8] sm:$0xf]
  %v1563 = vld [vmem:[%s3 + $0xac] sm:$0xf]
  %v1564 = vld [vmem:[%s3 + $0xb0] sm:$0xf]
  %v1565 = vld [vmem:[%s3 + $0xb4] sm:$0xf]
  %v1566 = vld [vmem:[%s3 + $0xb8] sm:$0xf]
  %v1567 = vld [vmem:[%s3 + $0xbc] sm:$0xf]
  %v1584 = vunpack.c.l.b16 %v1552
  %v1585 = vunpack.c.l.b16 %v1553
  %v1586 = vunpack.c.l.b16 %v1554
  %v1587 = vunpack.c.l.b16 %v1555
  %v1588 = vunpack.c.l.b16 %v1556
  %v1589 = vunpack.c.l.b16 %v1557
  %v1590 = vunpack.c.l.b16 %v1558
  %v1591 = vunpack.c.l.b16 %v1559
  %v1592 = vunpack.c.l.b16 %v1560
  %v1593 = vunpack.c.l.b16 %v1561
  %v1594 = vunpack.c.l.b16 %v1562
  %v1595 = vunpack.c.l.b16 %v1563
  %v1596 = vunpack.c.l.b16 %v1564
  %v1597 = vunpack.c.l.b16 %v1565
  %v1598 = vunpack.c.l.b16 %v1566
  %v1599 = vunpack.c.l.b16 %v1567
  %v1600 = vpack.c.b16 %v1585, %v1584
  %v1601 = vpack.c.b16 %v1587, %v1586
  %v1602 = vpack.c.b16 %v1589, %v1588
  %v1603 = vpack.c.b16 %v1591, %v1590
  %v1604 = vpack.c.b16 %v1593, %v1592
  %v1605 = vpack.c.b16 %v1595, %v1594
  %v1606 = vpack.c.b16 %v1597, %v1596
  %v1607 = vpack.c.b16 %v1599, %v1598
  %1616 = vmatprep.subr.bf16.mxu0 0
  %1617 = vmatpush1.bf16.msra.mxu0 %v1600
  %1618 = vmatprep.subr.bf16.mxu0 0
  %1619 = vmatpush1.bf16.msra.mxu0 %v1601
  %1620 = vmatprep.subr.bf16.mxu0 0
  %1621 = vmatpush1.bf16.msra.mxu0 %v1602
  %1622 = vmatprep.subr.bf16.mxu0 0
  %1623 = vmatpush1.bf16.msra.mxu0 %v1603
  %1624 = vmatprep.subr.bf16.mxu0 0
  %1625 = vmatpush1.bf16.msra.mxu0 %v1604
  %1626 = vmatprep.subr.bf16.mxu0 0
  %1627 = vmatpush1.bf16.msra.mxu0 %v1605
  %1628 = vmatprep.subr.bf16.mxu0 0
  %1629 = vmatpush1.bf16.msra.mxu0 %v1606
  %1630 = vmatprep.subr.bf16.mxu0 0
  %1631 = vmatpush1.bf16.msra.mxu0 %v1607
  %1632 = vmatprep.subr.bf16.mxu0 0
  %1633 = vmatpush1.bf16.msra.mxu0 0
  %1634 = vmatprep.subr.bf16.mxu0 0
  %1635 = vmatpush1.bf16.msra.mxu0 0
  %1636 = vmatprep.subr.bf16.mxu0 0
  %1637 = vmatpush1.bf16.msra.mxu0 0
  %1638 = vmatprep.subr.bf16.mxu0 0
  %1639 = vmatpush1.bf16.msra.mxu0 0
  %1640 = vmatprep.subr.bf16.mxu0 0
  %1641 = vmatpush1.bf16.msra.mxu0 0
  %1642 = vmatprep.subr.bf16.mxu0 0
  %1643 = vmatpush1.bf16.msra.mxu0 0
  %1644 = vmatprep.subr.bf16.mxu0 0
  %1645 = vmatpush1.bf16.msra.mxu0 0
  %1646 = vmatprep.subr.bf16.mxu0 0
  %1647 = vmatpush1.bf16.msra.mxu0 0
  %1648 = vmatprep.mubr.bf16.mxu0 0
  %1649 = vmatmul.mubr.bf16.gmra.mrb[0].mxu0 %v1551
  %v1650 = vpop.f32.mrb[0].mxu0
  %v1651 = vadd.f32 0.0, %v1650
  %v1652 = vpop.f32.mrb[0].mxu0
  %v1653 = vpop.f32.mrb[0].mxu0
  %v1654 = vpop.f32.mrb[0].mxu0
  %1655 = vdwg.mxu0
  %v1656 = vadd.f32 %v1418, %v1651
  %v1657 = vpack.c.bf16 %v900, %v900
  %v1658 = vpack.c.bf16 %v941, %v941
  %1659 = vmatprep.subr.bf16.mxu0 0
  %1660 = vmatpush1.bf16.xpose.msra.mxu0 %v1658
  %1661 = vmatprep.subr.bf16.mxu0 0
  %1662 = vmatpush1.bf16.xpose.msra.mxu0 0
  %1663 = vmatprep.subr.bf16.mxu0 0
  %1664 = vmatpush1.bf16.xpose.msra.mxu0 0
  %1665 = vmatprep.subr.bf16.mxu0 0
  %1666 = vmatpush1.bf16.xpose.msra.mxu0 0
  %1667 = vmatprep.subr.bf16.mxu0 0
  %1668 = vmatpush1.bf16.xpose.msra.mxu0 0
  %1669 = vmatprep.subr.bf16.mxu0 0
  %1670 = vmatpush1.bf16.xpose.msra.mxu0 0
  %1671 = vmatprep.subr.bf16.mxu0 0
  %1672 = vmatpush1.bf16.xpose.msra.mxu0 0
  %1673 = vmatprep.subr.bf16.mxu0 0
  %1674 = vmatpush1.bf16.xpose.msra.mxu0 0
  %1675 = vmatprep.subr.bf16.mxu0 0
  %1676 = vmatpush1.bf16.xpose.msra.mxu0 0
  %1677 = vmatprep.subr.bf16.mxu0 0
  %1678 = vmatpush1.bf16.xpose.msra.mxu0 0
  %1679 = vmatprep.subr.bf16.mxu0 0
  %1680 = vmatpush1.bf16.xpose.msra.mxu0 0
  %1681 = vmatprep.subr.bf16.mxu0 0
  %1682 = vmatpush1.bf16.xpose.msra.mxu0 0
  %1683 = vmatprep.subr.bf16.mxu0 0
  %1684 = vmatpush1.bf16.xpose.msra.mxu0 0
  %1685 = vmatprep.subr.bf16.mxu0 0
  %1686 = vmatpush1.bf16.xpose.msra.mxu0 0
  %1687 = vmatprep.subr.bf16.mxu0 0
  %1688 = vmatpush1.bf16.xpose.msra.mxu0 0
  %1689 = vmatprep.subr.bf16.mxu0 0
  %1690 = vmatpush1.bf16.xpose.msra.mxu0 0
  %1691 = vmatprep.mubr.bf16.mxu0 0
  %1692 = vmatmul.mubr.bf16.gmra.mrb[0].mxu0 %v1657
  %v1693 = vpop.f32.mrb[0].mxu0
  %v1694 = vadd.f32 0.0, %v1693
  %v1695 = vpop.f32.mrb[0].mxu0
  %v1696 = vpop.f32.mrb[0].mxu0
  %v1697 = vpop.f32.mrb[0].mxu0
  %1698 = vdwg.mxu0
  %v1699 = vmul.f32 %v1694, 0.17677669
  %v1700 = vadd.f32 %v1699, %v997
  %v1701 = vsel %vm1000, %v1700, -inf
  %1702 = vmax.xlane.f32.xlu0 %v1701
  %v1703 = vpop.xlane.xlu0 %1702
  %v1704 = vsub.f32 %v1700, %v1703
  %v1705 = vmul.f32 %v1704, 1.442695
  %v1706 = vpow.pop %v1705
  %v1707 = vsel %vm1000, %v1706, 0.0
  %1708 = vadd.xlane.f32.xlu0 %v1707
  %v1709 = vpop.xlane.xlu0 %1708
  %v1710 = vrcp.pop %v1709
  %v1711 = vmul.f32 %v1706, %v1710
  %v1713 = vsel %vm1000, %v1711, 0
  %1715 = vmatprep.subr.mxu0 0.0
  %1716 = vmatpush1.msra.mxu0 %v943
  %1717 = vmatprep.subr.mxu0 0.0
  %1718 = vmatpush1.msra.mxu0 0.0
  %1719 = vmatprep.subr.mxu0 0.0
  %1720 = vmatpush1.msra.mxu0 0.0
  %1721 = vmatprep.subr.mxu0 0.0
  %1722 = vmatpush1.msra.mxu0 0.0
  %1723 = vmatprep.subr.mxu0 0.0
  %1724 = vmatpush1.msra.mxu0 0.0
  %1725 = vmatprep.subr.mxu0 0.0
  %1726 = vmatpush1.msra.mxu0 0.0
  %1727 = vmatprep.subr.mxu0 0.0
  %1728 = vmatpush1.msra.mxu0 0.0
  %1729 = vmatprep.subr.mxu0 0.0
  %1730 = vmatpush1.msra.mxu0 0.0
  %1731 = vmatprep.subr.mxu0 0.0
  %1732 = vmatpush1.msra.mxu0 0.0
  %1733 = vmatprep.subr.mxu0 0.0
  %1734 = vmatpush1.msra.mxu0 0.0
  %1735 = vmatprep.subr.mxu0 0.0
  %1736 = vmatpush1.msra.mxu0 0.0
  %1737 = vmatprep.subr.mxu0 0.0
  %1738 = vmatpush1.msra.mxu0 0.0
  %1739 = vmatprep.subr.mxu0 0.0
  %1740 = vmatpush1.msra.mxu0 0.0
  %1741 = vmatprep.subr.mxu0 0.0
  %1742 = vmatpush1.msra.mxu0 0.0
  %1743 = vmatprep.subr.mxu0 0.0
  %1744 = vmatpush1.msra.mxu0 0.0
  %1745 = vmatprep.subr.mxu0 0.0
  %1746 = vmatpush1.msra.mxu0 0.0
  %1747 = vmatprep.subr.mxu0 0.0
  %1748 = vmatpush1.msra.mxu0 0.0
  %1749 = vmatprep.subr.mxu0 0.0
  %1750 = vmatpush1.msra.mxu0 0.0
  %1751 = vmatprep.subr.mxu0 0.0
  %1752 = vmatpush1.msra.mxu0 0.0
  %1753 = vmatprep.subr.mxu0 0.0
  %1754 = vmatpush1.msra.mxu0 0.0
  %1755 = vmatprep.subr.mxu0 0.0
  %1756 = vmatpush1.msra.mxu0 0.0
  %1757 = vmatprep.subr.mxu0 0.0
  %1758 = vmatpush1.msra.mxu0 0.0
  %1759 = vmatprep.subr.mxu0 0.0
  %1760 = vmatpush1.msra.mxu0 0.0
  %1761 = vmatprep.subr.mxu0 0.0
  %1762 = vmatpush1.msra.mxu0 0.0
  %1763 = vmatprep.subr.mxu0 0.0
  %1764 = vmatpush1.msra.mxu0 0.0
  %1765 = vmatprep.subr.mxu0 0.0
  %1766 = vmatpush1.msra.mxu0 0.0
  %1767 = vmatprep.subr.mxu0 0.0
  %1768 = vmatpush1.msra.mxu0 0.0
  %1769 = vmatprep.subr.mxu0 0.0
  %1770 = vmatpush1.msra.mxu0 0.0
  %1771 = vmatprep.subr.mxu0 0.0
  %1772 = vmatpush1.msra.mxu0 0.0
  %1773 = vmatprep.subr.mxu0 0.0
  %1774 = vmatpush1.msra.mxu0 0.0
  %1775 = vmatprep.subr.mxu0 0.0
  %1776 = vmatpush1.msra.mxu0 0.0
  %1777 = vmatprep.subr.mxu0 0.0
  %1778 = vmatpush1.msra.mxu0 0.0
  %1779 = vmatprep.mubr.f32.mxu0 0.0
  %1780 = vmatmul.mubr.f32.gmra.mrb[0].mxu0 %v1713
  %v1781 = vpop.f32.mrb[0].mxu0
  %v1782 = vadd.f32 0.0, %v1781
  %v1783 = vpop.f32.mrb[0].mxu0
  %1784 = vdwg.mxu0
  %v1785 = vpack.c.bf16 %v1782, %v1782
  %v1786 = vld [vmem:[%s3 + $0xc0] sm:$0xf]
  %v1787 = vld [vmem:[%s3 + $0xc4] sm:$0xf]
  %v1788 = vld [vmem:[%s3 + $0xc8] sm:$0xf]
  %v1789 = vld [vmem:[%s3 + $0xcc] sm:$0xf]
  %v1790 = vld [vmem:[%s3 + $0xd0] sm:$0xf]
  %v1791 = vld [vmem:[%s3 + $0xd4] sm:$0xf]
  %v1792 = vld [vmem:[%s3 + $0xd8] sm:$0xf]
  %v1793 = vld [vmem:[%s3 + $0xdc] sm:$0xf]
  %v1794 = vld [vmem:[%s3 + $0xe0] sm:$0xf]
  %v1795 = vld [vmem:[%s3 + $0xe4] sm:$0xf]
  %v1796 = vld [vmem:[%s3 + $0xe8] sm:$0xf]
  %v1797 = vld [vmem:[%s3 + $0xec] sm:$0xf]
  %v1798 = vld [vmem:[%s3 + $0xf0] sm:$0xf]
  %v1799 = vld [vmem:[%s3 + $0xf4] sm:$0xf]
  %v1800 = vld [vmem:[%s3 + $0xf8] sm:$0xf]
  %v1801 = vld [vmem:[%s3 + $0xfc] sm:$0xf]
  %v1818 = vunpack.c.l.b16 %v1786
  %v1819 = vunpack.c.l.b16 %v1787
  %v1820 = vunpack.c.l.b16 %v1788
  %v1821 = vunpack.c.l.b16 %v1789
  %v1822 = vunpack.c.l.b16 %v1790
  %v1823 = vunpack.c.l.b16 %v1791
  %v1824 = vunpack.c.l.b16 %v1792
  %v1825 = vunpack.c.l.b16 %v1793
  %v1826 = vunpack.c.l.b16 %v1794
  %v1827 = vunpack.c.l.b16 %v1795
  %v1828 = vunpack.c.l.b16 %v1796
  %v1829 = vunpack.c.l.b16 %v1797
  %v1830 = vunpack.c.l.b16 %v1798
  %v1831 = vunpack.c.l.b16 %v1799
  %v1832 = vunpack.c.l.b16 %v1800
  %v1833 = vunpack.c.l.b16 %v1801
  %v1834 = vpack.c.b16 %v1819, %v1818
  %v1835 = vpack.c.b16 %v1821, %v1820
  %v1836 = vpack.c.b16 %v1823, %v1822
  %v1837 = vpack.c.b16 %v1825, %v1824
  %v1838 = vpack.c.b16 %v1827, %v1826
  %v1839 = vpack.c.b16 %v1829, %v1828
  %v1840 = vpack.c.b16 %v1831, %v1830
  %v1841 = vpack.c.b16 %v1833, %v1832
  %1850 = vmatprep.subr.bf16.mxu0 0
  %1851 = vmatpush1.bf16.msra.mxu0 %v1834
  %1852 = vmatprep.subr.bf16.mxu0 0
  %1853 = vmatpush1.bf16.msra.mxu0 %v1835
  %1854 = vmatprep.subr.bf16.mxu0 0
  %1855 = vmatpush1.bf16.msra.mxu0 %v1836
  %1856 = vmatprep.subr.bf16.mxu0 0
  %1857 = vmatpush1.bf16.msra.mxu0 %v1837
  %1858 = vmatprep.subr.bf16.mxu0 0
  %1859 = vmatpush1.bf16.msra.mxu0 %v1838
  %1860 = vmatprep.subr.bf16.mxu0 0
  %1861 = vmatpush1.bf16.msra.mxu0 %v1839
  %1862 = vmatprep.subr.bf16.mxu0 0
  %1863 = vmatpush1.bf16.msra.mxu0 %v1840
  %1864 = vmatprep.subr.bf16.mxu0 0
  %1865 = vmatpush1.bf16.msra.mxu0 %v1841
  %1866 = vmatprep.subr.bf16.mxu0 0
  %1867 = vmatpush1.bf16.msra.mxu0 0
  %1868 = vmatprep.subr.bf16.mxu0 0
  %1869 = vmatpush1.bf16.msra.mxu0 0
  %1870 = vmatprep.subr.bf16.mxu0 0
  %1871 = vmatpush1.bf16.msra.mxu0 0
  %1872 = vmatprep.subr.bf16.mxu0 0
  %1873 = vmatpush1.bf16.msra.mxu0 0
  %1874 = vmatprep.subr.bf16.mxu0 0
  %1875 = vmatpush1.bf16.msra.mxu0 0
  %1876 = vmatprep.subr.bf16.mxu0 0
  %1877 = vmatpush1.bf16.msra.mxu0 0
  %1878 = vmatprep.subr.bf16.mxu0 0
  %1879 = vmatpush1.bf16.msra.mxu0 0
  %1880 = vmatprep.subr.bf16.mxu0 0
  %1881 = vmatpush1.bf16.msra.mxu0 0
  %1882 = vmatprep.mubr.bf16.mxu0 0
  %1883 = vmatmul.mubr.bf16.gmra.mrb[0].mxu0 %v1785
  %v1884 = vpop.f32.mrb[0].mxu0
  %v1885 = vadd.f32 0.0, %v1884
  %v1886 = vpop.f32.mrb[0].mxu0
  %v1887 = vpop.f32.mrb[0].mxu0
  %v1888 = vpop.f32.mrb[0].mxu0
  %1889 = vdwg.mxu0
  %v1890 = vadd.f32 %v1656, %v1885
  %s1891 = scalar_lea.vmem %s13, 1
  %v1892 = vld [vmem:[%s1891] sm:$0x1]
  %v1893 = vpack.c.bf16 %v730, %v730
  %v1894 = vpack.c.bf16 %v732, %v732
  %1895 = vmatprep.subr.bf16.mxu0 0
  %1896 = vmatpush1.bf16.xpose.msra.mxu0 %v1894
  %1897 = vmatprep.subr.bf16.mxu0 0
  %1898 = vmatpush1.bf16.xpose.msra.mxu0 0
  %1899 = vmatprep.subr.bf16.mxu0 0
  %1900 = vmatpush1.bf16.xpose.msra.mxu0 0
  %1901 = vmatprep.subr.bf16.mxu0 0
  %1902 = vmatpush1.bf16.xpose.msra.mxu0 0
  %1903 = vmatprep.subr.bf16.mxu0 0
  %1904 = vmatpush1.bf16.xpose.msra.mxu0 0
  %1905 = vmatprep.subr.bf16.mxu0 0
  %1906 = vmatpush1.bf16.xpose.msra.mxu0 0
  %1907 = vmatprep.subr.bf16.mxu0 0
  %1908 = vmatpush1.bf16.xpose.msra.mxu0 0
  %1909 = vmatprep.subr.bf16.mxu0 0
  %1910 = vmatpush1.bf16.xpose.msra.mxu0 0
  %1911 = vmatprep.subr.bf16.mxu0 0
  %1912 = vmatpush1.bf16.xpose.msra.mxu0 0
  %1913 = vmatprep.subr.bf16.mxu0 0
  %1914 = vmatpush1.bf16.xpose.msra.mxu0 0
  %1915 = vmatprep.subr.bf16.mxu0 0
  %1916 = vmatpush1.bf16.xpose.msra.mxu0 0
  %1917 = vmatprep.subr.bf16.mxu0 0
  %1918 = vmatpush1.bf16.xpose.msra.mxu0 0
  %1919 = vmatprep.subr.bf16.mxu0 0
  %1920 = vmatpush1.bf16.xpose.msra.mxu0 0
  %1921 = vmatprep.subr.bf16.mxu0 0
  %1922 = vmatpush1.bf16.xpose.msra.mxu0 0
  %1923 = vmatprep.subr.bf16.mxu0 0
  %1924 = vmatpush1.bf16.xpose.msra.mxu0 0
  %1925 = vmatprep.subr.bf16.mxu0 0
  %1926 = vmatpush1.bf16.xpose.msra.mxu0 0
  %1927 = vmatprep.mubr.bf16.mxu0 0
  %1928 = vmatmul.mubr.bf16.gmra.mrb[0].mxu0 %v1893
  %v1929 = vpop.f32.mrb[0].mxu0
  %v1930 = vadd.f32 0.0, %v1929
  %v1931 = vpop.f32.mrb[0].mxu0
  %v1932 = vpop.f32.mrb[0].mxu0
  %v1933 = vpop.f32.mrb[0].mxu0
  %1934 = vdwg.mxu0
  %v1935 = vmul.f32 %v1930, 0.17677669
  %v1937 = vlaneseq
  %v1938 = vshrl.u32 %v1937, 7
  %v1939 = vsub.s32 0, %v1938
  %v1940 = vrot.slane %v1892, %v1939
  %v1942 = vadd.f32 %v1935, %v1940
  %v1943 = vsel %vm1000, %v1942, -inf
  %1944 = vmax.xlane.f32.xlu0 %v1943
  %v1945 = vpop.xlane.xlu0 %1944
  %v1946 = vsub.f32 %v1942, %v1945
  %v1947 = vmul.f32 %v1946, 1.442695
  %v1948 = vpow.pop %v1947
  %v1949 = vsel %vm1000, %v1948, 0.0
  %1950 = vadd.xlane.f32.xlu0 %v1949
  %v1951 = vpop.xlane.xlu0 %1950
  %v1952 = vrcp.pop %v1951
  %v1953 = vmul.f32 %v1948, %v1952
  %v1955 = vsel %vm1000, %v1953, 0
  %1957 = vmatprep.subr.mxu0 0.0
  %1958 = vmatpush1.msra.mxu0 %v773
  %1959 = vmatprep.subr.mxu0 0.0
  %1960 = vmatpush1.msra.mxu0 0.0
  %1961 = vmatprep.subr.mxu0 0.0
  %1962 = vmatpush1.msra.mxu0 0.0
  %1963 = vmatprep.subr.mxu0 0.0
  %1964 = vmatpush1.msra.mxu0 0.0
  %1965 = vmatprep.subr.mxu0 0.0
  %1966 = vmatpush1.msra.mxu0 0.0
  %1967 = vmatprep.subr.mxu0 0.0
  %1968 = vmatpush1.msra.mxu0 0.0
  %1969 = vmatprep.subr.mxu0 0.0
  %1970 = vmatpush1.msra.mxu0 0.0
  %1971 = vmatprep.subr.mxu0 0.0
  %1972 = vmatpush1.msra.mxu0 0.0
  %1973 = vmatprep.subr.mxu0 0.0
  %1974 = vmatpush1.msra.mxu0 0.0
  %1975 = vmatprep.subr.mxu0 0.0
  %1976 = vmatpush1.msra.mxu0 0.0
  %1977 = vmatprep.subr.mxu0 0.0
  %1978 = vmatpush1.msra.mxu0 0.0
  %1979 = vmatprep.subr.mxu0 0.0
  %1980 = vmatpush1.msra.mxu0 0.0
  %1981 = vmatprep.subr.mxu0 0.0
  %1982 = vmatpush1.msra.mxu0 0.0
  %1983 = vmatprep.subr.mxu0 0.0
  %1984 = vmatpush1.msra.mxu0 0.0
  %1985 = vmatprep.subr.mxu0 0.0
  %1986 = vmatpush1.msra.mxu0 0.0
  %1987 = vmatprep.subr.mxu0 0.0
  %1988 = vmatpush1.msra.mxu0 0.0
  %1989 = vmatprep.subr.mxu0 0.0
  %1990 = vmatpush1.msra.mxu0 0.0
  %1991 = vmatprep.subr.mxu0 0.0
  %1992 = vmatpush1.msra.mxu0 0.0
  %1993 = vmatprep.subr.mxu0 0.0
  %1994 = vmatpush1.msra.mxu0 0.0
  %1995 = vmatprep.subr.mxu0 0.0
  %1996 = vmatpush1.msra.mxu0 0.0
  %1997 = vmatprep.subr.mxu0 0.0
  %1998 = vmatpush1.msra.mxu0 0.0
  %1999 = vmatprep.subr.mxu0 0.0
  %2000 = vmatpush1.msra.mxu0 0.0
  %2001 = vmatprep.subr.mxu0 0.0
  %2002 = vmatpush1.msra.mxu0 0.0
  %2003 = vmatprep.subr.mxu0 0.0
  %2004 = vmatpush1.msra.mxu0 0.0
  %2005 = vmatprep.subr.mxu0 0.0
  %2006 = vmatpush1.msra.mxu0 0.0
  %2007 = vmatprep.subr.mxu0 0.0
  %2008 = vmatpush1.msra.mxu0 0.0
  %2009 = vmatprep.subr.mxu0 0.0
  %2010 = vmatpush1.msra.mxu0 0.0
  %2011 = vmatprep.subr.mxu0 0.0
  %2012 = vmatpush1.msra.mxu0 0.0
  %2013 = vmatprep.subr.mxu0 0.0
  %2014 = vmatpush1.msra.mxu0 0.0
  %2015 = vmatprep.subr.mxu0 0.0
  %2016 = vmatpush1.msra.mxu0 0.0
  %2017 = vmatprep.subr.mxu0 0.0
  %2018 = vmatpush1.msra.mxu0 0.0
  %2019 = vmatprep.subr.mxu0 0.0
  %2020 = vmatpush1.msra.mxu0 0.0
  %2021 = vmatprep.mubr.f32.mxu0 0.0
  %2022 = vmatmul.mubr.f32.gmra.mrb[0].mxu0 %v1955
  %v2023 = vpop.f32.mrb[0].mxu0
  %v2024 = vadd.f32 0.0, %v2023
  %v2025 = vpop.f32.mrb[0].mxu0
  %2026 = vdwg.mxu0
  %v2027 = vpack.c.bf16 %v2024, %v2024
  %v2028 = vpack.c.bf16 %v775, %v775
  %v2029 = vpack.c.bf16 %v816, %v816
  %2030 = vmatprep.subr.bf16.mxu0 0
  %2031 = vmatpush1.bf16.xpose.msra.mxu0 %v2029
  %2032 = vmatprep.subr.bf16.mxu0 0
  %2033 = vmatpush1.bf16.xpose.msra.mxu0 0
  %2034 = vmatprep.subr.bf16.mxu0 0
  %2035 = vmatpush1.bf16.xpose.msra.mxu0 0
  %2036 = vmatprep.subr.bf16.mxu0 0
  %2037 = vmatpush1.bf16.xpose.msra.mxu0 0
  %2038 = vmatprep.subr.bf16.mxu0 0
  %2039 = vmatpush1.bf16.xpose.msra.mxu0 0
  %2040 = vmatprep.subr.bf16.mxu0 0
  %2041 = vmatpush1.bf16.xpose.msra.mxu0 0
  %2042 = vmatprep.subr.bf16.mxu0 0
  %2043 = vmatpush1.bf16.xpose.msra.mxu0 0
  %2044 = vmatprep.subr.bf16.mxu0 0
  %2045 = vmatpush1.bf16.xpose.msra.mxu0 0
  %2046 = vmatprep.subr.bf16.mxu0 0
  %2047 = vmatpush1.bf16.xpose.msra.mxu0 0
  %2048 = vmatprep.subr.bf16.mxu0 0
  %2049 = vmatpush1.bf16.xpose.msra.mxu0 0
  %2050 = vmatprep.subr.bf16.mxu0 0
  %2051 = vmatpush1.bf16.xpose.msra.mxu0 0
  %2052 = vmatprep.subr.bf16.mxu0 0
  %2053 = vmatpush1.bf16.xpose.msra.mxu0 0
  %2054 = vmatprep.subr.bf16.mxu0 0
  %2055 = vmatpush1.bf16.xpose.msra.mxu0 0
  %2056 = vmatprep.subr.bf16.mxu0 0
  %2057 = vmatpush1.bf16.xpose.msra.mxu0 0
  %2058 = vmatprep.subr.bf16.mxu0 0
  %2059 = vmatpush1.bf16.xpose.msra.mxu0 0
  %2060 = vmatprep.subr.bf16.mxu0 0
  %2061 = vmatpush1.bf16.xpose.msra.mxu0 0
  %2062 = vmatprep.mubr.bf16.mxu0 0
  %2063 = vmatmul.mubr.bf16.gmra.mrb[0].mxu0 %v2028
  %v2064 = vpop.f32.mrb[0].mxu0
  %v2065 = vadd.f32 0.0, %v2064
  %v2066 = vpop.f32.mrb[0].mxu0
  %v2067 = vpop.f32.mrb[0].mxu0
  %v2068 = vpop.f32.mrb[0].mxu0
  %2069 = vdwg.mxu0
  %v2070 = vmul.f32 %v2065, 0.17677669
  %v2071 = vadd.f32 %v2070, %v1940
  %v2072 = vsel %vm1000, %v2071, -inf
  %2073 = vmax.xlane.f32.xlu0 %v2072
  %v2074 = vpop.xlane.xlu0 %2073
  %v2075 = vsub.f32 %v2071, %v2074
  %v2076 = vmul.f32 %v2075, 1.442695
  %v2077 = vpow.pop %v2076
  %v2078 = vsel %vm1000, %v2077, 0.0
  %2079 = vadd.xlane.f32.xlu0 %v2078
  %v2080 = vpop.xlane.xlu0 %2079
  %v2081 = vrcp.pop %v2080
  %v2082 = vmul.f32 %v2077, %v2081
  %v2084 = vsel %vm1000, %v2082, 0
  %2086 = vmatprep.subr.mxu0 0.0
  %2087 = vmatpush1.msra.mxu0 %v818
  %2088 = vmatprep.subr.mxu0 0.0
  %2089 = vmatpush1.msra.mxu0 0.0
  %2090 = vmatprep.subr.mxu0 0.0
  %2091 = vmatpush1.msra.mxu0 0.0
  %2092 = vmatprep.subr.mxu0 0.0
  %2093 = vmatpush1.msra.mxu0 0.0
  %2094 = vmatprep.subr.mxu0 0.0
  %2095 = vmatpush1.msra.mxu0 0.0
  %2096 = vmatprep.subr.mxu0 0.0
  %2097 = vmatpush1.msra.mxu0 0.0
  %2098 = vmatprep.subr.mxu0 0.0
  %2099 = vmatpush1.msra.mxu0 0.0
  %2100 = vmatprep.subr.mxu0 0.0
  %2101 = vmatpush1.msra.mxu0 0.0
  %2102 = vmatprep.subr.mxu0 0.0
  %2103 = vmatpush1.msra.mxu0 0.0
  %2104 = vmatprep.subr.mxu0 0.0
  %2105 = vmatpush1.msra.mxu0 0.0
  %2106 = vmatprep.subr.mxu0 0.0
  %2107 = vmatpush1.msra.mxu0 0.0
  %2108 = vmatprep.subr.mxu0 0.0
  %2109 = vmatpush1.msra.mxu0 0.0
  %2110 = vmatprep.subr.mxu0 0.0
  %2111 = vmatpush1.msra.mxu0 0.0
  %2112 = vmatprep.subr.mxu0 0.0
  %2113 = vmatpush1.msra.mxu0 0.0
  %2114 = vmatprep.subr.mxu0 0.0
  %2115 = vmatpush1.msra.mxu0 0.0
  %2116 = vmatprep.subr.mxu0 0.0
  %2117 = vmatpush1.msra.mxu0 0.0
  %2118 = vmatprep.subr.mxu0 0.0
  %2119 = vmatpush1.msra.mxu0 0.0
  %2120 = vmatprep.subr.mxu0 0.0
  %2121 = vmatpush1.msra.mxu0 0.0
  %2122 = vmatprep.subr.mxu0 0.0
  %2123 = vmatpush1.msra.mxu0 0.0
  %2124 = vmatprep.subr.mxu0 0.0
  %2125 = vmatpush1.msra.mxu0 0.0
  %2126 = vmatprep.subr.mxu0 0.0
  %2127 = vmatpush1.msra.mxu0 0.0
  %2128 = vmatprep.subr.mxu0 0.0
  %2129 = vmatpush1.msra.mxu0 0.0
  %2130 = vmatprep.subr.mxu0 0.0
  %2131 = vmatpush1.msra.mxu0 0.0
  %2132 = vmatprep.subr.mxu0 0.0
  %2133 = vmatpush1.msra.mxu0 0.0
  %2134 = vmatprep.subr.mxu0 0.0
  %2135 = vmatpush1.msra.mxu0 0.0
  %2136 = vmatprep.subr.mxu0 0.0
  %2137 = vmatpush1.msra.mxu0 0.0
  %2138 = vmatprep.subr.mxu0 0.0
  %2139 = vmatpush1.msra.mxu0 0.0
  %2140 = vmatprep.subr.mxu0 0.0
  %2141 = vmatpush1.msra.mxu0 0.0
  %2142 = vmatprep.subr.mxu0 0.0
  %2143 = vmatpush1.msra.mxu0 0.0
  %2144 = vmatprep.subr.mxu0 0.0
  %2145 = vmatpush1.msra.mxu0 0.0
  %2146 = vmatprep.subr.mxu0 0.0
  %2147 = vmatpush1.msra.mxu0 0.0
  %2148 = vmatprep.subr.mxu0 0.0
  %2149 = vmatpush1.msra.mxu0 0.0
  %2150 = vmatprep.mubr.f32.mxu0 0.0
  %2151 = vmatmul.mubr.f32.gmra.mrb[0].mxu0 %v2084
  %v2152 = vpop.f32.mrb[0].mxu0
  %v2153 = vadd.f32 0.0, %v2152
  %v2154 = vpop.f32.mrb[0].mxu0
  %2155 = vdwg.mxu0
  %v2156 = vpack.c.bf16 %v2153, %v2153
  %2157 = vmatprep.subr.bf16.mxu0 0
  %2158 = vmatpush1.bf16.msra.mxu0 %v1279
  %2159 = vmatprep.subr.bf16.mxu0 0
  %2160 = vmatpush1.bf16.msra.mxu0 %v1280
  %2161 = vmatprep.subr.bf16.mxu0 0
  %2162 = vmatpush1.bf16.msra.mxu0 %v1281
  %2163 = vmatprep.subr.bf16.mxu0 0
  %2164 = vmatpush1.bf16.msra.mxu0 %v1282
  %2165 = vmatprep.subr.bf16.mxu0 0
  %2166 = vmatpush1.bf16.msra.mxu0 %v1283
  %2167 = vmatprep.subr.bf16.mxu0 0
  %2168 = vmatpush1.bf16.msra.mxu0 %v1284
  %2169 = vmatprep.subr.bf16.mxu0 0
  %2170 = vmatpush1.bf16.msra.mxu0 %v1285
  %2171 = vmatprep.subr.bf16.mxu0 0
  %2172 = vmatpush1.bf16.msra.mxu0 %v1286
  %2173 = vmatprep.subr.bf16.mxu0 0
  %2174 = vmatpush1.bf16.msra.mxu0 0
  %2175 = vmatprep.subr.bf16.mxu0 0
  %2176 = vmatpush1.bf16.msra.mxu0 0
  %2177 = vmatprep.subr.bf16.mxu0 0
  %2178 = vmatpush1.bf16.msra.mxu0 0
  %2179 = vmatprep.subr.bf16.mxu0 0
  %2180 = vmatpush1.bf16.msra.mxu0 0
  %2181 = vmatprep.subr.bf16.mxu0 0
  %2182 = vmatpush1.bf16.msra.mxu0 0
  %2183 = vmatprep.subr.bf16.mxu0 0
  %2184 = vmatpush1.bf16.msra.mxu0 0
  %2185 = vmatprep.subr.bf16.mxu0 0
  %2186 = vmatpush1.bf16.msra.mxu0 0
  %2187 = vmatprep.subr.bf16.mxu0 0
  %2188 = vmatpush1.bf16.msra.mxu0 0
  %2189 = vmatprep.mubr.bf16.mxu0 0
  %2190 = vmatmul.mubr.bf16.gmra.mrb[0].mxu0 %v2156
  %v2191 = vpop.f32.mrb[0].mxu0
  %v2192 = vadd.f32 0.0, %v2191
  %v2193 = vpop.f32.mrb[0].mxu0
  %v2194 = vpop.f32.mrb[0].mxu0
  %v2195 = vpop.f32.mrb[0].mxu0
  %2196 = vdwg.mxu0
  %2197 = vmatprep.subr.bf16.mxu0 0
  %2198 = vmatpush1.bf16.msra.mxu0 %v1367
  %2199 = vmatprep.subr.bf16.mxu0 0
  %2200 = vmatpush1.bf16.msra.mxu0 %v1368
  %2201 = vmatprep.subr.bf16.mxu0 0
  %2202 = vmatpush1.bf16.msra.mxu0 %v1369
  %2203 = vmatprep.subr.bf16.mxu0 0
  %2204 = vmatpush1.bf16.msra.mxu0 %v1370
  %2205 = vmatprep.subr.bf16.mxu0 0
  %2206 = vmatpush1.bf16.msra.mxu0 %v1371
  %2207 = vmatprep.subr.bf16.mxu0 0
  %2208 = vmatpush1.bf16.msra.mxu0 %v1372
  %2209 = vmatprep.subr.bf16.mxu0 0
  %2210 = vmatpush1.bf16.msra.mxu0 %v1373
  %2211 = vmatprep.subr.bf16.mxu0 0
  %2212 = vmatpush1.bf16.msra.mxu0 %v1374
  %2213 = vmatprep.subr.bf16.mxu0 0
  %2214 = vmatpush1.bf16.msra.mxu0 0
  %2215 = vmatprep.subr.bf16.mxu0 0
  %2216 = vmatpush1.bf16.msra.mxu0 0
  %2217 = vmatprep.subr.bf16.mxu0 0
  %2218 = vmatpush1.bf16.msra.mxu0 0
  %2219 = vmatprep.subr.bf16.mxu0 0
  %2220 = vmatpush1.bf16.msra.mxu0 0
  %2221 = vmatprep.subr.bf16.mxu0 0
  %2222 = vmatpush1.bf16.msra.mxu0 0
  %2223 = vmatprep.subr.bf16.mxu0 0
  %2224 = vmatpush1.bf16.msra.mxu0 0
  %2225 = vmatprep.subr.bf16.mxu0 0
  %2226 = vmatpush1.bf16.msra.mxu0 0
  %2227 = vmatprep.subr.bf16.mxu0 0
  %2228 = vmatpush1.bf16.msra.mxu0 0
  %2229 = vmatprep.mubr.bf16.mxu0 0
  %2230 = vmatmul.mubr.bf16.gmra.mrb[0].mxu0 %v2027
  %v2231 = vpop.f32.mrb[0].mxu0
  %v2232 = vadd.f32 %v2192, %v2231
  %v2233 = vpop.f32.mrb[0].mxu0
  %v2234 = vpop.f32.mrb[0].mxu0
  %v2235 = vpop.f32.mrb[0].mxu0
  %2236 = vdwg.mxu0
  %v2237 = vpack.c.bf16 %v859, %v859
  %v2238 = vpack.c.bf16 %v861, %v861
  %2239 = vmatprep.subr.bf16.mxu0 0
  %2240 = vmatpush1.bf16.xpose.msra.mxu0 %v2238
  %2241 = vmatprep.subr.bf16.mxu0 0
  %2242 = vmatpush1.bf16.xpose.msra.mxu0 0
  %2243 = vmatprep.subr.bf16.mxu0 0
  %2244 = vmatpush1.bf16.xpose.msra.mxu0 0
  %2245 = vmatprep.subr.bf16.mxu0 0
  %2246 = vmatpush1.bf16.xpose.msra.mxu0 0
  %2247 = vmatprep.subr.bf16.mxu0 0
  %2248 = vmatpush1.bf16.xpose.msra.mxu0 0
  %2249 = vmatprep.subr.bf16.mxu0 0
  %2250 = vmatpush1.bf16.xpose.msra.mxu0 0
  %2251 = vmatprep.subr.bf16.mxu0 0
  %2252 = vmatpush1.bf16.xpose.msra.mxu0 0
  %2253 = vmatprep.subr.bf16.mxu0 0
  %2254 = vmatpush1.bf16.xpose.msra.mxu0 0
  %2255 = vmatprep.subr.bf16.mxu0 0
  %2256 = vmatpush1.bf16.xpose.msra.mxu0 0
  %2257 = vmatprep.subr.bf16.mxu0 0
  %2258 = vmatpush1.bf16.xpose.msra.mxu0 0
  %2259 = vmatprep.subr.bf16.mxu0 0
  %2260 = vmatpush1.bf16.xpose.msra.mxu0 0
  %2261 = vmatprep.subr.bf16.mxu0 0
  %2262 = vmatpush1.bf16.xpose.msra.mxu0 0
  %2263 = vmatprep.subr.bf16.mxu0 0
  %2264 = vmatpush1.bf16.xpose.msra.mxu0 0
  %2265 = vmatprep.subr.bf16.mxu0 0
  %2266 = vmatpush1.bf16.xpose.msra.mxu0 0
  %2267 = vmatprep.subr.bf16.mxu0 0
  %2268 = vmatpush1.bf16.xpose.msra.mxu0 0
  %2269 = vmatprep.subr.bf16.mxu0 0
  %2270 = vmatpush1.bf16.xpose.msra.mxu0 0
  %2271 = vmatprep.mubr.bf16.mxu0 0
  %2272 = vmatmul.mubr.bf16.gmra.mrb[0].mxu0 %v2237
  %v2273 = vpop.f32.mrb[0].mxu0
  %v2274 = vadd.f32 0.0, %v2273
  %v2275 = vpop.f32.mrb[0].mxu0
  %v2276 = vpop.f32.mrb[0].mxu0
  %v2277 = vpop.f32.mrb[0].mxu0
  %2278 = vdwg.mxu0
  %v2279 = vmul.f32 %v2274, 0.17677669
  %v2280 = vadd.f32 %v2279, %v1940
  %v2281 = vsel %vm1000, %v2280, -inf
  %2282 = vmax.xlane.f32.xlu0 %v2281
  %v2283 = vpop.xlane.xlu0 %2282
  %v2284 = vsub.f32 %v2280, %v2283
  %v2285 = vmul.f32 %v2284, 1.442695
  %v2286 = vpow.pop %v2285
  %v2287 = vsel %vm1000, %v2286, 0.0
  %2288 = vadd.xlane.f32.xlu0 %v2287
  %v2289 = vpop.xlane.xlu0 %2288
  %v2290 = vrcp.pop %v2289
  %v2291 = vmul.f32 %v2286, %v2290
  %v2293 = vsel %vm1000, %v2291, 0
  %2295 = vmatprep.subr.mxu0 0.0
  %2296 = vmatpush1.msra.mxu0 %v902
  %2297 = vmatprep.subr.mxu0 0.0
  %2298 = vmatpush1.msra.mxu0 0.0
  %2299 = vmatprep.subr.mxu0 0.0
  %2300 = vmatpush1.msra.mxu0 0.0
  %2301 = vmatprep.subr.mxu0 0.0
  %2302 = vmatpush1.msra.mxu0 0.0
  %2303 = vmatprep.subr.mxu0 0.0
  %2304 = vmatpush1.msra.mxu0 0.0
  %2305 = vmatprep.subr.mxu0 0.0
  %2306 = vmatpush1.msra.mxu0 0.0
  %2307 = vmatprep.subr.mxu0 0.0
  %2308 = vmatpush1.msra.mxu0 0.0
  %2309 = vmatprep.subr.mxu0 0.0
  %2310 = vmatpush1.msra.mxu0 0.0
  %2311 = vmatprep.subr.mxu0 0.0
  %2312 = vmatpush1.msra.mxu0 0.0
  %2313 = vmatprep.subr.mxu0 0.0
  %2314 = vmatpush1.msra.mxu0 0.0
  %2315 = vmatprep.subr.mxu0 0.0
  %2316 = vmatpush1.msra.mxu0 0.0
  %2317 = vmatprep.subr.mxu0 0.0
  %2318 = vmatpush1.msra.mxu0 0.0
  %2319 = vmatprep.subr.mxu0 0.0
  %2320 = vmatpush1.msra.mxu0 0.0
  %2321 = vmatprep.subr.mxu0 0.0
  %2322 = vmatpush1.msra.mxu0 0.0
  %2323 = vmatprep.subr.mxu0 0.0
  %2324 = vmatpush1.msra.mxu0 0.0
  %2325 = vmatprep.subr.mxu0 0.0
  %2326 = vmatpush1.msra.mxu0 0.0
  %2327 = vmatprep.subr.mxu0 0.0
  %2328 = vmatpush1.msra.mxu0 0.0
  %2329 = vmatprep.subr.mxu0 0.0
  %2330 = vmatpush1.msra.mxu0 0.0
  %2331 = vmatprep.subr.mxu0 0.0
  %2332 = vmatpush1.msra.mxu0 0.0
  %2333 = vmatprep.subr.mxu0 0.0
  %2334 = vmatpush1.msra.mxu0 0.0
  %2335 = vmatprep.subr.mxu0 0.0
  %2336 = vmatpush1.msra.mxu0 0.0
  %2337 = vmatprep.subr.mxu0 0.0
  %2338 = vmatpush1.msra.mxu0 0.0
  %2339 = vmatprep.subr.mxu0 0.0
  %2340 = vmatpush1.msra.mxu0 0.0
  %2341 = vmatprep.subr.mxu0 0.0
  %2342 = vmatpush1.msra.mxu0 0.0
  %2343 = vmatprep.subr.mxu0 0.0
  %2344 = vmatpush1.msra.mxu0 0.0
  %2345 = vmatprep.subr.mxu0 0.0
  %2346 = vmatpush1.msra.mxu0 0.0
  %2347 = vmatprep.subr.mxu0 0.0
  %2348 = vmatpush1.msra.mxu0 0.0
  %2349 = vmatprep.subr.mxu0 0.0
  %2350 = vmatpush1.msra.mxu0 0.0
  %2351 = vmatprep.subr.mxu0 0.0
  %2352 = vmatpush1.msra.mxu0 0.0
  %2353 = vmatprep.subr.mxu0 0.0
  %2354 = vmatpush1.msra.mxu0 0.0
  %2355 = vmatprep.subr.mxu0 0.0
  %2356 = vmatpush1.msra.mxu0 0.0
  %2357 = vmatprep.subr.mxu0 0.0
  %2358 = vmatpush1.msra.mxu0 0.0
  %2359 = vmatprep.mubr.f32.mxu0 0.0
  %2360 = vmatmul.mubr.f32.gmra.mrb[0].mxu0 %v2293
  %v2361 = vpop.f32.mrb[0].mxu0
  %v2362 = vadd.f32 0.0, %v2361
  %v2363 = vpop.f32.mrb[0].mxu0
  %2364 = vdwg.mxu0
  %v2365 = vpack.c.bf16 %v2362, %v2362
  %2366 = vmatprep.subr.bf16.mxu0 0
  %2367 = vmatpush1.bf16.msra.mxu0 %v1600
  %2368 = vmatprep.subr.bf16.mxu0 0
  %2369 = vmatpush1.bf16.msra.mxu0 %v1601
  %2370 = vmatprep.subr.bf16.mxu0 0
  %2371 = vmatpush1.bf16.msra.mxu0 %v1602
  %2372 = vmatprep.subr.bf16.mxu0 0
  %2373 = vmatpush1.bf16.msra.mxu0 %v1603
  %2374 = vmatprep.subr.bf16.mxu0 0
  %2375 = vmatpush1.bf16.msra.mxu0 %v1604
  %2376 = vmatprep.subr.bf16.mxu0 0
  %2377 = vmatpush1.bf16.msra.mxu0 %v1605
  %2378 = vmatprep.subr.bf16.mxu0 0
  %2379 = vmatpush1.bf16.msra.mxu0 %v1606
  %2380 = vmatprep.subr.bf16.mxu0 0
  %2381 = vmatpush1.bf16.msra.mxu0 %v1607
  %2382 = vmatprep.subr.bf16.mxu0 0
  %2383 = vmatpush1.bf16.msra.mxu0 0
  %2384 = vmatprep.subr.bf16.mxu0 0
  %2385 = vmatpush1.bf16.msra.mxu0 0
  %2386 = vmatprep.subr.bf16.mxu0 0
  %2387 = vmatpush1.bf16.msra.mxu0 0
  %2388 = vmatprep.subr.bf16.mxu0 0
  %2389 = vmatpush1.bf16.msra.mxu0 0
  %2390 = vmatprep.subr.bf16.mxu0 0
  %2391 = vmatpush1.bf16.msra.mxu0 0
  %2392 = vmatprep.subr.bf16.mxu0 0
  %2393 = vmatpush1.bf16.msra.mxu0 0
  %2394 = vmatprep.subr.bf16.mxu0 0
  %2395 = vmatpush1.bf16.msra.mxu0 0
  %2396 = vmatprep.subr.bf16.mxu0 0
  %2397 = vmatpush1.bf16.msra.mxu0 0
  %2398 = vmatprep.mubr.bf16.mxu0 0
  %2399 = vmatmul.mubr.bf16.gmra.mrb[0].mxu0 %v2365
  %v2400 = vpop.f32.mrb[0].mxu0
  %v2401 = vadd.f32 0.0, %v2400
  %v2402 = vpop.f32.mrb[0].mxu0
  %v2403 = vpop.f32.mrb[0].mxu0
  %v2404 = vpop.f32.mrb[0].mxu0
  %2405 = vdwg.mxu0
  %v2406 = vadd.f32 %v2232, %v2401
  %v2407 = vpack.c.bf16 %v904, %v904
  %v2408 = vpack.c.bf16 %v945, %v945
  %2409 = vmatprep.subr.bf16.mxu0 0
  %2410 = vmatpush1.bf16.xpose.msra.mxu0 %v2408
  %2411 = vmatprep.subr.bf16.mxu0 0
  %2412 = vmatpush1.bf16.xpose.msra.mxu0 0
  %2413 = vmatprep.subr.bf16.mxu0 0
  %2414 = vmatpush1.bf16.xpose.msra.mxu0 0
  %2415 = vmatprep.subr.bf16.mxu0 0
  %2416 = vmatpush1.bf16.xpose.msra.mxu0 0
  %2417 = vmatprep.subr.bf16.mxu0 0
  %2418 = vmatpush1.bf16.xpose.msra.mxu0 0
  %2419 = vmatprep.subr.bf16.mxu0 0
  %2420 = vmatpush1.bf16.xpose.msra.mxu0 0
  %2421 = vmatprep.subr.bf16.mxu0 0
  %2422 = vmatpush1.bf16.xpose.msra.mxu0 0
  %2423 = vmatprep.subr.bf16.mxu0 0
  %2424 = vmatpush1.bf16.xpose.msra.mxu0 0
  %2425 = vmatprep.subr.bf16.mxu0 0
  %2426 = vmatpush1.bf16.xpose.msra.mxu0 0
  %2427 = vmatprep.subr.bf16.mxu0 0
  %2428 = vmatpush1.bf16.xpose.msra.mxu0 0
  %2429 = vmatprep.subr.bf16.mxu0 0
  %2430 = vmatpush1.bf16.xpose.msra.mxu0 0
  %2431 = vmatprep.subr.bf16.mxu0 0
  %2432 = vmatpush1.bf16.xpose.msra.mxu0 0
  %2433 = vmatprep.subr.bf16.mxu0 0
  %2434 = vmatpush1.bf16.xpose.msra.mxu0 0
  %2435 = vmatprep.subr.bf16.mxu0 0
  %2436 = vmatpush1.bf16.xpose.msra.mxu0 0
  %2437 = vmatprep.subr.bf16.mxu0 0
  %2438 = vmatpush1.bf16.xpose.msra.mxu0 0
  %2439 = vmatprep.subr.bf16.mxu0 0
  %2440 = vmatpush1.bf16.xpose.msra.mxu0 0
  %2441 = vmatprep.mubr.bf16.mxu0 0
  %2442 = vmatmul.mubr.bf16.gmra.mrb[0].mxu0 %v2407
  %v2443 = vpop.f32.mrb[0].mxu0
  %v2444 = vadd.f32 0.0, %v2443
  %v2445 = vpop.f32.mrb[0].mxu0
  %v2446 = vpop.f32.mrb[0].mxu0
  %v2447 = vpop.f32.mrb[0].mxu0
  %2448 = vdwg.mxu0
  %v2449 = vmul.f32 %v2444, 0.17677669
  %v2450 = vadd.f32 %v2449, %v1940
  %v2451 = vsel %vm1000, %v2450, -inf
  %2452 = vmax.xlane.f32.xlu0 %v2451
  %v2453 = vpop.xlane.xlu0 %2452
  %v2454 = vsub.f32 %v2450, %v2453
  %v2455 = vmul.f32 %v2454, 1.442695
  %v2456 = vpow.pop %v2455
  %v2457 = vsel %vm1000, %v2456, 0.0
  %2458 = vadd.xlane.f32.xlu0 %v2457
  %v2459 = vpop.xlane.xlu0 %2458
  %v2460 = vrcp.pop %v2459
  %v2461 = vmul.f32 %v2456, %v2460
  %v2463 = vsel %vm1000, %v2461, 0
  %2465 = vmatprep.subr.mxu0 0.0
  %2466 = vmatpush1.msra.mxu0 %v947
  %2467 = vmatprep.subr.mxu0 0.0
  %2468 = vmatpush1.msra.mxu0 0.0
  %2469 = vmatprep.subr.mxu0 0.0
  %2470 = vmatpush1.msra.mxu0 0.0
  %2471 = vmatprep.subr.mxu0 0.0
  %2472 = vmatpush1.msra.mxu0 0.0
  %2473 = vmatprep.subr.mxu0 0.0
  %2474 = vmatpush1.msra.mxu0 0.0
  %2475 = vmatprep.subr.mxu0 0.0
  %2476 = vmatpush1.msra.mxu0 0.0
  %2477 = vmatprep.subr.mxu0 0.0
  %2478 = vmatpush1.msra.mxu0 0.0
  %2479 = vmatprep.subr.mxu0 0.0
  %2480 = vmatpush1.msra.mxu0 0.0
  %2481 = vmatprep.subr.mxu0 0.0
  %2482 = vmatpush1.msra.mxu0 0.0
  %2483 = vmatprep.subr.mxu0 0.0
  %2484 = vmatpush1.msra.mxu0 0.0
  %2485 = vmatprep.subr.mxu0 0.0
  %2486 = vmatpush1.msra.mxu0 0.0
  %2487 = vmatprep.subr.mxu0 0.0
  %2488 = vmatpush1.msra.mxu0 0.0
  %2489 = vmatprep.subr.mxu0 0.0
  %2490 = vmatpush1.msra.mxu0 0.0
  %2491 = vmatprep.subr.mxu0 0.0
  %2492 = vmatpush1.msra.mxu0 0.0
  %2493 = vmatprep.subr.mxu0 0.0
  %2494 = vmatpush1.msra.mxu0 0.0
  %2495 = vmatprep.subr.mxu0 0.0
  %2496 = vmatpush1.msra.mxu0 0.0
  %2497 = vmatprep.subr.mxu0 0.0
  %2498 = vmatpush1.msra.mxu0 0.0
  %2499 = vmatprep.subr.mxu0 0.0
  %2500 = vmatpush1.msra.mxu0 0.0
  %2501 = vmatprep.subr.mxu0 0.0
  %2502 = vmatpush1.msra.mxu0 0.0
  %2503 = vmatprep.subr.mxu0 0.0
  %2504 = vmatpush1.msra.mxu0 0.0
  %2505 = vmatprep.subr.mxu0 0.0
  %2506 = vmatpush1.msra.mxu0 0.0
  %2507 = vmatprep.subr.mxu0 0.0
  %2508 = vmatpush1.msra.mxu0 0.0
  %2509 = vmatprep.subr.mxu0 0.0
  %2510 = vmatpush1.msra.mxu0 0.0
  %2511 = vmatprep.subr.mxu0 0.0
  %2512 = vmatpush1.msra.mxu0 0.0
  %2513 = vmatprep.subr.mxu0 0.0
  %2514 = vmatpush1.msra.mxu0 0.0
  %2515 = vmatprep.subr.mxu0 0.0
  %2516 = vmatpush1.msra.mxu0 0.0
  %2517 = vmatprep.subr.mxu0 0.0
  %2518 = vmatpush1.msra.mxu0 0.0
  %2519 = vmatprep.subr.mxu0 0.0
  %2520 = vmatpush1.msra.mxu0 0.0
  %2521 = vmatprep.subr.mxu0 0.0
  %2522 = vmatpush1.msra.mxu0 0.0
  %2523 = vmatprep.subr.mxu0 0.0
  %2524 = vmatpush1.msra.mxu0 0.0
  %2525 = vmatprep.subr.mxu0 0.0
  %2526 = vmatpush1.msra.mxu0 0.0
  %2527 = vmatprep.subr.mxu0 0.0
  %2528 = vmatpush1.msra.mxu0 0.0
  %2529 = vmatprep.mubr.f32.mxu0 0.0
  %2530 = vmatmul.mubr.f32.gmra.mrb[0].mxu0 %v2463
  %v2531 = vpop.f32.mrb[0].mxu0
  %v2532 = vadd.f32 0.0, %v2531
  %v2533 = vpop.f32.mrb[0].mxu0
  %2534 = vdwg.mxu0
  %v2535 = vpack.c.bf16 %v2532, %v2532
  %2536 = vmatprep.subr.bf16.mxu0 0
  %2537 = vmatpush1.bf16.msra.mxu0 %v1834
  %2538 = vmatprep.subr.bf16.mxu0 0
  %2539 = vmatpush1.bf16.msra.mxu0 %v1835
  %2540 = vmatprep.subr.bf16.mxu0 0
  %2541 = vmatpush1.bf16.msra.mxu0 %v1836
  %2542 = vmatprep.subr.bf16.mxu0 0
  %2543 = vmatpush1.bf16.msra.mxu0 %v1837
  %2544 = vmatprep.subr.bf16.mxu0 0
  %2545 = vmatpush1.bf16.msra.mxu0 %v1838
  %2546 = vmatprep.subr.bf16.mxu0 0
  %2547 = vmatpush1.bf16.msra.mxu0 %v1839
  %2548 = vmatprep.subr.bf16.mxu0 0
  %2549 = vmatpush1.bf16.msra.mxu0 %v1840
  %2550 = vmatprep.subr.bf16.mxu0 0
  %2551 = vmatpush1.bf16.msra.mxu0 %v1841
  %2552 = vmatprep.subr.bf16.mxu0 0
  %2553 = vmatpush1.bf16.msra.mxu0 0
  %2554 = vmatprep.subr.bf16.mxu0 0
  %2555 = vmatpush1.bf16.msra.mxu0 0
  %2556 = vmatprep.subr.bf16.mxu0 0
  %2557 = vmatpush1.bf16.msra.mxu0 0
  %2558 = vmatprep.subr.bf16.mxu0 0
  %2559 = vmatpush1.bf16.msra.mxu0 0
  %2560 = vmatprep.subr.bf16.mxu0 0
  %2561 = vmatpush1.bf16.msra.mxu0 0
  %2562 = vmatprep.subr.bf16.mxu0 0
  %2563 = vmatpush1.bf16.msra.mxu0 0
  %2564 = vmatprep.subr.bf16.mxu0 0
  %2565 = vmatpush1.bf16.msra.mxu0 0
  %2566 = vmatprep.subr.bf16.mxu0 0
  %2567 = vmatpush1.bf16.msra.mxu0 0
  %2568 = vmatprep.mubr.bf16.mxu0 0
  %2569 = vmatmul.mubr.bf16.gmra.mrb[0].mxu0 %v2535
  %v2570 = vpop.f32.mrb[0].mxu0
  %v2571 = vadd.f32 0.0, %v2570
  %v2572 = vpop.f32.mrb[0].mxu0
  %v2573 = vpop.f32.mrb[0].mxu0
  %v2574 = vpop.f32.mrb[0].mxu0
  %2575 = vdwg.mxu0
  %v2576 = vadd.f32 %v2406, %v2571
  %v2577 = vld [vmem:[%s4] sm:$0x1]
  %v2579 = vlaneseq
  %v2580 = vshrl.u32 %v2579, 7
  %v2581 = vsub.s32 0, %v2580
  %v2582 = vrot.slane %v2577, %v2581
  %v2584 = vadd.f32 %v1890, %v2582
  %v2585 = vadd.f32 %v2576, %v2582
  %v2586 = vadd.f32 %v48, %v2584
  %v2587 = vadd.f32 %v49, %v2585
  %v2588 = vld [vmem:[%s5] sm:$0x1]
  %v2589 = vld [vmem:[%s6] sm:$0x1]
  %2590 = vadd.xlane.f32.xlu0 %v2586
  %v2591 = vpop.xlane.xlu0 %2590
  %2592 = vadd.xlane.f32.xlu0 %v2587
  %v2593 = vpop.xlane.xlu0 %2592
  %v2594 = vrcp.pop 128.0
  %v2595 = vmul.f32 %v2591, %v2594
  %v2596 = vmul.f32 %v2593, %v2594
  %v2597 = vsub.f32 %v2586, %v2595
  %v2598 = vsub.f32 %v2587, %v2596
  %v2599 = vmul.f32 %v2597, %v2597
  %v2600 = vmul.f32 %v2598, %v2598
  %2601 = vadd.xlane.f32.xlu0 %v2599
  %v2602 = vpop.xlane.xlu0 %2601
  %2603 = vadd.xlane.f32.xlu0 %v2600
  %v2604 = vpop.xlane.xlu0 %2603
  %v2605 = vmul.f32 %v2602, %v2594
  %v2606 = vmul.f32 %v2604, %v2594
  %v2607 = vadd.f32 %v2605, 1e-12
  %v2608 = vadd.f32 %v2606, 1e-12
  %v2609 = vrsqrt.pop %v2607
  %v2610 = vrsqrt.pop %v2608
  %v2611 = vmul.f32 %v2597, %v2609
  %v2612 = vmul.f32 %v2598, %v2610
  %v2614 = vlaneseq
  %v2615 = vshrl.u32 %v2614, 7
  %v2616 = vsub.s32 0, %v2615
  %v2617 = vrot.slane %v2588, %v2616
  %v2619 = vmul.f32 %v2611, %v2617
  %v2620 = vmul.f32 %v2612, %v2617
  %v2622 = vlaneseq
  %v2623 = vshrl.u32 %v2622, 7
  %v2624 = vsub.s32 0, %v2623
  %v2625 = vrot.slane %v2589, %v2624
  %v2627 = vadd.f32 %v2619, %v2625
  %v2628 = vadd.f32 %v2620, %v2625
  %v2629 = vpack.c.bf16 %v2628, %v2627
  %v2630 = vld [vmem:[%s7] sm:$0xff]
  %v2631 = vld [vmem:[%s7 + $0x8] sm:$0xff]
  %v2632 = vld [vmem:[%s7 + $0x10] sm:$0xff]
  %v2633 = vld [vmem:[%s7 + $0x18] sm:$0xff]
  %v2634 = vld [vmem:[%s7 + $0x20] sm:$0xff]
  %v2635 = vld [vmem:[%s7 + $0x28] sm:$0xff]
  %v2636 = vld [vmem:[%s7 + $0x30] sm:$0xff]
  %v2637 = vld [vmem:[%s7 + $0x38] sm:$0xff]
  %v2638 = vld [vmem:[%s7 + $0x40] sm:$0xff]
  %v2639 = vld [vmem:[%s7 + $0x48] sm:$0xff]
  %v2640 = vld [vmem:[%s7 + $0x50] sm:$0xff]
  %v2641 = vld [vmem:[%s7 + $0x58] sm:$0xff]
  %v2642 = vld [vmem:[%s7 + $0x60] sm:$0xff]
  %v2643 = vld [vmem:[%s7 + $0x68] sm:$0xff]
  %v2644 = vld [vmem:[%s7 + $0x70] sm:$0xff]
  %v2645 = vld [vmem:[%s7 + $0x78] sm:$0xff]
  %v2646 = vld [vmem:[%s8] sm:$0x3]
  %v2648 = vlaneseq
  %v2649 = vshrl.u32 %v2648, 7
  %v2650 = vsub.s32 0, %v2649
  %v2651 = vrot.slane %v2646, %v2650
  %v2652 = vlaneseq
  %v2653 = vshrl.u32 %v2652, 7
  %v2654 = vsub.s32 1, %v2653
  %v2655 = vrot.slane %v2646, %v2654
  %v2674 = vunpack.c.l.b16 %v2630
  %v2675 = vunpack.c.h.b16 %v2630
  %v2676 = vunpack.c.l.b16 %v2631
  %v2677 = vunpack.c.h.b16 %v2631
  %v2678 = vunpack.c.l.b16 %v2632
  %v2679 = vunpack.c.h.b16 %v2632
  %v2680 = vunpack.c.l.b16 %v2633
  %v2681 = vunpack.c.h.b16 %v2633
  %v2682 = vunpack.c.l.b16 %v2634
  %v2683 = vunpack.c.h.b16 %v2634
  %v2684 = vunpack.c.l.b16 %v2635
  %v2685 = vunpack.c.h.b16 %v2635
  %v2686 = vunpack.c.l.b16 %v2636
  %v2687 = vunpack.c.h.b16 %v2636
  %v2688 = vunpack.c.l.b16 %v2637
  %v2689 = vunpack.c.h.b16 %v2637
  %v2690 = vunpack.c.l.b16 %v2638
  %v2691 = vunpack.c.h.b16 %v2638
  %v2692 = vunpack.c.l.b16 %v2639
  %v2693 = vunpack.c.h.b16 %v2639
  %v2694 = vunpack.c.l.b16 %v2640
  %v2695 = vunpack.c.h.b16 %v2640
  %v2696 = vunpack.c.l.b16 %v2641
  %v2697 = vunpack.c.h.b16 %v2641
  %v2698 = vunpack.c.l.b16 %v2642
  %v2699 = vunpack.c.h.b16 %v2642
  %v2700 = vunpack.c.l.b16 %v2643
  %v2701 = vunpack.c.h.b16 %v2643
  %v2702 = vunpack.c.l.b16 %v2644
  %v2703 = vunpack.c.h.b16 %v2644
  %v2704 = vunpack.c.l.b16 %v2645
  %v2705 = vunpack.c.h.b16 %v2645
  %v2706 = vpack.c.b16 %v2676, %v2674
  %v2707 = vpack.c.b16 %v2677, %v2675
  %v2708 = vpack.c.b16 %v2680, %v2678
  %v2709 = vpack.c.b16 %v2681, %v2679
  %v2710 = vpack.c.b16 %v2684, %v2682
  %v2711 = vpack.c.b16 %v2685, %v2683
  %v2712 = vpack.c.b16 %v2688, %v2686
  %v2713 = vpack.c.b16 %v2689, %v2687
  %v2714 = vpack.c.b16 %v2692, %v2690
  %v2715 = vpack.c.b16 %v2693, %v2691
  %v2716 = vpack.c.b16 %v2696, %v2694
  %v2717 = vpack.c.b16 %v2697, %v2695
  %v2718 = vpack.c.b16 %v2700, %v2698
  %v2719 = vpack.c.b16 %v2701, %v2699
  %v2720 = vpack.c.b16 %v2704, %v2702
  %v2721 = vpack.c.b16 %v2705, %v2703
  %2738 = vmatprep.subr.bf16.mxu0 %v2707
  %2739 = vmatpush1.bf16.msra.mxu0 %v2706
  %2740 = vmatprep.subr.bf16.mxu0 %v2709
  %2741 = vmatpush1.bf16.msra.mxu0 %v2708
  %2742 = vmatprep.subr.bf16.mxu0 %v2711
  %2743 = vmatpush1.bf16.msra.mxu0 %v2710
  %2744 = vmatprep.subr.bf16.mxu0 %v2713
  %2745 = vmatpush1.bf16.msra.mxu0 %v2712
  %2746 = vmatprep.subr.bf16.mxu0 %v2715
  %2747 = vmatpush1.bf16.msra.mxu0 %v2714
  %2748 = vmatprep.subr.bf16.mxu0 %v2717
  %2749 = vmatpush1.bf16.msra.mxu0 %v2716
  %2750 = vmatprep.subr.bf16.mxu0 %v2719
  %2751 = vmatpush1.bf16.msra.mxu0 %v2718
  %2752 = vmatprep.subr.bf16.mxu0 %v2721
  %2753 = vmatpush1.bf16.msra.mxu0 %v2720
  %2754 = vmatprep.subr.bf16.mxu0 0
  %2755 = vmatpush1.bf16.msra.mxu0 0
  %2756 = vmatprep.subr.bf16.mxu0 0
  %2757 = vmatpush1.bf16.msra.mxu0 0
  %2758 = vmatprep.subr.bf16.mxu0 0
  %2759 = vmatpush1.bf16.msra.mxu0 0
  %2760 = vmatprep.subr.bf16.mxu0 0
  %2761 = vmatpush1.bf16.msra.mxu0 0
  %2762 = vmatprep.subr.bf16.mxu0 0
  %2763 = vmatpush1.bf16.msra.mxu0 0
  %2764 = vmatprep.subr.bf16.mxu0 0
  %2765 = vmatpush1.bf16.msra.mxu0 0
  %2766 = vmatprep.subr.bf16.mxu0 0
  %2767 = vmatpush1.bf16.msra.mxu0 0
  %2768 = vmatprep.subr.bf16.mxu0 0
  %2769 = vmatpush1.bf16.msra.mxu0 0
  %2770 = vmatprep.mubr.bf16.mxu0 0
  %2771 = vmatmul.mubr.bf16.gmra.mrb[0].mxu0 %v2629
  %v2772 = vpop.f32.mrb[0].mxu0
  %v2773 = vadd.f32 %v2651, %v2772
  %v2774 = vpop.f32.mrb[0].mxu0
  %v2775 = vadd.f32 %v2655, %v2774
  %v2776 = vpop.f32.mrb[0].mxu0
  %v2777 = vadd.f32 %v2651, %v2776
  %v2778 = vpop.f32.mrb[0].mxu0
  %v2779 = vadd.f32 %v2655, %v2778
  %2780 = vdwg.mxu0
  %v2781 = vmul.f32 %v2773, 0.5
  %v2782 = vmul.f32 %v2775, 0.5
  %v2783 = vmul.f32 %v2777, 0.5
  %v2784 = vmul.f32 %v2779, 0.5
  %v2785 = vmul.f32 %v2773, 0.044715
  %v2786 = vmul.f32 %v2775, 0.044715
  %v2787 = vmul.f32 %v2777, 0.044715
  %v2788 = vmul.f32 %v2779, 0.044715
  %v2789 = vmul.f32 %v2785, %v2773
  %v2790 = vmul.f32 %v2786, %v2775
  %v2791 = vmul.f32 %v2787, %v2777
  %v2792 = vmul.f32 %v2788, %v2779
  %v2793 = vmul.f32 %v2789, %v2773
  %v2794 = vmul.f32 %v2790, %v2775
  %v2795 = vmul.f32 %v2791, %v2777
  %v2796 = vmul.f32 %v2792, %v2779
  %v2797 = vadd.f32 %v2773, %v2793
  %v2798 = vadd.f32 %v2775, %v2794
  %v2799 = vadd.f32 %v2777, %v2795
  %v2800 = vadd.f32 %v2779, %v2796
  %v2801 = vmul.f32 %v2797, 0.7978846
  %v2802 = vmul.f32 %v2798, 0.7978846
  %v2803 = vmul.f32 %v2799, 0.7978846
  %v2804 = vmul.f32 %v2800, 0.7978846
  %v2805 = vtanh.pop %v2801
  %v2806 = vtanh.pop %v2802
  %v2807 = vtanh.pop %v2803
  %v2808 = vtanh.pop %v2804
  %v2809 = vadd.f32 %v2805, 1.0
  %v2810 = vadd.f32 %v2806, 1.0
  %v2811 = vadd.f32 %v2807, 1.0
  %v2812 = vadd.f32 %v2808, 1.0
  %v2813 = vmul.f32 %v2781, %v2809
  %v2814 = vmul.f32 %v2782, %v2810
  %v2815 = vmul.f32 %v2783, %v2811
  %v2816 = vmul.f32 %v2784, %v2812
  %v2817 = vpack.c.bf16 %v2815, %v2813
  %v2818 = vpack.c.bf16 %v2816, %v2814
  %v2819 = vld [vmem:[%s9] sm:$0xf]
  %v2820 = vld [vmem:[%s9 + $0x4] sm:$0xf]
  %v2821 = vld [vmem:[%s9 + $0x8] sm:$0xf]
  %v2822 = vld [vmem:[%s9 + $0xc] sm:$0xf]
  %v2823 = vld [vmem:[%s9 + $0x10] sm:$0xf]
  %v2824 = vld [vmem:[%s9 + $0x14] sm:$0xf]
  %v2825 = vld [vmem:[%s9 + $0x18] sm:$0xf]
  %v2826 = vld [vmem:[%s9 + $0x1c] sm:$0xf]
  %v2827 = vld [vmem:[%s9 + $0x20] sm:$0xf]
  %v2828 = vld [vmem:[%s9 + $0x24] sm:$0xf]
  %v2829 = vld [vmem:[%s9 + $0x28] sm:$0xf]
  %v2830 = vld [vmem:[%s9 + $0x2c] sm:$0xf]
  %v2831 = vld [vmem:[%s9 + $0x30] sm:$0xf]
  %v2832 = vld [vmem:[%s9 + $0x34] sm:$0xf]
  %v2833 = vld [vmem:[%s9 + $0x38] sm:$0xf]
  %v2834 = vld [vmem:[%s9 + $0x3c] sm:$0xf]
  %v2835 = vld [vmem:[%s9 + $0x40] sm:$0xf]
  %v2836 = vld [vmem:[%s9 + $0x44] sm:$0xf]
  %v2837 = vld [vmem:[%s9 + $0x48] sm:$0xf]
  %v2838 = vld [vmem:[%s9 + $0x4c] sm:$0xf]
  %v2839 = vld [vmem:[%s9 + $0x50] sm:$0xf]
  %v2840 = vld [vmem:[%s9 + $0x54] sm:$0xf]
  %v2841 = vld [vmem:[%s9 + $0x58] sm:$0xf]
  %v2842 = vld [vmem:[%s9 + $0x5c] sm:$0xf]
  %v2843 = vld [vmem:[%s9 + $0x60] sm:$0xf]
  %v2844 = vld [vmem:[%s9 + $0x64] sm:$0xf]
  %v2845 = vld [vmem:[%s9 + $0x68] sm:$0xf]
  %v2846 = vld [vmem:[%s9 + $0x6c] sm:$0xf]
  %v2847 = vld [vmem:[%s9 + $0x70] sm:$0xf]
  %v2848 = vld [vmem:[%s9 + $0x74] sm:$0xf]
  %v2849 = vld [vmem:[%s9 + $0x78] sm:$0xf]
  %v2850 = vld [vmem:[%s9 + $0x7c] sm:$0xf]
  %v2851 = vld [vmem:[%s10] sm:$0x1]
  %v2853 = vlaneseq
  %v2854 = vshrl.u32 %v2853, 7
  %v2855 = vsub.s32 0, %v2854
  %v2856 = vrot.slane %v2851, %v2855
  %v2890 = vunpack.c.l.b16 %v2819
  %v2891 = vunpack.c.l.b16 %v2820
  %v2892 = vunpack.c.l.b16 %v2821
  %v2893 = vunpack.c.l.b16 %v2822
  %v2894 = vunpack.c.l.b16 %v2823
  %v2895 = vunpack.c.l.b16 %v2824
  %v2896 = vunpack.c.l.b16 %v2825
  %v2897 = vunpack.c.l.b16 %v2826
  %v2898 = vunpack.c.l.b16 %v2827
  %v2899 = vunpack.c.l.b16 %v2828
  %v2900 = vunpack.c.l.b16 %v2829
  %v2901 = vunpack.c.l.b16 %v2830
  %v2902 = vunpack.c.l.b16 %v2831
  %v2903 = vunpack.c.l.b16 %v2832
  %v2904 = vunpack.c.l.b16 %v2833
  %v2905 = vunpack.c.l.b16 %v2834
  %v2906 = vunpack.c.l.b16 %v2835
  %v2907 = vunpack.c.l.b16 %v2836
  %v2908 = vunpack.c.l.b16 %v2837
  %v2909 = vunpack.c.l.b16 %v2838
  %v2910 = vunpack.c.l.b16 %v2839
  %v2911 = vunpack.c.l.b16 %v2840
  %v2912 = vunpack.c.l.b16 %v2841
  %v2913 = vunpack.c.l.b16 %v2842
  %v2914 = vunpack.c.l.b16 %v2843
  %v2915 = vunpack.c.l.b16 %v2844
  %v2916 = vunpack.c.l.b16 %v2845
  %v2917 = vunpack.c.l.b16 %v2846
  %v2918 = vunpack.c.l.b16 %v2847
  %v2919 = vunpack.c.l.b16 %v2848
  %v2920 = vunpack.c.l.b16 %v2849
  %v2921 = vunpack.c.l.b16 %v2850
  %v2922 = vpack.c.b16 %v2891, %v2890
  %v2923 = vpack.c.b16 %v2893, %v2892
  %v2924 = vpack.c.b16 %v2895, %v2894
  %v2925 = vpack.c.b16 %v2897, %v2896
  %v2926 = vpack.c.b16 %v2899, %v2898
  %v2927 = vpack.c.b16 %v2901, %v2900
  %v2928 = vpack.c.b16 %v2903, %v2902
  %v2929 = vpack.c.b16 %v2905, %v2904
  %v2930 = vpack.c.b16 %v2907, %v2906
  %v2931 = vpack.c.b16 %v2909, %v2908
  %v2932 = vpack.c.b16 %v2911, %v2910
  %v2933 = vpack.c.b16 %v2913, %v2912
  %v2934 = vpack.c.b16 %v2915, %v2914
  %v2935 = vpack.c.b16 %v2917, %v2916
  %v2936 = vpack.c.b16 %v2919, %v2918
  %v2937 = vpack.c.b16 %v2921, %v2920
  %2954 = vmatprep.subr.bf16.mxu0 0
  %2955 = vmatpush1.bf16.msra.mxu0 %v2922
  %2956 = vmatprep.subr.bf16.mxu0 0
  %2957 = vmatpush1.bf16.msra.mxu0 %v2923
  %2958 = vmatprep.subr.bf16.mxu0 0
  %2959 = vmatpush1.bf16.msra.mxu0 %v2924
  %2960 = vmatprep.subr.bf16.mxu0 0
  %2961 = vmatpush1.bf16.msra.mxu0 %v2925
  %2962 = vmatprep.subr.bf16.mxu0 0
  %2963 = vmatpush1.bf16.msra.mxu0 %v2926
  %2964 = vmatprep.subr.bf16.mxu0 0
  %2965 = vmatpush1.bf16.msra.mxu0 %v2927
  %2966 = vmatprep.subr.bf16.mxu0 0
  %2967 = vmatpush1.bf16.msra.mxu0 %v2928
  %2968 = vmatprep.subr.bf16.mxu0 0
  %2969 = vmatpush1.bf16.msra.mxu0 %v2929
  %2970 = vmatprep.subr.bf16.mxu0 0
  %2971 = vmatpush1.bf16.msra.mxu0 %v2930
  %2972 = vmatprep.subr.bf16.mxu0 0
  %2973 = vmatpush1.bf16.msra.mxu0 %v2931
  %2974 = vmatprep.subr.bf16.mxu0 0
  %2975 = vmatpush1.bf16.msra.mxu0 %v2932
  %2976 = vmatprep.subr.bf16.mxu0 0
  %2977 = vmatpush1.bf16.msra.mxu0 %v2933
  %2978 = vmatprep.subr.bf16.mxu0 0
  %2979 = vmatpush1.bf16.msra.mxu0 %v2934
  %2980 = vmatprep.subr.bf16.mxu0 0
  %2981 = vmatpush1.bf16.msra.mxu0 %v2935
  %2982 = vmatprep.subr.bf16.mxu0 0
  %2983 = vmatpush1.bf16.msra.mxu0 %v2936
  %2984 = vmatprep.subr.bf16.mxu0 0
  %2985 = vmatpush1.bf16.msra.mxu0 %v2937
  %2986 = vmatprep.mubr.bf16.mxu0 %v2818
  %2987 = vmatmul.mubr.bf16.gmra.mrb[0].mxu0 %v2817
  %v2988 = vpop.f32.mrb[0].mxu0
  %v2989 = vadd.f32 %v2856, %v2988
  %v2990 = vpop.f32.mrb[0].mxu0
  %v2991 = vpop.f32.mrb[0].mxu0
  %v2992 = vadd.f32 %v2856, %v2991
  %v2993 = vpop.f32.mrb[0].mxu0
  %2994 = vdwg.mxu0
  %v2995 = vadd.f32 %v2627, %v2989
  %v2996 = vadd.f32 %v2628, %v2992
  %v2997 = vld [vmem:[%s11] sm:$0x1]
  %v2998 = vld [vmem:[%s12] sm:$0x1]
  %2999 = vadd.xlane.f32.xlu0 %v2995
  %v3000 = vpop.xlane.xlu0 %2999
  %3001 = vadd.xlane.f32.xlu0 %v2996
  %v3002 = vpop.xlane.xlu0 %3001
  %v3003 = vmul.f32 %v3000, %v2594
  %v3004 = vmul.f32 %v3002, %v2594
  %v3005 = vsub.f32 %v2995, %v3003
  %v3006 = vsub.f32 %v2996, %v3004
  %v3007 = vmul.f32 %v3005, %v3005
  %v3008 = vmul.f32 %v3006, %v3006
  %3009 = vadd.xlane.f32.xlu0 %v3007
  %v3010 = vpop.xlane.xlu0 %3009
  %3011 = vadd.xlane.f32.xlu0 %v3008
  %v3012 = vpop.xlane.xlu0 %3011
  %v3013 = vmul.f32 %v3010, %v2594
  %v3014 = vmul.f32 %v3012, %v2594
  %v3015 = vadd.f32 %v3013, 1e-12
  %v3016 = vadd.f32 %v3014, 1e-12
  %v3017 = vrsqrt.pop %v3015
  %v3018 = vrsqrt.pop %v3016
  %v3019 = vmul.f32 %v3005, %v3017
  %v3020 = vmul.f32 %v3006, %v3018
  %v3022 = vlaneseq
  %v3023 = vshrl.u32 %v3022, 7
  %v3024 = vsub.s32 0, %v3023
  %v3025 = vrot.slane %v2997, %v3024
  %v3027 = vmul.f32 %v3019, %v3025
  %v3028 = vmul.f32 %v3020, %v3025
  %v3030 = vlaneseq
  %v3031 = vshrl.u32 %v3030, 7
  %v3032 = vsub.s32 0, %v3031
  %v3033 = vrot.slane %v2998, %v3032
  %v3035 = vadd.f32 %v3027, %v3033
  %v3036 = vadd.f32 %v3028, %v3033
  %3037 = vst [vmem:[%s14] sm:$0xff] %v3035
  %3038 = vst [vmem:[%s14 + $0x8] sm:$0xff] %v3036
  // Predicated region
  $region58: #{bert_crf_forward.5} parent=0 // pred_check
    _
  $region59: #{bert_crf_forward.5} parent=0 // pred_check_branch
    %3040 = sbr.rel (0) target = $region61
  $region60: #{bert_crf_forward.5} parent=0 // pred_region
    _
  $region61: #{bert_crf_forward.5} parent=0 // pred_fallthru
    _
  // Predicated region
  $region62: #{bert_crf_forward.5} parent=0 // pred_check
    _
  $region63: #{bert_crf_forward.5} parent=0 // pred_check_branch
    %3042 = sbr.rel (0) target = $region65
  $region64: #{bert_crf_forward.5} parent=0 // pred_region
    _
  $region65: #{bert_crf_forward.5} parent=0 // pred_fallthru
    _

// kernel: bert_crf_forward.7
$region0: #{bert_crf_forward.7}
  #allocation0 [shape = 'u32[]', space=smem, size = 0x4, offset = 0x4, fixed_abs, tag = 'smem constant byte address 0x4 - core index']
  #allocation1 [shape = 'u32[144,128]{1,0:T(1,128)}', space=vmem, size = 0x12000, scoped, tag = 'internal scratch']
  %s0 = inlined_call_operand.vmem [shape: f32[16,128], index: 0, kind: input, shape index: {}]
  %s1 = inlined_call_operand.vmem [shape: bf16[128,128], index: 1, kind: input, shape index: {}]
  %s2 = inlined_call_operand.vmem [shape: f32[1,128], index: 2, kind: input, shape index: {}]
  %s3 = inlined_call_operand.vmem [shape: s32[2,8], index: 3, kind: input, shape index: {}]
  %s4 = inlined_call_operand.vmem [shape: f32[1,128], index: 4, kind: input, shape index: {}]
  %s5 = inlined_call_operand.vmem [shape: f32[1,128], index: 5, kind: input, shape index: {}]
  %s6 = inlined_call_operand.vmem [shape: f32[128,128], index: 6, kind: input, shape index: {}]
  %s7 = inlined_call_operand.hbm [shape: s32[2,8], index: 7, kind: output, shape index: {0}]
  %s8 = inlined_call_operand.vmem [shape: f32[2,1], index: 8, kind: output, shape index: {1}]
  %9 = xla_tuple %s7, %s8
  %s10 = sld [smem:[#allocation0]]
  $region46: #{bert_crf_forward.7} parent=0
    _
  %s12 = ssub.s32 1, %s10
  %s13 = scalar_select 0, %s12, %s10
  $region1: #{bert_crf_forward.7} parent=0
    #allocation2 [shape = 'u8[1024]{0}', space=vmem, size = 0x400, scoped, tag = 'output window, operand 0, single buffered']
    #allocation3 [shape = 's32[1]{0}', space=sflag, size = 0x4, scoped, tag = 'scoped memory for bert_crf_forward.7']
    %14 = vsyncpa [#allocation3], 0
    // Predicated region
    $region2: #{bert_crf_forward.7} parent=1 // pred_check
      _
    $region3: #{bert_crf_forward.7} parent=1 // pred_check_branch
      %16 = sbr.rel (0) target = $region5
    $region4: #{bert_crf_forward.7} parent=1 // pred_region
      _
    $region5: #{bert_crf_forward.7} parent=1 // pred_fallthru
      _
    // Predicated region
    $region6: #{bert_crf_forward.7} parent=1 // pred_check
      _
    $region7: #{bert_crf_forward.7} parent=1 // pred_check_branch
      %18 = sbr.rel (0) target = $region9
    $region8: #{bert_crf_forward.7} parent=1 // pred_region
      _
    $region9: #{bert_crf_forward.7} parent=1 // pred_fallthru
      _
    // Predicated region
    $region10: #{bert_crf_forward.7} parent=1 // pred_check
      _
    $region11: #{bert_crf_forward.7} parent=1 // pred_check_branch
      %20 = sbr.rel (0) target = $region13
    $region12: #{bert_crf_forward.7} parent=1 // pred_region
      _
    $region13: #{bert_crf_forward.7} parent=1 // pred_fallthru
      _
    // Predicated region
    $region14: #{bert_crf_forward.7} parent=1 // pred_check
      _
    $region15: #{bert_crf_forward.7} parent=1 // pred_check_branch
      %22 = sbr.rel (0) target = $region17
    $region16: #{bert_crf_forward.7} parent=1 // pred_region
      _
    $region17: #{bert_crf_forward.7} parent=1 // pred_fallthru
      _
    // Predicated region
    $region18: #{bert_crf_forward.7} parent=1 // pred_check
      _
    $region19: #{bert_crf_forward.7} parent=1 // pred_check_branch
      %24 = sbr.rel (0) target = $region21
    $region20: #{bert_crf_forward.7} parent=1 // pred_region
      _
    $region21: #{bert_crf_forward.7} parent=1 // pred_fallthru
      _
    // Predicated region
    $region22: #{bert_crf_forward.7} parent=1 // pred_check
      _
    $region23: #{bert_crf_forward.7} parent=1 // pred_check_branch
      %26 = sbr.rel (0) target = $region25
    $region24: #{bert_crf_forward.7} parent=1 // pred_region
      _
    $region25: #{bert_crf_forward.7} parent=1 // pred_fallthru
      _
    // Predicated region
    $region26: #{bert_crf_forward.7} parent=1 // pred_check
      _
    $region27: #{bert_crf_forward.7} parent=1 // pred_check_branch
      %28 = sbr.rel (0) target = $region29
    $region28: #{bert_crf_forward.7} parent=1 // pred_region
      _
    $region29: #{bert_crf_forward.7} parent=1 // pred_fallthru
      _
    %v30 = vld [vmem:[%s0] sm:$0xff]
    %v31 = vld [vmem:[%s0 + $0x8] sm:$0xff]
    %v32 = vpack.c.bf16 %v31, %v30
    %v33 = vld [vmem:[%s1] sm:$0xf]
    %v34 = vld [vmem:[%s1 + $0x4] sm:$0xf]
    %v35 = vld [vmem:[%s1 + $0x8] sm:$0xf]
    %v36 = vld [vmem:[%s1 + $0xc] sm:$0xf]
    %v37 = vld [vmem:[%s1 + $0x10] sm:$0xf]
    %v38 = vld [vmem:[%s1 + $0x14] sm:$0xf]
    %v39 = vld [vmem:[%s1 + $0x18] sm:$0xf]
    %v40 = vld [vmem:[%s1 + $0x1c] sm:$0xf]
    %v41 = vld [vmem:[%s1 + $0x20] sm:$0xf]
    %v42 = vld [vmem:[%s1 + $0x24] sm:$0xf]
    %v43 = vld [vmem:[%s1 + $0x28] sm:$0xf]
    %v44 = vld [vmem:[%s1 + $0x2c] sm:$0xf]
    %v45 = vld [vmem:[%s1 + $0x30] sm:$0xf]
    %v46 = vld [vmem:[%s1 + $0x34] sm:$0xf]
    %v47 = vld [vmem:[%s1 + $0x38] sm:$0xf]
    %v48 = vld [vmem:[%s1 + $0x3c] sm:$0xf]
    %v49 = vld [vmem:[%s2] sm:$0x1]
    %v51 = vlaneseq
    %v52 = vshrl.u32 %v51, 7
    %v53 = vsub.s32 0, %v52
    %v54 = vrot.slane %v49, %v53
    %v72 = vunpack.c.l.b16 %v33
    %v73 = vunpack.c.l.b16 %v34
    %v74 = vunpack.c.l.b16 %v35
    %v75 = vunpack.c.l.b16 %v36
    %v76 = vunpack.c.l.b16 %v37
    %v77 = vunpack.c.l.b16 %v38
    %v78 = vunpack.c.l.b16 %v39
    %v79 = vunpack.c.l.b16 %v40
    %v80 = vunpack.c.l.b16 %v41
    %v81 = vunpack.c.l.b16 %v42
    %v82 = vunpack.c.l.b16 %v43
    %v83 = vunpack.c.l.b16 %v44
    %v84 = vunpack.c.l.b16 %v45
    %v85 = vunpack.c.l.b16 %v46
    %v86 = vunpack.c.l.b16 %v47
    %v87 = vunpack.c.l.b16 %v48
    %v88 = vpack.c.b16 %v73, %v72
    %v89 = vpack.c.b16 %v75, %v74
    %v90 = vpack.c.b16 %v77, %v76
    %v91 = vpack.c.b16 %v79, %v78
    %v92 = vpack.c.b16 %v81, %v80
    %v93 = vpack.c.b16 %v83, %v82
    %v94 = vpack.c.b16 %v85, %v84
    %v95 = vpack.c.b16 %v87, %v86
    %104 = vmatprep.subr.bf16.mxu0 0
    %105 = vmatpush1.bf16.msra.mxu0 %v88
    %106 = vmatprep.subr.bf16.mxu0 0
    %107 = vmatpush1.bf16.msra.mxu0 %v89
    %108 = vmatprep.subr.bf16.mxu0 0
    %109 = vmatpush1.bf16.msra.mxu0 %v90
    %110 = vmatprep.subr.bf16.mxu0 0
    %111 = vmatpush1.bf16.msra.mxu0 %v91
    %112 = vmatprep.subr.bf16.mxu0 0
    %113 = vmatpush1.bf16.msra.mxu0 %v92
    %114 = vmatprep.subr.bf16.mxu0 0
    %115 = vmatpush1.bf16.msra.mxu0 %v93
    %116 = vmatprep.subr.bf16.mxu0 0
    %117 = vmatpush1.bf16.msra.mxu0 %v94
    %118 = vmatprep.subr.bf16.mxu0 0
    %119 = vmatpush1.bf16.msra.mxu0 %v95
    %120 = vmatprep.subr.bf16.mxu0 0
    %121 = vmatpush1.bf16.msra.mxu0 0
    %122 = vmatprep.subr.bf16.mxu0 0
    %123 = vmatpush1.bf16.msra.mxu0 0
    %124 = vmatprep.subr.bf16.mxu0 0
    %125 = vmatpush1.bf16.msra.mxu0 0
    %126 = vmatprep.subr.bf16.mxu0 0
    %127 = vmatpush1.bf16.msra.mxu0 0
    %128 = vmatprep.subr.bf16.mxu0 0
    %129 = vmatpush1.bf16.msra.mxu0 0
    %130 = vmatprep.subr.bf16.mxu0 0
    %131 = vmatpush1.bf16.msra.mxu0 0
    %132 = vmatprep.subr.bf16.mxu0 0
    %133 = vmatpush1.bf16.msra.mxu0 0
    %134 = vmatprep.subr.bf16.mxu0 0
    %135 = vmatpush1.bf16.msra.mxu0 0
    %136 = vmatprep.mubr.bf16.mxu0 0
    %137 = vmatmul.mubr.bf16.gmra.mrb[0].mxu0 %v32
    %v138 = vpop.f32.mrb[0].mxu0
    %v139 = vadd.f32 %v54, %v138
    %v140 = vpop.f32.mrb[0].mxu0
    %v141 = vpop.f32.mrb[0].mxu0
    %v142 = vadd.f32 %v54, %v141
    %v143 = vpop.f32.mrb[0].mxu0
    %144 = vdwg.mxu0
    %v145 = vld [vmem:[%s3] sm:$0x3]
    %v146 = vld [vmem:[%s6] sm:$0xff]
    %v147 = vld [vmem:[%s6 + $0x8] sm:$0xff]
    %v148 = vld [vmem:[%s6 + $0x10] sm:$0xff]
    %v149 = vld [vmem:[%s6 + $0x18] sm:$0xff]
    %v150 = vld [vmem:[%s6 + $0x20] sm:$0xff]
    %v151 = vld [vmem:[%s6 + $0x28] sm:$0xff]
    %v152 = vld [vmem:[%s6 + $0x30] sm:$0xff]
    %v153 = vld [vmem:[%s6 + $0x38] sm:$0xff]
    %v154 = vld [vmem:[%s6 + $0x40] sm:$0xff]
    %v155 = vld [vmem:[%s6 + $0x48] sm:$0xff]
    %v156 = vld [vmem:[%s6 + $0x50] sm:$0xff]
    %v157 = vld [vmem:[%s6 + $0x58] sm:$0xff]
    %v158 = vld [vmem:[%s6 + $0x60] sm:$0xff]
    %v159 = vld [vmem:[%s6 + $0x68] sm:$0xff]
    %v160 = vld [vmem:[%s6 + $0x70] sm:$0xff]
    %v161 = vld [vmem:[%s6 + $0x78] sm:$0xff]
    %v162 = vld [vmem:[%s4] sm:$0x1]
    %v163 = vld [vmem:[%s5] sm:$0x1]
    %v164 = vlaneseq
    %v165 = vand.u32 %v164, 127
    %v166 = vlaneseq
    %v167 = vshrl.u32 %v166, 7
    %v168 = vadd.s32 %v167, 8
    %v169 = vadd.s32 %v167, 16
    %v170 = vadd.s32 %v167, 24
    %v171 = vadd.s32 %v167, 32
    %v172 = vadd.s32 %v167, 40
    %v173 = vadd.s32 %v167, 48
    %v174 = vadd.s32 %v167, 56
    %v175 = vadd.s32 %v167, 64
    %v176 = vadd.s32 %v167, 72
    %v177 = vadd.s32 %v167, 80
    %v178 = vadd.s32 %v167, 88
    %v179 = vadd.s32 %v167, 96
    %v180 = vadd.s32 %v167, 104
    %v181 = vadd.s32 %v167, 112
    %v182 = vadd.s32 %v167, 120
    %v183 = vmul.u32 %v167, 8
    %vm184 = vcmp.eq.s32.totalorder %v165, %v183
    %v185 = vsel %vm184, 1, 0
    %v186 = vcvt.s32.f32 %v185
    %vm187 = vcmask 130048
    %v189 = vsel %vm187, %v186, 0
    %191 = vmatprep.subr.mxu0 0.0
    %192 = vmatpush1.msra.mxu0 %v139
    %193 = vmatprep.subr.mxu0 0.0
    %194 = vmatpush1.msra.mxu0 %v142
    %195 = vmatprep.subr.mxu0 0.0
    %196 = vmatpush1.msra.mxu0 0.0
    %197 = vmatprep.subr.mxu0 0.0
    %198 = vmatpush1.msra.mxu0 0.0
    %199 = vmatprep.subr.mxu0 0.0
    %200 = vmatpush1.msra.mxu0 0.0
    %201 = vmatprep.subr.mxu0 0.0
    %202 = vmatpush1.msra.mxu0 0.0
    %203 = vmatprep.subr.mxu0 0.0
    %204 = vmatpush1.msra.mxu0 0.0
    %205 = vmatprep.subr.mxu0 0.0
    %206 = vmatpush1.msra.mxu0 0.0
    %207 = vmatprep.subr.mxu0 0.0
    %208 = vmatpush1.msra.mxu0 0.0
    %209 = vmatprep.subr.mxu0 0.0
    %210 = vmatpush1.msra.mxu0 0.0
    %211 = vmatprep.subr.mxu0 0.0
    %212 = vmatpush1.msra.mxu0 0.0
    %213 = vmatprep.subr.mxu0 0.0
    %214 = vmatpush1.msra.mxu0 0.0
    %215 = vmatprep.subr.mxu0 0.0
    %216 = vmatpush1.msra.mxu0 0.0
    %217 = vmatprep.subr.mxu0 0.0
    %218 = vmatpush1.msra.mxu0 0.0
    %219 = vmatprep.subr.mxu0 0.0
    %220 = vmatpush1.msra.mxu0 0.0
    %221 = vmatprep.subr.mxu0 0.0
    %222 = vmatpush1.msra.mxu0 0.0
    %223 = vmatprep.subr.mxu0 0.0
    %224 = vmatpush1.msra.mxu0 0.0
    %225 = vmatprep.subr.mxu0 0.0
    %226 = vmatpush1.msra.mxu0 0.0
    %227 = vmatprep.subr.mxu0 0.0
    %228 = vmatpush1.msra.mxu0 0.0
    %229 = vmatprep.subr.mxu0 0.0
    %230 = vmatpush1.msra.mxu0 0.0
    %231 = vmatprep.subr.mxu0 0.0
    %232 = vmatpush1.msra.mxu0 0.0
    %233 = vmatprep.subr.mxu0 0.0
    %234 = vmatpush1.msra.mxu0 0.0
    %235 = vmatprep.subr.mxu0 0.0
    %236 = vmatpush1.msra.mxu0 0.0
    %237 = vmatprep.subr.mxu0 0.0
    %238 = vmatpush1.msra.mxu0 0.0
    %239 = vmatprep.subr.mxu0 0.0
    %240 = vmatpush1.msra.mxu0 0.0
    %241 = vmatprep.subr.mxu0 0.0
    %242 = vmatpush1.msra.mxu0 0.0
    %243 = vmatprep.subr.mxu0 0.0
    %244 = vmatpush1.msra.mxu0 0.0
    %245 = vmatprep.subr.mxu0 0.0
    %246 = vmatpush1.msra.mxu0 0.0
    %247 = vmatprep.subr.mxu0 0.0
    %248 = vmatpush1.msra.mxu0 0.0
    %249 = vmatprep.subr.mxu0 0.0
    %250 = vmatpush1.msra.mxu0 0.0
    %251 = vmatprep.subr.mxu0 0.0
    %252 = vmatpush1.msra.mxu0 0.0
    %253 = vmatprep.subr.mxu0 0.0
    %254 = vmatpush1.msra.mxu0 0.0
    %255 = vmatprep.mubr.f32.mxu0 0.0
    %256 = vmatmul.mubr.f32.gmra.mrb[0].mxu0 %v189
    %v257 = vpop.f32.mrb[0].mxu0
    %v258 = vadd.f32 0.0, %v257
    %v259 = vpop.f32.mrb[0].mxu0
    %260 = vdwg.mxu0
    %v262 = vlaneseq
    %v263 = vshrl.u32 %v262, 7
    %v264 = vsub.s32 0, %v263
    %v265 = vrot.slane %v162, %v264
    %v267 = vadd.f32 %v265, %v258
    %vm268 = vcmp.eq.s32.totalorder %v165, 0
    %v269 = vsel %vm268, %v145, 0
    %vm270 = vcmask 58368
    %v271 = vsel %vm270, %v269, 0
    %v272 = vand.u32 %v271, 65535
    %v273 = vshrl.u32 %v271, 16
    %v274 = vcvt.s32.f32 %v272
    %v275 = vcvt.s32.f32 %v273
    %276 = vadd.xlane.f32.xlu0 %v274
    %v277 = vpop.xlane.xlu0 %276
    %278 = vadd.xlane.f32.xlu0 %v275
    %v279 = vpop.xlane.xlu0 %278
    %v280 = vcvt.f32.s32 %v277
    %v281 = vcvt.f32.s32 %v279
    %v282 = vshll.u32 %v281, 16
    %v283 = vadd.s32 %v282, %v280
    %vm284 = vcmp.eq.s32.totalorder %v165, %v283
    %v285 = vsel %vm284, 1, 0
    %v286 = vcvt.s32.f32 %v285
    %v287 = vmul.f32 %v267, %v286
    %vm288 = vcmask 1041408
    %v289 = vsel %vm288, %v287, 0.0
    %290 = vadd.xlane.f32.xlu0 %v289
    %v291 = vpop.xlane.xlu0 %290
    %v292 = vadd.s32 %v183, 1
    %vm293 = vcmp.eq.s32.totalorder %v165, %v292
    %v294 = vsel %vm293, 1, 0
    %v295 = vcvt.s32.f32 %v294
    %v297 = vsel %vm187, %v295, 0
    %299 = vmatprep.subr.mxu0 0.0
    %300 = vmatpush1.msra.mxu0 %v139
    %301 = vmatprep.subr.mxu0 0.0
    %302 = vmatpush1.msra.mxu0 %v142
    %303 = vmatprep.subr.mxu0 0.0
    %304 = vmatpush1.msra.mxu0 0.0
    %305 = vmatprep.subr.mxu0 0.0
    %306 = vmatpush1.msra.mxu0 0.0
    %307 = vmatprep.subr.mxu0 0.0
    %308 = vmatpush1.msra.mxu0 0.0
    %309 = vmatprep.subr.mxu0 0.0
    %310 = vmatpush1.msra.mxu0 0.0
    %311 = vmatprep.subr.mxu0 0.0
    %312 = vmatpush1.msra.mxu0 0.0
    %313 = vmatprep.subr.mxu0 0.0
    %314 = vmatpush1.msra.mxu0 0.0
    %315 = vmatprep.subr.mxu0 0.0
    %316 = vmatpush1.msra.mxu0 0.0
    %317 = vmatprep.subr.mxu0 0.0
    %318 = vmatpush1.msra.mxu0 0.0
    %319 = vmatprep.subr.mxu0 0.0
    %320 = vmatpush1.msra.mxu0 0.0
    %321 = vmatprep.subr.mxu0 0.0
    %322 = vmatpush1.msra.mxu0 0.0
    %323 = vmatprep.subr.mxu0 0.0
    %324 = vmatpush1.msra.mxu0 0.0
    %325 = vmatprep.subr.mxu0 0.0
    %326 = vmatpush1.msra.mxu0 0.0
    %327 = vmatprep.subr.mxu0 0.0
    %328 = vmatpush1.msra.mxu0 0.0
    %329 = vmatprep.subr.mxu0 0.0
    %330 = vmatpush1.msra.mxu0 0.0
    %331 = vmatprep.subr.mxu0 0.0
    %332 = vmatpush1.msra.mxu0 0.0
    %333 = vmatprep.subr.mxu0 0.0
    %334 = vmatpush1.msra.mxu0 0.0
    %335 = vmatprep.subr.mxu0 0.0
    %336 = vmatpush1.msra.mxu0 0.0
    %337 = vmatprep.subr.mxu0 0.0
    %338 = vmatpush1.msra.mxu0 0.0
    %339 = vmatprep.subr.mxu0 0.0
    %340 = vmatpush1.msra.mxu0 0.0
    %341 = vmatprep.subr.mxu0 0.0
    %342 = vmatpush1.msra.mxu0 0.0
    %343 = vmatprep.subr.mxu0 0.0
    %344 = vmatpush1.msra.mxu0 0.0
    %345 = vmatprep.subr.mxu0 0.0
    %346 = vmatpush1.msra.mxu0 0.0
    %347 = vmatprep.subr.mxu0 0.0
    %348 = vmatpush1.msra.mxu0 0.0
    %349 = vmatprep.subr.mxu0 0.0
    %350 = vmatpush1.msra.mxu0 0.0
    %351 = vmatprep.subr.mxu0 0.0
    %352 = vmatpush1.msra.mxu0 0.0
    %353 = vmatprep.subr.mxu0 0.0
    %354 = vmatpush1.msra.mxu0 0.0
    %355 = vmatprep.subr.mxu0 0.0
    %356 = vmatpush1.msra.mxu0 0.0
    %357 = vmatprep.subr.mxu0 0.0
    %358 = vmatpush1.msra.mxu0 0.0
    %359 = vmatprep.subr.mxu0 0.0
    %360 = vmatpush1.msra.mxu0 0.0
    %361 = vmatprep.subr.mxu0 0.0
    %362 = vmatpush1.msra.mxu0 0.0
    %363 = vmatprep.mubr.f32.mxu0 0.0
    %364 = vmatmul.mubr.f32.gmra.mrb[0].mxu0 %v297
    %v365 = vpop.f32.mrb[0].mxu0
    %v366 = vadd.f32 0.0, %v365
    %v367 = vpop.f32.mrb[0].mxu0
    %368 = vdwg.mxu0
    %v369 = vlaneseq
    %v370 = vshrl.u32 %v369, 7
    %v371 = vsub.s32 0, %v370
    %v372 = vrot.slane %v267, %v371
    %374 = vbcast.lane.b32.xlu0 %v372, 256
    %v375 = vpop.permute.xlu0 %374
    %s377 = sor.u32 256, 8
    %378 = vbcast.lane.b32.xlu0 %v372, %s377
    %v379 = vpop.permute.xlu0 %378
    %s381 = sor.u32 256, 16
    %382 = vbcast.lane.b32.xlu0 %v372, %s381
    %v383 = vpop.permute.xlu0 %382
    %s385 = sor.u32 256, 24
    %386 = vbcast.lane.b32.xlu0 %v372, %s385
    %v387 = vpop.permute.xlu0 %386
    %s389 = sor.u32 256, 32
    %390 = vbcast.lane.b32.xlu0 %v372, %s389
    %v391 = vpop.permute.xlu0 %390
    %s393 = sor.u32 256, 40
    %394 = vbcast.lane.b32.xlu0 %v372, %s393
    %v395 = vpop.permute.xlu0 %394
    %s397 = sor.u32 256, 48
    %398 = vbcast.lane.b32.xlu0 %v372, %s397
    %v399 = vpop.permute.xlu0 %398
    %s401 = sor.u32 256, 56
    %402 = vbcast.lane.b32.xlu0 %v372, %s401
    %v403 = vpop.permute.xlu0 %402
    %s405 = sor.u32 256, 64
    %406 = vbcast.lane.b32.xlu0 %v372, %s405
    %v407 = vpop.permute.xlu0 %406
    %s409 = sor.u32 256, 72
    %410 = vbcast.lane.b32.xlu0 %v372, %s409
    %v411 = vpop.permute.xlu0 %410
    %s413 = sor.u32 256, 80
    %414 = vbcast.lane.b32.xlu0 %v372, %s413
    %v415 = vpop.permute.xlu0 %414
    %s417 = sor.u32 256, 88
    %418 = vbcast.lane.b32.xlu0 %v372, %s417
    %v419 = vpop.permute.xlu0 %418
    %s421 = sor.u32 256, 96
    %422 = vbcast.lane.b32.xlu0 %v372, %s421
    %v423 = vpop.permute.xlu0 %422
    %s425 = sor.u32 256, 104
    %426 = vbcast.lane.b32.xlu0 %v372, %s425
    %v427 = vpop.permute.xlu0 %426
    %s429 = sor.u32 256, 112
    %430 = vbcast.lane.b32.xlu0 %v372, %s429
    %v431 = vpop.permute.xlu0 %430
    %s433 = sor.u32 256, 120
    %434 = vbcast.lane.b32.xlu0 %v372, %s433
    %v435 = vpop.permute.xlu0 %434
    %v436 = vlaneseq
    %v437 = vshrl.u32 %v436, 7
    %v438 = vsub.s32 1, %v437
    %v439 = vrot.slane %v267, %v438
    %441 = vbcast.lane.b32.xlu0 %v439, 256
    %v442 = vpop.permute.xlu0 %441
    %s444 = sor.u32 256, 8
    %445 = vbcast.lane.b32.xlu0 %v439, %s444
    %v446 = vpop.permute.xlu0 %445
    %s448 = sor.u32 256, 16
    %449 = vbcast.lane.b32.xlu0 %v439, %s448
    %v450 = vpop.permute.xlu0 %449
    %s452 = sor.u32 256, 24
    %453 = vbcast.lane.b32.xlu0 %v439, %s452
    %v454 = vpop.permute.xlu0 %453
    %s456 = sor.u32 256, 32
    %457 = vbcast.lane.b32.xlu0 %v439, %s456
    %v458 = vpop.permute.xlu0 %457
    %s460 = sor.u32 256, 40
    %461 = vbcast.lane.b32.xlu0 %v439, %s460
    %v462 = vpop.permute.xlu0 %461
    %s464 = sor.u32 256, 48
    %465 = vbcast.lane.b32.xlu0 %v439, %s464
    %v466 = vpop.permute.xlu0 %465
    %s468 = sor.u32 256, 56
    %469 = vbcast.lane.b32.xlu0 %v439, %s468
    %v470 = vpop.permute.xlu0 %469
    %s472 = sor.u32 256, 64
    %473 = vbcast.lane.b32.xlu0 %v439, %s472
    %v474 = vpop.permute.xlu0 %473
    %s476 = sor.u32 256, 72
    %477 = vbcast.lane.b32.xlu0 %v439, %s476
    %v478 = vpop.permute.xlu0 %477
    %s480 = sor.u32 256, 80
    %481 = vbcast.lane.b32.xlu0 %v439, %s480
    %v482 = vpop.permute.xlu0 %481
    %s484 = sor.u32 256, 88
    %485 = vbcast.lane.b32.xlu0 %v439, %s484
    %v486 = vpop.permute.xlu0 %485
    %s488 = sor.u32 256, 96
    %489 = vbcast.lane.b32.xlu0 %v439, %s488
    %v490 = vpop.permute.xlu0 %489
    %s492 = sor.u32 256, 104
    %493 = vbcast.lane.b32.xlu0 %v439, %s492
    %v494 = vpop.permute.xlu0 %493
    %s496 = sor.u32 256, 112
    %497 = vbcast.lane.b32.xlu0 %v439, %s496
    %v498 = vpop.permute.xlu0 %497
    %s500 = sor.u32 256, 120
    %501 = vbcast.lane.b32.xlu0 %v439, %s500
    %v502 = vpop.permute.xlu0 %501
    %v503 = vadd.f32 %v375, %v146
    %v504 = vadd.f32 %v379, %v147
    %v505 = vadd.f32 %v383, %v148
    %v506 = vadd.f32 %v387, %v149
    %v507 = vadd.f32 %v391, %v150
    %v508 = vadd.f32 %v395, %v151
    %v509 = vadd.f32 %v399, %v152
    %v510 = vadd.f32 %v403, %v153
    %v511 = vadd.f32 %v407, %v154
    %v512 = vadd.f32 %v411, %v155
    %v513 = vadd.f32 %v415, %v156
    %v514 = vadd.f32 %v419, %v157
    %v515 = vadd.f32 %v423, %v158
    %v516 = vadd.f32 %v427, %v159
    %v517 = vadd.f32 %v431, %v160
    %v518 = vadd.f32 %v435, %v161
    %v519 = vadd.f32 %v442, %v146
    %v520 = vadd.f32 %v446, %v147
    %v521 = vadd.f32 %v450, %v148
    %v522 = vadd.f32 %v454, %v149
    %v523 = vadd.f32 %v458, %v150
    %v524 = vadd.f32 %v462, %v151
    %v525 = vadd.f32 %v466, %v152
    %v526 = vadd.f32 %v470, %v153
    %v527 = vadd.f32 %v474, %v154
    %v528 = vadd.f32 %v478, %v155
    %v529 = vadd.f32 %v482, %v156
    %v530 = vadd.f32 %v486, %v157
    %v531 = vadd.f32 %v490, %v158
    %v532 = vadd.f32 %v494, %v159
    %v533 = vadd.f32 %v498, %v160
    %v534 = vadd.f32 %v502, %v161
    %v535 = vmax.f32 %v503, %v505
    %v536 = vmax.f32 %v504, %v506
    %v537 = vmax.f32 %v535, %v507
    %v538 = vmax.f32 %v536, %v508
    %v539 = vmax.f32 %v537, %v509
    %v540 = vmax.f32 %v538, %v510
    %v541 = vmax.f32 %v539, %v511
    %v542 = vmax.f32 %v540, %v512
    %v543 = vmax.f32 %v541, %v513
    %v544 = vmax.f32 %v542, %v514
    %v545 = vmax.f32 %v543, %v515
    %v546 = vmax.f32 %v544, %v516
    %v547 = vmax.f32 %v545, %v517
    %v548 = vmax.f32 %v546, %v518
    %v549 = vmax.f32 %v547, %v548
    %v550 = vrot.slane %v549, 4
    %v551 = vmax.f32 %v549, %v550
    %v552 = vrot.slane %v551, 2
    %v553 = vmax.f32 %v551, %v552
    %v554 = vrot.slane %v553, 1
    %v555 = vmax.f32 %v553, %v554
    %v556 = vmax.f32 %v519, %v521
    %v557 = vmax.f32 %v520, %v522
    %v558 = vmax.f32 %v556, %v523
    %v559 = vmax.f32 %v557, %v524
    %v560 = vmax.f32 %v558, %v525
    %v561 = vmax.f32 %v559, %v526
    %v562 = vmax.f32 %v560, %v527
    %v563 = vmax.f32 %v561, %v528
    %v564 = vmax.f32 %v562, %v529
    %v565 = vmax.f32 %v563, %v530
    %v566 = vmax.f32 %v564, %v531
    %v567 = vmax.f32 %v565, %v532
    %v568 = vmax.f32 %v566, %v533
    %v569 = vmax.f32 %v567, %v534
    %v570 = vmax.f32 %v568, %v569
    %v571 = vrot.slane %v570, 4
    %v572 = vmax.f32 %v570, %v571
    %v573 = vrot.slane %v572, 2
    %v574 = vmax.f32 %v572, %v573
    %v575 = vrot.slane %v574, 1
    %v576 = vmax.f32 %v574, %v575
    %vm577 = vcmp.ge.f32.partialorder %v503, %v555
    %vm578 = vcmp.ge.f32.partialorder %v504, %v555
    %vm579 = vcmp.ge.f32.partialorder %v505, %v555
    %vm580 = vcmp.ge.f32.partialorder %v506, %v555
    %vm581 = vcmp.ge.f32.partialorder %v507, %v555
    %vm582 = vcmp.ge.f32.partialorder %v508, %v555
    %vm583 = vcmp.ge.f32.partialorder %v509, %v555
    %vm584 = vcmp.ge.f32.partialorder %v510, %v555
    %vm585 = vcmp.ge.f32.partialorder %v511, %v555
    %vm586 = vcmp.ge.f32.partialorder %v512, %v555
    %vm587 = vcmp.ge.f32.partialorder %v513, %v555
    %vm588 = vcmp.ge.f32.partialorder %v514, %v555
    %vm589 = vcmp.ge.f32.partialorder %v515, %v555
    %vm590 = vcmp.ge.f32.partialorder %v516, %v555
    %vm591 = vcmp.ge.f32.partialorder %v517, %v555
    %vm592 = vcmp.ge.f32.partialorder %v518, %v555
    %vm593 = vcmp.ge.f32.partialorder %v519, %v576
    %vm594 = vcmp.ge.f32.partialorder %v520, %v576
    %vm595 = vcmp.ge.f32.partialorder %v521, %v576
    %vm596 = vcmp.ge.f32.partialorder %v522, %v576
    %vm597 = vcmp.ge.f32.partialorder %v523, %v576
    %vm598 = vcmp.ge.f32.partialorder %v524, %v576
    %vm599 = vcmp.ge.f32.partialorder %v525, %v576
    %vm600 = vcmp.ge.f32.partialorder %v526, %v576
    %vm601 = vcmp.ge.f32.partialorder %v527, %v576
    %vm602 = vcmp.ge.f32.partialorder %v528, %v576
    %vm603 = vcmp.ge.f32.partialorder %v529, %v576
    %vm604 = vcmp.ge.f32.partialorder %v530, %v576
    %vm605 = vcmp.ge.f32.partialorder %v531, %v576
    %vm606 = vcmp.ge.f32.partialorder %v532, %v576
    %vm607 = vcmp.ge.f32.partialorder %v533, %v576
    %vm608 = vcmp.ge.f32.partialorder %v534, %v576
    %v609 = vsel %vm577, %v167, 128
    %v610 = vsel %vm578, %v168, 128
    %v611 = vsel %vm579, %v169, 128
    %v612 = vsel %vm580, %v170, 128
    %v613 = vsel %vm581, %v171, 128
    %v614 = vsel %vm582, %v172, 128
    %v615 = vsel %vm583, %v173, 128
    %v616 = vsel %vm584, %v174, 128
    %v617 = vsel %vm585, %v175, 128
    %v618 = vsel %vm586, %v176, 128
    %v619 = vsel %vm587, %v177, 128
    %v620 = vsel %vm588, %v178, 128
    %v621 = vsel %vm589, %v179, 128
    %v622 = vsel %vm590, %v180, 128
    %v623 = vsel %vm591, %v181, 128
    %v624 = vsel %vm592, %v182, 128
    %v625 = vsel %vm593, %v167, 128
    %v626 = vsel %vm594, %v168, 128
    %v627 = vsel %vm595, %v169, 128
    %v628 = vsel %vm596, %v170, 128
    %v629 = vsel %vm597, %v171, 128
    %v630 = vsel %vm598, %v172, 128
    %v631 = vsel %vm599, %v173, 128
    %v632 = vsel %vm600, %v174, 128
    %v633 = vsel %vm601, %v175, 128
    %v634 = vsel %vm602, %v176, 128
    %v635 = vsel %vm603, %v177, 128
    %v636 = vsel %vm604, %v178, 128
    %v637 = vsel %vm605, %v179, 128
    %v638 = vsel %vm606, %v180, 128
    %v639 = vsel %vm607, %v181, 128
    %v640 = vsel %vm608, %v182, 128
    %vm641 = vcmp.lt.s32.totalorder %v609, %v611
    %v642 = vsel %vm641, %v609, %v611
    %vm643 = vcmp.lt.s32.totalorder %v610, %v612
    %v644 = vsel %vm643, %v610, %v612
    %vm645 = vcmp.lt.s32.totalorder %v642, %v613
    %v646 = vsel %vm645, %v642, %v613
    %vm647 = vcmp.lt.s32.totalorder %v644, %v614
    %v648 = vsel %vm647, %v644, %v614
    %vm649 = vcmp.lt.s32.totalorder %v646, %v615
    %v650 = vsel %vm649, %v646, %v615
    %vm651 = vcmp.lt.s32.totalorder %v648, %v616
    %v652 = vsel %vm651, %v648, %v616
    %vm653 = vcmp.lt.s32.totalorder %v650, %v617
    %v654 = vsel %vm653, %v650, %v617
    %vm655 = vcmp.lt.s32.totalorder %v652, %v618
    %v656 = vsel %vm655, %v652, %v618
    %vm657 = vcmp.lt.s32.totalorder %v654, %v619
    %v658 = vsel %vm657, %v654, %v619
    %vm659 = vcmp.lt.s32.totalorder %v656, %v620
    %v660 = vsel %vm659, %v656, %v620
    %vm661 = vcmp.lt.s32.totalorder %v658, %v621
    %v662 = vsel %vm661, %v658, %v621
    %vm663 = vcmp.lt.s32.totalorder %v660, %v622
    %v664 = vsel %vm663, %v660, %v622
    %vm665 = vcmp.lt.s32.totalorder %v662, %v623
    %v666 = vsel %vm665, %v662, %v623
    %vm667 = vcmp.lt.s32.totalorder %v664, %v624
    %v668 = vsel %vm667, %v664, %v624
    %vm669 = vcmp.lt.s32.totalorder %v666, %v668
    %v670 = vsel %vm669, %v666, %v668
    %v671 = vrot.slane %v670, 4
    %vm672 = vcmp.lt.s32.totalorder %v670, %v671
    %v673 = vsel %vm672, %v670, %v671
    %v674 = vrot.slane %v673, 2
    %vm675 = vcmp.lt.s32.totalorder %v673, %v674
    %v676 = vsel %vm675, %v673, %v674
    %v677 = vrot.slane %v676, 1
    %vm678 = vcmp.lt.s32.totalorder %v676, %v677
    %v679 = vsel %vm678, %v676, %v677
    %vm680 = vcmp.lt.s32.totalorder %v625, %v627
    %v681 = vsel %vm680, %v625, %v627
    %vm682 = vcmp.lt.s32.totalorder %v626, %v628
    %v683 = vsel %vm682, %v626, %v628
    %vm684 = vcmp.lt.s32.totalorder %v681, %v629
    %v685 = vsel %vm684, %v681, %v629
    %vm686 = vcmp.lt.s32.totalorder %v683, %v630
    %v687 = vsel %vm686, %v683, %v630
    %vm688 = vcmp.lt.s32.totalorder %v685, %v631
    %v689 = vsel %vm688, %v685, %v631
    %vm690 = vcmp.lt.s32.totalorder %v687, %v632
    %v691 = vsel %vm690, %v687, %v632
    %vm692 = vcmp.lt.s32.totalorder %v689, %v633
    %v693 = vsel %vm692, %v689, %v633
    %vm694 = vcmp.lt.s32.totalorder %v691, %v634
    %v695 = vsel %vm694, %v691, %v634
    %vm696 = vcmp.lt.s32.totalorder %v693, %v635
    %v697 = vsel %vm696, %v693, %v635
    %vm698 = vcmp.lt.s32.totalorder %v695, %v636
    %v699 = vsel %vm698, %v695, %v636
    %vm700 = vcmp.lt.s32.totalorder %v697, %v637
    %v701 = vsel %vm700, %v697, %v637
    %vm702 = vcmp.lt.s32.totalorder %v699, %v638
    %v703 = vsel %vm702, %v699, %v638
    %vm704 = vcmp.lt.s32.totalorder %v701, %v639
    %v705 = vsel %vm704, %v701, %v639
    %vm706 = vcmp.lt.s32.totalorder %v703, %v640
    %v707 = vsel %vm706, %v703, %v640
    %vm708 = vcmp.lt.s32.totalorder %v705, %v707
    %v709 = vsel %vm708, %v705, %v707
    %v710 = vrot.slane %v709, 4
    %vm711 = vcmp.lt.s32.totalorder %v709, %v710
    %v712 = vsel %vm711, %v709, %v710
    %v713 = vrot.slane %v712, 2
    %vm714 = vcmp.lt.s32.totalorder %v712, %v713
    %v715 = vsel %vm714, %v712, %v713
    %v716 = vrot.slane %v715, 1
    %vm717 = vcmp.lt.s32.totalorder %v715, %v716
    %v718 = vsel %vm717, %v715, %v716
    %v720 = vrot.slane %v366, 1
    %v723 = vadd.f32 %v555, %v366
    %v724 = vadd.f32 %v576, %v720
    %v725 = vsub.f32 %v503, %v555
    %v726 = vsub.f32 %v504, %v555
    %v727 = vsub.f32 %v505, %v555
    %v728 = vsub.f32 %v506, %v555
    %v729 = vsub.f32 %v507, %v555
    %v730 = vsub.f32 %v508, %v555
    %v731 = vsub.f32 %v509, %v555
    %v732 = vsub.f32 %v510, %v555
    %v733 = vsub.f32 %v511, %v555
    %v734 = vsub.f32 %v512, %v555
    %v735 = vsub.f32 %v513, %v555
    %v736 = vsub.f32 %v514, %v555
    %v737 = vsub.f32 %v515, %v555
    %v738 = vsub.f32 %v516, %v555
    %v739 = vsub.f32 %v517, %v555
    %v740 = vsub.f32 %v518, %v555
    %v741 = vsub.f32 %v519, %v576
    %v742 = vsub.f32 %v520, %v576
    %v743 = vsub.f32 %v521, %v576
    %v744 = vsub.f32 %v522, %v576
    %v745 = vsub.f32 %v523, %v576
    %v746 = vsub.f32 %v524, %v576
    %v747 = vsub.f32 %v525, %v576
    %v748 = vsub.f32 %v526, %v576
    %v749 = vsub.f32 %v527, %v576
    %v750 = vsub.f32 %v528, %v576
    %v751 = vsub.f32 %v529, %v576
    %v752 = vsub.f32 %v530, %v576
    %v753 = vsub.f32 %v531, %v576
    %v754 = vsub.f32 %v532, %v576
    %v755 = vsub.f32 %v533, %v576
    %v756 = vsub.f32 %v534, %v576
    %v757 = vmul.f32 %v725, 1.442695
    %v758 = vpow.pop %v757
    %v759 = vmul.f32 %v726, 1.442695
    %v760 = vpow.pop %v759
    %v761 = vmul.f32 %v727, 1.442695
    %v762 = vpow.pop %v761
    %v763 = vmul.f32 %v728, 1.442695
    %v764 = vpow.pop %v763
    %v765 = vmul.f32 %v729, 1.442695
    %v766 = vpow.pop %v765
    %v767 = vmul.f32 %v730, 1.442695
    %v768 = vpow.pop %v767
    %v769 = vmul.f32 %v731, 1.442695
    %v770 = vpow.pop %v769
    %v771 = vmul.f32 %v732, 1.442695
    %v772 = vpow.pop %v771
    %v773 = vmul.f32 %v733, 1.442695
    %v774 = vpow.pop %v773
    %v775 = vmul.f32 %v734, 1.442695
    %v776 = vpow.pop %v775
    %v777 = vmul.f32 %v735, 1.442695
    %v778 = vpow.pop %v777
    %v779 = vmul.f32 %v736, 1.442695
    %v780 = vpow.pop %v779
    %v781 = vmul.f32 %v737, 1.442695
    %v782 = vpow.pop %v781
    %v783 = vmul.f32 %v738, 1.442695
    %v784 = vpow.pop %v783
    %v785 = vmul.f32 %v739, 1.442695
    %v786 = vpow.pop %v785
    %v787 = vmul.f32 %v740, 1.442695
    %v788 = vpow.pop %v787
    %v789 = vmul.f32 %v741, 1.442695
    %v790 = vpow.pop %v789
    %v791 = vmul.f32 %v742, 1.442695
    %v792 = vpow.pop %v791
    %v793 = vmul.f32 %v743, 1.442695
    %v794 = vpow.pop %v793
    %v795 = vmul.f32 %v744, 1.442695
    %v796 = vpow.pop %v795
    %v797 = vmul.f32 %v745, 1.442695
    %v798 = vpow.pop %v797
    %v799 = vmul.f32 %v746, 1.442695
    %v800 = vpow.pop %v799
    %v801 = vmul.f32 %v747, 1.442695
    %v802 = vpow.pop %v801
    %v803 = vmul.f32 %v748, 1.442695
    %v804 = vpow.pop %v803
    %v805 = vmul.f32 %v749, 1.442695
    %v806 = vpow.pop %v805
    %v807 = vmul.f32 %v750, 1.442695
    %v808 = vpow.pop %v807
    %v809 = vmul.f32 %v751, 1.442695
    %v810 = vpow.pop %v809
    %v811 = vmul.f32 %v752, 1.442695
    %v812 = vpow.pop %v811
    %v813 = vmul.f32 %v753, 1.442695
    %v814 = vpow.pop %v813
    %v815 = vmul.f32 %v754, 1.442695
    %v816 = vpow.pop %v815
    %v817 = vmul.f32 %v755, 1.442695
    %v818 = vpow.pop %v817
    %v819 = vmul.f32 %v756, 1.442695
    %v820 = vpow.pop %v819
    %v821 = vadd.f32 %v758, %v760
    %v822 = vadd.f32 %v821, %v762
    %v823 = vadd.f32 %v822, %v764
    %v824 = vadd.f32 %v823, %v766
    %v825 = vadd.f32 %v824, %v768
    %v826 = vadd.f32 %v825, %v770
    %v827 = vadd.f32 %v826, %v772
    %v828 = vadd.f32 %v827, %v774
    %v829 = vadd.f32 %v828, %v776
    %v830 = vadd.f32 %v829, %v778
    %v831 = vadd.f32 %v830, %v780
    %v832 = vadd.f32 %v831, %v782
    %v833 = vadd.f32 %v832, %v784
    %v834 = vadd.f32 %v833, %v786
    %v835 = vadd.f32 %v834, %v788
    %v836 = vrot.slane %v835, 4
    %v837 = vadd.f32 %v835, %v836
    %v838 = vrot.slane %v837, 2
    %v839 = vadd.f32 %v837, %v838
    %v840 = vrot.slane %v839, 1
    %v841 = vadd.f32 %v839, %v840
    %v842 = vadd.f32 %v790, %v792
    %v843 = vadd.f32 %v842, %v794
    %v844 = vadd.f32 %v843, %v796
    %v845 = vadd.f32 %v844, %v798
    %v846 = vadd.f32 %v845, %v800
    %v847 = vadd.f32 %v846, %v802
    %v848 = vadd.f32 %v847, %v804
    %v849 = vadd.f32 %v848, %v806
    %v850 = vadd.f32 %v849, %v808
    %v851 = vadd.f32 %v850, %v810
    %v852 = vadd.f32 %v851, %v812
    %v853 = vadd.f32 %v852, %v814
    %v854 = vadd.f32 %v853, %v816
    %v855 = vadd.f32 %v854, %v818
    %v856 = vadd.f32 %v855, %v820
    %v857 = vrot.slane %v856, 4
    %v858 = vadd.f32 %v856, %v857
    %v859 = vrot.slane %v858, 2
    %v860 = vadd.f32 %v858, %v859
    %v861 = vrot.slane %v860, 1
    %v862 = vadd.f32 %v860, %v861
    %v863 = vlog2.pop %v841
    %v864 = vmul.f32 %v863, 0.6931472
    %v865 = vlog2.pop %v862
    %v866 = vmul.f32 %v865, 0.6931472
    %v867 = vadd.f32 %v555, %v864
    %v868 = vadd.f32 %v576, %v866
    %v869 = vadd.f32 %v867, %v366
    %v870 = vadd.f32 %v868, %v720
    %vm871 = vcmp.eq.s32.totalorder %v165, 1
    %v872 = vsel %vm871, %v145, 0
    %v873 = vsel %vm270, %v872, 0
    %v874 = vand.u32 %v873, 65535
    %v875 = vshrl.u32 %v873, 16
    %v876 = vcvt.s32.f32 %v874
    %v877 = vcvt.s32.f32 %v875
    %878 = vadd.xlane.f32.xlu0 %v876
    %v879 = vpop.xlane.xlu0 %878
    %880 = vadd.xlane.f32.xlu0 %v877
    %v881 = vpop.xlane.xlu0 %880
    %v882 = vcvt.f32.s32 %v879
    %v883 = vcvt.f32.s32 %v881
    %v884 = vshll.u32 %v883, 16
    %v885 = vadd.s32 %v884, %v882
    %vm886 = vcmp.eq.s32.totalorder %v165, %v885
    %v887 = vsel %vm886, 1, 0
    %v888 = vcvt.s32.f32 %v887
    %889 = vmatprep.subr.mxu0 0.0
    %890 = vmatpush1.msra.mxu0 %v146
    %891 = vmatprep.subr.mxu0 0.0
    %892 = vmatpush1.msra.mxu0 %v147
    %893 = vmatprep.subr.mxu0 0.0
    %894 = vmatpush1.msra.mxu0 %v148
    %895 = vmatprep.subr.mxu0 0.0
    %896 = vmatpush1.msra.mxu0 %v149
    %897 = vmatprep.subr.mxu0 0.0
    %898 = vmatpush1.msra.mxu0 %v150
    %899 = vmatprep.subr.mxu0 0.0
    %900 = vmatpush1.msra.mxu0 %v151
    %901 = vmatprep.subr.mxu0 0.0
    %902 = vmatpush1.msra.mxu0 %v152
    %903 = vmatprep.subr.mxu0 0.0
    %904 = vmatpush1.msra.mxu0 %v153
    %905 = vmatprep.subr.mxu0 0.0
    %906 = vmatpush1.msra.mxu0 %v154
    %907 = vmatprep.subr.mxu0 0.0
    %908 = vmatpush1.msra.mxu0 %v155
    %909 = vmatprep.subr.mxu0 0.0
    %910 = vmatpush1.msra.mxu0 %v156
    %911 = vmatprep.subr.mxu0 0.0
    %912 = vmatpush1.msra.mxu0 %v157
    %913 = vmatprep.subr.mxu0 0.0
    %914 = vmatpush1.msra.mxu0 %v158
    %915 = vmatprep.subr.mxu0 0.0
    %916 = vmatpush1.msra.mxu0 %v159
    %917 = vmatprep.subr.mxu0 0.0
    %918 = vmatpush1.msra.mxu0 %v160
    %919 = vmatprep.subr.mxu0 0.0
    %920 = vmatpush1.msra.mxu0 %v161
    %921 = vmatprep.subr.mxu0 0.0
    %922 = vmatpush1.msra.mxu0 0.0
    %923 = vmatprep.subr.mxu0 0.0
    %924 = vmatpush1.msra.mxu0 0.0
    %925 = vmatprep.subr.mxu0 0.0
    %926 = vmatpush1.msra.mxu0 0.0
    %927 = vmatprep.subr.mxu0 0.0
    %928 = vmatpush1.msra.mxu0 0.0
    %929 = vmatprep.subr.mxu0 0.0
    %930 = vmatpush1.msra.mxu0 0.0
    %931 = vmatprep.subr.mxu0 0.0
    %932 = vmatpush1.msra.mxu0 0.0
    %933 = vmatprep.subr.mxu0 0.0
    %934 = vmatpush1.msra.mxu0 0.0
    %935 = vmatprep.subr.mxu0 0.0
    %936 = vmatpush1.msra.mxu0 0.0
    %937 = vmatprep.subr.mxu0 0.0
    %938 = vmatpush1.msra.mxu0 0.0
    %939 = vmatprep.subr.mxu0 0.0
    %940 = vmatpush1.msra.mxu0 0.0
    %941 = vmatprep.subr.mxu0 0.0
    %942 = vmatpush1.msra.mxu0 0.0
    %943 = vmatprep.subr.mxu0 0.0
    %944 = vmatpush1.msra.mxu0 0.0
    %945 = vmatprep.subr.mxu0 0.0
    %946 = vmatpush1.msra.mxu0 0.0
    %947 = vmatprep.subr.mxu0 0.0
    %948 = vmatpush1.msra.mxu0 0.0
    %949 = vmatprep.subr.mxu0 0.0
    %950 = vmatpush1.msra.mxu0 0.0
    %951 = vmatprep.subr.mxu0 0.0
    %952 = vmatpush1.msra.mxu0 0.0
    %953 = vmatprep.mubr.f32.mxu0 0.0
    %954 = vmatmul.mubr.f32.gmra.mrb[0].mxu0 %v286
    %v955 = vpop.f32.mrb[0].mxu0
    %v956 = vadd.f32 %v366, %v955
    %v957 = vpop.f32.mrb[0].mxu0
    %958 = vdwg.mxu0
    %v959 = vmul.f32 %v956, %v888
    %v960 = vsel %vm288, %v959, 0.0
    %961 = vadd.xlane.f32.xlu0 %v960
    %v962 = vpop.xlane.xlu0 %961
    %v963 = vadd.f32 %v291, %v962
    %v964 = vadd.s32 %v183, 2
    %vm965 = vcmp.eq.s32.totalorder %v165, %v964
    %v966 = vsel %vm965, 1, 0
    %v967 = vcvt.s32.f32 %v966
    %v969 = vsel %vm187, %v967, 0
    %971 = vmatprep.subr.mxu0 0.0
    %972 = vmatpush1.msra.mxu0 %v139
    %973 = vmatprep.subr.mxu0 0.0
    %974 = vmatpush1.msra.mxu0 %v142
    %975 = vmatprep.subr.mxu0 0.0
    %976 = vmatpush1.msra.mxu0 0.0
    %977 = vmatprep.subr.mxu0 0.0
    %978 = vmatpush1.msra.mxu0 0.0
    %979 = vmatprep.subr.mxu0 0.0
    %980 = vmatpush1.msra.mxu0 0.0
    %981 = vmatprep.subr.mxu0 0.0
    %982 = vmatpush1.msra.mxu0 0.0
    %983 = vmatprep.subr.mxu0 0.0
    %984 = vmatpush1.msra.mxu0 0.0
    %985 = vmatprep.subr.mxu0 0.0
    %986 = vmatpush1.msra.mxu0 0.0
    %987 = vmatprep.subr.mxu0 0.0
    %988 = vmatpush1.msra.mxu0 0.0
    %989 = vmatprep.subr.mxu0 0.0
    %990 = vmatpush1.msra.mxu0 0.0
    %991 = vmatprep.subr.mxu0 0.0
    %992 = vmatpush1.msra.mxu0 0.0
    %993 = vmatprep.subr.mxu0 0.0
    %994 = vmatpush1.msra.mxu0 0.0
    %995 = vmatprep.subr.mxu0 0.0
    %996 = vmatpush1.msra.mxu0 0.0
    %997 = vmatprep.subr.mxu0 0.0
    %998 = vmatpush1.msra.mxu0 0.0
    %999 = vmatprep.subr.mxu0 0.0
    %1000 = vmatpush1.msra.mxu0 0.0
    %1001 = vmatprep.subr.mxu0 0.0
    %1002 = vmatpush1.msra.mxu0 0.0
    %1003 = vmatprep.subr.mxu0 0.0
    %1004 = vmatpush1.msra.mxu0 0.0
    %1005 = vmatprep.subr.mxu0 0.0
    %1006 = vmatpush1.msra.mxu0 0.0
    %1007 = vmatprep.subr.mxu0 0.0
    %1008 = vmatpush1.msra.mxu0 0.0
    %1009 = vmatprep.subr.mxu0 0.0
    %1010 = vmatpush1.msra.mxu0 0.0
    %1011 = vmatprep.subr.mxu0 0.0
    %1012 = vmatpush1.msra.mxu0 0.0
    %1013 = vmatprep.subr.mxu0 0.0
    %1014 = vmatpush1.msra.mxu0 0.0
    %1015 = vmatprep.subr.mxu0 0.0
    %1016 = vmatpush1.msra.mxu0 0.0
    %1017 = vmatprep.subr.mxu0 0.0
    %1018 = vmatpush1.msra.mxu0 0.0
    %1019 = vmatprep.subr.mxu0 0.0
    %1020 = vmatpush1.msra.mxu0 0.0
    %1021 = vmatprep.subr.mxu0 0.0
    %1022 = vmatpush1.msra.mxu0 0.0
    %1023 = vmatprep.subr.mxu0 0.0
    %1024 = vmatpush1.msra.mxu0 0.0
    %1025 = vmatprep.subr.mxu0 0.0
    %1026 = vmatpush1.msra.mxu0 0.0
    %1027 = vmatprep.subr.mxu0 0.0
    %1028 = vmatpush1.msra.mxu0 0.0
    %1029 = vmatprep.subr.mxu0 0.0
    %1030 = vmatpush1.msra.mxu0 0.0
    %1031 = vmatprep.subr.mxu0 0.0
    %1032 = vmatpush1.msra.mxu0 0.0
    %1033 = vmatprep.subr.mxu0 0.0
    %1034 = vmatpush1.msra.mxu0 0.0
    %1035 = vmatprep.mubr.f32.mxu0 0.0
    %1036 = vmatmul.mubr.f32.gmra.mrb[0].mxu0 %v969
    %v1037 = vpop.f32.mrb[0].mxu0
    %v1038 = vadd.f32 0.0, %v1037
    %v1039 = vpop.f32.mrb[0].mxu0
    %1040 = vdwg.mxu0
    %v1041 = vlaneseq
    %v1042 = vshrl.u32 %v1041, 7
    %v1043 = vsub.s32 0, %v1042
    %v1044 = vrot.slane %v723, %v1043
    %1046 = vbcast.lane.b32.xlu0 %v1044, 256
    %v1047 = vpop.permute.xlu0 %1046
    %s1049 = sor.u32 256, 8
    %1050 = vbcast.lane.b32.xlu0 %v1044, %s1049
    %v1051 = vpop.permute.xlu0 %1050
    %s1053 = sor.u32 256, 16
    %1054 = vbcast.lane.b32.xlu0 %v1044, %s1053
    %v1055 = vpop.permute.xlu0 %1054
    %s1057 = sor.u32 256, 24
    %1058 = vbcast.lane.b32.xlu0 %v1044, %s1057
    %v1059 = vpop.permute.xlu0 %1058
    %s1061 = sor.u32 256, 32
    %1062 = vbcast.lane.b32.xlu0 %v1044, %s1061
    %v1063 = vpop.permute.xlu0 %1062
    %s1065 = sor.u32 256, 40
    %1066 = vbcast.lane.b32.xlu0 %v1044, %s1065
    %v1067 = vpop.permute.xlu0 %1066
    %s1069 = sor.u32 256, 48
    %1070 = vbcast.lane.b32.xlu0 %v1044, %s1069
    %v1071 = vpop.permute.xlu0 %1070
    %s1073 = sor.u32 256, 56
    %1074 = vbcast.lane.b32.xlu0 %v1044, %s1073
    %v1075 = vpop.permute.xlu0 %1074
    %s1077 = sor.u32 256, 64
    %1078 = vbcast.lane.b32.xlu0 %v1044, %s1077
    %v1079 = vpop.permute.xlu0 %1078
    %s1081 = sor.u32 256, 72
    %1082 = vbcast.lane.b32.xlu0 %v1044, %s1081
    %v1083 = vpop.permute.xlu0 %1082
    %s1085 = sor.u32 256, 80
    %1086 = vbcast.lane.b32.xlu0 %v1044, %s1085
    %v1087 = vpop.permute.xlu0 %1086
    %s1089 = sor.u32 256, 88
    %1090 = vbcast.lane.b32.xlu0 %v1044, %s1089
    %v1091 = vpop.permute.xlu0 %1090
    %s1093 = sor.u32 256, 96
    %1094 = vbcast.lane.b32.xlu0 %v1044, %s1093
    %v1095 = vpop.permute.xlu0 %1094
    %s1097 = sor.u32 256, 104
    %1098 = vbcast.lane.b32.xlu0 %v1044, %s1097
    %v1099 = vpop.permute.xlu0 %1098
    %s1101 = sor.u32 256, 112
    %1102 = vbcast.lane.b32.xlu0 %v1044, %s1101
    %v1103 = vpop.permute.xlu0 %1102
    %s1105 = sor.u32 256, 120
    %1106 = vbcast.lane.b32.xlu0 %v1044, %s1105
    %v1107 = vpop.permute.xlu0 %1106
    %v1108 = vlaneseq
    %v1109 = vshrl.u32 %v1108, 7
    %v1110 = vsub.s32 0, %v1109
    %v1111 = vrot.slane %v724, %v1110
    %1113 = vbcast.lane.b32.xlu0 %v1111, 256
    %v1114 = vpop.permute.xlu0 %1113
    %s1116 = sor.u32 256, 8
    %1117 = vbcast.lane.b32.xlu0 %v1111, %s1116
    %v1118 = vpop.permute.xlu0 %1117
    %s1120 = sor.u32 256, 16
    %1121 = vbcast.lane.b32.xlu0 %v1111, %s1120
    %v1122 = vpop.permute.xlu0 %1121
    %s1124 = sor.u32 256, 24
    %1125 = vbcast.lane.b32.xlu0 %v1111, %s1124
    %v1126 = vpop.permute.xlu0 %1125
    %s1128 = sor.u32 256, 32
    %1129 = vbcast.lane.b32.xlu0 %v1111, %s1128
    %v1130 = vpop.permute.xlu0 %1129
    %s1132 = sor.u32 256, 40
    %1133 = vbcast.lane.b32.xlu0 %v1111, %s1132
    %v1134 = vpop.permute.xlu0 %1133
    %s1136 = sor.u32 256, 48
    %1137 = vbcast.lane.b32.xlu0 %v1111, %s1136
    %v1138 = vpop.permute.xlu0 %1137
    %s1140 = sor.u32 256, 56
    %1141 = vbcast.lane.b32.xlu0 %v1111, %s1140
    %v1142 = vpop.permute.xlu0 %1141
    %s1144 = sor.u32 256, 64
    %1145 = vbcast.lane.b32.xlu0 %v1111, %s1144
    %v1146 = vpop.permute.xlu0 %1145
    %s1148 = sor.u32 256, 72
    %1149 = vbcast.lane.b32.xlu0 %v1111, %s1148
    %v1150 = vpop.permute.xlu0 %1149
    %s1152 = sor.u32 256, 80
    %1153 = vbcast.lane.b32.xlu0 %v1111, %s1152
    %v1154 = vpop.permute.xlu0 %1153
    %s1156 = sor.u32 256, 88
    %1157 = vbcast.lane.b32.xlu0 %v1111, %s1156
    %v1158 = vpop.permute.xlu0 %1157
    %s1160 = sor.u32 256, 96
    %1161 = vbcast.lane.b32.xlu0 %v1111, %s1160
    %v1162 = vpop.permute.xlu0 %1161
    %s1164 = sor.u32 256, 104
    %1165 = vbcast.lane.b32.xlu0 %v1111, %s1164
    %v1166 = vpop.permute.xlu0 %1165
    %s1168 = sor.u32 256, 112
    %1169 = vbcast.lane.b32.xlu0 %v1111, %s1168
    %v1170 = vpop.permute.xlu0 %1169
    %s1172 = sor.u32 256, 120
    %1173 = vbcast.lane.b32.xlu0 %v1111, %s1172
    %v1174 = vpop.permute.xlu0 %1173
    %v1175 = vadd.f32 %v1047, %v146
    %v1176 = vadd.f32 %v1051, %v147
    %v1177 = vadd.f32 %v1055, %v148
    %v1178 = vadd.f32 %v1059, %v149
    %v1179 = vadd.f32 %v1063, %v150
    %v1180 = vadd.f32 %v1067, %v151
    %v1181 = vadd.f32 %v1071, %v152
    %v1182 = vadd.f32 %v1075, %v153
    %v1183 = vadd.f32 %v1079, %v154
    %v1184 = vadd.f32 %v1083, %v155
    %v1185 = vadd.f32 %v1087, %v156
    %v1186 = vadd.f32 %v1091, %v157
    %v1187 = vadd.f32 %v1095, %v158
    %v1188 = vadd.f32 %v1099, %v159
    %v1189 = vadd.f32 %v1103, %v160
    %v1190 = vadd.f32 %v1107, %v161
    %v1191 = vadd.f32 %v1114, %v146
    %v1192 = vadd.f32 %v1118, %v147
    %v1193 = vadd.f32 %v1122, %v148
    %v1194 = vadd.f32 %v1126, %v149
    %v1195 = vadd.f32 %v1130, %v150
    %v1196 = vadd.f32 %v1134, %v151
    %v1197 = vadd.f32 %v1138, %v152
    %v1198 = vadd.f32 %v1142, %v153
    %v1199 = vadd.f32 %v1146, %v154
    %v1200 = vadd.f32 %v1150, %v155
    %v1201 = vadd.f32 %v1154, %v156
    %v1202 = vadd.f32 %v1158, %v157
    %v1203 = vadd.f32 %v1162, %v158
    %v1204 = vadd.f32 %v1166, %v159
    %v1205 = vadd.f32 %v1170, %v160
    %v1206 = vadd.f32 %v1174, %v161
    %v1207 = vmax.f32 %v1175, %v1177
    %v1208 = vmax.f32 %v1176, %v1178
    %v1209 = vmax.f32 %v1207, %v1179
    %v1210 = vmax.f32 %v1208, %v1180
    %v1211 = vmax.f32 %v1209, %v1181
    %v1212 = vmax.f32 %v1210, %v1182
    %v1213 = vmax.f32 %v1211, %v1183
    %v1214 = vmax.f32 %v1212, %v1184
    %v1215 = vmax.f32 %v1213, %v1185
    %v1216 = vmax.f32 %v1214, %v1186
    %v1217 = vmax.f32 %v1215, %v1187
    %v1218 = vmax.f32 %v1216, %v1188
    %v1219 = vmax.f32 %v1217, %v1189
    %v1220 = vmax.f32 %v1218, %v1190
    %v1221 = vmax.f32 %v1219, %v1220
    %v1222 = vrot.slane %v1221, 4
    %v1223 = vmax.f32 %v1221, %v1222
    %v1224 = vrot.slane %v1223, 2
    %v1225 = vmax.f32 %v1223, %v1224
    %v1226 = vrot.slane %v1225, 1
    %v1227 = vmax.f32 %v1225, %v1226
    %v1228 = vmax.f32 %v1191, %v1193
    %v1229 = vmax.f32 %v1192, %v1194
    %v1230 = vmax.f32 %v1228, %v1195
    %v1231 = vmax.f32 %v1229, %v1196
    %v1232 = vmax.f32 %v1230, %v1197
    %v1233 = vmax.f32 %v1231, %v1198
    %v1234 = vmax.f32 %v1232, %v1199
    %v1235 = vmax.f32 %v1233, %v1200
    %v1236 = vmax.f32 %v1234, %v1201
    %v1237 = vmax.f32 %v1235, %v1202
    %v1238 = vmax.f32 %v1236, %v1203
    %v1239 = vmax.f32 %v1237, %v1204
    %v1240 = vmax.f32 %v1238, %v1205
    %v1241 = vmax.f32 %v1239, %v1206
    %v1242 = vmax.f32 %v1240, %v1241
    %v1243 = vrot.slane %v1242, 4
    %v1244 = vmax.f32 %v1242, %v1243
    %v1245 = vrot.slane %v1244, 2
    %v1246 = vmax.f32 %v1244, %v1245
    %v1247 = vrot.slane %v1246, 1
    %v1248 = vmax.f32 %v1246, %v1247
    %vm1249 = vcmp.ge.f32.partialorder %v1175, %v1227
    %vm1250 = vcmp.ge.f32.partialorder %v1176, %v1227
    %vm1251 = vcmp.ge.f32.partialorder %v1177, %v1227
    %vm1252 = vcmp.ge.f32.partialorder %v1178, %v1227
    %vm1253 = vcmp.ge.f32.partialorder %v1179, %v1227
    %vm1254 = vcmp.ge.f32.partialorder %v1180, %v1227
    %vm1255 = vcmp.ge.f32.partialorder %v1181, %v1227
    %vm1256 = vcmp.ge.f32.partialorder %v1182, %v1227
    %vm1257 = vcmp.ge.f32.partialorder %v1183, %v1227
    %vm1258 = vcmp.ge.f32.partialorder %v1184, %v1227
    %vm1259 = vcmp.ge.f32.partialorder %v1185, %v1227
    %vm1260 = vcmp.ge.f32.partialorder %v1186, %v1227
    %vm1261 = vcmp.ge.f32.partialorder %v1187, %v1227
    %vm1262 = vcmp.ge.f32.partialorder %v1188, %v1227
    %vm1263 = vcmp.ge.f32.partialorder %v1189, %v1227
    %vm1264 = vcmp.ge.f32.partialorder %v1190, %v1227
    %vm1265 = vcmp.ge.f32.partialorder %v1191, %v1248
    %vm1266 = vcmp.ge.f32.partialorder %v1192, %v1248
    %vm1267 = vcmp.ge.f32.partialorder %v1193, %v1248
    %vm1268 = vcmp.ge.f32.partialorder %v1194, %v1248
    %vm1269 = vcmp.ge.f32.partialorder %v1195, %v1248
    %vm1270 = vcmp.ge.f32.partialorder %v1196, %v1248
    %vm1271 = vcmp.ge.f32.partialorder %v1197, %v1248
    %vm1272 = vcmp.ge.f32.partialorder %v1198, %v1248
    %vm1273 = vcmp.ge.f32.partialorder %v1199, %v1248
    %vm1274 = vcmp.ge.f32.partialorder %v1200, %v1248
    %vm1275 = vcmp.ge.f32.partialorder %v1201, %v1248
    %vm1276 = vcmp.ge.f32.partialorder %v1202, %v1248
    %vm1277 = vcmp.ge.f32.partialorder %v1203, %v1248
    %vm1278 = vcmp.ge.f32.partialorder %v1204, %v1248
    %vm1279 = vcmp.ge.f32.partialorder %v1205, %v1248
    %vm1280 = vcmp.ge.f32.partialorder %v1206, %v1248
    %v1281 = vsel %vm1249, %v167, 128
    %v1282 = vsel %vm1250, %v168, 128
    %v1283 = vsel %vm1251, %v169, 128
    %v1284 = vsel %vm1252, %v170, 128
    %v1285 = vsel %vm1253, %v171, 128
    %v1286 = vsel %vm1254, %v172, 128
    %v1287 = vsel %vm1255, %v173, 128
    %v1288 = vsel %vm1256, %v174, 128
    %v1289 = vsel %vm1257, %v175, 128
    %v1290 = vsel %vm1258, %v176, 128
    %v1291 = vsel %vm1259, %v177, 128
    %v1292 = vsel %vm1260, %v178, 128
    %v1293 = vsel %vm1261, %v179, 128
    %v1294 = vsel %vm1262, %v180, 128
    %v1295 = vsel %vm1263, %v181, 128
    %v1296 = vsel %vm1264, %v182, 128
    %v1297 = vsel %vm1265, %v167, 128
    %v1298 = vsel %vm1266, %v168, 128
    %v1299 = vsel %vm1267, %v169, 128
    %v1300 = vsel %vm1268, %v170, 128
    %v1301 = vsel %vm1269, %v171, 128
    %v1302 = vsel %vm1270, %v172, 128
    %v1303 = vsel %vm1271, %v173, 128
    %v1304 = vsel %vm1272, %v174, 128
    %v1305 = vsel %vm1273, %v175, 128
    %v1306 = vsel %vm1274, %v176, 128
    %v1307 = vsel %vm1275, %v177, 128
    %v1308 = vsel %vm1276, %v178, 128
    %v1309 = vsel %vm1277, %v179, 128
    %v1310 = vsel %vm1278, %v180, 128
    %v1311 = vsel %vm1279, %v181, 128
    %v1312 = vsel %vm1280, %v182, 128
    %vm1313 = vcmp.lt.s32.totalorder %v1281, %v1283
    %v1314 = vsel %vm1313, %v1281, %v1283
    %vm1315 = vcmp.lt.s32.totalorder %v1282, %v1284
    %v1316 = vsel %vm1315, %v1282, %v1284
    %vm1317 = vcmp.lt.s32.totalorder %v1314, %v1285
    %v1318 = vsel %vm1317, %v1314, %v1285
    %vm1319 = vcmp.lt.s32.totalorder %v1316, %v1286
    %v1320 = vsel %vm1319, %v1316, %v1286
    %vm1321 = vcmp.lt.s32.totalorder %v1318, %v1287
    %v1322 = vsel %vm1321, %v1318, %v1287
    %vm1323 = vcmp.lt.s32.totalorder %v1320, %v1288
    %v1324 = vsel %vm1323, %v1320, %v1288
    %vm1325 = vcmp.lt.s32.totalorder %v1322, %v1289
    %v1326 = vsel %vm1325, %v1322, %v1289
    %vm1327 = vcmp.lt.s32.totalorder %v1324, %v1290
    %v1328 = vsel %vm1327, %v1324, %v1290
    %vm1329 = vcmp.lt.s32.totalorder %v1326, %v1291
    %v1330 = vsel %vm1329, %v1326, %v1291
    %vm1331 = vcmp.lt.s32.totalorder %v1328, %v1292
    %v1332 = vsel %vm1331, %v1328, %v1292
    %vm1333 = vcmp.lt.s32.totalorder %v1330, %v1293
    %v1334 = vsel %vm1333, %v1330, %v1293
    %vm1335 = vcmp.lt.s32.totalorder %v1332, %v1294
    %v1336 = vsel %vm1335, %v1332, %v1294
    %vm1337 = vcmp.lt.s32.totalorder %v1334, %v1295
    %v1338 = vsel %vm1337, %v1334, %v1295
    %vm1339 = vcmp.lt.s32.totalorder %v1336, %v1296
    %v1340 = vsel %vm1339, %v1336, %v1296
    %vm1341 = vcmp.lt.s32.totalorder %v1338, %v1340
    %v1342 = vsel %vm1341, %v1338, %v1340
    %v1343 = vrot.slane %v1342, 4
    %vm1344 = vcmp.lt.s32.totalorder %v1342, %v1343
    %v1345 = vsel %vm1344, %v1342, %v1343
    %v1346 = vrot.slane %v1345, 2
    %vm1347 = vcmp.lt.s32.totalorder %v1345, %v1346
    %v1348 = vsel %vm1347, %v1345, %v1346
    %v1349 = vrot.slane %v1348, 1
    %vm1350 = vcmp.lt.s32.totalorder %v1348, %v1349
    %v1351 = vsel %vm1350, %v1348, %v1349
    %vm1352 = vcmp.lt.s32.totalorder %v1297, %v1299
    %v1353 = vsel %vm1352, %v1297, %v1299
    %vm1354 = vcmp.lt.s32.totalorder %v1298, %v1300
    %v1355 = vsel %vm1354, %v1298, %v1300
    %vm1356 = vcmp.lt.s32.totalorder %v1353, %v1301
    %v1357 = vsel %vm1356, %v1353, %v1301
    %vm1358 = vcmp.lt.s32.totalorder %v1355, %v1302
    %v1359 = vsel %vm1358, %v1355, %v1302
    %vm1360 = vcmp.lt.s32.totalorder %v1357, %v1303
    %v1361 = vsel %vm1360, %v1357, %v1303
    %vm1362 = vcmp.lt.s32.totalorder %v1359, %v1304
    %v1363 = vsel %vm1362, %v1359, %v1304
    %vm1364 = vcmp.lt.s32.totalorder %v1361, %v1305
    %v1365 = vsel %vm1364, %v1361, %v1305
    %vm1366 = vcmp.lt.s32.totalorder %v1363, %v1306
    %v1367 = vsel %vm1366, %v1363, %v1306
    %vm1368 = vcmp.lt.s32.totalorder %v1365, %v1307
    %v1369 = vsel %vm1368, %v1365, %v1307
    %vm1370 = vcmp.lt.s32.totalorder %v1367, %v1308
    %v1371 = vsel %vm1370, %v1367, %v1308
    %vm1372 = vcmp.lt.s32.totalorder %v1369, %v1309
    %v1373 = vsel %vm1372, %v1369, %v1309
    %vm1374 = vcmp.lt.s32.totalorder %v1371, %v1310
    %v1375 = vsel %vm1374, %v1371, %v1310
    %vm1376 = vcmp.lt.s32.totalorder %v1373, %v1311
    %v1377 = vsel %vm1376, %v1373, %v1311
    %vm1378 = vcmp.lt.s32.totalorder %v1375, %v1312
    %v1379 = vsel %vm1378, %v1375, %v1312
    %vm1380 = vcmp.lt.s32.totalorder %v1377, %v1379
    %v1381 = vsel %vm1380, %v1377, %v1379
    %v1382 = vrot.slane %v1381, 4
    %vm1383 = vcmp.lt.s32.totalorder %v1381, %v1382
    %v1384 = vsel %vm1383, %v1381, %v1382
    %v1385 = vrot.slane %v1384, 2
    %vm1386 = vcmp.lt.s32.totalorder %v1384, %v1385
    %v1387 = vsel %vm1386, %v1384, %v1385
    %v1388 = vrot.slane %v1387, 1
    %vm1389 = vcmp.lt.s32.totalorder %v1387, %v1388
    %v1390 = vsel %vm1389, %v1387, %v1388
    %v1392 = vrot.slane %v1038, 1
    %v1395 = vadd.f32 %v1227, %v1038
    %v1396 = vadd.f32 %v1248, %v1392
    %v1397 = vlaneseq
    %v1398 = vshrl.u32 %v1397, 7
    %v1399 = vsub.s32 0, %v1398
    %v1400 = vrot.slane %v869, %v1399
    %1402 = vbcast.lane.b32.xlu0 %v1400, 256
    %v1403 = vpop.permute.xlu0 %1402
    %s1405 = sor.u32 256, 8
    %1406 = vbcast.lane.b32.xlu0 %v1400, %s1405
    %v1407 = vpop.permute.xlu0 %1406
    %s1409 = sor.u32 256, 16
    %1410 = vbcast.lane.b32.xlu0 %v1400, %s1409
    %v1411 = vpop.permute.xlu0 %1410
    %s1413 = sor.u32 256, 24
    %1414 = vbcast.lane.b32.xlu0 %v1400, %s1413
    %v1415 = vpop.permute.xlu0 %1414
    %s1417 = sor.u32 256, 32
    %1418 = vbcast.lane.b32.xlu0 %v1400, %s1417
    %v1419 = vpop.permute.xlu0 %1418
    %s1421 = sor.u32 256, 40
    %1422 = vbcast.lane.b32.xlu0 %v1400, %s1421
    %v1423 = vpop.permute.xlu0 %1422
    %s1425 = sor.u32 256, 48
    %1426 = vbcast.lane.b32.xlu0 %v1400, %s1425
    %v1427 = vpop.permute.xlu0 %1426
    %s1429 = sor.u32 256, 56
    %1430 = vbcast.lane.b32.xlu0 %v1400, %s1429
    %v1431 = vpop.permute.xlu0 %1430
    %s1433 = sor.u32 256, 64
    %1434 = vbcast.lane.b32.xlu0 %v1400, %s1433
    %v1435 = vpop.permute.xlu0 %1434
    %s1437 = sor.u32 256, 72
    %1438 = vbcast.lane.b32.xlu0 %v1400, %s1437
    %v1439 = vpop.permute.xlu0 %1438
    %s1441 = sor.u32 256, 80
    %1442 = vbcast.lane.b32.xlu0 %v1400, %s1441
    %v1443 = vpop.permute.xlu0 %1442
    %s1445 = sor.u32 256, 88
    %1446 = vbcast.lane.b32.xlu0 %v1400, %s1445
    %v1447 = vpop.permute.xlu0 %1446
    %s1449 = sor.u32 256, 96
    %1450 = vbcast.lane.b32.xlu0 %v1400, %s1449
    %v1451 = vpop.permute.xlu0 %1450
    %s1453 = sor.u32 256, 104
    %1454 = vbcast.lane.b32.xlu0 %v1400, %s1453
    %v1455 = vpop.permute.xlu0 %1454
    %s1457 = sor.u32 256, 112
    %1458 = vbcast.lane.b32.xlu0 %v1400, %s1457
    %v1459 = vpop.permute.xlu0 %1458
    %s1461 = sor.u32 256, 120
    %1462 = vbcast.lane.b32.xlu0 %v1400, %s1461
    %v1463 = vpop.permute.xlu0 %1462
    %v1464 = vlaneseq
    %v1465 = vshrl.u32 %v1464, 7
    %v1466 = vsub.s32 0, %v1465
    %v1467 = vrot.slane %v870, %v1466
    %1469 = vbcast.lane.b32.xlu0 %v1467, 256
    %v1470 = vpop.permute.xlu0 %1469
    %s1472 = sor.u32 256, 8
    %1473 = vbcast.lane.b32.xlu0 %v1467, %s1472
    %v1474 = vpop.permute.xlu0 %1473
    %s1476 = sor.u32 256, 16
    %1477 = vbcast.lane.b32.xlu0 %v1467, %s1476
    %v1478 = vpop.permute.xlu0 %1477
    %s1480 = sor.u32 256, 24
    %1481 = vbcast.lane.b32.xlu0 %v1467, %s1480
    %v1482 = vpop.permute.xlu0 %1481
    %s1484 = sor.u32 256, 32
    %1485 = vbcast.lane.b32.xlu0 %v1467, %s1484
    %v1486 = vpop.permute.xlu0 %1485
    %s1488 = sor.u32 256, 40
    %1489 = vbcast.lane.b32.xlu0 %v1467, %s1488
    %v1490 = vpop.permute.xlu0 %1489
    %s1492 = sor.u32 256, 48
    %1493 = vbcast.lane.b32.xlu0 %v1467, %s1492
    %v1494 = vpop.permute.xlu0 %1493
    %s1496 = sor.u32 256, 56
    %1497 = vbcast.lane.b32.xlu0 %v1467, %s1496
    %v1498 = vpop.permute.xlu0 %1497
    %s1500 = sor.u32 256, 64
    %1501 = vbcast.lane.b32.xlu0 %v1467, %s1500
    %v1502 = vpop.permute.xlu0 %1501
    %s1504 = sor.u32 256, 72
    %1505 = vbcast.lane.b32.xlu0 %v1467, %s1504
    %v1506 = vpop.permute.xlu0 %1505
    %s1508 = sor.u32 256, 80
    %1509 = vbcast.lane.b32.xlu0 %v1467, %s1508
    %v1510 = vpop.permute.xlu0 %1509
    %s1512 = sor.u32 256, 88
    %1513 = vbcast.lane.b32.xlu0 %v1467, %s1512
    %v1514 = vpop.permute.xlu0 %1513
    %s1516 = sor.u32 256, 96
    %1517 = vbcast.lane.b32.xlu0 %v1467, %s1516
    %v1518 = vpop.permute.xlu0 %1517
    %s1520 = sor.u32 256, 104
    %1521 = vbcast.lane.b32.xlu0 %v1467, %s1520
    %v1522 = vpop.permute.xlu0 %1521
    %s1524 = sor.u32 256, 112
    %1525 = vbcast.lane.b32.xlu0 %v1467, %s1524
    %v1526 = vpop.permute.xlu0 %1525
    %s1528 = sor.u32 256, 120
    %1529 = vbcast.lane.b32.xlu0 %v1467, %s1528
    %v1530 = vpop.permute.xlu0 %1529
    %v1531 = vadd.f32 %v1403, %v146
    %v1532 = vadd.f32 %v1407, %v147
    %v1533 = vadd.f32 %v1411, %v148
    %v1534 = vadd.f32 %v1415, %v149
    %v1535 = vadd.f32 %v1419, %v150
    %v1536 = vadd.f32 %v1423, %v151
    %v1537 = vadd.f32 %v1427, %v152
    %v1538 = vadd.f32 %v1431, %v153
    %v1539 = vadd.f32 %v1435, %v154
    %v1540 = vadd.f32 %v1439, %v155
    %v1541 = vadd.f32 %v1443, %v156
    %v1542 = vadd.f32 %v1447, %v157
    %v1543 = vadd.f32 %v1451, %v158
    %v1544 = vadd.f32 %v1455, %v159
    %v1545 = vadd.f32 %v1459, %v160
    %v1546 = vadd.f32 %v1463, %v161
    %v1547 = vadd.f32 %v1470, %v146
    %v1548 = vadd.f32 %v1474, %v147
    %v1549 = vadd.f32 %v1478, %v148
    %v1550 = vadd.f32 %v1482, %v149
    %v1551 = vadd.f32 %v1486, %v150
    %v1552 = vadd.f32 %v1490, %v151
    %v1553 = vadd.f32 %v1494, %v152
    %v1554 = vadd.f32 %v1498, %v153
    %v1555 = vadd.f32 %v1502, %v154
    %v1556 = vadd.f32 %v1506, %v155
    %v1557 = vadd.f32 %v1510, %v156
    %v1558 = vadd.f32 %v1514, %v157
    %v1559 = vadd.f32 %v1518, %v158
    %v1560 = vadd.f32 %v1522, %v159
    %v1561 = vadd.f32 %v1526, %v160
    %v1562 = vadd.f32 %v1530, %v161
    %v1563 = vmax.f32 %v1531, %v1533
    %v1564 = vmax.f32 %v1532, %v1534
    %v1565 = vmax.f32 %v1563, %v1535
    %v1566 = vmax.f32 %v1564, %v1536
    %v1567 = vmax.f32 %v1565, %v1537
    %v1568 = vmax.f32 %v1566, %v1538
    %v1569 = vmax.f32 %v1567, %v1539
    %v1570 = vmax.f32 %v1568, %v1540
    %v1571 = vmax.f32 %v1569, %v1541
    %v1572 = vmax.f32 %v1570, %v1542
    %v1573 = vmax.f32 %v1571, %v1543
    %v1574 = vmax.f32 %v1572, %v1544
    %v1575 = vmax.f32 %v1573, %v1545
    %v1576 = vmax.f32 %v1574, %v1546
    %v1577 = vmax.f32 %v1575, %v1576
    %v1578 = vrot.slane %v1577, 4
    %v1579 = vmax.f32 %v1577, %v1578
    %v1580 = vrot.slane %v1579, 2
    %v1581 = vmax.f32 %v1579, %v1580
    %v1582 = vrot.slane %v1581, 1
    %v1583 = vmax.f32 %v1581, %v1582
    %v1584 = vmax.f32 %v1547, %v1549
    %v1585 = vmax.f32 %v1548, %v1550
    %v1586 = vmax.f32 %v1584, %v1551
    %v1587 = vmax.f32 %v1585, %v1552
    %v1588 = vmax.f32 %v1586, %v1553
    %v1589 = vmax.f32 %v1587, %v1554
    %v1590 = vmax.f32 %v1588, %v1555
    %v1591 = vmax.f32 %v1589, %v1556
    %v1592 = vmax.f32 %v1590, %v1557
    %v1593 = vmax.f32 %v1591, %v1558
    %v1594 = vmax.f32 %v1592, %v1559
    %v1595 = vmax.f32 %v1593, %v1560
    %v1596 = vmax.f32 %v1594, %v1561
    %v1597 = vmax.f32 %v1595, %v1562
    %v1598 = vmax.f32 %v1596, %v1597
    %v1599 = vrot.slane %v1598, 4
    %v1600 = vmax.f32 %v1598, %v1599
    %v1601 = vrot.slane %v1600, 2
    %v1602 = vmax.f32 %v1600, %v1601
    %v1603 = vrot.slane %v1602, 1
    %v1604 = vmax.f32 %v1602, %v1603
    %v1605 = vsub.f32 %v1531, %v1583
    %v1606 = vsub.f32 %v1532, %v1583
    %v1607 = vsub.f32 %v1533, %v1583
    %v1608 = vsub.f32 %v1534, %v1583
    %v1609 = vsub.f32 %v1535, %v1583
    %v1610 = vsub.f32 %v1536, %v1583
    %v1611 = vsub.f32 %v1537, %v1583
    %v1612 = vsub.f32 %v1538, %v1583
    %v1613 = vsub.f32 %v1539, %v1583
    %v1614 = vsub.f32 %v1540, %v1583
    %v1615 = vsub.f32 %v1541, %v1583
    %v1616 = vsub.f32 %v1542, %v1583
    %v1617 = vsub.f32 %v1543, %v1583
    %v1618 = vsub.f32 %v1544, %v1583
    %v1619 = vsub.f32 %v1545, %v1583
    %v1620 = vsub.f32 %v1546, %v1583
    %v1621 = vsub.f32 %v1547, %v1604
    %v1622 = vsub.f32 %v1548, %v1604
    %v1623 = vsub.f32 %v1549, %v1604
    %v1624 = vsub.f32 %v1550, %v1604
    %v1625 = vsub.f32 %v1551, %v1604
    %v1626 = vsub.f32 %v1552, %v1604
    %v1627 = vsub.f32 %v1553, %v1604
    %v1628 = vsub.f32 %v1554, %v1604
    %v1629 = vsub.f32 %v1555, %v1604
    %v1630 = vsub.f32 %v1556, %v1604
    %v1631 = vsub.f32 %v1557, %v1604
    %v1632 = vsub.f32 %v1558, %v1604
    %v1633 = vsub.f32 %v1559, %v1604
    %v1634 = vsub.f32 %v1560, %v1604
    %v1635 = vsub.f32 %v1561, %v1604
    %v1636 = vsub.f32 %v1562, %v1604
    %v1637 = vmul.f32 %v1605, 1.442695
    %v1638 = vpow.pop %v1637
    %v1639 = vmul.f32 %v1606, 1.442695
    %v1640 = vpow.pop %v1639
    %v1641 = vmul.f32 %v1607, 1.442695
    %v1642 = vpow.pop %v1641
    %v1643 = vmul.f32 %v1608, 1.442695
    %v1644 = vpow.pop %v1643
    %v1645 = vmul.f32 %v1609, 1.442695
    %v1646 = vpow.pop %v1645
    %v1647 = vmul.f32 %v1610, 1.442695
    %v1648 = vpow.pop %v1647
    %v1649 = vmul.f32 %v1611, 1.442695
    %v1650 = vpow.pop %v1649
    %v1651 = vmul.f32 %v1612, 1.442695
    %v1652 = vpow.pop %v1651
    %v1653 = vmul.f32 %v1613, 1.442695
    %v1654 = vpow.pop %v1653
    %v1655 = vmul.f32 %v1614, 1.442695
    %v1656 = vpow.pop %v1655
    %v1657 = vmul.f32 %v1615, 1.442695
    %v1658 = vpow.pop %v1657
    %v1659 = vmul.f32 %v1616, 1.442695
    %v1660 = vpow.pop %v1659
    %v1661 = vmul.f32 %v1617, 1.442695
    %v1662 = vpow.pop %v1661
    %v1663 = vmul.f32 %v1618, 1.442695
    %v1664 = vpow.pop %v1663
    %v1665 = vmul.f32 %v1619, 1.442695
    %v1666 = vpow.pop %v1665
    %v1667 = vmul.f32 %v1620, 1.442695
    %v1668 = vpow.pop %v1667
    %v1669 = vmul.f32 %v1621, 1.442695
    %v1670 = vpow.pop %v1669
    %v1671 = vmul.f32 %v1622, 1.442695
    %v1672 = vpow.pop %v1671
    %v1673 = vmul.f32 %v1623, 1.442695
    %v1674 = vpow.pop %v1673
    %v1675 = vmul.f32 %v1624, 1.442695
    %v1676 = vpow.pop %v1675
    %v1677 = vmul.f32 %v1625, 1.442695
    %v1678 = vpow.pop %v1677
    %v1679 = vmul.f32 %v1626, 1.442695
    %v1680 = vpow.pop %v1679
    %v1681 = vmul.f32 %v1627, 1.442695
    %v1682 = vpow.pop %v1681
    %v1683 = vmul.f32 %v1628, 1.442695
    %v1684 = vpow.pop %v1683
    %v1685 = vmul.f32 %v1629, 1.442695
    %v1686 = vpow.pop %v1685
    %v1687 = vmul.f32 %v1630, 1.442695
    %v1688 = vpow.pop %v1687
    %v1689 = vmul.f32 %v1631, 1.442695
    %v1690 = vpow.pop %v1689
    %v1691 = vmul.f32 %v1632, 1.442695
    %v1692 = vpow.pop %v1691
    %v1693 = vmul.f32 %v1633, 1.442695
    %v1694 = vpow.pop %v1693
    %v1695 = vmul.f32 %v1634, 1.442695
    %v1696 = vpow.pop %v1695
    %v1697 = vmul.f32 %v1635, 1.442695
    %v1698 = vpow.pop %v1697
    %v1699 = vmul.f32 %v1636, 1.442695
    %v1700 = vpow.pop %v1699
    %v1701 = vadd.f32 %v1638, %v1640
    %v1702 = vadd.f32 %v1701, %v1642
    %v1703 = vadd.f32 %v1702, %v1644
    %v1704 = vadd.f32 %v1703, %v1646
    %v1705 = vadd.f32 %v1704, %v1648
    %v1706 = vadd.f32 %v1705, %v1650
    %v1707 = vadd.f32 %v1706, %v1652
    %v1708 = vadd.f32 %v1707, %v1654
    %v1709 = vadd.f32 %v1708, %v1656
    %v1710 = vadd.f32 %v1709, %v1658
    %v1711 = vadd.f32 %v1710, %v1660
    %v1712 = vadd.f32 %v1711, %v1662
    %v1713 = vadd.f32 %v1712, %v1664
    %v1714 = vadd.f32 %v1713, %v1666
    %v1715 = vadd.f32 %v1714, %v1668
    %v1716 = vrot.slane %v1715, 4
    %v1717 = vadd.f32 %v1715, %v1716
    %v1718 = vrot.slane %v1717, 2
    %v1719 = vadd.f32 %v1717, %v1718
    %v1720 = vrot.slane %v1719, 1
    %v1721 = vadd.f32 %v1719, %v1720
    %v1722 = vadd.f32 %v1670, %v1672
    %v1723 = vadd.f32 %v1722, %v1674
    %v1724 = vadd.f32 %v1723, %v1676
    %v1725 = vadd.f32 %v1724, %v1678
    %v1726 = vadd.f32 %v1725, %v1680
    %v1727 = vadd.f32 %v1726, %v1682
    %v1728 = vadd.f32 %v1727, %v1684
    %v1729 = vadd.f32 %v1728, %v1686
    %v1730 = vadd.f32 %v1729, %v1688
    %v1731 = vadd.f32 %v1730, %v1690
    %v1732 = vadd.f32 %v1731, %v1692
    %v1733 = vadd.f32 %v1732, %v1694
    %v1734 = vadd.f32 %v1733, %v1696
    %v1735 = vadd.f32 %v1734, %v1698
    %v1736 = vadd.f32 %v1735, %v1700
    %v1737 = vrot.slane %v1736, 4
    %v1738 = vadd.f32 %v1736, %v1737
    %v1739 = vrot.slane %v1738, 2
    %v1740 = vadd.f32 %v1738, %v1739
    %v1741 = vrot.slane %v1740, 1
    %v1742 = vadd.f32 %v1740, %v1741
    %v1743 = vlog2.pop %v1721
    %v1744 = vmul.f32 %v1743, 0.6931472
    %v1745 = vlog2.pop %v1742
    %v1746 = vmul.f32 %v1745, 0.6931472
    %v1747 = vadd.f32 %v1583, %v1744
    %v1748 = vadd.f32 %v1604, %v1746
    %v1749 = vadd.f32 %v1747, %v1038
    %v1750 = vadd.f32 %v1748, %v1392
    %vm1751 = vcmp.eq.s32.totalorder %v165, 2
    %v1752 = vsel %vm1751, %v145, 0
    %v1753 = vsel %vm270, %v1752, 0
    %v1754 = vand.u32 %v1753, 65535
    %v1755 = vshrl.u32 %v1753, 16
    %v1756 = vcvt.s32.f32 %v1754
    %v1757 = vcvt.s32.f32 %v1755
    %1758 = vadd.xlane.f32.xlu0 %v1756
    %v1759 = vpop.xlane.xlu0 %1758
    %1760 = vadd.xlane.f32.xlu0 %v1757
    %v1761 = vpop.xlane.xlu0 %1760
    %v1762 = vcvt.f32.s32 %v1759
    %v1763 = vcvt.f32.s32 %v1761
    %v1764 = vshll.u32 %v1763, 16
    %v1765 = vadd.s32 %v1764, %v1762
    %vm1766 = vcmp.eq.s32.totalorder %v165, %v1765
    %v1767 = vsel %vm1766, 1, 0
    %v1768 = vcvt.s32.f32 %v1767
    %1769 = vmatprep.subr.mxu0 0.0
    %1770 = vmatpush1.msra.mxu0 %v146
    %1771 = vmatprep.subr.mxu0 0.0
    %1772 = vmatpush1.msra.mxu0 %v147
    %1773 = vmatprep.subr.mxu0 0.0
    %1774 = vmatpush1.msra.mxu0 %v148
    %1775 = vmatprep.subr.mxu0 0.0
    %1776 = vmatpush1.msra.mxu0 %v149
    %1777 = vmatprep.subr.mxu0 0.0
    %1778 = vmatpush1.msra.mxu0 %v150
    %1779 = vmatprep.subr.mxu0 0.0
    %1780 = vmatpush1.msra.mxu0 %v151
    %1781 = vmatprep.subr.mxu0 0.0
    %1782 = vmatpush1.msra.mxu0 %v152
    %1783 = vmatprep.subr.mxu0 0.0
    %1784 = vmatpush1.msra.mxu0 %v153
    %1785 = vmatprep.subr.mxu0 0.0
    %1786 = vmatpush1.msra.mxu0 %v154
    %1787 = vmatprep.subr.mxu0 0.0
    %1788 = vmatpush1.msra.mxu0 %v155
    %1789 = vmatprep.subr.mxu0 0.0
    %1790 = vmatpush1.msra.mxu0 %v156
    %1791 = vmatprep.subr.mxu0 0.0
    %1792 = vmatpush1.msra.mxu0 %v157
    %1793 = vmatprep.subr.mxu0 0.0
    %1794 = vmatpush1.msra.mxu0 %v158
    %1795 = vmatprep.subr.mxu0 0.0
    %1796 = vmatpush1.msra.mxu0 %v159
    %1797 = vmatprep.subr.mxu0 0.0
    %1798 = vmatpush1.msra.mxu0 %v160
    %1799 = vmatprep.subr.mxu0 0.0
    %1800 = vmatpush1.msra.mxu0 %v161
    %1801 = vmatprep.subr.mxu0 0.0
    %1802 = vmatpush1.msra.mxu0 0.0
    %1803 = vmatprep.subr.mxu0 0.0
    %1804 = vmatpush1.msra.mxu0 0.0
    %1805 = vmatprep.subr.mxu0 0.0
    %1806 = vmatpush1.msra.mxu0 0.0
    %1807 = vmatprep.subr.mxu0 0.0
    %1808 = vmatpush1.msra.mxu0 0.0
    %1809 = vmatprep.subr.mxu0 0.0
    %1810 = vmatpush1.msra.mxu0 0.0
    %1811 = vmatprep.subr.mxu0 0.0
    %1812 = vmatpush1.msra.mxu0 0.0
    %1813 = vmatprep.subr.mxu0 0.0
    %1814 = vmatpush1.msra.mxu0 0.0
    %1815 = vmatprep.subr.mxu0 0.0
    %1816 = vmatpush1.msra.mxu0 0.0
    %1817 = vmatprep.subr.mxu0 0.0
    %1818 = vmatpush1.msra.mxu0 0.0
    %1819 = vmatprep.subr.mxu0 0.0
    %1820 = vmatpush1.msra.mxu0 0.0
    %1821 = vmatprep.subr.mxu0 0.0
    %1822 = vmatpush1.msra.mxu0 0.0
    %1823 = vmatprep.subr.mxu0 0.0
    %1824 = vmatpush1.msra.mxu0 0.0
    %1825 = vmatprep.subr.mxu0 0.0
    %1826 = vmatpush1.msra.mxu0 0.0
    %1827 = vmatprep.subr.mxu0 0.0
    %1828 = vmatpush1.msra.mxu0 0.0
    %1829 = vmatprep.subr.mxu0 0.0
    %1830 = vmatpush1.msra.mxu0 0.0
    %1831 = vmatprep.subr.mxu0 0.0
    %1832 = vmatpush1.msra.mxu0 0.0
    %1833 = vmatprep.mubr.f32.mxu0 0.0
    %1834 = vmatmul.mubr.f32.gmra.mrb[0].mxu0 %v888
    %v1835 = vpop.f32.mrb[0].mxu0
    %v1836 = vadd.f32 %v1038, %v1835
    %v1837 = vpop.f32.mrb[0].mxu0
    %1838 = vdwg.mxu0
    %v1839 = vmul.f32 %v1836, %v1768
    %v1840 = vsel %vm288, %v1839, 0.0
    %1841 = vadd.xlane.f32.xlu0 %v1840
    %v1842 = vpop.xlane.xlu0 %1841
    %v1843 = vadd.f32 %v963, %v1842
    %v1844 = vadd.s32 %v183, 3
    %vm1845 = vcmp.eq.s32.totalorder %v165, %v1844
    %v1846 = vsel %vm1845, 1, 0
    %v1847 = vcvt.s32.f32 %v1846
    %v1849 = vsel %vm187, %v1847, 0
    %1851 = vmatprep.subr.mxu0 0.0
    %1852 = vmatpush1.msra.mxu0 %v139
    %1853 = vmatprep.subr.mxu0 0.0
    %1854 = vmatpush1.msra.mxu0 %v142
    %1855 = vmatprep.subr.mxu0 0.0
    %1856 = vmatpush1.msra.mxu0 0.0
    %1857 = vmatprep.subr.mxu0 0.0
    %1858 = vmatpush1.msra.mxu0 0.0
    %1859 = vmatprep.subr.mxu0 0.0
    %1860 = vmatpush1.msra.mxu0 0.0
    %1861 = vmatprep.subr.mxu0 0.0
    %1862 = vmatpush1.msra.mxu0 0.0
    %1863 = vmatprep.subr.mxu0 0.0
    %1864 = vmatpush1.msra.mxu0 0.0
    %1865 = vmatprep.subr.mxu0 0.0
    %1866 = vmatpush1.msra.mxu0 0.0
    %1867 = vmatprep.subr.mxu0 0.0
    %1868 = vmatpush1.msra.mxu0 0.0
    %1869 = vmatprep.subr.mxu0 0.0
    %1870 = vmatpush1.msra.mxu0 0.0
    %1871 = vmatprep.subr.mxu0 0.0
    %1872 = vmatpush1.msra.mxu0 0.0
    %1873 = vmatprep.subr.mxu0 0.0
    %1874 = vmatpush1.msra.mxu0 0.0
    %1875 = vmatprep.subr.mxu0 0.0
    %1876 = vmatpush1.msra.mxu0 0.0
    %1877 = vmatprep.subr.mxu0 0.0
    %1878 = vmatpush1.msra.mxu0 0.0
    %1879 = vmatprep.subr.mxu0 0.0
    %1880 = vmatpush1.msra.mxu0 0.0
    %1881 = vmatprep.subr.mxu0 0.0
    %1882 = vmatpush1.msra.mxu0 0.0
    %1883 = vmatprep.subr.mxu0 0.0
    %1884 = vmatpush1.msra.mxu0 0.0
    %1885 = vmatprep.subr.mxu0 0.0
    %1886 = vmatpush1.msra.mxu0 0.0
    %1887 = vmatprep.subr.mxu0 0.0
    %1888 = vmatpush1.msra.mxu0 0.0
    %1889 = vmatprep.subr.mxu0 0.0
    %1890 = vmatpush1.msra.mxu0 0.0
    %1891 = vmatprep.subr.mxu0 0.0
    %1892 = vmatpush1.msra.mxu0 0.0
    %1893 = vmatprep.subr.mxu0 0.0
    %1894 = vmatpush1.msra.mxu0 0.0
    %1895 = vmatprep.subr.mxu0 0.0
    %1896 = vmatpush1.msra.mxu0 0.0
    %1897 = vmatprep.subr.mxu0 0.0
    %1898 = vmatpush1.msra.mxu0 0.0
    %1899 = vmatprep.subr.mxu0 0.0
    %1900 = vmatpush1.msra.mxu0 0.0
    %1901 = vmatprep.subr.mxu0 0.0
    %1902 = vmatpush1.msra.mxu0 0.0
    %1903 = vmatprep.subr.mxu0 0.0
    %1904 = vmatpush1.msra.mxu0 0.0
    %1905 = vmatprep.subr.mxu0 0.0
    %1906 = vmatpush1.msra.mxu0 0.0
    %1907 = vmatprep.subr.mxu0 0.0
    %1908 = vmatpush1.msra.mxu0 0.0
    %1909 = vmatprep.subr.mxu0 0.0
    %1910 = vmatpush1.msra.mxu0 0.0
    %1911 = vmatprep.subr.mxu0 0.0
    %1912 = vmatpush1.msra.mxu0 0.0
    %1913 = vmatprep.subr.mxu0 0.0
    %1914 = vmatpush1.msra.mxu0 0.0
    %1915 = vmatprep.mubr.f32.mxu0 0.0
    %1916 = vmatmul.mubr.f32.gmra.mrb[0].mxu0 %v1849
    %v1917 = vpop.f32.mrb[0].mxu0
    %v1918 = vadd.f32 0.0, %v1917
    %v1919 = vpop.f32.mrb[0].mxu0
    %1920 = vdwg.mxu0
    %v1921 = vlaneseq
    %v1922 = vshrl.u32 %v1921, 7
    %v1923 = vsub.s32 0, %v1922
    %v1924 = vrot.slane %v1395, %v1923
    %1926 = vbcast.lane.b32.xlu0 %v1924, 256
    %v1927 = vpop.permute.xlu0 %1926
    %s1929 = sor.u32 256, 8
    %1930 = vbcast.lane.b32.xlu0 %v1924, %s1929
    %v1931 = vpop.permute.xlu0 %1930
    %s1933 = sor.u32 256, 16
    %1934 = vbcast.lane.b32.xlu0 %v1924, %s1933
    %v1935 = vpop.permute.xlu0 %1934
    %s1937 = sor.u32 256, 24
    %1938 = vbcast.lane.b32.xlu0 %v1924, %s1937
    %v1939 = vpop.permute.xlu0 %1938
    %s1941 = sor.u32 256, 32
    %1942 = vbcast.lane.b32.xlu0 %v1924, %s1941
    %v1943 = vpop.permute.xlu0 %1942
    %s1945 = sor.u32 256, 40
    %1946 = vbcast.lane.b32.xlu0 %v1924, %s1945
    %v1947 = vpop.permute.xlu0 %1946
    %s1949 = sor.u32 256, 48
    %1950 = vbcast.lane.b32.xlu0 %v1924, %s1949
    %v1951 = vpop.permute.xlu0 %1950
    %s1953 = sor.u32 256, 56
    %1954 = vbcast.lane.b32.xlu0 %v1924, %s1953
    %v1955 = vpop.permute.xlu0 %1954
    %s1957 = sor.u32 256, 64
    %1958 = vbcast.lane.b32.xlu0 %v1924, %s1957
    %v1959 = vpop.permute.xlu0 %1958
    %s1961 = sor.u32 256, 72
    %1962 = vbcast.lane.b32.xlu0 %v1924, %s1961
    %v1963 = vpop.permute.xlu0 %1962
    %s1965 = sor.u32 256, 80
    %1966 = vbcast.lane.b32.xlu0 %v1924, %s1965
    %v1967 = vpop.permute.xlu0 %1966
    %s1969 = sor.u32 256, 88
    %1970 = vbcast.lane.b32.xlu0 %v1924, %s1969
    %v1971 = vpop.permute.xlu0 %1970
    %s1973 = sor.u32 256, 96
    %1974 = vbcast.lane.b32.xlu0 %v1924, %s1973
    %v1975 = vpop.permute.xlu0 %1974
    %s1977 = sor.u32 256, 104
    %1978 = vbcast.lane.b32.xlu0 %v1924, %s1977
    %v1979 = vpop.permute.xlu0 %1978
    %s1981 = sor.u32 256, 112
    %1982 = vbcast.lane.b32.xlu0 %v1924, %s1981
    %v1983 = vpop.permute.xlu0 %1982
    %s1985 = sor.u32 256, 120
    %1986 = vbcast.lane.b32.xlu0 %v1924, %s1985
    %v1987 = vpop.permute.xlu0 %1986
    %v1988 = vlaneseq
    %v1989 = vshrl.u32 %v1988, 7
    %v1990 = vsub.s32 0, %v1989
    %v1991 = vrot.slane %v1396, %v1990
    %1993 = vbcast.lane.b32.xlu0 %v1991, 256
    %v1994 = vpop.permute.xlu0 %1993
    %s1996 = sor.u32 256, 8
    %1997 = vbcast.lane.b32.xlu0 %v1991, %s1996
    %v1998 = vpop.permute.xlu0 %1997
    %s2000 = sor.u32 256, 16
    %2001 = vbcast.lane.b32.xlu0 %v1991, %s2000
    %v2002 = vpop.permute.xlu0 %2001
    %s2004 = sor.u32 256, 24
    %2005 = vbcast.lane.b32.xlu0 %v1991, %s2004
    %v2006 = vpop.permute.xlu0 %2005
    %s2008 = sor.u32 256, 32
    %2009 = vbcast.lane.b32.xlu0 %v1991, %s2008
    %v2010 = vpop.permute.xlu0 %2009
    %s2012 = sor.u32 256, 40
    %2013 = vbcast.lane.b32.xlu0 %v1991, %s2012
    %v2014 = vpop.permute.xlu0 %2013
    %s2016 = sor.u32 256, 48
    %2017 = vbcast.lane.b32.xlu0 %v1991, %s2016
    %v2018 = vpop.permute.xlu0 %2017
    %s2020 = sor.u32 256, 56
    %2021 = vbcast.lane.b32.xlu0 %v1991, %s2020
    %v2022 = vpop.permute.xlu0 %2021
    %s2024 = sor.u32 256, 64
    %2025 = vbcast.lane.b32.xlu0 %v1991, %s2024
    %v2026 = vpop.permute.xlu0 %2025
    %s2028 = sor.u32 256, 72
    %2029 = vbcast.lane.b32.xlu0 %v1991, %s2028
    %v2030 = vpop.permute.xlu0 %2029
    %s2032 = sor.u32 256, 80
    %2033 = vbcast.lane.b32.xlu0 %v1991, %s2032
    %v2034 = vpop.permute.xlu0 %2033
    %s2036 = sor.u32 256, 88
    %2037 = vbcast.lane.b32.xlu0 %v1991, %s2036
    %v2038 = vpop.permute.xlu0 %2037
    %s2040 = sor.u32 256, 96
    %2041 = vbcast.lane.b32.xlu0 %v1991, %s2040
    %v2042 = vpop.permute.xlu0 %2041
    %s2044 = sor.u32 256, 104
    %2045 = vbcast.lane.b32.xlu0 %v1991, %s2044
    %v2046 = vpop.permute.xlu0 %2045
    %s2048 = sor.u32 256, 112
    %2049 = vbcast.lane.b32.xlu0 %v1991, %s2048
    %v2050 = vpop.permute.xlu0 %2049
    %s2052 = sor.u32 256, 120
    %2053 = vbcast.lane.b32.xlu0 %v1991, %s2052
    %v2054 = vpop.permute.xlu0 %2053
    %v2055 = vadd.f32 %v1927, %v146
    %v2056 = vadd.f32 %v1931, %v147
    %v2057 = vadd.f32 %v1935, %v148
    %v2058 = vadd.f32 %v1939, %v149
    %v2059 = vadd.f32 %v1943, %v150
    %v2060 = vadd.f32 %v1947, %v151
    %v2061 = vadd.f32 %v1951, %v152
    %v2062 = vadd.f32 %v1955, %v153
    %v2063 = vadd.f32 %v1959, %v154
    %v2064 = vadd.f32 %v1963, %v155
    %v2065 = vadd.f32 %v1967, %v156
    %v2066 = vadd.f32 %v1971, %v157
    %v2067 = vadd.f32 %v1975, %v158
    %v2068 = vadd.f32 %v1979, %v159
    %v2069 = vadd.f32 %v1983, %v160
    %v2070 = vadd.f32 %v1987, %v161
    %v2071 = vadd.f32 %v1994, %v146
    %v2072 = vadd.f32 %v1998, %v147
    %v2073 = vadd.f32 %v2002, %v148
    %v2074 = vadd.f32 %v2006, %v149
    %v2075 = vadd.f32 %v2010, %v150
    %v2076 = vadd.f32 %v2014, %v151
    %v2077 = vadd.f32 %v2018, %v152
    %v2078 = vadd.f32 %v2022, %v153
    %v2079 = vadd.f32 %v2026, %v154
    %v2080 = vadd.f32 %v2030, %v155
    %v2081 = vadd.f32 %v2034, %v156
    %v2082 = vadd.f32 %v2038, %v157
    %v2083 = vadd.f32 %v2042, %v158
    %v2084 = vadd.f32 %v2046, %v159
    %v2085 = vadd.f32 %v2050, %v160
    %v2086 = vadd.f32 %v2054, %v161
    %v2087 = vmax.f32 %v2055, %v2057
    %v2088 = vmax.f32 %v2056, %v2058
    %v2089 = vmax.f32 %v2087, %v2059
    %v2090 = vmax.f32 %v2088, %v2060
    %v2091 = vmax.f32 %v2089, %v2061
    %v2092 = vmax.f32 %v2090, %v2062
    %v2093 = vmax.f32 %v2091, %v2063
    %v2094 = vmax.f32 %v2092, %v2064
    %v2095 = vmax.f32 %v2093, %v2065
    %v2096 = vmax.f32 %v2094, %v2066
    %v2097 = vmax.f32 %v2095, %v2067
    %v2098 = vmax.f32 %v2096, %v2068
    %v2099 = vmax.f32 %v2097, %v2069
    %v2100 = vmax.f32 %v2098, %v2070
    %v2101 = vmax.f32 %v2099, %v2100
    %v2102 = vrot.slane %v2101, 4
    %v2103 = vmax.f32 %v2101, %v2102
    %v2104 = vrot.slane %v2103, 2
    %v2105 = vmax.f32 %v2103, %v2104
    %v2106 = vrot.slane %v2105, 1
    %v2107 = vmax.f32 %v2105, %v2106
    %v2108 = vmax.f32 %v2071, %v2073
    %v2109 = vmax.f32 %v2072, %v2074
    %v2110 = vmax.f32 %v2108, %v2075
    %v2111 = vmax.f32 %v2109, %v2076
    %v2112 = vmax.f32 %v2110, %v2077
    %v2113 = vmax.f32 %v2111, %v2078
    %v2114 = vmax.f32 %v2112, %v2079
    %v2115 = vmax.f32 %v2113, %v2080
    %v2116 = vmax.f32 %v2114, %v2081
    %v2117 = vmax.f32 %v2115, %v2082
    %v2118 = vmax.f32 %v2116, %v2083
    %v2119 = vmax.f32 %v2117, %v2084
    %v2120 = vmax.f32 %v2118, %v2085
    %v2121 = vmax.f32 %v2119, %v2086
    %v2122 = vmax.f32 %v2120, %v2121
    %v2123 = vrot.slane %v2122, 4
    %v2124 = vmax.f32 %v2122, %v2123
    %v2125 = vrot.slane %v2124, 2
    %v2126 = vmax.f32 %v2124, %v2125
    %v2127 = vrot.slane %v2126, 1
    %v2128 = vmax.f32 %v2126, %v2127
    %vm2129 = vcmp.ge.f32.partialorder %v2055, %v2107
    %vm2130 = vcmp.ge.f32.partialorder %v2056, %v2107
    %vm2131 = vcmp.ge.f32.partialorder %v2057, %v2107
    %vm2132 = vcmp.ge.f32.partialorder %v2058, %v2107
    %vm2133 = vcmp.ge.f32.partialorder %v2059, %v2107
    %vm2134 = vcmp.ge.f32.partialorder %v2060, %v2107
    %vm2135 = vcmp.ge.f32.partialorder %v2061, %v2107
    %vm2136 = vcmp.ge.f32.partialorder %v2062, %v2107
    %vm2137 = vcmp.ge.f32.partialorder %v2063, %v2107
    %vm2138 = vcmp.ge.f32.partialorder %v2064, %v2107
    %vm2139 = vcmp.ge.f32.partialorder %v2065, %v2107
    %vm2140 = vcmp.ge.f32.partialorder %v2066, %v2107
    %vm2141 = vcmp.ge.f32.partialorder %v2067, %v2107
    %vm2142 = vcmp.ge.f32.partialorder %v2068, %v2107
    %vm2143 = vcmp.ge.f32.partialorder %v2069, %v2107
    %vm2144 = vcmp.ge.f32.partialorder %v2070, %v2107
    %vm2145 = vcmp.ge.f32.partialorder %v2071, %v2128
    %vm2146 = vcmp.ge.f32.partialorder %v2072, %v2128
    %vm2147 = vcmp.ge.f32.partialorder %v2073, %v2128
    %vm2148 = vcmp.ge.f32.partialorder %v2074, %v2128
    %vm2149 = vcmp.ge.f32.partialorder %v2075, %v2128
    %vm2150 = vcmp.ge.f32.partialorder %v2076, %v2128
    %vm2151 = vcmp.ge.f32.partialorder %v2077, %v2128
    %vm2152 = vcmp.ge.f32.partialorder %v2078, %v2128
    %vm2153 = vcmp.ge.f32.partialorder %v2079, %v2128
    %vm2154 = vcmp.ge.f32.partialorder %v2080, %v2128
    %vm2155 = vcmp.ge.f32.partialorder %v2081, %v2128
    %vm2156 = vcmp.ge.f32.partialorder %v2082, %v2128
    %vm2157 = vcmp.ge.f32.partialorder %v2083, %v2128
    %vm2158 = vcmp.ge.f32.partialorder %v2084, %v2128
    %vm2159 = vcmp.ge.f32.partialorder %v2085, %v2128
    %vm2160 = vcmp.ge.f32.partialorder %v2086, %v2128
    %v2161 = vsel %vm2129, %v167, 128
    %v2162 = vsel %vm2130, %v168, 128
    %v2163 = vsel %vm2131, %v169, 128
    %v2164 = vsel %vm2132, %v170, 128
    %v2165 = vsel %vm2133, %v171, 128
    %v2166 = vsel %vm2134, %v172, 128
    %v2167 = vsel %vm2135, %v173, 128
    %v2168 = vsel %vm2136, %v174, 128
    %v2169 = vsel %vm2137, %v175, 128
    %v2170 = vsel %vm2138, %v176, 128
    %v2171 = vsel %vm2139, %v177, 128
    %v2172 = vsel %vm2140, %v178, 128
    %v2173 = vsel %vm2141, %v179, 128
    %v2174 = vsel %vm2142, %v180, 128
    %v2175 = vsel %vm2143, %v181, 128
    %v2176 = vsel %vm2144, %v182, 128
    %v2177 = vsel %vm2145, %v167, 128
    %v2178 = vsel %vm2146, %v168, 128
    %v2179 = vsel %vm2147, %v169, 128
    %v2180 = vsel %vm2148, %v170, 128
    %v2181 = vsel %vm2149, %v171, 128
    %v2182 = vsel %vm2150, %v172, 128
    %v2183 = vsel %vm2151, %v173, 128
    %v2184 = vsel %vm2152, %v174, 128
    %v2185 = vsel %vm2153, %v175, 128
    %v2186 = vsel %vm2154, %v176, 128
    %v2187 = vsel %vm2155, %v177, 128
    %v2188 = vsel %vm2156, %v178, 128
    %v2189 = vsel %vm2157, %v179, 128
    %v2190 = vsel %vm2158, %v180, 128
    %v2191 = vsel %vm2159, %v181, 128
    %v2192 = vsel %vm2160, %v182, 128
    %vm2193 = vcmp.lt.s32.totalorder %v2161, %v2163
    %v2194 = vsel %vm2193, %v2161, %v2163
    %vm2195 = vcmp.lt.s32.totalorder %v2162, %v2164
    %v2196 = vsel %vm2195, %v2162, %v2164
    %vm2197 = vcmp.lt.s32.totalorder %v2194, %v2165
    %v2198 = vsel %vm2197, %v2194, %v2165
    %vm2199 = vcmp.lt.s32.totalorder %v2196, %v2166
    %v2200 = vsel %vm2199, %v2196, %v2166
    %vm2201 = vcmp.lt.s32.totalorder %v2198, %v2167
    %v2202 = vsel %vm2201, %v2198, %v2167
    %vm2203 = vcmp.lt.s32.totalorder %v2200, %v2168
    %v2204 = vsel %vm2203, %v2200, %v2168
    %vm2205 = vcmp.lt.s32.totalorder %v2202, %v2169
    %v2206 = vsel %vm2205, %v2202, %v2169
    %vm2207 = vcmp.lt.s32.totalorder %v2204, %v2170
    %v2208 = vsel %vm2207, %v2204, %v2170
    %vm2209 = vcmp.lt.s32.totalorder %v2206, %v2171
    %v2210 = vsel %vm2209, %v2206, %v2171
    %vm2211 = vcmp.lt.s32.totalorder %v2208, %v2172
    %v2212 = vsel %vm2211, %v2208, %v2172
    %vm2213 = vcmp.lt.s32.totalorder %v2210, %v2173
    %v2214 = vsel %vm2213, %v2210, %v2173
    %vm2215 = vcmp.lt.s32.totalorder %v2212, %v2174
    %v2216 = vsel %vm2215, %v2212, %v2174
    %vm2217 = vcmp.lt.s32.totalorder %v2214, %v2175
    %v2218 = vsel %vm2217, %v2214, %v2175
    %vm2219 = vcmp.lt.s32.totalorder %v2216, %v2176
    %v2220 = vsel %vm2219, %v2216, %v2176
    %vm2221 = vcmp.lt.s32.totalorder %v2218, %v2220
    %v2222 = vsel %vm2221, %v2218, %v2220
    %v2223 = vrot.slane %v2222, 4
    %vm2224 = vcmp.lt.s32.totalorder %v2222, %v2223
    %v2225 = vsel %vm2224, %v2222, %v2223
    %v2226 = vrot.slane %v2225, 2
    %vm2227 = vcmp.lt.s32.totalorder %v2225, %v2226
    %v2228 = vsel %vm2227, %v2225, %v2226
    %v2229 = vrot.slane %v2228, 1
    %vm2230 = vcmp.lt.s32.totalorder %v2228, %v2229
    %v2231 = vsel %vm2230, %v2228, %v2229
    %vm2232 = vcmp.lt.s32.totalorder %v2177, %v2179
    %v2233 = vsel %vm2232, %v2177, %v2179
    %vm2234 = vcmp.lt.s32.totalorder %v2178, %v2180
    %v2235 = vsel %vm2234, %v2178, %v2180
    %vm2236 = vcmp.lt.s32.totalorder %v2233, %v2181
    %v2237 = vsel %vm2236, %v2233, %v2181
    %vm2238 = vcmp.lt.s32.totalorder %v2235, %v2182
    %v2239 = vsel %vm2238, %v2235, %v2182
    %vm2240 = vcmp.lt.s32.totalorder %v2237, %v2183
    %v2241 = vsel %vm2240, %v2237, %v2183
    %vm2242 = vcmp.lt.s32.totalorder %v2239, %v2184
    %v2243 = vsel %vm2242, %v2239, %v2184
    %vm2244 = vcmp.lt.s32.totalorder %v2241, %v2185
    %v2245 = vsel %vm2244, %v2241, %v2185
    %vm2246 = vcmp.lt.s32.totalorder %v2243, %v2186
    %v2247 = vsel %vm2246, %v2243, %v2186
    %vm2248 = vcmp.lt.s32.totalorder %v2245, %v2187
    %v2249 = vsel %vm2248, %v2245, %v2187
    %vm2250 = vcmp.lt.s32.totalorder %v2247, %v2188
    %v2251 = vsel %vm2250, %v2247, %v2188
    %vm2252 = vcmp.lt.s32.totalorder %v2249, %v2189
    %v2253 = vsel %vm2252, %v2249, %v2189
    %vm2254 = vcmp.lt.s32.totalorder %v2251, %v2190
    %v2255 = vsel %vm2254, %v2251, %v2190
    %vm2256 = vcmp.lt.s32.totalorder %v2253, %v2191
    %v2257 = vsel %vm2256, %v2253, %v2191
    %vm2258 = vcmp.lt.s32.totalorder %v2255, %v2192
    %v2259 = vsel %vm2258, %v2255, %v2192
    %vm2260 = vcmp.lt.s32.totalorder %v2257, %v2259
    %v2261 = vsel %vm2260, %v2257, %v2259
    %v2262 = vrot.slane %v2261, 4
    %vm2263 = vcmp.lt.s32.totalorder %v2261, %v2262
    %v2264 = vsel %vm2263, %v2261, %v2262
    %v2265 = vrot.slane %v2264, 2
    %vm2266 = vcmp.lt.s32.totalorder %v2264, %v2265
    %v2267 = vsel %vm2266, %v2264, %v2265
    %v2268 = vrot.slane %v2267, 1
    %vm2269 = vcmp.lt.s32.totalorder %v2267, %v2268
    %v2270 = vsel %vm2269, %v2267, %v2268
    %v2272 = vrot.slane %v1918, 1
    %v2275 = vadd.f32 %v2107, %v1918
    %v2276 = vadd.f32 %v2128, %v2272
    %v2277 = vlaneseq
    %v2278 = vshrl.u32 %v2277, 7
    %v2279 = vsub.s32 0, %v2278
    %v2280 = vrot.slane %v1749, %v2279
    %2282 = vbcast.lane.b32.xlu0 %v2280, 256
    %v2283 = vpop.permute.xlu0 %2282
    %s2285 = sor.u32 256, 8
    %2286 = vbcast.lane.b32.xlu0 %v2280, %s2285
    %v2287 = vpop.permute.xlu0 %2286
    %s2289 = sor.u32 256, 16
    %2290 = vbcast.lane.b32.xlu0 %v2280, %s2289
    %v2291 = vpop.permute.xlu0 %2290
    %s2293 = sor.u32 256, 24
    %2294 = vbcast.lane.b32.xlu0 %v2280, %s2293
    %v2295 = vpop.permute.xlu0 %2294
    %s2297 = sor.u32 256, 32
    %2298 = vbcast.lane.b32.xlu0 %v2280, %s2297
    %v2299 = vpop.permute.xlu0 %2298
    %s2301 = sor.u32 256, 40
    %2302 = vbcast.lane.b32.xlu0 %v2280, %s2301
    %v2303 = vpop.permute.xlu0 %2302
    %s2305 = sor.u32 256, 48
    %2306 = vbcast.lane.b32.xlu0 %v2280, %s2305
    %v2307 = vpop.permute.xlu0 %2306
    %s2309 = sor.u32 256, 56
    %2310 = vbcast.lane.b32.xlu0 %v2280, %s2309
    %v2311 = vpop.permute.xlu0 %2310
    %s2313 = sor.u32 256, 64
    %2314 = vbcast.lane.b32.xlu0 %v2280, %s2313
    %v2315 = vpop.permute.xlu0 %2314
    %s2317 = sor.u32 256, 72
    %2318 = vbcast.lane.b32.xlu0 %v2280, %s2317
    %v2319 = vpop.permute.xlu0 %2318
    %s2321 = sor.u32 256, 80
    %2322 = vbcast.lane.b32.xlu0 %v2280, %s2321
    %v2323 = vpop.permute.xlu0 %2322
    %s2325 = sor.u32 256, 88
    %2326 = vbcast.lane.b32.xlu0 %v2280, %s2325
    %v2327 = vpop.permute.xlu0 %2326
    %s2329 = sor.u32 256, 96
    %2330 = vbcast.lane.b32.xlu0 %v2280, %s2329
    %v2331 = vpop.permute.xlu0 %2330
    %s2333 = sor.u32 256, 104
    %2334 = vbcast.lane.b32.xlu0 %v2280, %s2333
    %v2335 = vpop.permute.xlu0 %2334
    %s2337 = sor.u32 256, 112
    %2338 = vbcast.lane.b32.xlu0 %v2280, %s2337
    %v2339 = vpop.permute.xlu0 %2338
    %s2341 = sor.u32 256, 120
    %2342 = vbcast.lane.b32.xlu0 %v2280, %s2341
    %v2343 = vpop.permute.xlu0 %2342
    %v2344 = vlaneseq
    %v2345 = vshrl.u32 %v2344, 7
    %v2346 = vsub.s32 0, %v2345
    %v2347 = vrot.slane %v1750, %v2346
    %2349 = vbcast.lane.b32.xlu0 %v2347, 256
    %v2350 = vpop.permute.xlu0 %2349
    %s2352 = sor.u32 256, 8
    %2353 = vbcast.lane.b32.xlu0 %v2347, %s2352
    %v2354 = vpop.permute.xlu0 %2353
    %s2356 = sor.u32 256, 16
    %2357 = vbcast.lane.b32.xlu0 %v2347, %s2356
    %v2358 = vpop.permute.xlu0 %2357
    %s2360 = sor.u32 256, 24
    %2361 = vbcast.lane.b32.xlu0 %v2347, %s2360
    %v2362 = vpop.permute.xlu0 %2361
    %s2364 = sor.u32 256, 32
    %2365 = vbcast.lane.b32.xlu0 %v2347, %s2364
    %v2366 = vpop.permute.xlu0 %2365
    %s2368 = sor.u32 256, 40
    %2369 = vbcast.lane.b32.xlu0 %v2347, %s2368
    %v2370 = vpop.permute.xlu0 %2369
    %s2372 = sor.u32 256, 48
    %2373 = vbcast.lane.b32.xlu0 %v2347, %s2372
    %v2374 = vpop.permute.xlu0 %2373
    %s2376 = sor.u32 256, 56
    %2377 = vbcast.lane.b32.xlu0 %v2347, %s2376
    %v2378 = vpop.permute.xlu0 %2377
    %s2380 = sor.u32 256, 64
    %2381 = vbcast.lane.b32.xlu0 %v2347, %s2380
    %v2382 = vpop.permute.xlu0 %2381
    %s2384 = sor.u32 256, 72
    %2385 = vbcast.lane.b32.xlu0 %v2347, %s2384
    %v2386 = vpop.permute.xlu0 %2385
    %s2388 = sor.u32 256, 80
    %2389 = vbcast.lane.b32.xlu0 %v2347, %s2388
    %v2390 = vpop.permute.xlu0 %2389
    %s2392 = sor.u32 256, 88
    %2393 = vbcast.lane.b32.xlu0 %v2347, %s2392
    %v2394 = vpop.permute.xlu0 %2393
    %s2396 = sor.u32 256, 96
    %2397 = vbcast.lane.b32.xlu0 %v2347, %s2396
    %v2398 = vpop.permute.xlu0 %2397
    %s2400 = sor.u32 256, 104
    %2401 = vbcast.lane.b32.xlu0 %v2347, %s2400
    %v2402 = vpop.permute.xlu0 %2401
    %s2404 = sor.u32 256, 112
    %2405 = vbcast.lane.b32.xlu0 %v2347, %s2404
    %v2406 = vpop.permute.xlu0 %2405
    %s2408 = sor.u32 256, 120
    %2409 = vbcast.lane.b32.xlu0 %v2347, %s2408
    %v2410 = vpop.permute.xlu0 %2409
    %v2411 = vadd.f32 %v2283, %v146
    %v2412 = vadd.f32 %v2287, %v147
    %v2413 = vadd.f32 %v2291, %v148
    %v2414 = vadd.f32 %v2295, %v149
    %v2415 = vadd.f32 %v2299, %v150
    %v2416 = vadd.f32 %v2303, %v151
    %v2417 = vadd.f32 %v2307, %v152
    %v2418 = vadd.f32 %v2311, %v153
    %v2419 = vadd.f32 %v2315, %v154
    %v2420 = vadd.f32 %v2319, %v155
    %v2421 = vadd.f32 %v2323, %v156
    %v2422 = vadd.f32 %v2327, %v157
    %v2423 = vadd.f32 %v2331, %v158
    %v2424 = vadd.f32 %v2335, %v159
    %v2425 = vadd.f32 %v2339, %v160
    %v2426 = vadd.f32 %v2343, %v161
    %v2427 = vadd.f32 %v2350, %v146
    %v2428 = vadd.f32 %v2354, %v147
    %v2429 = vadd.f32 %v2358, %v148
    %v2430 = vadd.f32 %v2362, %v149
    %v2431 = vadd.f32 %v2366, %v150
    %v2432 = vadd.f32 %v2370, %v151
    %v2433 = vadd.f32 %v2374, %v152
    %v2434 = vadd.f32 %v2378, %v153
    %v2435 = vadd.f32 %v2382, %v154
    %v2436 = vadd.f32 %v2386, %v155
    %v2437 = vadd.f32 %v2390, %v156
    %v2438 = vadd.f32 %v2394, %v157
    %v2439 = vadd.f32 %v2398, %v158
    %v2440 = vadd.f32 %v2402, %v159
    %v2441 = vadd.f32 %v2406, %v160
    %v2442 = vadd.f32 %v2410, %v161
    %v2443 = vmax.f32 %v2411, %v2413
    %v2444 = vmax.f32 %v2412, %v2414
    %v2445 = vmax.f32 %v2443, %v2415
    %v2446 = vmax.f32 %v2444, %v2416
    %v2447 = vmax.f32 %v2445, %v2417
    %v2448 = vmax.f32 %v2446, %v2418
    %v2449 = vmax.f32 %v2447, %v2419
    %v2450 = vmax.f32 %v2448, %v2420
    %v2451 = vmax.f32 %v2449, %v2421
    %v2452 = vmax.f32 %v2450, %v2422
    %v2453 = vmax.f32 %v2451, %v2423
    %v2454 = vmax.f32 %v2452, %v2424
    %v2455 = vmax.f32 %v2453, %v2425
    %v2456 = vmax.f32 %v2454, %v2426
    %v2457 = vmax.f32 %v2455, %v2456
    %v2458 = vrot.slane %v2457, 4
    %v2459 = vmax.f32 %v2457, %v2458
    %v2460 = vrot.slane %v2459, 2
    %v2461 = vmax.f32 %v2459, %v2460
    %v2462 = vrot.slane %v2461, 1
    %v2463 = vmax.f32 %v2461, %v2462
    %v2464 = vmax.f32 %v2427, %v2429
    %v2465 = vmax.f32 %v2428, %v2430
    %v2466 = vmax.f32 %v2464, %v2431
    %v2467 = vmax.f32 %v2465, %v2432
    %v2468 = vmax.f32 %v2466, %v2433
    %v2469 = vmax.f32 %v2467, %v2434
    %v2470 = vmax.f32 %v2468, %v2435
    %v2471 = vmax.f32 %v2469, %v2436
    %v2472 = vmax.f32 %v2470, %v2437
    %v2473 = vmax.f32 %v2471, %v2438
    %v2474 = vmax.f32 %v2472, %v2439
    %v2475 = vmax.f32 %v2473, %v2440
    %v2476 = vmax.f32 %v2474, %v2441
    %v2477 = vmax.f32 %v2475, %v2442
    %v2478 = vmax.f32 %v2476, %v2477
    %v2479 = vrot.slane %v2478, 4
    %v2480 = vmax.f32 %v2478, %v2479
    %v2481 = vrot.slane %v2480, 2
    %v2482 = vmax.f32 %v2480, %v2481
    %v2483 = vrot.slane %v2482, 1
    %v2484 = vmax.f32 %v2482, %v2483
    %v2485 = vsub.f32 %v2411, %v2463
    %v2486 = vsub.f32 %v2412, %v2463
    %v2487 = vsub.f32 %v2413, %v2463
    %v2488 = vsub.f32 %v2414, %v2463
    %v2489 = vsub.f32 %v2415, %v2463
    %v2490 = vsub.f32 %v2416, %v2463
    %v2491 = vsub.f32 %v2417, %v2463
    %v2492 = vsub.f32 %v2418, %v2463
    %v2493 = vsub.f32 %v2419, %v2463
    %v2494 = vsub.f32 %v2420, %v2463
    %v2495 = vsub.f32 %v2421, %v2463
    %v2496 = vsub.f32 %v2422, %v2463
    %v2497 = vsub.f32 %v2423, %v2463
    %v2498 = vsub.f32 %v2424, %v2463
    %v2499 = vsub.f32 %v2425, %v2463
    %v2500 = vsub.f32 %v2426, %v2463
    %v2501 = vsub.f32 %v2427, %v2484
    %v2502 = vsub.f32 %v2428, %v2484
    %v2503 = vsub.f32 %v2429, %v2484
    %v2504 = vsub.f32 %v2430, %v2484
    %v2505 = vsub.f32 %v2431, %v2484
    %v2506 = vsub.f32 %v2432, %v2484
    %v2507 = vsub.f32 %v2433, %v2484
    %v2508 = vsub.f32 %v2434, %v2484
    %v2509 = vsub.f32 %v2435, %v2484
    %v2510 = vsub.f32 %v2436, %v2484
    %v2511 = vsub.f32 %v2437, %v2484
    %v2512 = vsub.f32 %v2438, %v2484
    %v2513 = vsub.f32 %v2439, %v2484
    %v2514 = vsub.f32 %v2440, %v2484
    %v2515 = vsub.f32 %v2441, %v2484
    %v2516 = vsub.f32 %v2442, %v2484
    %v2517 = vmul.f32 %v2485, 1.442695
    %v2518 = vpow.pop %v2517
    %v2519 = vmul.f32 %v2486, 1.442695
    %v2520 = vpow.pop %v2519
    %v2521 = vmul.f32 %v2487, 1.442695
    %v2522 = vpow.pop %v2521
    %v2523 = vmul.f32 %v2488, 1.442695
    %v2524 = vpow.pop %v2523
    %v2525 = vmul.f32 %v2489, 1.442695
    %v2526 = vpow.pop %v2525
    %v2527 = vmul.f32 %v2490, 1.442695
    %v2528 = vpow.pop %v2527
    %v2529 = vmul.f32 %v2491, 1.442695
    %v2530 = vpow.pop %v2529
    %v2531 = vmul.f32 %v2492, 1.442695
    %v2532 = vpow.pop %v2531
    %v2533 = vmul.f32 %v2493, 1.442695
    %v2534 = vpow.pop %v2533
    %v2535 = vmul.f32 %v2494, 1.442695
    %v2536 = vpow.pop %v2535
    %v2537 = vmul.f32 %v2495, 1.442695
    %v2538 = vpow.pop %v2537
    %v2539 = vmul.f32 %v2496, 1.442695
    %v2540 = vpow.pop %v2539
    %v2541 = vmul.f32 %v2497, 1.442695
    %v2542 = vpow.pop %v2541
    %v2543 = vmul.f32 %v2498, 1.442695
    %v2544 = vpow.pop %v2543
    %v2545 = vmul.f32 %v2499, 1.442695
    %v2546 = vpow.pop %v2545
    %v2547 = vmul.f32 %v2500, 1.442695
    %v2548 = vpow.pop %v2547
    %v2549 = vmul.f32 %v2501, 1.442695
    %v2550 = vpow.pop %v2549
    %v2551 = vmul.f32 %v2502, 1.442695
    %v2552 = vpow.pop %v2551
    %v2553 = vmul.f32 %v2503, 1.442695
    %v2554 = vpow.pop %v2553
    %v2555 = vmul.f32 %v2504, 1.442695
    %v2556 = vpow.pop %v2555
    %v2557 = vmul.f32 %v2505, 1.442695
    %v2558 = vpow.pop %v2557
    %v2559 = vmul.f32 %v2506, 1.442695
    %v2560 = vpow.pop %v2559
    %v2561 = vmul.f32 %v2507, 1.442695
    %v2562 = vpow.pop %v2561
    %v2563 = vmul.f32 %v2508, 1.442695
    %v2564 = vpow.pop %v2563
    %v2565 = vmul.f32 %v2509, 1.442695
    %v2566 = vpow.pop %v2565
    %v2567 = vmul.f32 %v2510, 1.442695
    %v2568 = vpow.pop %v2567
    %v2569 = vmul.f32 %v2511, 1.442695
    %v2570 = vpow.pop %v2569
    %v2571 = vmul.f32 %v2512, 1.442695
    %v2572 = vpow.pop %v2571
    %v2573 = vmul.f32 %v2513, 1.442695
    %v2574 = vpow.pop %v2573
    %v2575 = vmul.f32 %v2514, 1.442695
    %v2576 = vpow.pop %v2575
    %v2577 = vmul.f32 %v2515, 1.442695
    %v2578 = vpow.pop %v2577
    %v2579 = vmul.f32 %v2516, 1.442695
    %v2580 = vpow.pop %v2579
    %v2581 = vadd.f32 %v2518, %v2520
    %v2582 = vadd.f32 %v2581, %v2522
    %v2583 = vadd.f32 %v2582, %v2524
    %v2584 = vadd.f32 %v2583, %v2526
    %v2585 = vadd.f32 %v2584, %v2528
    %v2586 = vadd.f32 %v2585, %v2530
    %v2587 = vadd.f32 %v2586, %v2532
    %v2588 = vadd.f32 %v2587, %v2534
    %v2589 = vadd.f32 %v2588, %v2536
    %v2590 = vadd.f32 %v2589, %v2538
    %v2591 = vadd.f32 %v2590, %v2540
    %v2592 = vadd.f32 %v2591, %v2542
    %v2593 = vadd.f32 %v2592, %v2544
    %v2594 = vadd.f32 %v2593, %v2546
    %v2595 = vadd.f32 %v2594, %v2548
    %v2596 = vrot.slane %v2595, 4
    %v2597 = vadd.f32 %v2595, %v2596
    %v2598 = vrot.slane %v2597, 2
    %v2599 = vadd.f32 %v2597, %v2598
    %v2600 = vrot.slane %v2599, 1
    %v2601 = vadd.f32 %v2599, %v2600
    %v2602 = vadd.f32 %v2550, %v2552
    %v2603 = vadd.f32 %v2602, %v2554
    %v2604 = vadd.f32 %v2603, %v2556
    %v2605 = vadd.f32 %v2604, %v2558
    %v2606 = vadd.f32 %v2605, %v2560
    %v2607 = vadd.f32 %v2606, %v2562
    %v2608 = vadd.f32 %v2607, %v2564
    %v2609 = vadd.f32 %v2608, %v2566
    %v2610 = vadd.f32 %v2609, %v2568
    %v2611 = vadd.f32 %v2610, %v2570
    %v2612 = vadd.f32 %v2611, %v2572
    %v2613 = vadd.f32 %v2612, %v2574
    %v2614 = vadd.f32 %v2613, %v2576
    %v2615 = vadd.f32 %v2614, %v2578
    %v2616 = vadd.f32 %v2615, %v2580
    %v2617 = vrot.slane %v2616, 4
    %v2618 = vadd.f32 %v2616, %v2617
    %v2619 = vrot.slane %v2618, 2
    %v2620 = vadd.f32 %v2618, %v2619
    %v2621 = vrot.slane %v2620, 1
    %v2622 = vadd.f32 %v2620, %v2621
    %v2623 = vlog2.pop %v2601
    %v2624 = vmul.f32 %v2623, 0.6931472
    %v2625 = vlog2.pop %v2622
    %v2626 = vmul.f32 %v2625, 0.6931472
    %v2627 = vadd.f32 %v2463, %v2624
    %v2628 = vadd.f32 %v2484, %v2626
    %v2629 = vadd.f32 %v2627, %v1918
    %v2630 = vadd.f32 %v2628, %v2272
    %vm2631 = vcmp.eq.s32.totalorder %v165, 3
    %v2632 = vsel %vm2631, %v145, 0
    %v2633 = vsel %vm270, %v2632, 0
    %v2634 = vand.u32 %v2633, 65535
    %v2635 = vshrl.u32 %v2633, 16
    %v2636 = vcvt.s32.f32 %v2634
    %v2637 = vcvt.s32.f32 %v2635
    %2638 = vadd.xlane.f32.xlu0 %v2636
    %v2639 = vpop.xlane.xlu0 %2638
    %2640 = vadd.xlane.f32.xlu0 %v2637
    %v2641 = vpop.xlane.xlu0 %2640
    %v2642 = vcvt.f32.s32 %v2639
    %v2643 = vcvt.f32.s32 %v2641
    %v2644 = vshll.u32 %v2643, 16
    %v2645 = vadd.s32 %v2644, %v2642
    %vm2646 = vcmp.eq.s32.totalorder %v165, %v2645
    %v2647 = vsel %vm2646, 1, 0
    %v2648 = vcvt.s32.f32 %v2647
    %2649 = vmatprep.subr.mxu0 0.0
    %2650 = vmatpush1.msra.mxu0 %v146
    %2651 = vmatprep.subr.mxu0 0.0
    %2652 = vmatpush1.msra.mxu0 %v147
    %2653 = vmatprep.subr.mxu0 0.0
    %2654 = vmatpush1.msra.mxu0 %v148
    %2655 = vmatprep.subr.mxu0 0.0
    %2656 = vmatpush1.msra.mxu0 %v149
    %2657 = vmatprep.subr.mxu0 0.0
    %2658 = vmatpush1.msra.mxu0 %v150
    %2659 = vmatprep.subr.mxu0 0.0
    %2660 = vmatpush1.msra.mxu0 %v151
    %2661 = vmatprep.subr.mxu0 0.0
    %2662 = vmatpush1.msra.mxu0 %v152
    %2663 = vmatprep.subr.mxu0 0.0
    %2664 = vmatpush1.msra.mxu0 %v153
    %2665 = vmatprep.subr.mxu0 0.0
    %2666 = vmatpush1.msra.mxu0 %v154
    %2667 = vmatprep.subr.mxu0 0.0
    %2668 = vmatpush1.msra.mxu0 %v155
    %2669 = vmatprep.subr.mxu0 0.0
    %2670 = vmatpush1.msra.mxu0 %v156
    %2671 = vmatprep.subr.mxu0 0.0
    %2672 = vmatpush1.msra.mxu0 %v157
    %2673 = vmatprep.subr.mxu0 0.0
    %2674 = vmatpush1.msra.mxu0 %v158
    %2675 = vmatprep.subr.mxu0 0.0
    %2676 = vmatpush1.msra.mxu0 %v159
    %2677 = vmatprep.subr.mxu0 0.0
    %2678 = vmatpush1.msra.mxu0 %v160
    %2679 = vmatprep.subr.mxu0 0.0
    %2680 = vmatpush1.msra.mxu0 %v161
    %2681 = vmatprep.subr.mxu0 0.0
    %2682 = vmatpush1.msra.mxu0 0.0
    %2683 = vmatprep.subr.mxu0 0.0
    %2684 = vmatpush1.msra.mxu0 0.0
    %2685 = vmatprep.subr.mxu0 0.0
    %2686 = vmatpush1.msra.mxu0 0.0
    %2687 = vmatprep.subr.mxu0 0.0
    %2688 = vmatpush1.msra.mxu0 0.0
    %2689 = vmatprep.subr.mxu0 0.0
    %2690 = vmatpush1.msra.mxu0 0.0
    %2691 = vmatprep.subr.mxu0 0.0
    %2692 = vmatpush1.msra.mxu0 0.0
    %2693 = vmatprep.subr.mxu0 0.0
    %2694 = vmatpush1.msra.mxu0 0.0
    %2695 = vmatprep.subr.mxu0 0.0
    %2696 = vmatpush1.msra.mxu0 0.0
    %2697 = vmatprep.subr.mxu0 0.0
    %2698 = vmatpush1.msra.mxu0 0.0
    %2699 = vmatprep.subr.mxu0 0.0
    %2700 = vmatpush1.msra.mxu0 0.0
    %2701 = vmatprep.subr.mxu0 0.0
    %2702 = vmatpush1.msra.mxu0 0.0
    %2703 = vmatprep.subr.mxu0 0.0
    %2704 = vmatpush1.msra.mxu0 0.0
    %2705 = vmatprep.subr.mxu0 0.0
    %2706 = vmatpush1.msra.mxu0 0.0
    %2707 = vmatprep.subr.mxu0 0.0
    %2708 = vmatpush1.msra.mxu0 0.0
    %2709 = vmatprep.subr.mxu0 0.0
    %2710 = vmatpush1.msra.mxu0 0.0
    %2711 = vmatprep.subr.mxu0 0.0
    %2712 = vmatpush1.msra.mxu0 0.0
    %2713 = vmatprep.mubr.f32.mxu0 0.0
    %2714 = vmatmul.mubr.f32.gmra.mrb[0].mxu0 %v1768
    %v2715 = vpop.f32.mrb[0].mxu0
    %v2716 = vadd.f32 %v1918, %v2715
    %v2717 = vpop.f32.mrb[0].mxu0
    %2718 = vdwg.mxu0
    %v2719 = vmul.f32 %v2716, %v2648
    %v2720 = vsel %vm288, %v2719, 0.0
    %2721 = vadd.xlane.f32.xlu0 %v2720
    %v2722 = vpop.xlane.xlu0 %2721
    %v2723 = vadd.f32 %v1843, %v2722
    %v2724 = vadd.s32 %v183, 4
    %vm2725 = vcmp.eq.s32.totalorder %v165, %v2724
    %v2726 = vsel %vm2725, 1, 0
    %v2727 = vcvt.s32.f32 %v2726
    %v2729 = vsel %vm187, %v2727, 0
    %2731 = vmatprep.subr.mxu0 0.0
    %2732 = vmatpush1.msra.mxu0 %v139
    %2733 = vmatprep.subr.mxu0 0.0
    %2734 = vmatpush1.msra.mxu0 %v142
    %2735 = vmatprep.subr.mxu0 0.0
    %2736 = vmatpush1.msra.mxu0 0.0
    %2737 = vmatprep.subr.mxu0 0.0
    %2738 = vmatpush1.msra.mxu0 0.0
    %2739 = vmatprep.subr.mxu0 0.0
    %2740 = vmatpush1.msra.mxu0 0.0
    %2741 = vmatprep.subr.mxu0 0.0
    %2742 = vmatpush1.msra.mxu0 0.0
    %2743 = vmatprep.subr.mxu0 0.0
    %2744 = vmatpush1.msra.mxu0 0.0
    %2745 = vmatprep.subr.mxu0 0.0
    %2746 = vmatpush1.msra.mxu0 0.0
    %2747 = vmatprep.subr.mxu0 0.0
    %2748 = vmatpush1.msra.mxu0 0.0
    %2749 = vmatprep.subr.mxu0 0.0
    %2750 = vmatpush1.msra.mxu0 0.0
    %2751 = vmatprep.subr.mxu0 0.0
    %2752 = vmatpush1.msra.mxu0 0.0
    %2753 = vmatprep.subr.mxu0 0.0
    %2754 = vmatpush1.msra.mxu0 0.0
    %2755 = vmatprep.subr.mxu0 0.0
    %2756 = vmatpush1.msra.mxu0 0.0
    %2757 = vmatprep.subr.mxu0 0.0
    %2758 = vmatpush1.msra.mxu0 0.0
    %2759 = vmatprep.subr.mxu0 0.0
    %2760 = vmatpush1.msra.mxu0 0.0
    %2761 = vmatprep.subr.mxu0 0.0
    %2762 = vmatpush1.msra.mxu0 0.0
    %2763 = vmatprep.subr.mxu0 0.0
    %2764 = vmatpush1.msra.mxu0 0.0
    %2765 = vmatprep.subr.mxu0 0.0
    %2766 = vmatpush1.msra.mxu0 0.0
    %2767 = vmatprep.subr.mxu0 0.0
    %2768 = vmatpush1.msra.mxu0 0.0
    %2769 = vmatprep.subr.mxu0 0.0
    %2770 = vmatpush1.msra.mxu0 0.0
    %2771 = vmatprep.subr.mxu0 0.0
    %2772 = vmatpush1.msra.mxu0 0.0
    %2773 = vmatprep.subr.mxu0 0.0
    %2774 = vmatpush1.msra.mxu0 0.0
    %2775 = vmatprep.subr.mxu0 0.0
    %2776 = vmatpush1.msra.mxu0 0.0
    %2777 = vmatprep.subr.mxu0 0.0
    %2778 = vmatpush1.msra.mxu0 0.0
    %2779 = vmatprep.subr.mxu0 0.0
    %2780 = vmatpush1.msra.mxu0 0.0
    %2781 = vmatprep.subr.mxu0 0.0
    %2782 = vmatpush1.msra.mxu0 0.0
    %2783 = vmatprep.subr.mxu0 0.0
    %2784 = vmatpush1.msra.mxu0 0.0
    %2785 = vmatprep.subr.mxu0 0.0
    %2786 = vmatpush1.msra.mxu0 0.0
    %2787 = vmatprep.subr.mxu0 0.0
    %2788 = vmatpush1.msra.mxu0 0.0
    %2789 = vmatprep.subr.mxu0 0.0
    %2790 = vmatpush1.msra.mxu0 0.0
    %2791 = vmatprep.subr.mxu0 0.0
    %2792 = vmatpush1.msra.mxu0 0.0
    %2793 = vmatprep.subr.mxu0 0.0
    %2794 = vmatpush1.msra.mxu0 0.0
    %2795 = vmatprep.mubr.f32.mxu0 0.0
    %2796 = vmatmul.mubr.f32.gmra.mrb[0].mxu0 %v2729
    %v2797 = vpop.f32.mrb[0].mxu0
    %v2798 = vadd.f32 0.0, %v2797
    %v2799 = vpop.f32.mrb[0].mxu0
    %2800 = vdwg.mxu0
    %v2801 = vlaneseq
    %v2802 = vshrl.u32 %v2801, 7
    %v2803 = vsub.s32 0, %v2802
    %v2804 = vrot.slane %v2275, %v2803
    %2806 = vbcast.lane.b32.xlu0 %v2804, 256
    %v2807 = vpop.permute.xlu0 %2806
    %s2809 = sor.u32 256, 8
    %2810 = vbcast.lane.b32.xlu0 %v2804, %s2809
    %v2811 = vpop.permute.xlu0 %2810
    %s2813 = sor.u32 256, 16
    %2814 = vbcast.lane.b32.xlu0 %v2804, %s2813
    %v2815 = vpop.permute.xlu0 %2814
    %s2817 = sor.u32 256, 24
    %2818 = vbcast.lane.b32.xlu0 %v2804, %s2817
    %v2819 = vpop.permute.xlu0 %2818
    %s2821 = sor.u32 256, 32
    %2822 = vbcast.lane.b32.xlu0 %v2804, %s2821
    %v2823 = vpop.permute.xlu0 %2822
    %s2825 = sor.u32 256, 40
    %2826 = vbcast.lane.b32.xlu0 %v2804, %s2825
    %v2827 = vpop.permute.xlu0 %2826
    %s2829 = sor.u32 256, 48
    %2830 = vbcast.lane.b32.xlu0 %v2804, %s2829
    %v2831 = vpop.permute.xlu0 %2830
    %s2833 = sor.u32 256, 56
    %2834 = vbcast.lane.b32.xlu0 %v2804, %s2833
    %v2835 = vpop.permute.xlu0 %2834
    %s2837 = sor.u32 256, 64
    %2838 = vbcast.lane.b32.xlu0 %v2804, %s2837
    %v2839 = vpop.permute.xlu0 %2838
    %s2841 = sor.u32 256, 72
    %2842 = vbcast.lane.b32.xlu0 %v2804, %s2841
    %v2843 = vpop.permute.xlu0 %2842
    %s2845 = sor.u32 256, 80
    %2846 = vbcast.lane.b32.xlu0 %v2804, %s2845
    %v2847 = vpop.permute.xlu0 %2846
    %s2849 = sor.u32 256, 88
    %2850 = vbcast.lane.b32.xlu0 %v2804, %s2849
    %v2851 = vpop.permute.xlu0 %2850
    %s2853 = sor.u32 256, 96
    %2854 = vbcast.lane.b32.xlu0 %v2804, %s2853
    %v2855 = vpop.permute.xlu0 %2854
    %s2857 = sor.u32 256, 104
    %2858 = vbcast.lane.b32.xlu0 %v2804, %s2857
    %v2859 = vpop.permute.xlu0 %2858
    %s2861 = sor.u32 256, 112
    %2862 = vbcast.lane.b32.xlu0 %v2804, %s2861
    %v2863 = vpop.permute.xlu0 %2862
    %s2865 = sor.u32 256, 120
    %2866 = vbcast.lane.b32.xlu0 %v2804, %s2865
    %v2867 = vpop.permute.xlu0 %2866
    %v2868 = vlaneseq
    %v2869 = vshrl.u32 %v2868, 7
    %v2870 = vsub.s32 0, %v2869
    %v2871 = vrot.slane %v2276, %v2870
    %2873 = vbcast.lane.b32.xlu0 %v2871, 256
    %v2874 = vpop.permute.xlu0 %2873
    %s2876 = sor.u32 256, 8
    %2877 = vbcast.lane.b32.xlu0 %v2871, %s2876
    %v2878 = vpop.permute.xlu0 %2877
    %s2880 = sor.u32 256, 16
    %2881 = vbcast.lane.b32.xlu0 %v2871, %s2880
    %v2882 = vpop.permute.xlu0 %2881
    %s2884 = sor.u32 256, 24
    %2885 = vbcast.lane.b32.xlu0 %v2871, %s2884
    %v2886 = vpop.permute.xlu0 %2885
    %s2888 = sor.u32 256, 32
    %2889 = vbcast.lane.b32.xlu0 %v2871, %s2888
    %v2890 = vpop.permute.xlu0 %2889
    %s2892 = sor.u32 256, 40
    %2893 = vbcast.lane.b32.xlu0 %v2871, %s2892
    %v2894 = vpop.permute.xlu0 %2893
    %s2896 = sor.u32 256, 48
    %2897 = vbcast.lane.b32.xlu0 %v2871, %s2896
    %v2898 = vpop.permute.xlu0 %2897
    %s2900 = sor.u32 256, 56
    %2901 = vbcast.lane.b32.xlu0 %v2871, %s2900
    %v2902 = vpop.permute.xlu0 %2901
    %s2904 = sor.u32 256, 64
    %2905 = vbcast.lane.b32.xlu0 %v2871, %s2904
    %v2906 = vpop.permute.xlu0 %2905
    %s2908 = sor.u32 256, 72
    %2909 = vbcast.lane.b32.xlu0 %v2871, %s2908
    %v2910 = vpop.permute.xlu0 %2909
    %s2912 = sor.u32 256, 80
    %2913 = vbcast.lane.b32.xlu0 %v2871, %s2912
    %v2914 = vpop.permute.xlu0 %2913
    %s2916 = sor.u32 256, 88
    %2917 = vbcast.lane.b32.xlu0 %v2871, %s2916
    %v2918 = vpop.permute.xlu0 %2917
    %s2920 = sor.u32 256, 96
    %2921 = vbcast.lane.b32.xlu0 %v2871, %s2920
    %v2922 = vpop.permute.xlu0 %2921
    %s2924 = sor.u32 256, 104
    %2925 = vbcast.lane.b32.xlu0 %v2871, %s2924
    %v2926 = vpop.permute.xlu0 %2925
    %s2928 = sor.u32 256, 112
    %2929 = vbcast.lane.b32.xlu0 %v2871, %s2928
    %v2930 = vpop.permute.xlu0 %2929
    %s2932 = sor.u32 256, 120
    %2933 = vbcast.lane.b32.xlu0 %v2871, %s2932
    %v2934 = vpop.permute.xlu0 %2933
    %v2935 = vadd.f32 %v2807, %v146
    %v2936 = vadd.f32 %v2811, %v147
    %v2937 = vadd.f32 %v2815, %v148
    %v2938 = vadd.f32 %v2819, %v149
    %v2939 = vadd.f32 %v2823, %v150
    %v2940 = vadd.f32 %v2827, %v151
    %v2941 = vadd.f32 %v2831, %v152
    %v2942 = vadd.f32 %v2835, %v153
    %v2943 = vadd.f32 %v2839, %v154
    %v2944 = vadd.f32 %v2843, %v155
    %v2945 = vadd.f32 %v2847, %v156
    %v2946 = vadd.f32 %v2851, %v157
    %v2947 = vadd.f32 %v2855, %v158
    %v2948 = vadd.f32 %v2859, %v159
    %v2949 = vadd.f32 %v2863, %v160
    %v2950 = vadd.f32 %v2867, %v161
    %v2951 = vadd.f32 %v2874, %v146
    %v2952 = vadd.f32 %v2878, %v147
    %v2953 = vadd.f32 %v2882, %v148
    %v2954 = vadd.f32 %v2886, %v149
    %v2955 = vadd.f32 %v2890, %v150
    %v2956 = vadd.f32 %v2894, %v151
    %v2957 = vadd.f32 %v2898, %v152
    %v2958 = vadd.f32 %v2902, %v153
    %v2959 = vadd.f32 %v2906, %v154
    %v2960 = vadd.f32 %v2910, %v155
    %v2961 = vadd.f32 %v2914, %v156
    %v2962 = vadd.f32 %v2918, %v157
    %v2963 = vadd.f32 %v2922, %v158
    %v2964 = vadd.f32 %v2926, %v159
    %v2965 = vadd.f32 %v2930, %v160
    %v2966 = vadd.f32 %v2934, %v161
    %v2967 = vmax.f32 %v2935, %v2937
    %v2968 = vmax.f32 %v2936, %v2938
    %v2969 = vmax.f32 %v2967, %v2939
    %v2970 = vmax.f32 %v2968, %v2940
    %v2971 = vmax.f32 %v2969, %v2941
    %v2972 = vmax.f32 %v2970, %v2942
    %v2973 = vmax.f32 %v2971, %v2943
    %v2974 = vmax.f32 %v2972, %v2944
    %v2975 = vmax.f32 %v2973, %v2945
    %v2976 = vmax.f32 %v2974, %v2946
    %v2977 = vmax.f32 %v2975, %v2947
    %v2978 = vmax.f32 %v2976, %v2948
    %v2979 = vmax.f32 %v2977, %v2949
    %v2980 = vmax.f32 %v2978, %v2950
    %v2981 = vmax.f32 %v2979, %v2980
    %v2982 = vrot.slane %v2981, 4
    %v2983 = vmax.f32 %v2981, %v2982
    %v2984 = vrot.slane %v2983, 2
    %v2985 = vmax.f32 %v2983, %v2984
    %v2986 = vrot.slane %v2985, 1
    %v2987 = vmax.f32 %v2985, %v2986
    %v2988 = vmax.f32 %v2951, %v2953
    %v2989 = vmax.f32 %v2952, %v2954
    %v2990 = vmax.f32 %v2988, %v2955
    %v2991 = vmax.f32 %v2989, %v2956
    %v2992 = vmax.f32 %v2990, %v2957
    %v2993 = vmax.f32 %v2991, %v2958
    %v2994 = vmax.f32 %v2992, %v2959
    %v2995 = vmax.f32 %v2993, %v2960
    %v2996 = vmax.f32 %v2994, %v2961
    %v2997 = vmax.f32 %v2995, %v2962
    %v2998 = vmax.f32 %v2996, %v2963
    %v2999 = vmax.f32 %v2997, %v2964
    %v3000 = vmax.f32 %v2998, %v2965
    %v3001 = vmax.f32 %v2999, %v2966
    %v3002 = vmax.f32 %v3000, %v3001
    %v3003 = vrot.slane %v3002, 4
    %v3004 = vmax.f32 %v3002, %v3003
    %v3005 = vrot.slane %v3004, 2
    %v3006 = vmax.f32 %v3004, %v3005
    %v3007 = vrot.slane %v3006, 1
    %v3008 = vmax.f32 %v3006, %v3007
    %vm3009 = vcmp.ge.f32.partialorder %v2935, %v2987
    %vm3010 = vcmp.ge.f32.partialorder %v2936, %v2987
    %vm3011 = vcmp.ge.f32.partialorder %v2937, %v2987
    %vm3012 = vcmp.ge.f32.partialorder %v2938, %v2987
    %vm3013 = vcmp.ge.f32.partialorder %v2939, %v2987
    %vm3014 = vcmp.ge.f32.partialorder %v2940, %v2987
    %vm3015 = vcmp.ge.f32.partialorder %v2941, %v2987
    %vm3016 = vcmp.ge.f32.partialorder %v2942, %v2987
    %vm3017 = vcmp.ge.f32.partialorder %v2943, %v2987
    %vm3018 = vcmp.ge.f32.partialorder %v2944, %v2987
    %vm3019 = vcmp.ge.f32.partialorder %v2945, %v2987
    %vm3020 = vcmp.ge.f32.partialorder %v2946, %v2987
    %vm3021 = vcmp.ge.f32.partialorder %v2947, %v2987
    %vm3022 = vcmp.ge.f32.partialorder %v2948, %v2987
    %vm3023 = vcmp.ge.f32.partialorder %v2949, %v2987
    %vm3024 = vcmp.ge.f32.partialorder %v2950, %v2987
    %vm3025 = vcmp.ge.f32.partialorder %v2951, %v3008
    %vm3026 = vcmp.ge.f32.partialorder %v2952, %v3008
    %vm3027 = vcmp.ge.f32.partialorder %v2953, %v3008
    %vm3028 = vcmp.ge.f32.partialorder %v2954, %v3008
    %vm3029 = vcmp.ge.f32.partialorder %v2955, %v3008
    %vm3030 = vcmp.ge.f32.partialorder %v2956, %v3008
    %vm3031 = vcmp.ge.f32.partialorder %v2957, %v3008
    %vm3032 = vcmp.ge.f32.partialorder %v2958, %v3008
    %vm3033 = vcmp.ge.f32.partialorder %v2959, %v3008
    %vm3034 = vcmp.ge.f32.partialorder %v2960, %v3008
    %vm3035 = vcmp.ge.f32.partialorder %v2961, %v3008
    %vm3036 = vcmp.ge.f32.partialorder %v2962, %v3008
    %vm3037 = vcmp.ge.f32.partialorder %v2963, %v3008
    %vm3038 = vcmp.ge.f32.partialorder %v2964, %v3008
    %vm3039 = vcmp.ge.f32.partialorder %v2965, %v3008
    %vm3040 = vcmp.ge.f32.partialorder %v2966, %v3008
    %v3041 = vsel %vm3009, %v167, 128
    %v3042 = vsel %vm3010, %v168, 128
    %v3043 = vsel %vm3011, %v169, 128
    %v3044 = vsel %vm3012, %v170, 128
    %v3045 = vsel %vm3013, %v171, 128
    %v3046 = vsel %vm3014, %v172, 128
    %v3047 = vsel %vm3015, %v173, 128
    %v3048 = vsel %vm3016, %v174, 128
    %v3049 = vsel %vm3017, %v175, 128
    %v3050 = vsel %vm3018, %v176, 128
    %v3051 = vsel %vm3019, %v177, 128
    %v3052 = vsel %vm3020, %v178, 128
    %v3053 = vsel %vm3021, %v179, 128
    %v3054 = vsel %vm3022, %v180, 128
    %v3055 = vsel %vm3023, %v181, 128
    %v3056 = vsel %vm3024, %v182, 128
    %v3057 = vsel %vm3025, %v167, 128
    %v3058 = vsel %vm3026, %v168, 128
    %v3059 = vsel %vm3027, %v169, 128
    %v3060 = vsel %vm3028, %v170, 128
    %v3061 = vsel %vm3029, %v171, 128
    %v3062 = vsel %vm3030, %v172, 128
    %v3063 = vsel %vm3031, %v173, 128
    %v3064 = vsel %vm3032, %v174, 128
    %v3065 = vsel %vm3033, %v175, 128
    %v3066 = vsel %vm3034, %v176, 128
    %v3067 = vsel %vm3035, %v177, 128
    %v3068 = vsel %vm3036, %v178, 128
    %v3069 = vsel %vm3037, %v179, 128
    %v3070 = vsel %vm3038, %v180, 128
    %v3071 = vsel %vm3039, %v181, 128
    %v3072 = vsel %vm3040, %v182, 128
    %vm3073 = vcmp.lt.s32.totalorder %v3041, %v3043
    %v3074 = vsel %vm3073, %v3041, %v3043
    %vm3075 = vcmp.lt.s32.totalorder %v3042, %v3044
    %v3076 = vsel %vm3075, %v3042, %v3044
    %vm3077 = vcmp.lt.s32.totalorder %v3074, %v3045
    %v3078 = vsel %vm3077, %v3074, %v3045
    %vm3079 = vcmp.lt.s32.totalorder %v3076, %v3046
    %v3080 = vsel %vm3079, %v3076, %v3046
    %vm3081 = vcmp.lt.s32.totalorder %v3078, %v3047
    %v3082 = vsel %vm3081, %v3078, %v3047
    %vm3083 = vcmp.lt.s32.totalorder %v3080, %v3048
    %v3084 = vsel %vm3083, %v3080, %v3048
    %vm3085 = vcmp.lt.s32.totalorder %v3082, %v3049
    %v3086 = vsel %vm3085, %v3082, %v3049
    %vm3087 = vcmp.lt.s32.totalorder %v3084, %v3050
    %v3088 = vsel %vm3087, %v3084, %v3050
    %vm3089 = vcmp.lt.s32.totalorder %v3086, %v3051
    %v3090 = vsel %vm3089, %v3086, %v3051
    %vm3091 = vcmp.lt.s32.totalorder %v3088, %v3052
    %v3092 = vsel %vm3091, %v3088, %v3052
    %vm3093 = vcmp.lt.s32.totalorder %v3090, %v3053
    %v3094 = vsel %vm3093, %v3090, %v3053
    %vm3095 = vcmp.lt.s32.totalorder %v3092, %v3054
    %v3096 = vsel %vm3095, %v3092, %v3054
    %vm3097 = vcmp.lt.s32.totalorder %v3094, %v3055
    %v3098 = vsel %vm3097, %v3094, %v3055
    %vm3099 = vcmp.lt.s32.totalorder %v3096, %v3056
    %v3100 = vsel %vm3099, %v3096, %v3056
    %vm3101 = vcmp.lt.s32.totalorder %v3098, %v3100
    %v3102 = vsel %vm3101, %v3098, %v3100
    %v3103 = vrot.slane %v3102, 4
    %vm3104 = vcmp.lt.s32.totalorder %v3102, %v3103
    %v3105 = vsel %vm3104, %v3102, %v3103
    %v3106 = vrot.slane %v3105, 2
    %vm3107 = vcmp.lt.s32.totalorder %v3105, %v3106
    %v3108 = vsel %vm3107, %v3105, %v3106
    %v3109 = vrot.slane %v3108, 1
    %vm3110 = vcmp.lt.s32.totalorder %v3108, %v3109
    %v3111 = vsel %vm3110, %v3108, %v3109
    %vm3112 = vcmp.lt.s32.totalorder %v3057, %v3059
    %v3113 = vsel %vm3112, %v3057, %v3059
    %vm3114 = vcmp.lt.s32.totalorder %v3058, %v3060
    %v3115 = vsel %vm3114, %v3058, %v3060
    %vm3116 = vcmp.lt.s32.totalorder %v3113, %v3061
    %v3117 = vsel %vm3116, %v3113, %v3061
    %vm3118 = vcmp.lt.s32.totalorder %v3115, %v3062
    %v3119 = vsel %vm3118, %v3115, %v3062
    %vm3120 = vcmp.lt.s32.totalorder %v3117, %v3063
    %v3121 = vsel %vm3120, %v3117, %v3063
    %vm3122 = vcmp.lt.s32.totalorder %v3119, %v3064
    %v3123 = vsel %vm3122, %v3119, %v3064
    %vm3124 = vcmp.lt.s32.totalorder %v3121, %v3065
    %v3125 = vsel %vm3124, %v3121, %v3065
    %vm3126 = vcmp.lt.s32.totalorder %v3123, %v3066
    %v3127 = vsel %vm3126, %v3123, %v3066
    %vm3128 = vcmp.lt.s32.totalorder %v3125, %v3067
    %v3129 = vsel %vm3128, %v3125, %v3067
    %vm3130 = vcmp.lt.s32.totalorder %v3127, %v3068
    %v3131 = vsel %vm3130, %v3127, %v3068
    %vm3132 = vcmp.lt.s32.totalorder %v3129, %v3069
    %v3133 = vsel %vm3132, %v3129, %v3069
    %vm3134 = vcmp.lt.s32.totalorder %v3131, %v3070
    %v3135 = vsel %vm3134, %v3131, %v3070
    %vm3136 = vcmp.lt.s32.totalorder %v3133, %v3071
    %v3137 = vsel %vm3136, %v3133, %v3071
    %vm3138 = vcmp.lt.s32.totalorder %v3135, %v3072
    %v3139 = vsel %vm3138, %v3135, %v3072
    %vm3140 = vcmp.lt.s32.totalorder %v3137, %v3139
    %v3141 = vsel %vm3140, %v3137, %v3139
    %v3142 = vrot.slane %v3141, 4
    %vm3143 = vcmp.lt.s32.totalorder %v3141, %v3142
    %v3144 = vsel %vm3143, %v3141, %v3142
    %v3145 = vrot.slane %v3144, 2
    %vm3146 = vcmp.lt.s32.totalorder %v3144, %v3145
    %v3147 = vsel %vm3146, %v3144, %v3145
    %v3148 = vrot.slane %v3147, 1
    %vm3149 = vcmp.lt.s32.totalorder %v3147, %v3148
    %v3150 = vsel %vm3149, %v3147, %v3148
    %v3152 = vrot.slane %v2798, 1
    %v3155 = vadd.f32 %v2987, %v2798
    %v3156 = vadd.f32 %v3008, %v3152
    %v3157 = vlaneseq
    %v3158 = vshrl.u32 %v3157, 7
    %v3159 = vsub.s32 0, %v3158
    %v3160 = vrot.slane %v2629, %v3159
    %3162 = vbcast.lane.b32.xlu0 %v3160, 256
    %v3163 = vpop.permute.xlu0 %3162
    %s3165 = sor.u32 256, 8
    %3166 = vbcast.lane.b32.xlu0 %v3160, %s3165
    %v3167 = vpop.permute.xlu0 %3166
    %s3169 = sor.u32 256, 16
    %3170 = vbcast.lane.b32.xlu0 %v3160, %s3169
    %v3171 = vpop.permute.xlu0 %3170
    %s3173 = sor.u32 256, 24
    %3174 = vbcast.lane.b32.xlu0 %v3160, %s3173
    %v3175 = vpop.permute.xlu0 %3174
    %s3177 = sor.u32 256, 32
    %3178 = vbcast.lane.b32.xlu0 %v3160, %s3177
    %v3179 = vpop.permute.xlu0 %3178
    %s3181 = sor.u32 256, 40
    %3182 = vbcast.lane.b32.xlu0 %v3160, %s3181
    %v3183 = vpop.permute.xlu0 %3182
    %s3185 = sor.u32 256, 48
    %3186 = vbcast.lane.b32.xlu0 %v3160, %s3185
    %v3187 = vpop.permute.xlu0 %3186
    %s3189 = sor.u32 256, 56
    %3190 = vbcast.lane.b32.xlu0 %v3160, %s3189
    %v3191 = vpop.permute.xlu0 %3190
    %s3193 = sor.u32 256, 64
    %3194 = vbcast.lane.b32.xlu0 %v3160, %s3193
    %v3195 = vpop.permute.xlu0 %3194
    %s3197 = sor.u32 256, 72
    %3198 = vbcast.lane.b32.xlu0 %v3160, %s3197
    %v3199 = vpop.permute.xlu0 %3198
    %s3201 = sor.u32 256, 80
    %3202 = vbcast.lane.b32.xlu0 %v3160, %s3201
    %v3203 = vpop.permute.xlu0 %3202
    %s3205 = sor.u32 256, 88
    %3206 = vbcast.lane.b32.xlu0 %v3160, %s3205
    %v3207 = vpop.permute.xlu0 %3206
    %s3209 = sor.u32 256, 96
    %3210 = vbcast.lane.b32.xlu0 %v3160, %s3209
    %v3211 = vpop.permute.xlu0 %3210
    %s3213 = sor.u32 256, 104
    %3214 = vbcast.lane.b32.xlu0 %v3160, %s3213
    %v3215 = vpop.permute.xlu0 %3214
    %s3217 = sor.u32 256, 112
    %3218 = vbcast.lane.b32.xlu0 %v3160, %s3217
    %v3219 = vpop.permute.xlu0 %3218
    %s3221 = sor.u32 256, 120
    %3222 = vbcast.lane.b32.xlu0 %v3160, %s3221
    %v3223 = vpop.permute.xlu0 %3222
    %v3224 = vlaneseq
    %v3225 = vshrl.u32 %v3224, 7
    %v3226 = vsub.s32 0, %v3225
    %v3227 = vrot.slane %v2630, %v3226
    %3229 = vbcast.lane.b32.xlu0 %v3227, 256
    %v3230 = vpop.permute.xlu0 %3229
    %s3232 = sor.u32 256, 8
    %3233 = vbcast.lane.b32.xlu0 %v3227, %s3232
    %v3234 = vpop.permute.xlu0 %3233
    %s3236 = sor.u32 256, 16
    %3237 = vbcast.lane.b32.xlu0 %v3227, %s3236
    %v3238 = vpop.permute.xlu0 %3237
    %s3240 = sor.u32 256, 24
    %3241 = vbcast.lane.b32.xlu0 %v3227, %s3240
    %v3242 = vpop.permute.xlu0 %3241
    %s3244 = sor.u32 256, 32
    %3245 = vbcast.lane.b32.xlu0 %v3227, %s3244
    %v3246 = vpop.permute.xlu0 %3245
    %s3248 = sor.u32 256, 40
    %3249 = vbcast.lane.b32.xlu0 %v3227, %s3248
    %v3250 = vpop.permute.xlu0 %3249
    %s3252 = sor.u32 256, 48
    %3253 = vbcast.lane.b32.xlu0 %v3227, %s3252
    %v3254 = vpop.permute.xlu0 %3253
    %s3256 = sor.u32 256, 56
    %3257 = vbcast.lane.b32.xlu0 %v3227, %s3256
    %v3258 = vpop.permute.xlu0 %3257
    %s3260 = sor.u32 256, 64
    %3261 = vbcast.lane.b32.xlu0 %v3227, %s3260
    %v3262 = vpop.permute.xlu0 %3261
    %s3264 = sor.u32 256, 72
    %3265 = vbcast.lane.b32.xlu0 %v3227, %s3264
    %v3266 = vpop.permute.xlu0 %3265
    %s3268 = sor.u32 256, 80
    %3269 = vbcast.lane.b32.xlu0 %v3227, %s3268
    %v3270 = vpop.permute.xlu0 %3269
    %s3272 = sor.u32 256, 88
    %3273 = vbcast.lane.b32.xlu0 %v3227, %s3272
    %v3274 = vpop.permute.xlu0 %3273
    %s3276 = sor.u32 256, 96
    %3277 = vbcast.lane.b32.xlu0 %v3227, %s3276
    %v3278 = vpop.permute.xlu0 %3277
    %s3280 = sor.u32 256, 104
    %3281 = vbcast.lane.b32.xlu0 %v3227, %s3280
    %v3282 = vpop.permute.xlu0 %3281
    %s3284 = sor.u32 256, 112
    %3285 = vbcast.lane.b32.xlu0 %v3227, %s3284
    %v3286 = vpop.permute.xlu0 %3285
    %s3288 = sor.u32 256, 120
    %3289 = vbcast.lane.b32.xlu0 %v3227, %s3288
    %v3290 = vpop.permute.xlu0 %3289
    %v3291 = vadd.f32 %v3163, %v146
    %v3292 = vadd.f32 %v3167, %v147
    %v3293 = vadd.f32 %v3171, %v148
    %v3294 = vadd.f32 %v3175, %v149
    %v3295 = vadd.f32 %v3179, %v150
    %v3296 = vadd.f32 %v3183, %v151
    %v3297 = vadd.f32 %v3187, %v152
    %v3298 = vadd.f32 %v3191, %v153
    %v3299 = vadd.f32 %v3195, %v154
    %v3300 = vadd.f32 %v3199, %v155
    %v3301 = vadd.f32 %v3203, %v156
    %v3302 = vadd.f32 %v3207, %v157
    %v3303 = vadd.f32 %v3211, %v158
    %v3304 = vadd.f32 %v3215, %v159
    %v3305 = vadd.f32 %v3219, %v160
    %v3306 = vadd.f32 %v3223, %v161
    %v3307 = vadd.f32 %v3230, %v146
    %v3308 = vadd.f32 %v3234, %v147
    %v3309 = vadd.f32 %v3238, %v148
    %v3310 = vadd.f32 %v3242, %v149
    %v3311 = vadd.f32 %v3246, %v150
    %v3312 = vadd.f32 %v3250, %v151
    %v3313 = vadd.f32 %v3254, %v152
    %v3314 = vadd.f32 %v3258, %v153
    %v3315 = vadd.f32 %v3262, %v154
    %v3316 = vadd.f32 %v3266, %v155
    %v3317 = vadd.f32 %v3270, %v156
    %v3318 = vadd.f32 %v3274, %v157
    %v3319 = vadd.f32 %v3278, %v158
    %v3320 = vadd.f32 %v3282, %v159
    %v3321 = vadd.f32 %v3286, %v160
    %v3322 = vadd.f32 %v3290, %v161
    %v3323 = vmax.f32 %v3291, %v3293
    %v3324 = vmax.f32 %v3292, %v3294
    %v3325 = vmax.f32 %v3323, %v3295
    %v3326 = vmax.f32 %v3324, %v3296
    %v3327 = vmax.f32 %v3325, %v3297
    %v3328 = vmax.f32 %v3326, %v3298
    %v3329 = vmax.f32 %v3327, %v3299
    %v3330 = vmax.f32 %v3328, %v3300
    %v3331 = vmax.f32 %v3329, %v3301
    %v3332 = vmax.f32 %v3330, %v3302
    %v3333 = vmax.f32 %v3331, %v3303
    %v3334 = vmax.f32 %v3332, %v3304
    %v3335 = vmax.f32 %v3333, %v3305
    %v3336 = vmax.f32 %v3334, %v3306
    %v3337 = vmax.f32 %v3335, %v3336
    %v3338 = vrot.slane %v3337, 4
    %v3339 = vmax.f32 %v3337, %v3338
    %v3340 = vrot.slane %v3339, 2
    %v3341 = vmax.f32 %v3339, %v3340
    %v3342 = vrot.slane %v3341, 1
    %v3343 = vmax.f32 %v3341, %v3342
    %v3344 = vmax.f32 %v3307, %v3309
    %v3345 = vmax.f32 %v3308, %v3310
    %v3346 = vmax.f32 %v3344, %v3311
    %v3347 = vmax.f32 %v3345, %v3312
    %v3348 = vmax.f32 %v3346, %v3313
    %v3349 = vmax.f32 %v3347, %v3314
    %v3350 = vmax.f32 %v3348, %v3315
    %v3351 = vmax.f32 %v3349, %v3316
    %v3352 = vmax.f32 %v3350, %v3317
    %v3353 = vmax.f32 %v3351, %v3318
    %v3354 = vmax.f32 %v3352, %v3319
    %v3355 = vmax.f32 %v3353, %v3320
    %v3356 = vmax.f32 %v3354, %v3321
    %v3357 = vmax.f32 %v3355, %v3322
    %v3358 = vmax.f32 %v3356, %v3357
    %v3359 = vrot.slane %v3358, 4
    %v3360 = vmax.f32 %v3358, %v3359
    %v3361 = vrot.slane %v3360, 2
    %v3362 = vmax.f32 %v3360, %v3361
    %v3363 = vrot.slane %v3362, 1
    %v3364 = vmax.f32 %v3362, %v3363
    %v3365 = vsub.f32 %v3291, %v3343
    %v3366 = vsub.f32 %v3292, %v3343
    %v3367 = vsub.f32 %v3293, %v3343
    %v3368 = vsub.f32 %v3294, %v3343
    %v3369 = vsub.f32 %v3295, %v3343
    %v3370 = vsub.f32 %v3296, %v3343
    %v3371 = vsub.f32 %v3297, %v3343
    %v3372 = vsub.f32 %v3298, %v3343
    %v3373 = vsub.f32 %v3299, %v3343
    %v3374 = vsub.f32 %v3300, %v3343
    %v3375 = vsub.f32 %v3301, %v3343
    %v3376 = vsub.f32 %v3302, %v3343
    %v3377 = vsub.f32 %v3303, %v3343
    %v3378 = vsub.f32 %v3304, %v3343
    %v3379 = vsub.f32 %v3305, %v3343
    %v3380 = vsub.f32 %v3306, %v3343
    %v3381 = vsub.f32 %v3307, %v3364
    %v3382 = vsub.f32 %v3308, %v3364
    %v3383 = vsub.f32 %v3309, %v3364
    %v3384 = vsub.f32 %v3310, %v3364
    %v3385 = vsub.f32 %v3311, %v3364
    %v3386 = vsub.f32 %v3312, %v3364
    %v3387 = vsub.f32 %v3313, %v3364
    %v3388 = vsub.f32 %v3314, %v3364
    %v3389 = vsub.f32 %v3315, %v3364
    %v3390 = vsub.f32 %v3316, %v3364
    %v3391 = vsub.f32 %v3317, %v3364
    %v3392 = vsub.f32 %v3318, %v3364
    %v3393 = vsub.f32 %v3319, %v3364
    %v3394 = vsub.f32 %v3320, %v3364
    %v3395 = vsub.f32 %v3321, %v3364
    %v3396 = vsub.f32 %v3322, %v3364
    %v3397 = vmul.f32 %v3365, 1.442695
    %v3398 = vpow.pop %v3397
    %v3399 = vmul.f32 %v3366, 1.442695
    %v3400 = vpow.pop %v3399
    %v3401 = vmul.f32 %v3367, 1.442695
    %v3402 = vpow.pop %v3401
    %v3403 = vmul.f32 %v3368, 1.442695
    %v3404 = vpow.pop %v3403
    %v3405 = vmul.f32 %v3369, 1.442695
    %v3406 = vpow.pop %v3405
    %v3407 = vmul.f32 %v3370, 1.442695
    %v3408 = vpow.pop %v3407
    %v3409 = vmul.f32 %v3371, 1.442695
    %v3410 = vpow.pop %v3409
    %v3411 = vmul.f32 %v3372, 1.442695
    %v3412 = vpow.pop %v3411
    %v3413 = vmul.f32 %v3373, 1.442695
    %v3414 = vpow.pop %v3413
    %v3415 = vmul.f32 %v3374, 1.442695
    %v3416 = vpow.pop %v3415
    %v3417 = vmul.f32 %v3375, 1.442695
    %v3418 = vpow.pop %v3417
    %v3419 = vmul.f32 %v3376, 1.442695
    %v3420 = vpow.pop %v3419
    %v3421 = vmul.f32 %v3377, 1.442695
    %v3422 = vpow.pop %v3421
    %v3423 = vmul.f32 %v3378, 1.442695
    %v3424 = vpow.pop %v3423
    %v3425 = vmul.f32 %v3379, 1.442695
    %v3426 = vpow.pop %v3425
    %v3427 = vmul.f32 %v3380, 1.442695
    %v3428 = vpow.pop %v3427
    %v3429 = vmul.f32 %v3381, 1.442695
    %v3430 = vpow.pop %v3429
    %v3431 = vmul.f32 %v3382, 1.442695
    %v3432 = vpow.pop %v3431
    %v3433 = vmul.f32 %v3383, 1.442695
    %v3434 = vpow.pop %v3433
    %v3435 = vmul.f32 %v3384, 1.442695
    %v3436 = vpow.pop %v3435
    %v3437 = vmul.f32 %v3385, 1.442695
    %v3438 = vpow.pop %v3437
    %v3439 = vmul.f32 %v3386, 1.442695
    %v3440 = vpow.pop %v3439
    %v3441 = vmul.f32 %v3387, 1.442695
    %v3442 = vpow.pop %v3441
    %v3443 = vmul.f32 %v3388, 1.442695
    %v3444 = vpow.pop %v3443
    %v3445 = vmul.f32 %v3389, 1.442695
    %v3446 = vpow.pop %v3445
    %v3447 = vmul.f32 %v3390, 1.442695
    %v3448 = vpow.pop %v3447
    %v3449 = vmul.f32 %v3391, 1.442695
    %v3450 = vpow.pop %v3449
    %v3451 = vmul.f32 %v3392, 1.442695
    %v3452 = vpow.pop %v3451
    %v3453 = vmul.f32 %v3393, 1.442695
    %v3454 = vpow.pop %v3453
    %v3455 = vmul.f32 %v3394, 1.442695
    %v3456 = vpow.pop %v3455
    %v3457 = vmul.f32 %v3395, 1.442695
    %v3458 = vpow.pop %v3457
    %v3459 = vmul.f32 %v3396, 1.442695
    %v3460 = vpow.pop %v3459
    %v3461 = vadd.f32 %v3398, %v3400
    %v3462 = vadd.f32 %v3461, %v3402
    %v3463 = vadd.f32 %v3462, %v3404
    %v3464 = vadd.f32 %v3463, %v3406
    %v3465 = vadd.f32 %v3464, %v3408
    %v3466 = vadd.f32 %v3465, %v3410
    %v3467 = vadd.f32 %v3466, %v3412
    %v3468 = vadd.f32 %v3467, %v3414
    %v3469 = vadd.f32 %v3468, %v3416
    %v3470 = vadd.f32 %v3469, %v3418
    %v3471 = vadd.f32 %v3470, %v3420
    %v3472 = vadd.f32 %v3471, %v3422
    %v3473 = vadd.f32 %v3472, %v3424
    %v3474 = vadd.f32 %v3473, %v3426
    %v3475 = vadd.f32 %v3474, %v3428
    %v3476 = vrot.slane %v3475, 4
    %v3477 = vadd.f32 %v3475, %v3476
    %v3478 = vrot.slane %v3477, 2
    %v3479 = vadd.f32 %v3477, %v3478
    %v3480 = vrot.slane %v3479, 1
    %v3481 = vadd.f32 %v3479, %v3480
    %v3482 = vadd.f32 %v3430, %v3432
    %v3483 = vadd.f32 %v3482, %v3434
    %v3484 = vadd.f32 %v3483, %v3436
    %v3485 = vadd.f32 %v3484, %v3438
    %v3486 = vadd.f32 %v3485, %v3440
    %v3487 = vadd.f32 %v3486, %v3442
    %v3488 = vadd.f32 %v3487, %v3444
    %v3489 = vadd.f32 %v3488, %v3446
    %v3490 = vadd.f32 %v3489, %v3448
    %v3491 = vadd.f32 %v3490, %v3450
    %v3492 = vadd.f32 %v3491, %v3452
    %v3493 = vadd.f32 %v3492, %v3454
    %v3494 = vadd.f32 %v3493, %v3456
    %v3495 = vadd.f32 %v3494, %v3458
    %v3496 = vadd.f32 %v3495, %v3460
    %v3497 = vrot.slane %v3496, 4
    %v3498 = vadd.f32 %v3496, %v3497
    %v3499 = vrot.slane %v3498, 2
    %v3500 = vadd.f32 %v3498, %v3499
    %v3501 = vrot.slane %v3500, 1
    %v3502 = vadd.f32 %v3500, %v3501
    %v3503 = vlog2.pop %v3481
    %v3504 = vmul.f32 %v3503, 0.6931472
    %v3505 = vlog2.pop %v3502
    %v3506 = vmul.f32 %v3505, 0.6931472
    %v3507 = vadd.f32 %v3343, %v3504
    %v3508 = vadd.f32 %v3364, %v3506
    %v3509 = vadd.f32 %v3507, %v2798
    %v3510 = vadd.f32 %v3508, %v3152
    %vm3511 = vcmp.eq.s32.totalorder %v165, 4
    %v3512 = vsel %vm3511, %v145, 0
    %v3513 = vsel %vm270, %v3512, 0
    %v3514 = vand.u32 %v3513, 65535
    %v3515 = vshrl.u32 %v3513, 16
    %v3516 = vcvt.s32.f32 %v3514
    %v3517 = vcvt.s32.f32 %v3515
    %3518 = vadd.xlane.f32.xlu0 %v3516
    %v3519 = vpop.xlane.xlu0 %3518
    %3520 = vadd.xlane.f32.xlu0 %v3517
    %v3521 = vpop.xlane.xlu0 %3520
    %v3522 = vcvt.f32.s32 %v3519
    %v3523 = vcvt.f32.s32 %v3521
    %v3524 = vshll.u32 %v3523, 16
    %v3525 = vadd.s32 %v3524, %v3522
    %vm3526 = vcmp.eq.s32.totalorder %v165, %v3525
    %v3527 = vsel %vm3526, 1, 0
    %v3528 = vcvt.s32.f32 %v3527
    %3529 = vmatprep.subr.mxu0 0.0
    %3530 = vmatpush1.msra.mxu0 %v146
    %3531 = vmatprep.subr.mxu0 0.0
    %3532 = vmatpush1.msra.mxu0 %v147
    %3533 = vmatprep.subr.mxu0 0.0
    %3534 = vmatpush1.msra.mxu0 %v148
    %3535 = vmatprep.subr.mxu0 0.0
    %3536 = vmatpush1.msra.mxu0 %v149
    %3537 = vmatprep.subr.mxu0 0.0
    %3538 = vmatpush1.msra.mxu0 %v150
    %3539 = vmatprep.subr.mxu0 0.0
    %3540 = vmatpush1.msra.mxu0 %v151
    %3541 = vmatprep.subr.mxu0 0.0
    %3542 = vmatpush1.msra.mxu0 %v152
    %3543 = vmatprep.subr.mxu0 0.0
    %3544 = vmatpush1.msra.mxu0 %v153
    %3545 = vmatprep.subr.mxu0 0.0
    %3546 = vmatpush1.msra.mxu0 %v154
    %3547 = vmatprep.subr.mxu0 0.0
    %3548 = vmatpush1.msra.mxu0 %v155
    %3549 = vmatprep.subr.mxu0 0.0
    %3550 = vmatpush1.msra.mxu0 %v156
    %3551 = vmatprep.subr.mxu0 0.0
    %3552 = vmatpush1.msra.mxu0 %v157
    %3553 = vmatprep.subr.mxu0 0.0
    %3554 = vmatpush1.msra.mxu0 %v158
    %3555 = vmatprep.subr.mxu0 0.0
    %3556 = vmatpush1.msra.mxu0 %v159
    %3557 = vmatprep.subr.mxu0 0.0
    %3558 = vmatpush1.msra.mxu0 %v160
    %3559 = vmatprep.subr.mxu0 0.0
    %3560 = vmatpush1.msra.mxu0 %v161
    %3561 = vmatprep.subr.mxu0 0.0
    %3562 = vmatpush1.msra.mxu0 0.0
    %3563 = vmatprep.subr.mxu0 0.0
    %3564 = vmatpush1.msra.mxu0 0.0
    %3565 = vmatprep.subr.mxu0 0.0
    %3566 = vmatpush1.msra.mxu0 0.0
    %3567 = vmatprep.subr.mxu0 0.0
    %3568 = vmatpush1.msra.mxu0 0.0
    %3569 = vmatprep.subr.mxu0 0.0
    %3570 = vmatpush1.msra.mxu0 0.0
    %3571 = vmatprep.subr.mxu0 0.0
    %3572 = vmatpush1.msra.mxu0 0.0
    %3573 = vmatprep.subr.mxu0 0.0
    %3574 = vmatpush1.msra.mxu0 0.0
    %3575 = vmatprep.subr.mxu0 0.0
    %3576 = vmatpush1.msra.mxu0 0.0
    %3577 = vmatprep.subr.mxu0 0.0
    %3578 = vmatpush1.msra.mxu0 0.0
    %3579 = vmatprep.subr.mxu0 0.0
    %3580 = vmatpush1.msra.mxu0 0.0
    %3581 = vmatprep.subr.mxu0 0.0
    %3582 = vmatpush1.msra.mxu0 0.0
    %3583 = vmatprep.subr.mxu0 0.0
    %3584 = vmatpush1.msra.mxu0 0.0
    %3585 = vmatprep.subr.mxu0 0.0
    %3586 = vmatpush1.msra.mxu0 0.0
    %3587 = vmatprep.subr.mxu0 0.0
    %3588 = vmatpush1.msra.mxu0 0.0
    %3589 = vmatprep.subr.mxu0 0.0
    %3590 = vmatpush1.msra.mxu0 0.0
    %3591 = vmatprep.subr.mxu0 0.0
    %3592 = vmatpush1.msra.mxu0 0.0
    %3593 = vmatprep.mubr.f32.mxu0 0.0
    %3594 = vmatmul.mubr.f32.gmra.mrb[0].mxu0 %v2648
    %v3595 = vpop.f32.mrb[0].mxu0
    %v3596 = vadd.f32 %v2798, %v3595
    %v3597 = vpop.f32.mrb[0].mxu0
    %3598 = vdwg.mxu0
    %v3599 = vmul.f32 %v3596, %v3528
    %v3600 = vsel %vm288, %v3599, 0.0
    %3601 = vadd.xlane.f32.xlu0 %v3600
    %v3602 = vpop.xlane.xlu0 %3601
    %v3603 = vadd.f32 %v2723, %v3602
    %v3604 = vadd.s32 %v183, 5
    %vm3605 = vcmp.eq.s32.totalorder %v165, %v3604
    %v3606 = vsel %vm3605, 1, 0
    %v3607 = vcvt.s32.f32 %v3606
    %v3609 = vsel %vm187, %v3607, 0
    %3611 = vmatprep.subr.mxu0 0.0
    %3612 = vmatpush1.msra.mxu0 %v139
    %3613 = vmatprep.subr.mxu0 0.0
    %3614 = vmatpush1.msra.mxu0 %v142
    %3615 = vmatprep.subr.mxu0 0.0
    %3616 = vmatpush1.msra.mxu0 0.0
    %3617 = vmatprep.subr.mxu0 0.0
    %3618 = vmatpush1.msra.mxu0 0.0
    %3619 = vmatprep.subr.mxu0 0.0
    %3620 = vmatpush1.msra.mxu0 0.0
    %3621 = vmatprep.subr.mxu0 0.0
    %3622 = vmatpush1.msra.mxu0 0.0
    %3623 = vmatprep.subr.mxu0 0.0
    %3624 = vmatpush1.msra.mxu0 0.0
    %3625 = vmatprep.subr.mxu0 0.0
    %3626 = vmatpush1.msra.mxu0 0.0
    %3627 = vmatprep.subr.mxu0 0.0
    %3628 = vmatpush1.msra.mxu0 0.0
    %3629 = vmatprep.subr.mxu0 0.0
    %3630 = vmatpush1.msra.mxu0 0.0
    %3631 = vmatprep.subr.mxu0 0.0
    %3632 = vmatpush1.msra.mxu0 0.0
    %3633 = vmatprep.subr.mxu0 0.0
    %3634 = vmatpush1.msra.mxu0 0.0
    %3635 = vmatprep.subr.mxu0 0.0
    %3636 = vmatpush1.msra.mxu0 0.0
    %3637 = vmatprep.subr.mxu0 0.0
    %3638 = vmatpush1.msra.mxu0 0.0
    %3639 = vmatprep.subr.mxu0 0.0
    %3640 = vmatpush1.msra.mxu0 0.0
    %3641 = vmatprep.subr.mxu0 0.0
    %3642 = vmatpush1.msra.mxu0 0.0
    %3643 = vmatprep.subr.mxu0 0.0
    %3644 = vmatpush1.msra.mxu0 0.0
    %3645 = vmatprep.subr.mxu0 0.0
    %3646 = vmatpush1.msra.mxu0 0.0
    %3647 = vmatprep.subr.mxu0 0.0
    %3648 = vmatpush1.msra.mxu0 0.0
    %3649 = vmatprep.subr.mxu0 0.0
    %3650 = vmatpush1.msra.mxu0 0.0
    %3651 = vmatprep.subr.mxu0 0.0
    %3652 = vmatpush1.msra.mxu0 0.0
    %3653 = vmatprep.subr.mxu0 0.0
    %3654 = vmatpush1.msra.mxu0 0.0
    %3655 = vmatprep.subr.mxu0 0.0
    %3656 = vmatpush1.msra.mxu0 0.0
    %3657 = vmatprep.subr.mxu0 0.0
    %3658 = vmatpush1.msra.mxu0 0.0
    %3659 = vmatprep.subr.mxu0 0.0
    %3660 = vmatpush1.msra.mxu0 0.0
    %3661 = vmatprep.subr.mxu0 0.0
    %3662 = vmatpush1.msra.mxu0 0.0
    %3663 = vmatprep.subr.mxu0 0.0
    %3664 = vmatpush1.msra.mxu0 0.0
    %3665 = vmatprep.subr.mxu0 0.0
    %3666 = vmatpush1.msra.mxu0 0.0
    %3667 = vmatprep.subr.mxu0 0.0
    %3668 = vmatpush1.msra.mxu0 0.0
    %3669 = vmatprep.subr.mxu0 0.0
    %3670 = vmatpush1.msra.mxu0 0.0
    %3671 = vmatprep.subr.mxu0 0.0
    %3672 = vmatpush1.msra.mxu0 0.0
    %3673 = vmatprep.subr.mxu0 0.0
    %3674 = vmatpush1.msra.mxu0 0.0
    %3675 = vmatprep.mubr.f32.mxu0 0.0
    %3676 = vmatmul.mubr.f32.gmra.mrb[0].mxu0 %v3609
    %v3677 = vpop.f32.mrb[0].mxu0
    %v3678 = vadd.f32 0.0, %v3677
    %v3679 = vpop.f32.mrb[0].mxu0
    %3680 = vdwg.mxu0
    %v3681 = vlaneseq
    %v3682 = vshrl.u32 %v3681, 7
    %v3683 = vsub.s32 0, %v3682
    %v3684 = vrot.slane %v3155, %v3683
    %3686 = vbcast.lane.b32.xlu0 %v3684, 256
    %v3687 = vpop.permute.xlu0 %3686
    %s3689 = sor.u32 256, 8
    %3690 = vbcast.lane.b32.xlu0 %v3684, %s3689
    %v3691 = vpop.permute.xlu0 %3690
    %s3693 = sor.u32 256, 16
    %3694 = vbcast.lane.b32.xlu0 %v3684, %s3693
    %v3695 = vpop.permute.xlu0 %3694
    %s3697 = sor.u32 256, 24
    %3698 = vbcast.lane.b32.xlu0 %v3684, %s3697
    %v3699 = vpop.permute.xlu0 %3698
    %s3701 = sor.u32 256, 32
    %3702 = vbcast.lane.b32.xlu0 %v3684, %s3701
    %v3703 = vpop.permute.xlu0 %3702
    %s3705 = sor.u32 256, 40
    %3706 = vbcast.lane.b32.xlu0 %v3684, %s3705
    %v3707 = vpop.permute.xlu0 %3706
    %s3709 = sor.u32 256, 48
    %3710 = vbcast.lane.b32.xlu0 %v3684, %s3709
    %v3711 = vpop.permute.xlu0 %3710
    %s3713 = sor.u32 256, 56
    %3714 = vbcast.lane.b32.xlu0 %v3684, %s3713
    %v3715 = vpop.permute.xlu0 %3714
    %s3717 = sor.u32 256, 64
    %3718 = vbcast.lane.b32.xlu0 %v3684, %s3717
    %v3719 = vpop.permute.xlu0 %3718
    %s3721 = sor.u32 256, 72
    %3722 = vbcast.lane.b32.xlu0 %v3684, %s3721
    %v3723 = vpop.permute.xlu0 %3722
    %s3725 = sor.u32 256, 80
    %3726 = vbcast.lane.b32.xlu0 %v3684, %s3725
    %v3727 = vpop.permute.xlu0 %3726
    %s3729 = sor.u32 256, 88
    %3730 = vbcast.lane.b32.xlu0 %v3684, %s3729
    %v3731 = vpop.permute.xlu0 %3730
    %s3733 = sor.u32 256, 96
    %3734 = vbcast.lane.b32.xlu0 %v3684, %s3733
    %v3735 = vpop.permute.xlu0 %3734
    %s3737 = sor.u32 256, 104
    %3738 = vbcast.lane.b32.xlu0 %v3684, %s3737
    %v3739 = vpop.permute.xlu0 %3738
    %s3741 = sor.u32 256, 112
    %3742 = vbcast.lane.b32.xlu0 %v3684, %s3741
    %v3743 = vpop.permute.xlu0 %3742
    %s3745 = sor.u32 256, 120
    %3746 = vbcast.lane.b32.xlu0 %v3684, %s3745
    %v3747 = vpop.permute.xlu0 %3746
    %v3748 = vlaneseq
    %v3749 = vshrl.u32 %v3748, 7
    %v3750 = vsub.s32 0, %v3749
    %v3751 = vrot.slane %v3156, %v3750
    %3753 = vbcast.lane.b32.xlu0 %v3751, 256
    %v3754 = vpop.permute.xlu0 %3753
    %s3756 = sor.u32 256, 8
    %3757 = vbcast.lane.b32.xlu0 %v3751, %s3756
    %v3758 = vpop.permute.xlu0 %3757
    %s3760 = sor.u32 256, 16
    %3761 = vbcast.lane.b32.xlu0 %v3751, %s3760
    %v3762 = vpop.permute.xlu0 %3761
    %s3764 = sor.u32 256, 24
    %3765 = vbcast.lane.b32.xlu0 %v3751, %s3764
    %v3766 = vpop.permute.xlu0 %3765
    %s3768 = sor.u32 256, 32
    %3769 = vbcast.lane.b32.xlu0 %v3751, %s3768
    %v3770 = vpop.permute.xlu0 %3769
    %s3772 = sor.u32 256, 40
    %3773 = vbcast.lane.b32.xlu0 %v3751, %s3772
    %v3774 = vpop.permute.xlu0 %3773
    %s3776 = sor.u32 256, 48
    %3777 = vbcast.lane.b32.xlu0 %v3751, %s3776
    %v3778 = vpop.permute.xlu0 %3777
    %s3780 = sor.u32 256, 56
    %3781 = vbcast.lane.b32.xlu0 %v3751, %s3780
    %v3782 = vpop.permute.xlu0 %3781
    %s3784 = sor.u32 256, 64
    %3785 = vbcast.lane.b32.xlu0 %v3751, %s3784
    %v3786 = vpop.permute.xlu0 %3785
    %s3788 = sor.u32 256, 72
    %3789 = vbcast.lane.b32.xlu0 %v3751, %s3788
    %v3790 = vpop.permute.xlu0 %3789
    %s3792 = sor.u32 256, 80
    %3793 = vbcast.lane.b32.xlu0 %v3751, %s3792
    %v3794 = vpop.permute.xlu0 %3793
    %s3796 = sor.u32 256, 88
    %3797 = vbcast.lane.b32.xlu0 %v3751, %s3796
    %v3798 = vpop.permute.xlu0 %3797
    %s3800 = sor.u32 256, 96
    %3801 = vbcast.lane.b32.xlu0 %v3751, %s3800
    %v3802 = vpop.permute.xlu0 %3801
    %s3804 = sor.u32 256, 104
    %3805 = vbcast.lane.b32.xlu0 %v3751, %s3804
    %v3806 = vpop.permute.xlu0 %3805
    %s3808 = sor.u32 256, 112
    %3809 = vbcast.lane.b32.xlu0 %v3751, %s3808
    %v3810 = vpop.permute.xlu0 %3809
    %s3812 = sor.u32 256, 120
    %3813 = vbcast.lane.b32.xlu0 %v3751, %s3812
    %v3814 = vpop.permute.xlu0 %3813
    %v3815 = vadd.f32 %v3687, %v146
    %v3816 = vadd.f32 %v3691, %v147
    %v3817 = vadd.f32 %v3695, %v148
    %v3818 = vadd.f32 %v3699, %v149
    %v3819 = vadd.f32 %v3703, %v150
    %v3820 = vadd.f32 %v3707, %v151
    %v3821 = vadd.f32 %v3711, %v152
    %v3822 = vadd.f32 %v3715, %v153
    %v3823 = vadd.f32 %v3719, %v154
    %v3824 = vadd.f32 %v3723, %v155
    %v3825 = vadd.f32 %v3727, %v156
    %v3826 = vadd.f32 %v3731, %v157
    %v3827 = vadd.f32 %v3735, %v158
    %v3828 = vadd.f32 %v3739, %v159
    %v3829 = vadd.f32 %v3743, %v160
    %v3830 = vadd.f32 %v3747, %v161
    %v3831 = vadd.f32 %v3754, %v146
    %v3832 = vadd.f32 %v3758, %v147
    %v3833 = vadd.f32 %v3762, %v148
    %v3834 = vadd.f32 %v3766, %v149
    %v3835 = vadd.f32 %v3770, %v150
    %v3836 = vadd.f32 %v3774, %v151
    %v3837 = vadd.f32 %v3778, %v152
    %v3838 = vadd.f32 %v3782, %v153
    %v3839 = vadd.f32 %v3786, %v154
    %v3840 = vadd.f32 %v3790, %v155
    %v3841 = vadd.f32 %v3794, %v156
    %v3842 = vadd.f32 %v3798, %v157
    %v3843 = vadd.f32 %v3802, %v158
    %v3844 = vadd.f32 %v3806, %v159
    %v3845 = vadd.f32 %v3810, %v160
    %v3846 = vadd.f32 %v3814, %v161
    %v3847 = vmax.f32 %v3815, %v3817
    %v3848 = vmax.f32 %v3816, %v3818
    %v3849 = vmax.f32 %v3847, %v3819
    %v3850 = vmax.f32 %v3848, %v3820
    %v3851 = vmax.f32 %v3849, %v3821
    %v3852 = vmax.f32 %v3850, %v3822
    %v3853 = vmax.f32 %v3851, %v3823
    %v3854 = vmax.f32 %v3852, %v3824
    %v3855 = vmax.f32 %v3853, %v3825
    %v3856 = vmax.f32 %v3854, %v3826
    %v3857 = vmax.f32 %v3855, %v3827
    %v3858 = vmax.f32 %v3856, %v3828
    %v3859 = vmax.f32 %v3857, %v3829
    %v3860 = vmax.f32 %v3858, %v3830
    %v3861 = vmax.f32 %v3859, %v3860
    %v3862 = vrot.slane %v3861, 4
    %v3863 = vmax.f32 %v3861, %v3862
    %v3864 = vrot.slane %v3863, 2
    %v3865 = vmax.f32 %v3863, %v3864
    %v3866 = vrot.slane %v3865, 1
    %v3867 = vmax.f32 %v3865, %v3866
    %v3868 = vmax.f32 %v3831, %v3833
    %v3869 = vmax.f32 %v3832, %v3834
    %v3870 = vmax.f32 %v3868, %v3835
    %v3871 = vmax.f32 %v3869, %v3836
    %v3872 = vmax.f32 %v3870, %v3837
    %v3873 = vmax.f32 %v3871, %v3838
    %v3874 = vmax.f32 %v3872, %v3839
    %v3875 = vmax.f32 %v3873, %v3840
    %v3876 = vmax.f32 %v3874, %v3841
    %v3877 = vmax.f32 %v3875, %v3842
    %v3878 = vmax.f32 %v3876, %v3843
    %v3879 = vmax.f32 %v3877, %v3844
    %v3880 = vmax.f32 %v3878, %v3845
    %v3881 = vmax.f32 %v3879, %v3846
    %v3882 = vmax.f32 %v3880, %v3881
    %v3883 = vrot.slane %v3882, 4
    %v3884 = vmax.f32 %v3882, %v3883
    %v3885 = vrot.slane %v3884, 2
    %v3886 = vmax.f32 %v3884, %v3885
    %v3887 = vrot.slane %v3886, 1
    %v3888 = vmax.f32 %v3886, %v3887
    %vm3889 = vcmp.ge.f32.partialorder %v3815, %v3867
    %vm3890 = vcmp.ge.f32.partialorder %v3816, %v3867
    %vm3891 = vcmp.ge.f32.partialorder %v3817, %v3867
    %vm3892 = vcmp.ge.f32.partialorder %v3818, %v3867
    %vm3893 = vcmp.ge.f32.partialorder %v3819, %v3867
    %vm3894 = vcmp.ge.f32.partialorder %v3820, %v3867
    %vm3895 = vcmp.ge.f32.partialorder %v3821, %v3867
    %vm3896 = vcmp.ge.f32.partialorder %v3822, %v3867
    %vm3897 = vcmp.ge.f32.partialorder %v3823, %v3867
    %vm3898 = vcmp.ge.f32.partialorder %v3824, %v3867
    %vm3899 = vcmp.ge.f32.partialorder %v3825, %v3867
    %vm3900 = vcmp.ge.f32.partialorder %v3826, %v3867
    %vm3901 = vcmp.ge.f32.partialorder %v3827, %v3867
    %vm3902 = vcmp.ge.f32.partialorder %v3828, %v3867
    %vm3903 = vcmp.ge.f32.partialorder %v3829, %v3867
    %vm3904 = vcmp.ge.f32.partialorder %v3830, %v3867
    %vm3905 = vcmp.ge.f32.partialorder %v3831, %v3888
    %vm3906 = vcmp.ge.f32.partialorder %v3832, %v3888
    %vm3907 = vcmp.ge.f32.partialorder %v3833, %v3888
    %vm3908 = vcmp.ge.f32.partialorder %v3834, %v3888
    %vm3909 = vcmp.ge.f32.partialorder %v3835, %v3888
    %vm3910 = vcmp.ge.f32.partialorder %v3836, %v3888
    %vm3911 = vcmp.ge.f32.partialorder %v3837, %v3888
    %vm3912 = vcmp.ge.f32.partialorder %v3838, %v3888
    %vm3913 = vcmp.ge.f32.partialorder %v3839, %v3888
    %vm3914 = vcmp.ge.f32.partialorder %v3840, %v3888
    %vm3915 = vcmp.ge.f32.partialorder %v3841, %v3888
    %vm3916 = vcmp.ge.f32.partialorder %v3842, %v3888
    %vm3917 = vcmp.ge.f32.partialorder %v3843, %v3888
    %vm3918 = vcmp.ge.f32.partialorder %v3844, %v3888
    %vm3919 = vcmp.ge.f32.partialorder %v3845, %v3888
    %vm3920 = vcmp.ge.f32.partialorder %v3846, %v3888
    %v3921 = vsel %vm3889, %v167, 128
    %v3922 = vsel %vm3890, %v168, 128
    %v3923 = vsel %vm3891, %v169, 128
    %v3924 = vsel %vm3892, %v170, 128
    %v3925 = vsel %vm3893, %v171, 128
    %v3926 = vsel %vm3894, %v172, 128
    %v3927 = vsel %vm3895, %v173, 128
    %v3928 = vsel %vm3896, %v174, 128
    %v3929 = vsel %vm3897, %v175, 128
    %v3930 = vsel %vm3898, %v176, 128
    %v3931 = vsel %vm3899, %v177, 128
    %v3932 = vsel %vm3900, %v178, 128
    %v3933 = vsel %vm3901, %v179, 128
    %v3934 = vsel %vm3902, %v180, 128
    %v3935 = vsel %vm3903, %v181, 128
    %v3936 = vsel %vm3904, %v182, 128
    %v3937 = vsel %vm3905, %v167, 128
    %v3938 = vsel %vm3906, %v168, 128
    %v3939 = vsel %vm3907, %v169, 128
    %v3940 = vsel %vm3908, %v170, 128
    %v3941 = vsel %vm3909, %v171, 128
    %v3942 = vsel %vm3910, %v172, 128
    %v3943 = vsel %vm3911, %v173, 128
    %v3944 = vsel %vm3912, %v174, 128
    %v3945 = vsel %vm3913, %v175, 128
    %v3946 = vsel %vm3914, %v176, 128
    %v3947 = vsel %vm3915, %v177, 128
    %v3948 = vsel %vm3916, %v178, 128
    %v3949 = vsel %vm3917, %v179, 128
    %v3950 = vsel %vm3918, %v180, 128
    %v3951 = vsel %vm3919, %v181, 128
    %v3952 = vsel %vm3920, %v182, 128
    %vm3953 = vcmp.lt.s32.totalorder %v3921, %v3923
    %v3954 = vsel %vm3953, %v3921, %v3923
    %vm3955 = vcmp.lt.s32.totalorder %v3922, %v3924
    %v3956 = vsel %vm3955, %v3922, %v3924
    %vm3957 = vcmp.lt.s32.totalorder %v3954, %v3925
    %v3958 = vsel %vm3957, %v3954, %v3925
    %vm3959 = vcmp.lt.s32.totalorder %v3956, %v3926
    %v3960 = vsel %vm3959, %v3956, %v3926
    %vm3961 = vcmp.lt.s32.totalorder %v3958, %v3927
    %v3962 = vsel %vm3961, %v3958, %v3927
    %vm3963 = vcmp.lt.s32.totalorder %v3960, %v3928
    %v3964 = vsel %vm3963, %v3960, %v3928
    %vm3965 = vcmp.lt.s32.totalorder %v3962, %v3929
    %v3966 = vsel %vm3965, %v3962, %v3929
    %vm3967 = vcmp.lt.s32.totalorder %v3964, %v3930
    %v3968 = vsel %vm3967, %v3964, %v3930
    %vm3969 = vcmp.lt.s32.totalorder %v3966, %v3931
    %v3970 = vsel %vm3969, %v3966, %v3931
    %vm3971 = vcmp.lt.s32.totalorder %v3968, %v3932
    %v3972 = vsel %vm3971, %v3968, %v3932
    %vm3973 = vcmp.lt.s32.totalorder %v3970, %v3933
    %v3974 = vsel %vm3973, %v3970, %v3933
    %vm3975 = vcmp.lt.s32.totalorder %v3972, %v3934
    %v3976 = vsel %vm3975, %v3972, %v3934
    %vm3977 = vcmp.lt.s32.totalorder %v3974, %v3935
    %v3978 = vsel %vm3977, %v3974, %v3935
    %vm3979 = vcmp.lt.s32.totalorder %v3976, %v3936
    %v3980 = vsel %vm3979, %v3976, %v3936
    %vm3981 = vcmp.lt.s32.totalorder %v3978, %v3980
    %v3982 = vsel %vm3981, %v3978, %v3980
    %v3983 = vrot.slane %v3982, 4
    %vm3984 = vcmp.lt.s32.totalorder %v3982, %v3983
    %v3985 = vsel %vm3984, %v3982, %v3983
    %v3986 = vrot.slane %v3985, 2
    %vm3987 = vcmp.lt.s32.totalorder %v3985, %v3986
    %v3988 = vsel %vm3987, %v3985, %v3986
    %v3989 = vrot.slane %v3988, 1
    %vm3990 = vcmp.lt.s32.totalorder %v3988, %v3989
    %v3991 = vsel %vm3990, %v3988, %v3989
    %vm3992 = vcmp.lt.s32.totalorder %v3937, %v3939
    %v3993 = vsel %vm3992, %v3937, %v3939
    %vm3994 = vcmp.lt.s32.totalorder %v3938, %v3940
    %v3995 = vsel %vm3994, %v3938, %v3940
    %vm3996 = vcmp.lt.s32.totalorder %v3993, %v3941
    %v3997 = vsel %vm3996, %v3993, %v3941
    %vm3998 = vcmp.lt.s32.totalorder %v3995, %v3942
    %v3999 = vsel %vm3998, %v3995, %v3942
    %vm4000 = vcmp.lt.s32.totalorder %v3997, %v3943
    %v4001 = vsel %vm4000, %v3997, %v3943
    %vm4002 = vcmp.lt.s32.totalorder %v3999, %v3944
    %v4003 = vsel %vm4002, %v3999, %v3944
    %vm4004 = vcmp.lt.s32.totalorder %v4001, %v3945
    %v4005 = vsel %vm4004, %v4001, %v3945
    %vm4006 = vcmp.lt.s32.totalorder %v4003, %v3946
    %v4007 = vsel %vm4006, %v4003, %v3946
    %vm4008 = vcmp.lt.s32.totalorder %v4005, %v3947
    %v4009 = vsel %vm4008, %v4005, %v3947
    %vm4010 = vcmp.lt.s32.totalorder %v4007, %v3948
    %v4011 = vsel %vm4010, %v4007, %v3948
    %vm4012 = vcmp.lt.s32.totalorder %v4009, %v3949
    %v4013 = vsel %vm4012, %v4009, %v3949
    %vm4014 = vcmp.lt.s32.totalorder %v4011, %v3950
    %v4015 = vsel %vm4014, %v4011, %v3950
    %vm4016 = vcmp.lt.s32.totalorder %v4013, %v3951
    %v4017 = vsel %vm4016, %v4013, %v3951
    %vm4018 = vcmp.lt.s32.totalorder %v4015, %v3952
    %v4019 = vsel %vm4018, %v4015, %v3952
    %vm4020 = vcmp.lt.s32.totalorder %v4017, %v4019
    %v4021 = vsel %vm4020, %v4017, %v4019
    %v4022 = vrot.slane %v4021, 4
    %vm4023 = vcmp.lt.s32.totalorder %v4021, %v4022
    %v4024 = vsel %vm4023, %v4021, %v4022
    %v4025 = vrot.slane %v4024, 2
    %vm4026 = vcmp.lt.s32.totalorder %v4024, %v4025
    %v4027 = vsel %vm4026, %v4024, %v4025
    %v4028 = vrot.slane %v4027, 1
    %vm4029 = vcmp.lt.s32.totalorder %v4027, %v4028
    %v4030 = vsel %vm4029, %v4027, %v4028
    %v4032 = vrot.slane %v3678, 1
    %v4035 = vadd.f32 %v3867, %v3678
    %v4036 = vadd.f32 %v3888, %v4032
    %v4037 = vlaneseq
    %v4038 = vshrl.u32 %v4037, 7
    %v4039 = vsub.s32 0, %v4038
    %v4040 = vrot.slane %v3509, %v4039
    %4042 = vbcast.lane.b32.xlu0 %v4040, 256
    %v4043 = vpop.permute.xlu0 %4042
    %s4045 = sor.u32 256, 8
    %4046 = vbcast.lane.b32.xlu0 %v4040, %s4045
    %v4047 = vpop.permute.xlu0 %4046
    %s4049 = sor.u32 256, 16
    %4050 = vbcast.lane.b32.xlu0 %v4040, %s4049
    %v4051 = vpop.permute.xlu0 %4050
    %s4053 = sor.u32 256, 24
    %4054 = vbcast.lane.b32.xlu0 %v4040, %s4053
    %v4055 = vpop.permute.xlu0 %4054
    %s4057 = sor.u32 256, 32
    %4058 = vbcast.lane.b32.xlu0 %v4040, %s4057
    %v4059 = vpop.permute.xlu0 %4058
    %s4061 = sor.u32 256, 40
    %4062 = vbcast.lane.b32.xlu0 %v4040, %s4061
    %v4063 = vpop.permute.xlu0 %4062
    %s4065 = sor.u32 256, 48
    %4066 = vbcast.lane.b32.xlu0 %v4040, %s4065
    %v4067 = vpop.permute.xlu0 %4066
    %s4069 = sor.u32 256, 56
    %4070 = vbcast.lane.b32.xlu0 %v4040, %s4069
    %v4071 = vpop.permute.xlu0 %4070
    %s4073 = sor.u32 256, 64
    %4074 = vbcast.lane.b32.xlu0 %v4040, %s4073
    %v4075 = vpop.permute.xlu0 %4074
    %s4077 = sor.u32 256, 72
    %4078 = vbcast.lane.b32.xlu0 %v4040, %s4077
    %v4079 = vpop.permute.xlu0 %4078
    %s4081 = sor.u32 256, 80
    %4082 = vbcast.lane.b32.xlu0 %v4040, %s4081
    %v4083 = vpop.permute.xlu0 %4082
    %s4085 = sor.u32 256, 88
    %4086 = vbcast.lane.b32.xlu0 %v4040, %s4085
    %v4087 = vpop.permute.xlu0 %4086
    %s4089 = sor.u32 256, 96
    %4090 = vbcast.lane.b32.xlu0 %v4040, %s4089
    %v4091 = vpop.permute.xlu0 %4090
    %s4093 = sor.u32 256, 104
    %4094 = vbcast.lane.b32.xlu0 %v4040, %s4093
    %v4095 = vpop.permute.xlu0 %4094
    %s4097 = sor.u32 256, 112
    %4098 = vbcast.lane.b32.xlu0 %v4040, %s4097
    %v4099 = vpop.permute.xlu0 %4098
    %s4101 = sor.u32 256, 120
    %4102 = vbcast.lane.b32.xlu0 %v4040, %s4101
    %v4103 = vpop.permute.xlu0 %4102
    %v4104 = vlaneseq
    %v4105 = vshrl.u32 %v4104, 7
    %v4106 = vsub.s32 0, %v4105
    %v4107 = vrot.slane %v3510, %v4106
    %4109 = vbcast.lane.b32.xlu0 %v4107, 256
    %v4110 = vpop.permute.xlu0 %4109
    %s4112 = sor.u32 256, 8
    %4113 = vbcast.lane.b32.xlu0 %v4107, %s4112
    %v4114 = vpop.permute.xlu0 %4113
    %s4116 = sor.u32 256, 16
    %4117 = vbcast.lane.b32.xlu0 %v4107, %s4116
    %v4118 = vpop.permute.xlu0 %4117
    %s4120 = sor.u32 256, 24
    %4121 = vbcast.lane.b32.xlu0 %v4107, %s4120
    %v4122 = vpop.permute.xlu0 %4121
    %s4124 = sor.u32 256, 32
    %4125 = vbcast.lane.b32.xlu0 %v4107, %s4124
    %v4126 = vpop.permute.xlu0 %4125
    %s4128 = sor.u32 256, 40
    %4129 = vbcast.lane.b32.xlu0 %v4107, %s4128
    %v4130 = vpop.permute.xlu0 %4129
    %s4132 = sor.u32 256, 48
    %4133 = vbcast.lane.b32.xlu0 %v4107, %s4132
    %v4134 = vpop.permute.xlu0 %4133
    %s4136 = sor.u32 256, 56
    %4137 = vbcast.lane.b32.xlu0 %v4107, %s4136
    %v4138 = vpop.permute.xlu0 %4137
    %s4140 = sor.u32 256, 64
    %4141 = vbcast.lane.b32.xlu0 %v4107, %s4140
    %v4142 = vpop.permute.xlu0 %4141
    %s4144 = sor.u32 256, 72
    %4145 = vbcast.lane.b32.xlu0 %v4107, %s4144
    %v4146 = vpop.permute.xlu0 %4145
    %s4148 = sor.u32 256, 80
    %4149 = vbcast.lane.b32.xlu0 %v4107, %s4148
    %v4150 = vpop.permute.xlu0 %4149
    %s4152 = sor.u32 256, 88
    %4153 = vbcast.lane.b32.xlu0 %v4107, %s4152
    %v4154 = vpop.permute.xlu0 %4153
    %s4156 = sor.u32 256, 96
    %4157 = vbcast.lane.b32.xlu0 %v4107, %s4156
    %v4158 = vpop.permute.xlu0 %4157
    %s4160 = sor.u32 256, 104
    %4161 = vbcast.lane.b32.xlu0 %v4107, %s4160
    %v4162 = vpop.permute.xlu0 %4161
    %s4164 = sor.u32 256, 112
    %4165 = vbcast.lane.b32.xlu0 %v4107, %s4164
    %v4166 = vpop.permute.xlu0 %4165
    %s4168 = sor.u32 256, 120
    %4169 = vbcast.lane.b32.xlu0 %v4107, %s4168
    %v4170 = vpop.permute.xlu0 %4169
    %v4171 = vadd.f32 %v4043, %v146
    %v4172 = vadd.f32 %v4047, %v147
    %v4173 = vadd.f32 %v4051, %v148
    %v4174 = vadd.f32 %v4055, %v149
    %v4175 = vadd.f32 %v4059, %v150
    %v4176 = vadd.f32 %v4063, %v151
    %v4177 = vadd.f32 %v4067, %v152
    %v4178 = vadd.f32 %v4071, %v153
    %v4179 = vadd.f32 %v4075, %v154
    %v4180 = vadd.f32 %v4079, %v155
    %v4181 = vadd.f32 %v4083, %v156
    %v4182 = vadd.f32 %v4087, %v157
    %v4183 = vadd.f32 %v4091, %v158
    %v4184 = vadd.f32 %v4095, %v159
    %v4185 = vadd.f32 %v4099, %v160
    %v4186 = vadd.f32 %v4103, %v161
    %v4187 = vadd.f32 %v4110, %v146
    %v4188 = vadd.f32 %v4114, %v147
    %v4189 = vadd.f32 %v4118, %v148
    %v4190 = vadd.f32 %v4122, %v149
    %v4191 = vadd.f32 %v4126, %v150
    %v4192 = vadd.f32 %v4130, %v151
    %v4193 = vadd.f32 %v4134, %v152
    %v4194 = vadd.f32 %v4138, %v153
    %v4195 = vadd.f32 %v4142, %v154
    %v4196 = vadd.f32 %v4146, %v155
    %v4197 = vadd.f32 %v4150, %v156
    %v4198 = vadd.f32 %v4154, %v157
    %v4199 = vadd.f32 %v4158, %v158
    %v4200 = vadd.f32 %v4162, %v159
    %v4201 = vadd.f32 %v4166, %v160
    %v4202 = vadd.f32 %v4170, %v161
    %v4203 = vmax.f32 %v4171, %v4173
    %v4204 = vmax.f32 %v4172, %v4174
    %v4205 = vmax.f32 %v4203, %v4175
    %v4206 = vmax.f32 %v4204, %v4176
    %v4207 = vmax.f32 %v4205, %v4177
    %v4208 = vmax.f32 %v4206, %v4178
    %v4209 = vmax.f32 %v4207, %v4179
    %v4210 = vmax.f32 %v4208, %v4180
    %v4211 = vmax.f32 %v4209, %v4181
    %v4212 = vmax.f32 %v4210, %v4182
    %v4213 = vmax.f32 %v4211, %v4183
    %v4214 = vmax.f32 %v4212, %v4184
    %v4215 = vmax.f32 %v4213, %v4185
    %v4216 = vmax.f32 %v4214, %v4186
    %v4217 = vmax.f32 %v4215, %v4216
    %v4218 = vrot.slane %v4217, 4
    %v4219 = vmax.f32 %v4217, %v4218
    %v4220 = vrot.slane %v4219, 2
    %v4221 = vmax.f32 %v4219, %v4220
    %v4222 = vrot.slane %v4221, 1
    %v4223 = vmax.f32 %v4221, %v4222
    %v4224 = vmax.f32 %v4187, %v4189
    %v4225 = vmax.f32 %v4188, %v4190
    %v4226 = vmax.f32 %v4224, %v4191
    %v4227 = vmax.f32 %v4225, %v4192
    %v4228 = vmax.f32 %v4226, %v4193
    %v4229 = vmax.f32 %v4227, %v4194
    %v4230 = vmax.f32 %v4228, %v4195
    %v4231 = vmax.f32 %v4229, %v4196
    %v4232 = vmax.f32 %v4230, %v4197
    %v4233 = vmax.f32 %v4231, %v4198
    %v4234 = vmax.f32 %v4232, %v4199
    %v4235 = vmax.f32 %v4233, %v4200
    %v4236 = vmax.f32 %v4234, %v4201
    %v4237 = vmax.f32 %v4235, %v4202
    %v4238 = vmax.f32 %v4236, %v4237
    %v4239 = vrot.slane %v4238, 4
    %v4240 = vmax.f32 %v4238, %v4239
    %v4241 = vrot.slane %v4240, 2
    %v4242 = vmax.f32 %v4240, %v4241
    %v4243 = vrot.slane %v4242, 1
    %v4244 = vmax.f32 %v4242, %v4243
    %v4245 = vsub.f32 %v4171, %v4223
    %v4246 = vsub.f32 %v4172, %v4223
    %v4247 = vsub.f32 %v4173, %v4223
    %v4248 = vsub.f32 %v4174, %v4223
    %v4249 = vsub.f32 %v4175, %v4223
    %v4250 = vsub.f32 %v4176, %v4223
    %v4251 = vsub.f32 %v4177, %v4223
    %v4252 = vsub.f32 %v4178, %v4223
    %v4253 = vsub.f32 %v4179, %v4223
    %v4254 = vsub.f32 %v4180, %v4223
    %v4255 = vsub.f32 %v4181, %v4223
    %v4256 = vsub.f32 %v4182, %v4223
    %v4257 = vsub.f32 %v4183, %v4223
    %v4258 = vsub.f32 %v4184, %v4223
    %v4259 = vsub.f32 %v4185, %v4223
    %v4260 = vsub.f32 %v4186, %v4223
    %v4261 = vsub.f32 %v4187, %v4244
    %v4262 = vsub.f32 %v4188, %v4244
    %v4263 = vsub.f32 %v4189, %v4244
    %v4264 = vsub.f32 %v4190, %v4244
    %v4265 = vsub.f32 %v4191, %v4244
    %v4266 = vsub.f32 %v4192, %v4244
    %v4267 = vsub.f32 %v4193, %v4244
    %v4268 = vsub.f32 %v4194, %v4244
    %v4269 = vsub.f32 %v4195, %v4244
    %v4270 = vsub.f32 %v4196, %v4244
    %v4271 = vsub.f32 %v4197, %v4244
    %v4272 = vsub.f32 %v4198, %v4244
    %v4273 = vsub.f32 %v4199, %v4244
    %v4274 = vsub.f32 %v4200, %v4244
    %v4275 = vsub.f32 %v4201, %v4244
    %v4276 = vsub.f32 %v4202, %v4244
    %v4277 = vmul.f32 %v4245, 1.442695
    %v4278 = vpow.pop %v4277
    %v4279 = vmul.f32 %v4246, 1.442695
    %v4280 = vpow.pop %v4279
    %v4281 = vmul.f32 %v4247, 1.442695
    %v4282 = vpow.pop %v4281
    %v4283 = vmul.f32 %v4248, 1.442695
    %v4284 = vpow.pop %v4283
    %v4285 = vmul.f32 %v4249, 1.442695
    %v4286 = vpow.pop %v4285
    %v4287 = vmul.f32 %v4250, 1.442695
    %v4288 = vpow.pop %v4287
    %v4289 = vmul.f32 %v4251, 1.442695
    %v4290 = vpow.pop %v4289
    %v4291 = vmul.f32 %v4252, 1.442695
    %v4292 = vpow.pop %v4291
    %v4293 = vmul.f32 %v4253, 1.442695
    %v4294 = vpow.pop %v4293
    %v4295 = vmul.f32 %v4254, 1.442695
    %v4296 = vpow.pop %v4295
    %v4297 = vmul.f32 %v4255, 1.442695
    %v4298 = vpow.pop %v4297
    %v4299 = vmul.f32 %v4256, 1.442695
    %v4300 = vpow.pop %v4299
    %v4301 = vmul.f32 %v4257, 1.442695
    %v4302 = vpow.pop %v4301
    %v4303 = vmul.f32 %v4258, 1.442695
    %v4304 = vpow.pop %v4303
    %v4305 = vmul.f32 %v4259, 1.442695
    %v4306 = vpow.pop %v4305
    %v4307 = vmul.f32 %v4260, 1.442695
    %v4308 = vpow.pop %v4307
    %v4309 = vmul.f32 %v4261, 1.442695
    %v4310 = vpow.pop %v4309
    %v4311 = vmul.f32 %v4262, 1.442695
    %v4312 = vpow.pop %v4311
    %v4313 = vmul.f32 %v4263, 1.442695
    %v4314 = vpow.pop %v4313
    %v4315 = vmul.f32 %v4264, 1.442695
    %v4316 = vpow.pop %v4315
    %v4317 = vmul.f32 %v4265, 1.442695
    %v4318 = vpow.pop %v4317
    %v4319 = vmul.f32 %v4266, 1.442695
    %v4320 = vpow.pop %v4319
    %v4321 = vmul.f32 %v4267, 1.442695
    %v4322 = vpow.pop %v4321
    %v4323 = vmul.f32 %v4268, 1.442695
    %v4324 = vpow.pop %v4323
    %v4325 = vmul.f32 %v4269, 1.442695
    %v4326 = vpow.pop %v4325
    %v4327 = vmul.f32 %v4270, 1.442695
    %v4328 = vpow.pop %v4327
    %v4329 = vmul.f32 %v4271, 1.442695
    %v4330 = vpow.pop %v4329
    %v4331 = vmul.f32 %v4272, 1.442695
    %v4332 = vpow.pop %v4331
    %v4333 = vmul.f32 %v4273, 1.442695
    %v4334 = vpow.pop %v4333
    %v4335 = vmul.f32 %v4274, 1.442695
    %v4336 = vpow.pop %v4335
    %v4337 = vmul.f32 %v4275, 1.442695
    %v4338 = vpow.pop %v4337
    %v4339 = vmul.f32 %v4276, 1.442695
    %v4340 = vpow.pop %v4339
    %v4341 = vadd.f32 %v4278, %v4280
    %v4342 = vadd.f32 %v4341, %v4282
    %v4343 = vadd.f32 %v4342, %v4284
    %v4344 = vadd.f32 %v4343, %v4286
    %v4345 = vadd.f32 %v4344, %v4288
    %v4346 = vadd.f32 %v4345, %v4290
    %v4347 = vadd.f32 %v4346, %v4292
    %v4348 = vadd.f32 %v4347, %v4294
    %v4349 = vadd.f32 %v4348, %v4296
    %v4350 = vadd.f32 %v4349, %v4298
    %v4351 = vadd.f32 %v4350, %v4300
    %v4352 = vadd.f32 %v4351, %v4302
    %v4353 = vadd.f32 %v4352, %v4304
    %v4354 = vadd.f32 %v4353, %v4306
    %v4355 = vadd.f32 %v4354, %v4308
    %v4356 = vrot.slane %v4355, 4
    %v4357 = vadd.f32 %v4355, %v4356
    %v4358 = vrot.slane %v4357, 2
    %v4359 = vadd.f32 %v4357, %v4358
    %v4360 = vrot.slane %v4359, 1
    %v4361 = vadd.f32 %v4359, %v4360
    %v4362 = vadd.f32 %v4310, %v4312
    %v4363 = vadd.f32 %v4362, %v4314
    %v4364 = vadd.f32 %v4363, %v4316
    %v4365 = vadd.f32 %v4364, %v4318
    %v4366 = vadd.f32 %v4365, %v4320
    %v4367 = vadd.f32 %v4366, %v4322
    %v4368 = vadd.f32 %v4367, %v4324
    %v4369 = vadd.f32 %v4368, %v4326
    %v4370 = vadd.f32 %v4369, %v4328
    %v4371 = vadd.f32 %v4370, %v4330
    %v4372 = vadd.f32 %v4371, %v4332
    %v4373 = vadd.f32 %v4372, %v4334
    %v4374 = vadd.f32 %v4373, %v4336
    %v4375 = vadd.f32 %v4374, %v4338
    %v4376 = vadd.f32 %v4375, %v4340
    %v4377 = vrot.slane %v4376, 4
    %v4378 = vadd.f32 %v4376, %v4377
    %v4379 = vrot.slane %v4378, 2
    %v4380 = vadd.f32 %v4378, %v4379
    %v4381 = vrot.slane %v4380, 1
    %v4382 = vadd.f32 %v4380, %v4381
    %v4383 = vlog2.pop %v4361
    %v4384 = vmul.f32 %v4383, 0.6931472
    %v4385 = vlog2.pop %v4382
    %v4386 = vmul.f32 %v4385, 0.6931472
    %v4387 = vadd.f32 %v4223, %v4384
    %v4388 = vadd.f32 %v4244, %v4386
    %v4389 = vadd.f32 %v4387, %v3678
    %v4390 = vadd.f32 %v4388, %v4032
    %vm4391 = vcmp.eq.s32.totalorder %v165, 5
    %v4392 = vsel %vm4391, %v145, 0
    %v4393 = vsel %vm270, %v4392, 0
    %v4394 = vand.u32 %v4393, 65535
    %v4395 = vshrl.u32 %v4393, 16
    %v4396 = vcvt.s32.f32 %v4394
    %v4397 = vcvt.s32.f32 %v4395
    %4398 = vadd.xlane.f32.xlu0 %v4396
    %v4399 = vpop.xlane.xlu0 %4398
    %4400 = vadd.xlane.f32.xlu0 %v4397
    %v4401 = vpop.xlane.xlu0 %4400
    %v4402 = vcvt.f32.s32 %v4399
    %v4403 = vcvt.f32.s32 %v4401
    %v4404 = vshll.u32 %v4403, 16
    %v4405 = vadd.s32 %v4404, %v4402
    %vm4406 = vcmp.eq.s32.totalorder %v165, %v4405
    %v4407 = vsel %vm4406, 1, 0
    %v4408 = vcvt.s32.f32 %v4407
    %4409 = vmatprep.subr.mxu0 0.0
    %4410 = vmatpush1.msra.mxu0 %v146
    %4411 = vmatprep.subr.mxu0 0.0
    %4412 = vmatpush1.msra.mxu0 %v147
    %4413 = vmatprep.subr.mxu0 0.0
    %4414 = vmatpush1.msra.mxu0 %v148
    %4415 = vmatprep.subr.mxu0 0.0
    %4416 = vmatpush1.msra.mxu0 %v149
    %4417 = vmatprep.subr.mxu0 0.0
    %4418 = vmatpush1.msra.mxu0 %v150
    %4419 = vmatprep.subr.mxu0 0.0
    %4420 = vmatpush1.msra.mxu0 %v151
    %4421 = vmatprep.subr.mxu0 0.0
    %4422 = vmatpush1.msra.mxu0 %v152
    %4423 = vmatprep.subr.mxu0 0.0
    %4424 = vmatpush1.msra.mxu0 %v153
    %4425 = vmatprep.subr.mxu0 0.0
    %4426 = vmatpush1.msra.mxu0 %v154
    %4427 = vmatprep.subr.mxu0 0.0
    %4428 = vmatpush1.msra.mxu0 %v155
    %4429 = vmatprep.subr.mxu0 0.0
    %4430 = vmatpush1.msra.mxu0 %v156
    %4431 = vmatprep.subr.mxu0 0.0
    %4432 = vmatpush1.msra.mxu0 %v157
    %4433 = vmatprep.subr.mxu0 0.0
    %4434 = vmatpush1.msra.mxu0 %v158
    %4435 = vmatprep.subr.mxu0 0.0
    %4436 = vmatpush1.msra.mxu0 %v159
    %4437 = vmatprep.subr.mxu0 0.0
    %4438 = vmatpush1.msra.mxu0 %v160
    %4439 = vmatprep.subr.mxu0 0.0
    %4440 = vmatpush1.msra.mxu0 %v161
    %4441 = vmatprep.subr.mxu0 0.0
    %4442 = vmatpush1.msra.mxu0 0.0
    %4443 = vmatprep.subr.mxu0 0.0
    %4444 = vmatpush1.msra.mxu0 0.0
    %4445 = vmatprep.subr.mxu0 0.0
    %4446 = vmatpush1.msra.mxu0 0.0
    %4447 = vmatprep.subr.mxu0 0.0
    %4448 = vmatpush1.msra.mxu0 0.0
    %4449 = vmatprep.subr.mxu0 0.0
    %4450 = vmatpush1.msra.mxu0 0.0
    %4451 = vmatprep.subr.mxu0 0.0
    %4452 = vmatpush1.msra.mxu0 0.0
    %4453 = vmatprep.subr.mxu0 0.0
    %4454 = vmatpush1.msra.mxu0 0.0
    %4455 = vmatprep.subr.mxu0 0.0
    %4456 = vmatpush1.msra.mxu0 0.0
    %4457 = vmatprep.subr.mxu0 0.0
    %4458 = vmatpush1.msra.mxu0 0.0
    %4459 = vmatprep.subr.mxu0 0.0
    %4460 = vmatpush1.msra.mxu0 0.0
    %4461 = vmatprep.subr.mxu0 0.0
    %4462 = vmatpush1.msra.mxu0 0.0
    %4463 = vmatprep.subr.mxu0 0.0
    %4464 = vmatpush1.msra.mxu0 0.0
    %4465 = vmatprep.subr.mxu0 0.0
    %4466 = vmatpush1.msra.mxu0 0.0
    %4467 = vmatprep.subr.mxu0 0.0
    %4468 = vmatpush1.msra.mxu0 0.0
    %4469 = vmatprep.subr.mxu0 0.0
    %4470 = vmatpush1.msra.mxu0 0.0
    %4471 = vmatprep.subr.mxu0 0.0
    %4472 = vmatpush1.msra.mxu0 0.0
    %4473 = vmatprep.mubr.f32.mxu0 0.0
    %4474 = vmatmul.mubr.f32.gmra.mrb[0].mxu0 %v3528
    %v4475 = vpop.f32.mrb[0].mxu0
    %v4476 = vadd.f32 %v3678, %v4475
    %v4477 = vpop.f32.mrb[0].mxu0
    %4478 = vdwg.mxu0
    %v4479 = vmul.f32 %v4476, %v4408
    %v4480 = vsel %vm288, %v4479, 0.0
    %4481 = vadd.xlane.f32.xlu0 %v4480
    %v4482 = vpop.xlane.xlu0 %4481
    %v4483 = vadd.f32 %v3603, %v4482
    %v4484 = vadd.s32 %v183, 6
    %vm4485 = vcmp.eq.s32.totalorder %v165, %v4484
    %v4486 = vsel %vm4485, 1, 0
    %v4487 = vcvt.s32.f32 %v4486
    %v4489 = vsel %vm187, %v4487, 0
    %4491 = vmatprep.subr.mxu0 0.0
    %4492 = vmatpush1.msra.mxu0 %v139
    %4493 = vmatprep.subr.mxu0 0.0
    %4494 = vmatpush1.msra.mxu0 %v142
    %4495 = vmatprep.subr.mxu0 0.0
    %4496 = vmatpush1.msra.mxu0 0.0
    %4497 = vmatprep.subr.mxu0 0.0
    %4498 = vmatpush1.msra.mxu0 0.0
    %4499 = vmatprep.subr.mxu0 0.0
    %4500 = vmatpush1.msra.mxu0 0.0
    %4501 = vmatprep.subr.mxu0 0.0
    %4502 = vmatpush1.msra.mxu0 0.0
    %4503 = vmatprep.subr.mxu0 0.0
    %4504 = vmatpush1.msra.mxu0 0.0
    %4505 = vmatprep.subr.mxu0 0.0
    %4506 = vmatpush1.msra.mxu0 0.0
    %4507 = vmatprep.subr.mxu0 0.0
    %4508 = vmatpush1.msra.mxu0 0.0
    %4509 = vmatprep.subr.mxu0 0.0
    %4510 = vmatpush1.msra.mxu0 0.0
    %4511 = vmatprep.subr.mxu0 0.0
    %4512 = vmatpush1.msra.mxu0 0.0
    %4513 = vmatprep.subr.mxu0 0.0
    %4514 = vmatpush1.msra.mxu0 0.0
    %4515 = vmatprep.subr.mxu0 0.0
    %4516 = vmatpush1.msra.mxu0 0.0
    %4517 = vmatprep.subr.mxu0 0.0
    %4518 = vmatpush1.msra.mxu0 0.0
    %4519 = vmatprep.subr.mxu0 0.0
    %4520 = vmatpush1.msra.mxu0 0.0
    %4521 = vmatprep.subr.mxu0 0.0
    %4522 = vmatpush1.msra.mxu0 0.0
    %4523 = vmatprep.subr.mxu0 0.0
    %4524 = vmatpush1.msra.mxu0 0.0
    %4525 = vmatprep.subr.mxu0 0.0
    %4526 = vmatpush1.msra.mxu0 0.0
    %4527 = vmatprep.subr.mxu0 0.0
    %4528 = vmatpush1.msra.mxu0 0.0
    %4529 = vmatprep.subr.mxu0 0.0
    %4530 = vmatpush1.msra.mxu0 0.0
    %4531 = vmatprep.subr.mxu0 0.0
    %4532 = vmatpush1.msra.mxu0 0.0
    %4533 = vmatprep.subr.mxu0 0.0
    %4534 = vmatpush1.msra.mxu0 0.0
    %4535 = vmatprep.subr.mxu0 0.0
    %4536 = vmatpush1.msra.mxu0 0.0
    %4537 = vmatprep.subr.mxu0 0.0
    %4538 = vmatpush1.msra.mxu0 0.0
    %4539 = vmatprep.subr.mxu0 0.0
    %4540 = vmatpush1.msra.mxu0 0.0
    %4541 = vmatprep.subr.mxu0 0.0
    %4542 = vmatpush1.msra.mxu0 0.0
    %4543 = vmatprep.subr.mxu0 0.0
    %4544 = vmatpush1.msra.mxu0 0.0
    %4545 = vmatprep.subr.mxu0 0.0
    %4546 = vmatpush1.msra.mxu0 0.0
    %4547 = vmatprep.subr.mxu0 0.0
    %4548 = vmatpush1.msra.mxu0 0.0
    %4549 = vmatprep.subr.mxu0 0.0
    %4550 = vmatpush1.msra.mxu0 0.0
    %4551 = vmatprep.subr.mxu0 0.0
    %4552 = vmatpush1.msra.mxu0 0.0
    %4553 = vmatprep.subr.mxu0 0.0
    %4554 = vmatpush1.msra.mxu0 0.0
    %4555 = vmatprep.mubr.f32.mxu0 0.0
    %4556 = vmatmul.mubr.f32.gmra.mrb[0].mxu0 %v4489
    %v4557 = vpop.f32.mrb[0].mxu0
    %v4558 = vadd.f32 0.0, %v4557
    %v4559 = vpop.f32.mrb[0].mxu0
    %4560 = vdwg.mxu0
    %v4561 = vlaneseq
    %v4562 = vshrl.u32 %v4561, 7
    %v4563 = vsub.s32 0, %v4562
    %v4564 = vrot.slane %v4035, %v4563
    %4566 = vbcast.lane.b32.xlu0 %v4564, 256
    %v4567 = vpop.permute.xlu0 %4566
    %s4569 = sor.u32 256, 8
    %4570 = vbcast.lane.b32.xlu0 %v4564, %s4569
    %v4571 = vpop.permute.xlu0 %4570
    %s4573 = sor.u32 256, 16
    %4574 = vbcast.lane.b32.xlu0 %v4564, %s4573
    %v4575 = vpop.permute.xlu0 %4574
    %s4577 = sor.u32 256, 24
    %4578 = vbcast.lane.b32.xlu0 %v4564, %s4577
    %v4579 = vpop.permute.xlu0 %4578
    %s4581 = sor.u32 256, 32
    %4582 = vbcast.lane.b32.xlu0 %v4564, %s4581
    %v4583 = vpop.permute.xlu0 %4582
    %s4585 = sor.u32 256, 40
    %4586 = vbcast.lane.b32.xlu0 %v4564, %s4585
    %v4587 = vpop.permute.xlu0 %4586
    %s4589 = sor.u32 256, 48
    %4590 = vbcast.lane.b32.xlu0 %v4564, %s4589
    %v4591 = vpop.permute.xlu0 %4590
    %s4593 = sor.u32 256, 56
    %4594 = vbcast.lane.b32.xlu0 %v4564, %s4593
    %v4595 = vpop.permute.xlu0 %4594
    %s4597 = sor.u32 256, 64
    %4598 = vbcast.lane.b32.xlu0 %v4564, %s4597
    %v4599 = vpop.permute.xlu0 %4598
    %s4601 = sor.u32 256, 72
    %4602 = vbcast.lane.b32.xlu0 %v4564, %s4601
    %v4603 = vpop.permute.xlu0 %4602
    %s4605 = sor.u32 256, 80
    %4606 = vbcast.lane.b32.xlu0 %v4564, %s4605
    %v4607 = vpop.permute.xlu0 %4606
    %s4609 = sor.u32 256, 88
    %4610 = vbcast.lane.b32.xlu0 %v4564, %s4609
    %v4611 = vpop.permute.xlu0 %4610
    %s4613 = sor.u32 256, 96
    %4614 = vbcast.lane.b32.xlu0 %v4564, %s4613
    %v4615 = vpop.permute.xlu0 %4614
    %s4617 = sor.u32 256, 104
    %4618 = vbcast.lane.b32.xlu0 %v4564, %s4617
    %v4619 = vpop.permute.xlu0 %4618
    %s4621 = sor.u32 256, 112
    %4622 = vbcast.lane.b32.xlu0 %v4564, %s4621
    %v4623 = vpop.permute.xlu0 %4622
    %s4625 = sor.u32 256, 120
    %4626 = vbcast.lane.b32.xlu0 %v4564, %s4625
    %v4627 = vpop.permute.xlu0 %4626
    %v4628 = vlaneseq
    %v4629 = vshrl.u32 %v4628, 7
    %v4630 = vsub.s32 0, %v4629
    %v4631 = vrot.slane %v4036, %v4630
    %4633 = vbcast.lane.b32.xlu0 %v4631, 256
    %v4634 = vpop.permute.xlu0 %4633
    %s4636 = sor.u32 256, 8
    %4637 = vbcast.lane.b32.xlu0 %v4631, %s4636
    %v4638 = vpop.permute.xlu0 %4637
    %s4640 = sor.u32 256, 16
    %4641 = vbcast.lane.b32.xlu0 %v4631, %s4640
    %v4642 = vpop.permute.xlu0 %4641
    %s4644 = sor.u32 256, 24
    %4645 = vbcast.lane.b32.xlu0 %v4631, %s4644
    %v4646 = vpop.permute.xlu0 %4645
    %s4648 = sor.u32 256, 32
    %4649 = vbcast.lane.b32.xlu0 %v4631, %s4648
    %v4650 = vpop.permute.xlu0 %4649
    %s4652 = sor.u32 256, 40
    %4653 = vbcast.lane.b32.xlu0 %v4631, %s4652
    %v4654 = vpop.permute.xlu0 %4653
    %s4656 = sor.u32 256, 48
    %4657 = vbcast.lane.b32.xlu0 %v4631, %s4656
    %v4658 = vpop.permute.xlu0 %4657
    %s4660 = sor.u32 256, 56
    %4661 = vbcast.lane.b32.xlu0 %v4631, %s4660
    %v4662 = vpop.permute.xlu0 %4661
    %s4664 = sor.u32 256, 64
    %4665 = vbcast.lane.b32.xlu0 %v4631, %s4664
    %v4666 = vpop.permute.xlu0 %4665
    %s4668 = sor.u32 256, 72
    %4669 = vbcast.lane.b32.xlu0 %v4631, %s4668
    %v4670 = vpop.permute.xlu0 %4669
    %s4672 = sor.u32 256, 80
    %4673 = vbcast.lane.b32.xlu0 %v4631, %s4672
    %v4674 = vpop.permute.xlu0 %4673
    %s4676 = sor.u32 256, 88
    %4677 = vbcast.lane.b32.xlu0 %v4631, %s4676
    %v4678 = vpop.permute.xlu0 %4677
    %s4680 = sor.u32 256, 96
    %4681 = vbcast.lane.b32.xlu0 %v4631, %s4680
    %v4682 = vpop.permute.xlu0 %4681
    %s4684 = sor.u32 256, 104
    %4685 = vbcast.lane.b32.xlu0 %v4631, %s4684
    %v4686 = vpop.permute.xlu0 %4685
    %s4688 = sor.u32 256, 112
    %4689 = vbcast.lane.b32.xlu0 %v4631, %s4688
    %v4690 = vpop.permute.xlu0 %4689
    %s4692 = sor.u32 256, 120
    %4693 = vbcast.lane.b32.xlu0 %v4631, %s4692
    %v4694 = vpop.permute.xlu0 %4693
    %v4695 = vadd.f32 %v4567, %v146
    %v4696 = vadd.f32 %v4571, %v147
    %v4697 = vadd.f32 %v4575, %v148
    %v4698 = vadd.f32 %v4579, %v149
    %v4699 = vadd.f32 %v4583, %v150
    %v4700 = vadd.f32 %v4587, %v151
    %v4701 = vadd.f32 %v4591, %v152
    %v4702 = vadd.f32 %v4595, %v153
    %v4703 = vadd.f32 %v4599, %v154
    %v4704 = vadd.f32 %v4603, %v155
    %v4705 = vadd.f32 %v4607, %v156
    %v4706 = vadd.f32 %v4611, %v157
    %v4707 = vadd.f32 %v4615, %v158
    %v4708 = vadd.f32 %v4619, %v159
    %v4709 = vadd.f32 %v4623, %v160
    %v4710 = vadd.f32 %v4627, %v161
    %v4711 = vadd.f32 %v4634, %v146
    %v4712 = vadd.f32 %v4638, %v147
    %v4713 = vadd.f32 %v4642, %v148
    %v4714 = vadd.f32 %v4646, %v149
    %v4715 = vadd.f32 %v4650, %v150
    %v4716 = vadd.f32 %v4654, %v151
    %v4717 = vadd.f32 %v4658, %v152
    %v4718 = vadd.f32 %v4662, %v153
    %v4719 = vadd.f32 %v4666, %v154
    %v4720 = vadd.f32 %v4670, %v155
    %v4721 = vadd.f32 %v4674, %v156
    %v4722 = vadd.f32 %v4678, %v157
    %v4723 = vadd.f32 %v4682, %v158
    %v4724 = vadd.f32 %v4686, %v159
    %v4725 = vadd.f32 %v4690, %v160
    %v4726 = vadd.f32 %v4694, %v161
    %v4727 = vmax.f32 %v4695, %v4697
    %v4728 = vmax.f32 %v4696, %v4698
    %v4729 = vmax.f32 %v4727, %v4699
    %v4730 = vmax.f32 %v4728, %v4700
    %v4731 = vmax.f32 %v4729, %v4701
    %v4732 = vmax.f32 %v4730, %v4702
    %v4733 = vmax.f32 %v4731, %v4703
    %v4734 = vmax.f32 %v4732, %v4704
    %v4735 = vmax.f32 %v4733, %v4705
    %v4736 = vmax.f32 %v4734, %v4706
    %v4737 = vmax.f32 %v4735, %v4707
    %v4738 = vmax.f32 %v4736, %v4708
    %v4739 = vmax.f32 %v4737, %v4709
    %v4740 = vmax.f32 %v4738, %v4710
    %v4741 = vmax.f32 %v4739, %v4740
    %v4742 = vrot.slane %v4741, 4
    %v4743 = vmax.f32 %v4741, %v4742
    %v4744 = vrot.slane %v4743, 2
    %v4745 = vmax.f32 %v4743, %v4744
    %v4746 = vrot.slane %v4745, 1
    %v4747 = vmax.f32 %v4745, %v4746
    %v4748 = vmax.f32 %v4711, %v4713
    %v4749 = vmax.f32 %v4712, %v4714
    %v4750 = vmax.f32 %v4748, %v4715
    %v4751 = vmax.f32 %v4749, %v4716
    %v4752 = vmax.f32 %v4750, %v4717
    %v4753 = vmax.f32 %v4751, %v4718
    %v4754 = vmax.f32 %v4752, %v4719
    %v4755 = vmax.f32 %v4753, %v4720
    %v4756 = vmax.f32 %v4754, %v4721
    %v4757 = vmax.f32 %v4755, %v4722
    %v4758 = vmax.f32 %v4756, %v4723
    %v4759 = vmax.f32 %v4757, %v4724
    %v4760 = vmax.f32 %v4758, %v4725
    %v4761 = vmax.f32 %v4759, %v4726
    %v4762 = vmax.f32 %v4760, %v4761
    %v4763 = vrot.slane %v4762, 4
    %v4764 = vmax.f32 %v4762, %v4763
    %v4765 = vrot.slane %v4764, 2
    %v4766 = vmax.f32 %v4764, %v4765
    %v4767 = vrot.slane %v4766, 1
    %v4768 = vmax.f32 %v4766, %v4767
    %vm4769 = vcmp.ge.f32.partialorder %v4695, %v4747
    %vm4770 = vcmp.ge.f32.partialorder %v4696, %v4747
    %vm4771 = vcmp.ge.f32.partialorder %v4697, %v4747
    %vm4772 = vcmp.ge.f32.partialorder %v4698, %v4747
    %vm4773 = vcmp.ge.f32.partialorder %v4699, %v4747
    %vm4774 = vcmp.ge.f32.partialorder %v4700, %v4747
    %vm4775 = vcmp.ge.f32.partialorder %v4701, %v4747
    %vm4776 = vcmp.ge.f32.partialorder %v4702, %v4747
    %vm4777 = vcmp.ge.f32.partialorder %v4703, %v4747
    %vm4778 = vcmp.ge.f32.partialorder %v4704, %v4747
    %vm4779 = vcmp.ge.f32.partialorder %v4705, %v4747
    %vm4780 = vcmp.ge.f32.partialorder %v4706, %v4747
    %vm4781 = vcmp.ge.f32.partialorder %v4707, %v4747
    %vm4782 = vcmp.ge.f32.partialorder %v4708, %v4747
    %vm4783 = vcmp.ge.f32.partialorder %v4709, %v4747
    %vm4784 = vcmp.ge.f32.partialorder %v4710, %v4747
    %vm4785 = vcmp.ge.f32.partialorder %v4711, %v4768
    %vm4786 = vcmp.ge.f32.partialorder %v4712, %v4768
    %vm4787 = vcmp.ge.f32.partialorder %v4713, %v4768
    %vm4788 = vcmp.ge.f32.partialorder %v4714, %v4768
    %vm4789 = vcmp.ge.f32.partialorder %v4715, %v4768
    %vm4790 = vcmp.ge.f32.partialorder %v4716, %v4768
    %vm4791 = vcmp.ge.f32.partialorder %v4717, %v4768
    %vm4792 = vcmp.ge.f32.partialorder %v4718, %v4768
    %vm4793 = vcmp.ge.f32.partialorder %v4719, %v4768
    %vm4794 = vcmp.ge.f32.partialorder %v4720, %v4768
    %vm4795 = vcmp.ge.f32.partialorder %v4721, %v4768
    %vm4796 = vcmp.ge.f32.partialorder %v4722, %v4768
    %vm4797 = vcmp.ge.f32.partialorder %v4723, %v4768
    %vm4798 = vcmp.ge.f32.partialorder %v4724, %v4768
    %vm4799 = vcmp.ge.f32.partialorder %v4725, %v4768
    %vm4800 = vcmp.ge.f32.partialorder %v4726, %v4768
    %v4801 = vsel %vm4769, %v167, 128
    %v4802 = vsel %vm4770, %v168, 128
    %v4803 = vsel %vm4771, %v169, 128
    %v4804 = vsel %vm4772, %v170, 128
    %v4805 = vsel %vm4773, %v171, 128
    %v4806 = vsel %vm4774, %v172, 128
    %v4807 = vsel %vm4775, %v173, 128
    %v4808 = vsel %vm4776, %v174, 128
    %v4809 = vsel %vm4777, %v175, 128
    %v4810 = vsel %vm4778, %v176, 128
    %v4811 = vsel %vm4779, %v177, 128
    %v4812 = vsel %vm4780, %v178, 128
    %v4813 = vsel %vm4781, %v179, 128
    %v4814 = vsel %vm4782, %v180, 128
    %v4815 = vsel %vm4783, %v181, 128
    %v4816 = vsel %vm4784, %v182, 128
    %v4817 = vsel %vm4785, %v167, 128
    %v4818 = vsel %vm4786, %v168, 128
    %v4819 = vsel %vm4787, %v169, 128
    %v4820 = vsel %vm4788, %v170, 128
    %v4821 = vsel %vm4789, %v171, 128
    %v4822 = vsel %vm4790, %v172, 128
    %v4823 = vsel %vm4791, %v173, 128
    %v4824 = vsel %vm4792, %v174, 128
    %v4825 = vsel %vm4793, %v175, 128
    %v4826 = vsel %vm4794, %v176, 128
    %v4827 = vsel %vm4795, %v177, 128
    %v4828 = vsel %vm4796, %v178, 128
    %v4829 = vsel %vm4797, %v179, 128
    %v4830 = vsel %vm4798, %v180, 128
    %v4831 = vsel %vm4799, %v181, 128
    %v4832 = vsel %vm4800, %v182, 128
    %vm4833 = vcmp.lt.s32.totalorder %v4801, %v4803
    %v4834 = vsel %vm4833, %v4801, %v4803
    %vm4835 = vcmp.lt.s32.totalorder %v4802, %v4804
    %v4836 = vsel %vm4835, %v4802, %v4804
    %vm4837 = vcmp.lt.s32.totalorder %v4834, %v4805
    %v4838 = vsel %vm4837, %v4834, %v4805
    %vm4839 = vcmp.lt.s32.totalorder %v4836, %v4806
    %v4840 = vsel %vm4839, %v4836, %v4806
    %vm4841 = vcmp.lt.s32.totalorder %v4838, %v4807
    %v4842 = vsel %vm4841, %v4838, %v4807
    %vm4843 = vcmp.lt.s32.totalorder %v4840, %v4808
    %v4844 = vsel %vm4843, %v4840, %v4808
    %vm4845 = vcmp.lt.s32.totalorder %v4842, %v4809
    %v4846 = vsel %vm4845, %v4842, %v4809
    %vm4847 = vcmp.lt.s32.totalorder %v4844, %v4810
    %v4848 = vsel %vm4847, %v4844, %v4810
    %vm4849 = vcmp.lt.s32.totalorder %v4846, %v4811
    %v4850 = vsel %vm4849, %v4846, %v4811
    %vm4851 = vcmp.lt.s32.totalorder %v4848, %v4812
    %v4852 = vsel %vm4851, %v4848, %v4812
    %vm4853 = vcmp.lt.s32.totalorder %v4850, %v4813
    %v4854 = vsel %vm4853, %v4850, %v4813
    %vm4855 = vcmp.lt.s32.totalorder %v4852, %v4814
    %v4856 = vsel %vm4855, %v4852, %v4814
    %vm4857 = vcmp.lt.s32.totalorder %v4854, %v4815
    %v4858 = vsel %vm4857, %v4854, %v4815
    %vm4859 = vcmp.lt.s32.totalorder %v4856, %v4816
    %v4860 = vsel %vm4859, %v4856, %v4816
    %vm4861 = vcmp.lt.s32.totalorder %v4858, %v4860
    %v4862 = vsel %vm4861, %v4858, %v4860
    %v4863 = vrot.slane %v4862, 4
    %vm4864 = vcmp.lt.s32.totalorder %v4862, %v4863
    %v4865 = vsel %vm4864, %v4862, %v4863
    %v4866 = vrot.slane %v4865, 2
    %vm4867 = vcmp.lt.s32.totalorder %v4865, %v4866
    %v4868 = vsel %vm4867, %v4865, %v4866
    %v4869 = vrot.slane %v4868, 1
    %vm4870 = vcmp.lt.s32.totalorder %v4868, %v4869
    %v4871 = vsel %vm4870, %v4868, %v4869
    %vm4872 = vcmp.lt.s32.totalorder %v4817, %v4819
    %v4873 = vsel %vm4872, %v4817, %v4819
    %vm4874 = vcmp.lt.s32.totalorder %v4818, %v4820
    %v4875 = vsel %vm4874, %v4818, %v4820
    %vm4876 = vcmp.lt.s32.totalorder %v4873, %v4821
    %v4877 = vsel %vm4876, %v4873, %v4821
    %vm4878 = vcmp.lt.s32.totalorder %v4875, %v4822
    %v4879 = vsel %vm4878, %v4875, %v4822
    %vm4880 = vcmp.lt.s32.totalorder %v4877, %v4823
    %v4881 = vsel %vm4880, %v4877, %v4823
    %vm4882 = vcmp.lt.s32.totalorder %v4879, %v4824
    %v4883 = vsel %vm4882, %v4879, %v4824
    %vm4884 = vcmp.lt.s32.totalorder %v4881, %v4825
    %v4885 = vsel %vm4884, %v4881, %v4825
    %vm4886 = vcmp.lt.s32.totalorder %v4883, %v4826
    %v4887 = vsel %vm4886, %v4883, %v4826
    %vm4888 = vcmp.lt.s32.totalorder %v4885, %v4827
    %v4889 = vsel %vm4888, %v4885, %v4827
    %vm4890 = vcmp.lt.s32.totalorder %v4887, %v4828
    %v4891 = vsel %vm4890, %v4887, %v4828
    %vm4892 = vcmp.lt.s32.totalorder %v4889, %v4829
    %v4893 = vsel %vm4892, %v4889, %v4829
    %vm4894 = vcmp.lt.s32.totalorder %v4891, %v4830
    %v4895 = vsel %vm4894, %v4891, %v4830
    %vm4896 = vcmp.lt.s32.totalorder %v4893, %v4831
    %v4897 = vsel %vm4896, %v4893, %v4831
    %vm4898 = vcmp.lt.s32.totalorder %v4895, %v4832
    %v4899 = vsel %vm4898, %v4895, %v4832
    %vm4900 = vcmp.lt.s32.totalorder %v4897, %v4899
    %v4901 = vsel %vm4900, %v4897, %v4899
    %v4902 = vrot.slane %v4901, 4
    %vm4903 = vcmp.lt.s32.totalorder %v4901, %v4902
    %v4904 = vsel %vm4903, %v4901, %v4902
    %v4905 = vrot.slane %v4904, 2
    %vm4906 = vcmp.lt.s32.totalorder %v4904, %v4905
    %v4907 = vsel %vm4906, %v4904, %v4905
    %v4908 = vrot.slane %v4907, 1
    %vm4909 = vcmp.lt.s32.totalorder %v4907, %v4908
    %v4910 = vsel %vm4909, %v4907, %v4908
    %v4912 = vrot.slane %v4558, 1
    %v4915 = vadd.f32 %v4747, %v4558
    %v4916 = vadd.f32 %v4768, %v4912
    %v4917 = vlaneseq
    %v4918 = vshrl.u32 %v4917, 7
    %v4919 = vsub.s32 0, %v4918
    %v4920 = vrot.slane %v4389, %v4919
    %4922 = vbcast.lane.b32.xlu0 %v4920, 256
    %v4923 = vpop.permute.xlu0 %4922
    %s4925 = sor.u32 256, 8
    %4926 = vbcast.lane.b32.xlu0 %v4920, %s4925
    %v4927 = vpop.permute.xlu0 %4926
    %s4929 = sor.u32 256, 16
    %4930 = vbcast.lane.b32.xlu0 %v4920, %s4929
    %v4931 = vpop.permute.xlu0 %4930
    %s4933 = sor.u32 256, 24
    %4934 = vbcast.lane.b32.xlu0 %v4920, %s4933
    %v4935 = vpop.permute.xlu0 %4934
    %s4937 = sor.u32 256, 32
    %4938 = vbcast.lane.b32.xlu0 %v4920, %s4937
    %v4939 = vpop.permute.xlu0 %4938
    %s4941 = sor.u32 256, 40
    %4942 = vbcast.lane.b32.xlu0 %v4920, %s4941
    %v4943 = vpop.permute.xlu0 %4942
    %s4945 = sor.u32 256, 48
    %4946 = vbcast.lane.b32.xlu0 %v4920, %s4945
    %v4947 = vpop.permute.xlu0 %4946
    %s4949 = sor.u32 256, 56
    %4950 = vbcast.lane.b32.xlu0 %v4920, %s4949
    %v4951 = vpop.permute.xlu0 %4950
    %s4953 = sor.u32 256, 64
    %4954 = vbcast.lane.b32.xlu0 %v4920, %s4953
    %v4955 = vpop.permute.xlu0 %4954
    %s4957 = sor.u32 256, 72
    %4958 = vbcast.lane.b32.xlu0 %v4920, %s4957
    %v4959 = vpop.permute.xlu0 %4958
    %s4961 = sor.u32 256, 80
    %4962 = vbcast.lane.b32.xlu0 %v4920, %s4961
    %v4963 = vpop.permute.xlu0 %4962
    %s4965 = sor.u32 256, 88
    %4966 = vbcast.lane.b32.xlu0 %v4920, %s4965
    %v4967 = vpop.permute.xlu0 %4966
    %s4969 = sor.u32 256, 96
    %4970 = vbcast.lane.b32.xlu0 %v4920, %s4969
    %v4971 = vpop.permute.xlu0 %4970
    %s4973 = sor.u32 256, 104
    %4974 = vbcast.lane.b32.xlu0 %v4920, %s4973
    %v4975 = vpop.permute.xlu0 %4974
    %s4977 = sor.u32 256, 112
    %4978 = vbcast.lane.b32.xlu0 %v4920, %s4977
    %v4979 = vpop.permute.xlu0 %4978
    %s4981 = sor.u32 256, 120
    %4982 = vbcast.lane.b32.xlu0 %v4920, %s4981
    %v4983 = vpop.permute.xlu0 %4982
    %v4984 = vlaneseq
    %v4985 = vshrl.u32 %v4984, 7
    %v4986 = vsub.s32 0, %v4985
    %v4987 = vrot.slane %v4390, %v4986
    %4989 = vbcast.lane.b32.xlu0 %v4987, 256
    %v4990 = vpop.permute.xlu0 %4989
    %s4992 = sor.u32 256, 8
    %4993 = vbcast.lane.b32.xlu0 %v4987, %s4992
    %v4994 = vpop.permute.xlu0 %4993
    %s4996 = sor.u32 256, 16
    %4997 = vbcast.lane.b32.xlu0 %v4987, %s4996
    %v4998 = vpop.permute.xlu0 %4997
    %s5000 = sor.u32 256, 24
    %5001 = vbcast.lane.b32.xlu0 %v4987, %s5000
    %v5002 = vpop.permute.xlu0 %5001
    %s5004 = sor.u32 256, 32
    %5005 = vbcast.lane.b32.xlu0 %v4987, %s5004
    %v5006 = vpop.permute.xlu0 %5005
    %s5008 = sor.u32 256, 40
    %5009 = vbcast.lane.b32.xlu0 %v4987, %s5008
    %v5010 = vpop.permute.xlu0 %5009
    %s5012 = sor.u32 256, 48
    %5013 = vbcast.lane.b32.xlu0 %v4987, %s5012
    %v5014 = vpop.permute.xlu0 %5013
    %s5016 = sor.u32 256, 56
    %5017 = vbcast.lane.b32.xlu0 %v4987, %s5016
    %v5018 = vpop.permute.xlu0 %5017
    %s5020 = sor.u32 256, 64
    %5021 = vbcast.lane.b32.xlu0 %v4987, %s5020
    %v5022 = vpop.permute.xlu0 %5021
    %s5024 = sor.u32 256, 72
    %5025 = vbcast.lane.b32.xlu0 %v4987, %s5024
    %v5026 = vpop.permute.xlu0 %5025
    %s5028 = sor.u32 256, 80
    %5029 = vbcast.lane.b32.xlu0 %v4987, %s5028
    %v5030 = vpop.permute.xlu0 %5029
    %s5032 = sor.u32 256, 88
    %5033 = vbcast.lane.b32.xlu0 %v4987, %s5032
    %v5034 = vpop.permute.xlu0 %5033
    %s5036 = sor.u32 256, 96
    %5037 = vbcast.lane.b32.xlu0 %v4987, %s5036
    %v5038 = vpop.permute.xlu0 %5037
    %s5040 = sor.u32 256, 104
    %5041 = vbcast.lane.b32.xlu0 %v4987, %s5040
    %v5042 = vpop.permute.xlu0 %5041
    %s5044 = sor.u32 256, 112
    %5045 = vbcast.lane.b32.xlu0 %v4987, %s5044
    %v5046 = vpop.permute.xlu0 %5045
    %s5048 = sor.u32 256, 120
    %5049 = vbcast.lane.b32.xlu0 %v4987, %s5048
    %v5050 = vpop.permute.xlu0 %5049
    %v5051 = vadd.f32 %v4923, %v146
    %v5052 = vadd.f32 %v4927, %v147
    %v5053 = vadd.f32 %v4931, %v148
    %v5054 = vadd.f32 %v4935, %v149
    %v5055 = vadd.f32 %v4939, %v150
    %v5056 = vadd.f32 %v4943, %v151
    %v5057 = vadd.f32 %v4947, %v152
    %v5058 = vadd.f32 %v4951, %v153
    %v5059 = vadd.f32 %v4955, %v154
    %v5060 = vadd.f32 %v4959, %v155
    %v5061 = vadd.f32 %v4963, %v156
    %v5062 = vadd.f32 %v4967, %v157
    %v5063 = vadd.f32 %v4971, %v158
    %v5064 = vadd.f32 %v4975, %v159
    %v5065 = vadd.f32 %v4979, %v160
    %v5066 = vadd.f32 %v4983, %v161
    %v5067 = vadd.f32 %v4990, %v146
    %v5068 = vadd.f32 %v4994, %v147
    %v5069 = vadd.f32 %v4998, %v148
    %v5070 = vadd.f32 %v5002, %v149
    %v5071 = vadd.f32 %v5006, %v150
    %v5072 = vadd.f32 %v5010, %v151
    %v5073 = vadd.f32 %v5014, %v152
    %v5074 = vadd.f32 %v5018, %v153
    %v5075 = vadd.f32 %v5022, %v154
    %v5076 = vadd.f32 %v5026, %v155
    %v5077 = vadd.f32 %v5030, %v156
    %v5078 = vadd.f32 %v5034, %v157
    %v5079 = vadd.f32 %v5038, %v158
    %v5080 = vadd.f32 %v5042, %v159
    %v5081 = vadd.f32 %v5046, %v160
    %v5082 = vadd.f32 %v5050, %v161
    %v5083 = vmax.f32 %v5051, %v5053
    %v5084 = vmax.f32 %v5052, %v5054
    %v5085 = vmax.f32 %v5083, %v5055
    %v5086 = vmax.f32 %v5084, %v5056
    %v5087 = vmax.f32 %v5085, %v5057
    %v5088 = vmax.f32 %v5086, %v5058
    %v5089 = vmax.f32 %v5087, %v5059
    %v5090 = vmax.f32 %v5088, %v5060
    %v5091 = vmax.f32 %v5089, %v5061
    %v5092 = vmax.f32 %v5090, %v5062
    %v5093 = vmax.f32 %v5091, %v5063
    %v5094 = vmax.f32 %v5092, %v5064
    %v5095 = vmax.f32 %v5093, %v5065
    %v5096 = vmax.f32 %v5094, %v5066
    %v5097 = vmax.f32 %v5095, %v5096
    %v5098 = vrot.slane %v5097, 4
    %v5099 = vmax.f32 %v5097, %v5098
    %v5100 = vrot.slane %v5099, 2
    %v5101 = vmax.f32 %v5099, %v5100
    %v5102 = vrot.slane %v5101, 1
    %v5103 = vmax.f32 %v5101, %v5102
    %v5104 = vmax.f32 %v5067, %v5069
    %v5105 = vmax.f32 %v5068, %v5070
    %v5106 = vmax.f32 %v5104, %v5071
    %v5107 = vmax.f32 %v5105, %v5072
    %v5108 = vmax.f32 %v5106, %v5073
    %v5109 = vmax.f32 %v5107, %v5074
    %v5110 = vmax.f32 %v5108, %v5075
    %v5111 = vmax.f32 %v5109, %v5076
    %v5112 = vmax.f32 %v5110, %v5077
    %v5113 = vmax.f32 %v5111, %v5078
    %v5114 = vmax.f32 %v5112, %v5079
    %v5115 = vmax.f32 %v5113, %v5080
    %v5116 = vmax.f32 %v5114, %v5081
    %v5117 = vmax.f32 %v5115, %v5082
    %v5118 = vmax.f32 %v5116, %v5117
    %v5119 = vrot.slane %v5118, 4
    %v5120 = vmax.f32 %v5118, %v5119
    %v5121 = vrot.slane %v5120, 2
    %v5122 = vmax.f32 %v5120, %v5121
    %v5123 = vrot.slane %v5122, 1
    %v5124 = vmax.f32 %v5122, %v5123
    %v5125 = vsub.f32 %v5051, %v5103
    %v5126 = vsub.f32 %v5052, %v5103
    %v5127 = vsub.f32 %v5053, %v5103
    %v5128 = vsub.f32 %v5054, %v5103
    %v5129 = vsub.f32 %v5055, %v5103
    %v5130 = vsub.f32 %v5056, %v5103
    %v5131 = vsub.f32 %v5057, %v5103
    %v5132 = vsub.f32 %v5058, %v5103
    %v5133 = vsub.f32 %v5059, %v5103
    %v5134 = vsub.f32 %v5060, %v5103
    %v5135 = vsub.f32 %v5061, %v5103
    %v5136 = vsub.f32 %v5062, %v5103
    %v5137 = vsub.f32 %v5063, %v5103
    %v5138 = vsub.f32 %v5064, %v5103
    %v5139 = vsub.f32 %v5065, %v5103
    %v5140 = vsub.f32 %v5066, %v5103
    %v5141 = vsub.f32 %v5067, %v5124
    %v5142 = vsub.f32 %v5068, %v5124
    %v5143 = vsub.f32 %v5069, %v5124
    %v5144 = vsub.f32 %v5070, %v5124
    %v5145 = vsub.f32 %v5071, %v5124
    %v5146 = vsub.f32 %v5072, %v5124
    %v5147 = vsub.f32 %v5073, %v5124
    %v5148 = vsub.f32 %v5074, %v5124
    %v5149 = vsub.f32 %v5075, %v5124
    %v5150 = vsub.f32 %v5076, %v5124
    %v5151 = vsub.f32 %v5077, %v5124
    %v5152 = vsub.f32 %v5078, %v5124
    %v5153 = vsub.f32 %v5079, %v5124
    %v5154 = vsub.f32 %v5080, %v5124
    %v5155 = vsub.f32 %v5081, %v5124
    %v5156 = vsub.f32 %v5082, %v5124
    %v5157 = vmul.f32 %v5125, 1.442695
    %v5158 = vpow.pop %v5157
    %v5159 = vmul.f32 %v5126, 1.442695
    %v5160 = vpow.pop %v5159
    %v5161 = vmul.f32 %v5127, 1.442695
    %v5162 = vpow.pop %v5161
    %v5163 = vmul.f32 %v5128, 1.442695
    %v5164 = vpow.pop %v5163
    %v5165 = vmul.f32 %v5129, 1.442695
    %v5166 = vpow.pop %v5165
    %v5167 = vmul.f32 %v5130, 1.442695
    %v5168 = vpow.pop %v5167
    %v5169 = vmul.f32 %v5131, 1.442695
    %v5170 = vpow.pop %v5169
    %v5171 = vmul.f32 %v5132, 1.442695
    %v5172 = vpow.pop %v5171
    %v5173 = vmul.f32 %v5133, 1.442695
    %v5174 = vpow.pop %v5173
    %v5175 = vmul.f32 %v5134, 1.442695
    %v5176 = vpow.pop %v5175
    %v5177 = vmul.f32 %v5135, 1.442695
    %v5178 = vpow.pop %v5177
    %v5179 = vmul.f32 %v5136, 1.442695
    %v5180 = vpow.pop %v5179
    %v5181 = vmul.f32 %v5137, 1.442695
    %v5182 = vpow.pop %v5181
    %v5183 = vmul.f32 %v5138, 1.442695
    %v5184 = vpow.pop %v5183
    %v5185 = vmul.f32 %v5139, 1.442695
    %v5186 = vpow.pop %v5185
    %v5187 = vmul.f32 %v5140, 1.442695
    %v5188 = vpow.pop %v5187
    %v5189 = vmul.f32 %v5141, 1.442695
    %v5190 = vpow.pop %v5189
    %v5191 = vmul.f32 %v5142, 1.442695
    %v5192 = vpow.pop %v5191
    %v5193 = vmul.f32 %v5143, 1.442695
    %v5194 = vpow.pop %v5193
    %v5195 = vmul.f32 %v5144, 1.442695
    %v5196 = vpow.pop %v5195
    %v5197 = vmul.f32 %v5145, 1.442695
    %v5198 = vpow.pop %v5197
    %v5199 = vmul.f32 %v5146, 1.442695
    %v5200 = vpow.pop %v5199
    %v5201 = vmul.f32 %v5147, 1.442695
    %v5202 = vpow.pop %v5201
    %v5203 = vmul.f32 %v5148, 1.442695
    %v5204 = vpow.pop %v5203
    %v5205 = vmul.f32 %v5149, 1.442695
    %v5206 = vpow.pop %v5205
    %v5207 = vmul.f32 %v5150, 1.442695
    %v5208 = vpow.pop %v5207
    %v5209 = vmul.f32 %v5151, 1.442695
    %v5210 = vpow.pop %v5209
    %v5211 = vmul.f32 %v5152, 1.442695
    %v5212 = vpow.pop %v5211
    %v5213 = vmul.f32 %v5153, 1.442695
    %v5214 = vpow.pop %v5213
    %v5215 = vmul.f32 %v5154, 1.442695
    %v5216 = vpow.pop %v5215
    %v5217 = vmul.f32 %v5155, 1.442695
    %v5218 = vpow.pop %v5217
    %v5219 = vmul.f32 %v5156, 1.442695
    %v5220 = vpow.pop %v5219
    %v5221 = vadd.f32 %v5158, %v5160
    %v5222 = vadd.f32 %v5221, %v5162
    %v5223 = vadd.f32 %v5222, %v5164
    %v5224 = vadd.f32 %v5223, %v5166
    %v5225 = vadd.f32 %v5224, %v5168
    %v5226 = vadd.f32 %v5225, %v5170
    %v5227 = vadd.f32 %v5226, %v5172
    %v5228 = vadd.f32 %v5227, %v5174
    %v5229 = vadd.f32 %v5228, %v5176
    %v5230 = vadd.f32 %v5229, %v5178
    %v5231 = vadd.f32 %v5230, %v5180
    %v5232 = vadd.f32 %v5231, %v5182
    %v5233 = vadd.f32 %v5232, %v5184
    %v5234 = vadd.f32 %v5233, %v5186
    %v5235 = vadd.f32 %v5234, %v5188
    %v5236 = vrot.slane %v5235, 4
    %v5237 = vadd.f32 %v5235, %v5236
    %v5238 = vrot.slane %v5237, 2
    %v5239 = vadd.f32 %v5237, %v5238
    %v5240 = vrot.slane %v5239, 1
    %v5241 = vadd.f32 %v5239, %v5240
    %v5242 = vadd.f32 %v5190, %v5192
    %v5243 = vadd.f32 %v5242, %v5194
    %v5244 = vadd.f32 %v5243, %v5196
    %v5245 = vadd.f32 %v5244, %v5198
    %v5246 = vadd.f32 %v5245, %v5200
    %v5247 = vadd.f32 %v5246, %v5202
    %v5248 = vadd.f32 %v5247, %v5204
    %v5249 = vadd.f32 %v5248, %v5206
    %v5250 = vadd.f32 %v5249, %v5208
    %v5251 = vadd.f32 %v5250, %v5210
    %v5252 = vadd.f32 %v5251, %v5212
    %v5253 = vadd.f32 %v5252, %v5214
    %v5254 = vadd.f32 %v5253, %v5216
    %v5255 = vadd.f32 %v5254, %v5218
    %v5256 = vadd.f32 %v5255, %v5220
    %v5257 = vrot.slane %v5256, 4
    %v5258 = vadd.f32 %v5256, %v5257
    %v5259 = vrot.slane %v5258, 2
    %v5260 = vadd.f32 %v5258, %v5259
    %v5261 = vrot.slane %v5260, 1
    %v5262 = vadd.f32 %v5260, %v5261
    %v5263 = vlog2.pop %v5241
    %v5264 = vmul.f32 %v5263, 0.6931472
    %v5265 = vlog2.pop %v5262
    %v5266 = vmul.f32 %v5265, 0.6931472
    %v5267 = vadd.f32 %v5103, %v5264
    %v5268 = vadd.f32 %v5124, %v5266
    %v5269 = vadd.f32 %v5267, %v4558
    %v5270 = vadd.f32 %v5268, %v4912
    %vm5271 = vcmp.eq.s32.totalorder %v165, 6
    %v5272 = vsel %vm5271, %v145, 0
    %v5273 = vsel %vm270, %v5272, 0
    %v5274 = vand.u32 %v5273, 65535
    %v5275 = vshrl.u32 %v5273, 16
    %v5276 = vcvt.s32.f32 %v5274
    %v5277 = vcvt.s32.f32 %v5275
    %5278 = vadd.xlane.f32.xlu0 %v5276
    %v5279 = vpop.xlane.xlu0 %5278
    %5280 = vadd.xlane.f32.xlu0 %v5277
    %v5281 = vpop.xlane.xlu0 %5280
    %v5282 = vcvt.f32.s32 %v5279
    %v5283 = vcvt.f32.s32 %v5281
    %v5284 = vshll.u32 %v5283, 16
    %v5285 = vadd.s32 %v5284, %v5282
    %vm5286 = vcmp.eq.s32.totalorder %v165, %v5285
    %v5287 = vsel %vm5286, 1, 0
    %v5288 = vcvt.s32.f32 %v5287
    %5289 = vmatprep.subr.mxu0 0.0
    %5290 = vmatpush1.msra.mxu0 %v146
    %5291 = vmatprep.subr.mxu0 0.0
    %5292 = vmatpush1.msra.mxu0 %v147
    %5293 = vmatprep.subr.mxu0 0.0
    %5294 = vmatpush1.msra.mxu0 %v148
    %5295 = vmatprep.subr.mxu0 0.0
    %5296 = vmatpush1.msra.mxu0 %v149
    %5297 = vmatprep.subr.mxu0 0.0
    %5298 = vmatpush1.msra.mxu0 %v150
    %5299 = vmatprep.subr.mxu0 0.0
    %5300 = vmatpush1.msra.mxu0 %v151
    %5301 = vmatprep.subr.mxu0 0.0
    %5302 = vmatpush1.msra.mxu0 %v152
    %5303 = vmatprep.subr.mxu0 0.0
    %5304 = vmatpush1.msra.mxu0 %v153
    %5305 = vmatprep.subr.mxu0 0.0
    %5306 = vmatpush1.msra.mxu0 %v154
    %5307 = vmatprep.subr.mxu0 0.0
    %5308 = vmatpush1.msra.mxu0 %v155
    %5309 = vmatprep.subr.mxu0 0.0
    %5310 = vmatpush1.msra.mxu0 %v156
    %5311 = vmatprep.subr.mxu0 0.0
    %5312 = vmatpush1.msra.mxu0 %v157
    %5313 = vmatprep.subr.mxu0 0.0
    %5314 = vmatpush1.msra.mxu0 %v158
    %5315 = vmatprep.subr.mxu0 0.0
    %5316 = vmatpush1.msra.mxu0 %v159
    %5317 = vmatprep.subr.mxu0 0.0
    %5318 = vmatpush1.msra.mxu0 %v160
    %5319 = vmatprep.subr.mxu0 0.0
    %5320 = vmatpush1.msra.mxu0 %v161
    %5321 = vmatprep.subr.mxu0 0.0
    %5322 = vmatpush1.msra.mxu0 0.0
    %5323 = vmatprep.subr.mxu0 0.0
    %5324 = vmatpush1.msra.mxu0 0.0
    %5325 = vmatprep.subr.mxu0 0.0
    %5326 = vmatpush1.msra.mxu0 0.0
    %5327 = vmatprep.subr.mxu0 0.0
    %5328 = vmatpush1.msra.mxu0 0.0
    %5329 = vmatprep.subr.mxu0 0.0
    %5330 = vmatpush1.msra.mxu0 0.0
    %5331 = vmatprep.subr.mxu0 0.0
    %5332 = vmatpush1.msra.mxu0 0.0
    %5333 = vmatprep.subr.mxu0 0.0
    %5334 = vmatpush1.msra.mxu0 0.0
    %5335 = vmatprep.subr.mxu0 0.0
    %5336 = vmatpush1.msra.mxu0 0.0
    %5337 = vmatprep.subr.mxu0 0.0
    %5338 = vmatpush1.msra.mxu0 0.0
    %5339 = vmatprep.subr.mxu0 0.0
    %5340 = vmatpush1.msra.mxu0 0.0
    %5341 = vmatprep.subr.mxu0 0.0
    %5342 = vmatpush1.msra.mxu0 0.0
    %5343 = vmatprep.subr.mxu0 0.0
    %5344 = vmatpush1.msra.mxu0 0.0
    %5345 = vmatprep.subr.mxu0 0.0
    %5346 = vmatpush1.msra.mxu0 0.0
    %5347 = vmatprep.subr.mxu0 0.0
    %5348 = vmatpush1.msra.mxu0 0.0
    %5349 = vmatprep.subr.mxu0 0.0
    %5350 = vmatpush1.msra.mxu0 0.0
    %5351 = vmatprep.subr.mxu0 0.0
    %5352 = vmatpush1.msra.mxu0 0.0
    %5353 = vmatprep.mubr.f32.mxu0 0.0
    %5354 = vmatmul.mubr.f32.gmra.mrb[0].mxu0 %v4408
    %v5355 = vpop.f32.mrb[0].mxu0
    %v5356 = vadd.f32 %v4558, %v5355
    %v5357 = vpop.f32.mrb[0].mxu0
    %5358 = vdwg.mxu0
    %v5359 = vmul.f32 %v5356, %v5288
    %v5360 = vsel %vm288, %v5359, 0.0
    %5361 = vadd.xlane.f32.xlu0 %v5360
    %v5362 = vpop.xlane.xlu0 %5361
    %v5363 = vadd.f32 %v4483, %v5362
    %v5364 = vadd.s32 %v183, 7
    %vm5365 = vcmp.eq.s32.totalorder %v165, %v5364
    %v5366 = vsel %vm5365, 1, 0
    %v5367 = vcvt.s32.f32 %v5366
    %v5369 = vsel %vm187, %v5367, 0
    %5371 = vmatprep.subr.mxu0 0.0
    %5372 = vmatpush1.msra.mxu0 %v139
    %5373 = vmatprep.subr.mxu0 0.0
    %5374 = vmatpush1.msra.mxu0 %v142
    %5375 = vmatprep.subr.mxu0 0.0
    %5376 = vmatpush1.msra.mxu0 0.0
    %5377 = vmatprep.subr.mxu0 0.0
    %5378 = vmatpush1.msra.mxu0 0.0
    %5379 = vmatprep.subr.mxu0 0.0
    %5380 = vmatpush1.msra.mxu0 0.0
    %5381 = vmatprep.subr.mxu0 0.0
    %5382 = vmatpush1.msra.mxu0 0.0
    %5383 = vmatprep.subr.mxu0 0.0
    %5384 = vmatpush1.msra.mxu0 0.0
    %5385 = vmatprep.subr.mxu0 0.0
    %5386 = vmatpush1.msra.mxu0 0.0
    %5387 = vmatprep.subr.mxu0 0.0
    %5388 = vmatpush1.msra.mxu0 0.0
    %5389 = vmatprep.subr.mxu0 0.0
    %5390 = vmatpush1.msra.mxu0 0.0
    %5391 = vmatprep.subr.mxu0 0.0
    %5392 = vmatpush1.msra.mxu0 0.0
    %5393 = vmatprep.subr.mxu0 0.0
    %5394 = vmatpush1.msra.mxu0 0.0
    %5395 = vmatprep.subr.mxu0 0.0
    %5396 = vmatpush1.msra.mxu0 0.0
    %5397 = vmatprep.subr.mxu0 0.0
    %5398 = vmatpush1.msra.mxu0 0.0
    %5399 = vmatprep.subr.mxu0 0.0
    %5400 = vmatpush1.msra.mxu0 0.0
    %5401 = vmatprep.subr.mxu0 0.0
    %5402 = vmatpush1.msra.mxu0 0.0
    %5403 = vmatprep.subr.mxu0 0.0
    %5404 = vmatpush1.msra.mxu0 0.0
    %5405 = vmatprep.subr.mxu0 0.0
    %5406 = vmatpush1.msra.mxu0 0.0
    %5407 = vmatprep.subr.mxu0 0.0
    %5408 = vmatpush1.msra.mxu0 0.0
    %5409 = vmatprep.subr.mxu0 0.0
    %5410 = vmatpush1.msra.mxu0 0.0
    %5411 = vmatprep.subr.mxu0 0.0
    %5412 = vmatpush1.msra.mxu0 0.0
    %5413 = vmatprep.subr.mxu0 0.0
    %5414 = vmatpush1.msra.mxu0 0.0
    %5415 = vmatprep.subr.mxu0 0.0
    %5416 = vmatpush1.msra.mxu0 0.0
    %5417 = vmatprep.subr.mxu0 0.0
    %5418 = vmatpush1.msra.mxu0 0.0
    %5419 = vmatprep.subr.mxu0 0.0
    %5420 = vmatpush1.msra.mxu0 0.0
    %5421 = vmatprep.subr.mxu0 0.0
    %5422 = vmatpush1.msra.mxu0 0.0
    %5423 = vmatprep.subr.mxu0 0.0
    %5424 = vmatpush1.msra.mxu0 0.0
    %5425 = vmatprep.subr.mxu0 0.0
    %5426 = vmatpush1.msra.mxu0 0.0
    %5427 = vmatprep.subr.mxu0 0.0
    %5428 = vmatpush1.msra.mxu0 0.0
    %5429 = vmatprep.subr.mxu0 0.0
    %5430 = vmatpush1.msra.mxu0 0.0
    %5431 = vmatprep.subr.mxu0 0.0
    %5432 = vmatpush1.msra.mxu0 0.0
    %5433 = vmatprep.subr.mxu0 0.0
    %5434 = vmatpush1.msra.mxu0 0.0
    %5435 = vmatprep.mubr.f32.mxu0 0.0
    %5436 = vmatmul.mubr.f32.gmra.mrb[0].mxu0 %v5369
    %v5437 = vpop.f32.mrb[0].mxu0
    %v5438 = vadd.f32 0.0, %v5437
    %v5439 = vpop.f32.mrb[0].mxu0
    %5440 = vdwg.mxu0
    %v5441 = vlaneseq
    %v5442 = vshrl.u32 %v5441, 7
    %v5443 = vsub.s32 0, %v5442
    %v5444 = vrot.slane %v4915, %v5443
    %5446 = vbcast.lane.b32.xlu0 %v5444, 256
    %v5447 = vpop.permute.xlu0 %5446
    %s5449 = sor.u32 256, 8
    %5450 = vbcast.lane.b32.xlu0 %v5444, %s5449
    %v5451 = vpop.permute.xlu0 %5450
    %s5453 = sor.u32 256, 16
    %5454 = vbcast.lane.b32.xlu0 %v5444, %s5453
    %v5455 = vpop.permute.xlu0 %5454
    %s5457 = sor.u32 256, 24
    %5458 = vbcast.lane.b32.xlu0 %v5444, %s5457
    %v5459 = vpop.permute.xlu0 %5458
    %s5461 = sor.u32 256, 32
    %5462 = vbcast.lane.b32.xlu0 %v5444, %s5461
    %v5463 = vpop.permute.xlu0 %5462
    %s5465 = sor.u32 256, 40
    %5466 = vbcast.lane.b32.xlu0 %v5444, %s5465
    %v5467 = vpop.permute.xlu0 %5466
    %s5469 = sor.u32 256, 48
    %5470 = vbcast.lane.b32.xlu0 %v5444, %s5469
    %v5471 = vpop.permute.xlu0 %5470
    %s5473 = sor.u32 256, 56
    %5474 = vbcast.lane.b32.xlu0 %v5444, %s5473
    %v5475 = vpop.permute.xlu0 %5474
    %s5477 = sor.u32 256, 64
    %5478 = vbcast.lane.b32.xlu0 %v5444, %s5477
    %v5479 = vpop.permute.xlu0 %5478
    %s5481 = sor.u32 256, 72
    %5482 = vbcast.lane.b32.xlu0 %v5444, %s5481
    %v5483 = vpop.permute.xlu0 %5482
    %s5485 = sor.u32 256, 80
    %5486 = vbcast.lane.b32.xlu0 %v5444, %s5485
    %v5487 = vpop.permute.xlu0 %5486
    %s5489 = sor.u32 256, 88
    %5490 = vbcast.lane.b32.xlu0 %v5444, %s5489
    %v5491 = vpop.permute.xlu0 %5490
    %s5493 = sor.u32 256, 96
    %5494 = vbcast.lane.b32.xlu0 %v5444, %s5493
    %v5495 = vpop.permute.xlu0 %5494
    %s5497 = sor.u32 256, 104
    %5498 = vbcast.lane.b32.xlu0 %v5444, %s5497
    %v5499 = vpop.permute.xlu0 %5498
    %s5501 = sor.u32 256, 112
    %5502 = vbcast.lane.b32.xlu0 %v5444, %s5501
    %v5503 = vpop.permute.xlu0 %5502
    %s5505 = sor.u32 256, 120
    %5506 = vbcast.lane.b32.xlu0 %v5444, %s5505
    %v5507 = vpop.permute.xlu0 %5506
    %v5508 = vlaneseq
    %v5509 = vshrl.u32 %v5508, 7
    %v5510 = vsub.s32 0, %v5509
    %v5511 = vrot.slane %v4916, %v5510
    %5513 = vbcast.lane.b32.xlu0 %v5511, 256
    %v5514 = vpop.permute.xlu0 %5513
    %s5516 = sor.u32 256, 8
    %5517 = vbcast.lane.b32.xlu0 %v5511, %s5516
    %v5518 = vpop.permute.xlu0 %5517
    %s5520 = sor.u32 256, 16
    %5521 = vbcast.lane.b32.xlu0 %v5511, %s5520
    %v5522 = vpop.permute.xlu0 %5521
    %s5524 = sor.u32 256, 24
    %5525 = vbcast.lane.b32.xlu0 %v5511, %s5524
    %v5526 = vpop.permute.xlu0 %5525
    %s5528 = sor.u32 256, 32
    %5529 = vbcast.lane.b32.xlu0 %v5511, %s5528
    %v5530 = vpop.permute.xlu0 %5529
    %s5532 = sor.u32 256, 40
    %5533 = vbcast.lane.b32.xlu0 %v5511, %s5532
    %v5534 = vpop.permute.xlu0 %5533
    %s5536 = sor.u32 256, 48
    %5537 = vbcast.lane.b32.xlu0 %v5511, %s5536
    %v5538 = vpop.permute.xlu0 %5537
    %s5540 = sor.u32 256, 56
    %5541 = vbcast.lane.b32.xlu0 %v5511, %s5540
    %v5542 = vpop.permute.xlu0 %5541
    %s5544 = sor.u32 256, 64
    %5545 = vbcast.lane.b32.xlu0 %v5511, %s5544
    %v5546 = vpop.permute.xlu0 %5545
    %s5548 = sor.u32 256, 72
    %5549 = vbcast.lane.b32.xlu0 %v5511, %s5548
    %v5550 = vpop.permute.xlu0 %5549
    %s5552 = sor.u32 256, 80
    %5553 = vbcast.lane.b32.xlu0 %v5511, %s5552
    %v5554 = vpop.permute.xlu0 %5553
    %s5556 = sor.u32 256, 88
    %5557 = vbcast.lane.b32.xlu0 %v5511, %s5556
    %v5558 = vpop.permute.xlu0 %5557
    %s5560 = sor.u32 256, 96
    %5561 = vbcast.lane.b32.xlu0 %v5511, %s5560
    %v5562 = vpop.permute.xlu0 %5561
    %s5564 = sor.u32 256, 104
    %5565 = vbcast.lane.b32.xlu0 %v5511, %s5564
    %v5566 = vpop.permute.xlu0 %5565
    %s5568 = sor.u32 256, 112
    %5569 = vbcast.lane.b32.xlu0 %v5511, %s5568
    %v5570 = vpop.permute.xlu0 %5569
    %s5572 = sor.u32 256, 120
    %5573 = vbcast.lane.b32.xlu0 %v5511, %s5572
    %v5574 = vpop.permute.xlu0 %5573
    %v5575 = vadd.f32 %v5447, %v146
    %v5576 = vadd.f32 %v5451, %v147
    %v5577 = vadd.f32 %v5455, %v148
    %v5578 = vadd.f32 %v5459, %v149
    %v5579 = vadd.f32 %v5463, %v150
    %v5580 = vadd.f32 %v5467, %v151
    %v5581 = vadd.f32 %v5471, %v152
    %v5582 = vadd.f32 %v5475, %v153
    %v5583 = vadd.f32 %v5479, %v154
    %v5584 = vadd.f32 %v5483, %v155
    %v5585 = vadd.f32 %v5487, %v156
    %v5586 = vadd.f32 %v5491, %v157
    %v5587 = vadd.f32 %v5495, %v158
    %v5588 = vadd.f32 %v5499, %v159
    %v5589 = vadd.f32 %v5503, %v160
    %v5590 = vadd.f32 %v5507, %v161
    %v5591 = vadd.f32 %v5514, %v146
    %v5592 = vadd.f32 %v5518, %v147
    %v5593 = vadd.f32 %v5522, %v148
    %v5594 = vadd.f32 %v5526, %v149
    %v5595 = vadd.f32 %v5530, %v150
    %v5596 = vadd.f32 %v5534, %v151
    %v5597 = vadd.f32 %v5538, %v152
    %v5598 = vadd.f32 %v5542, %v153
    %v5599 = vadd.f32 %v5546, %v154
    %v5600 = vadd.f32 %v5550, %v155
    %v5601 = vadd.f32 %v5554, %v156
    %v5602 = vadd.f32 %v5558, %v157
    %v5603 = vadd.f32 %v5562, %v158
    %v5604 = vadd.f32 %v5566, %v159
    %v5605 = vadd.f32 %v5570, %v160
    %v5606 = vadd.f32 %v5574, %v161
    %v5607 = vmax.f32 %v5575, %v5577
    %v5608 = vmax.f32 %v5576, %v5578
    %v5609 = vmax.f32 %v5607, %v5579
    %v5610 = vmax.f32 %v5608, %v5580
    %v5611 = vmax.f32 %v5609, %v5581
    %v5612 = vmax.f32 %v5610, %v5582
    %v5613 = vmax.f32 %v5611, %v5583
    %v5614 = vmax.f32 %v5612, %v5584
    %v5615 = vmax.f32 %v5613, %v5585
    %v5616 = vmax.f32 %v5614, %v5586
    %v5617 = vmax.f32 %v5615, %v5587
    %v5618 = vmax.f32 %v5616, %v5588
    %v5619 = vmax.f32 %v5617, %v5589
    %v5620 = vmax.f32 %v5618, %v5590
    %v5621 = vmax.f32 %v5619, %v5620
    %v5622 = vrot.slane %v5621, 4
    %v5623 = vmax.f32 %v5621, %v5622
    %v5624 = vrot.slane %v5623, 2
    %v5625 = vmax.f32 %v5623, %v5624
    %v5626 = vrot.slane %v5625, 1
    %v5627 = vmax.f32 %v5625, %v5626
    %v5628 = vmax.f32 %v5591, %v5593
    %v5629 = vmax.f32 %v5592, %v5594
    %v5630 = vmax.f32 %v5628, %v5595
    %v5631 = vmax.f32 %v5629, %v5596
    %v5632 = vmax.f32 %v5630, %v5597
    %v5633 = vmax.f32 %v5631, %v5598
    %v5634 = vmax.f32 %v5632, %v5599
    %v5635 = vmax.f32 %v5633, %v5600
    %v5636 = vmax.f32 %v5634, %v5601
    %v5637 = vmax.f32 %v5635, %v5602
    %v5638 = vmax.f32 %v5636, %v5603
    %v5639 = vmax.f32 %v5637, %v5604
    %v5640 = vmax.f32 %v5638, %v5605
    %v5641 = vmax.f32 %v5639, %v5606
    %v5642 = vmax.f32 %v5640, %v5641
    %v5643 = vrot.slane %v5642, 4
    %v5644 = vmax.f32 %v5642, %v5643
    %v5645 = vrot.slane %v5644, 2
    %v5646 = vmax.f32 %v5644, %v5645
    %v5647 = vrot.slane %v5646, 1
    %v5648 = vmax.f32 %v5646, %v5647
    %vm5649 = vcmp.ge.f32.partialorder %v5575, %v5627
    %vm5650 = vcmp.ge.f32.partialorder %v5576, %v5627
    %vm5651 = vcmp.ge.f32.partialorder %v5577, %v5627
    %vm5652 = vcmp.ge.f32.partialorder %v5578, %v5627
    %vm5653 = vcmp.ge.f32.partialorder %v5579, %v5627
    %vm5654 = vcmp.ge.f32.partialorder %v5580, %v5627
    %vm5655 = vcmp.ge.f32.partialorder %v5581, %v5627
    %vm5656 = vcmp.ge.f32.partialorder %v5582, %v5627
    %vm5657 = vcmp.ge.f32.partialorder %v5583, %v5627
    %vm5658 = vcmp.ge.f32.partialorder %v5584, %v5627
    %vm5659 = vcmp.ge.f32.partialorder %v5585, %v5627
    %vm5660 = vcmp.ge.f32.partialorder %v5586, %v5627
    %vm5661 = vcmp.ge.f32.partialorder %v5587, %v5627
    %vm5662 = vcmp.ge.f32.partialorder %v5588, %v5627
    %vm5663 = vcmp.ge.f32.partialorder %v5589, %v5627
    %vm5664 = vcmp.ge.f32.partialorder %v5590, %v5627
    %vm5665 = vcmp.ge.f32.partialorder %v5591, %v5648
    %vm5666 = vcmp.ge.f32.partialorder %v5592, %v5648
    %vm5667 = vcmp.ge.f32.partialorder %v5593, %v5648
    %vm5668 = vcmp.ge.f32.partialorder %v5594, %v5648
    %vm5669 = vcmp.ge.f32.partialorder %v5595, %v5648
    %vm5670 = vcmp.ge.f32.partialorder %v5596, %v5648
    %vm5671 = vcmp.ge.f32.partialorder %v5597, %v5648
    %vm5672 = vcmp.ge.f32.partialorder %v5598, %v5648
    %vm5673 = vcmp.ge.f32.partialorder %v5599, %v5648
    %vm5674 = vcmp.ge.f32.partialorder %v5600, %v5648
    %vm5675 = vcmp.ge.f32.partialorder %v5601, %v5648
    %vm5676 = vcmp.ge.f32.partialorder %v5602, %v5648
    %vm5677 = vcmp.ge.f32.partialorder %v5603, %v5648
    %vm5678 = vcmp.ge.f32.partialorder %v5604, %v5648
    %vm5679 = vcmp.ge.f32.partialorder %v5605, %v5648
    %vm5680 = vcmp.ge.f32.partialorder %v5606, %v5648
    %v5681 = vsel %vm5649, %v167, 128
    %v5682 = vsel %vm5650, %v168, 128
    %v5683 = vsel %vm5651, %v169, 128
    %v5684 = vsel %vm5652, %v170, 128
    %v5685 = vsel %vm5653, %v171, 128
    %v5686 = vsel %vm5654, %v172, 128
    %v5687 = vsel %vm5655, %v173, 128
    %v5688 = vsel %vm5656, %v174, 128
    %v5689 = vsel %vm5657, %v175, 128
    %v5690 = vsel %vm5658, %v176, 128
    %v5691 = vsel %vm5659, %v177, 128
    %v5692 = vsel %vm5660, %v178, 128
    %v5693 = vsel %vm5661, %v179, 128
    %v5694 = vsel %vm5662, %v180, 128
    %v5695 = vsel %vm5663, %v181, 128
    %v5696 = vsel %vm5664, %v182, 128
    %v5697 = vsel %vm5665, %v167, 128
    %v5698 = vsel %vm5666, %v168, 128
    %v5699 = vsel %vm5667, %v169, 128
    %v5700 = vsel %vm5668, %v170, 128
    %v5701 = vsel %vm5669, %v171, 128
    %v5702 = vsel %vm5670, %v172, 128
    %v5703 = vsel %vm5671, %v173, 128
    %v5704 = vsel %vm5672, %v174, 128
    %v5705 = vsel %vm5673, %v175, 128
    %v5706 = vsel %vm5674, %v176, 128
    %v5707 = vsel %vm5675, %v177, 128
    %v5708 = vsel %vm5676, %v178, 128
    %v5709 = vsel %vm5677, %v179, 128
    %v5710 = vsel %vm5678, %v180, 128
    %v5711 = vsel %vm5679, %v181, 128
    %v5712 = vsel %vm5680, %v182, 128
    %vm5713 = vcmp.lt.s32.totalorder %v5681, %v5683
    %v5714 = vsel %vm5713, %v5681, %v5683
    %vm5715 = vcmp.lt.s32.totalorder %v5682, %v5684
    %v5716 = vsel %vm5715, %v5682, %v5684
    %vm5717 = vcmp.lt.s32.totalorder %v5714, %v5685
    %v5718 = vsel %vm5717, %v5714, %v5685
    %vm5719 = vcmp.lt.s32.totalorder %v5716, %v5686
    %v5720 = vsel %vm5719, %v5716, %v5686
    %vm5721 = vcmp.lt.s32.totalorder %v5718, %v5687
    %v5722 = vsel %vm5721, %v5718, %v5687
    %vm5723 = vcmp.lt.s32.totalorder %v5720, %v5688
    %v5724 = vsel %vm5723, %v5720, %v5688
    %vm5725 = vcmp.lt.s32.totalorder %v5722, %v5689
    %v5726 = vsel %vm5725, %v5722, %v5689
    %vm5727 = vcmp.lt.s32.totalorder %v5724, %v5690
    %v5728 = vsel %vm5727, %v5724, %v5690
    %vm5729 = vcmp.lt.s32.totalorder %v5726, %v5691
    %v5730 = vsel %vm5729, %v5726, %v5691
    %vm5731 = vcmp.lt.s32.totalorder %v5728, %v5692
    %v5732 = vsel %vm5731, %v5728, %v5692
    %vm5733 = vcmp.lt.s32.totalorder %v5730, %v5693
    %v5734 = vsel %vm5733, %v5730, %v5693
    %vm5735 = vcmp.lt.s32.totalorder %v5732, %v5694
    %v5736 = vsel %vm5735, %v5732, %v5694
    %vm5737 = vcmp.lt.s32.totalorder %v5734, %v5695
    %v5738 = vsel %vm5737, %v5734, %v5695
    %vm5739 = vcmp.lt.s32.totalorder %v5736, %v5696
    %v5740 = vsel %vm5739, %v5736, %v5696
    %vm5741 = vcmp.lt.s32.totalorder %v5738, %v5740
    %v5742 = vsel %vm5741, %v5738, %v5740
    %v5743 = vrot.slane %v5742, 4
    %vm5744 = vcmp.lt.s32.totalorder %v5742, %v5743
    %v5745 = vsel %vm5744, %v5742, %v5743
    %v5746 = vrot.slane %v5745, 2
    %vm5747 = vcmp.lt.s32.totalorder %v5745, %v5746
    %v5748 = vsel %vm5747, %v5745, %v5746
    %v5749 = vrot.slane %v5748, 1
    %vm5750 = vcmp.lt.s32.totalorder %v5748, %v5749
    %v5751 = vsel %vm5750, %v5748, %v5749
    %vm5752 = vcmp.lt.s32.totalorder %v5697, %v5699
    %v5753 = vsel %vm5752, %v5697, %v5699
    %vm5754 = vcmp.lt.s32.totalorder %v5698, %v5700
    %v5755 = vsel %vm5754, %v5698, %v5700
    %vm5756 = vcmp.lt.s32.totalorder %v5753, %v5701
    %v5757 = vsel %vm5756, %v5753, %v5701
    %vm5758 = vcmp.lt.s32.totalorder %v5755, %v5702
    %v5759 = vsel %vm5758, %v5755, %v5702
    %vm5760 = vcmp.lt.s32.totalorder %v5757, %v5703
    %v5761 = vsel %vm5760, %v5757, %v5703
    %vm5762 = vcmp.lt.s32.totalorder %v5759, %v5704
    %v5763 = vsel %vm5762, %v5759, %v5704
    %vm5764 = vcmp.lt.s32.totalorder %v5761, %v5705
    %v5765 = vsel %vm5764, %v5761, %v5705
    %vm5766 = vcmp.lt.s32.totalorder %v5763, %v5706
    %v5767 = vsel %vm5766, %v5763, %v5706
    %vm5768 = vcmp.lt.s32.totalorder %v5765, %v5707
    %v5769 = vsel %vm5768, %v5765, %v5707
    %vm5770 = vcmp.lt.s32.totalorder %v5767, %v5708
    %v5771 = vsel %vm5770, %v5767, %v5708
    %vm5772 = vcmp.lt.s32.totalorder %v5769, %v5709
    %v5773 = vsel %vm5772, %v5769, %v5709
    %vm5774 = vcmp.lt.s32.totalorder %v5771, %v5710
    %v5775 = vsel %vm5774, %v5771, %v5710
    %vm5776 = vcmp.lt.s32.totalorder %v5773, %v5711
    %v5777 = vsel %vm5776, %v5773, %v5711
    %vm5778 = vcmp.lt.s32.totalorder %v5775, %v5712
    %v5779 = vsel %vm5778, %v5775, %v5712
    %vm5780 = vcmp.lt.s32.totalorder %v5777, %v5779
    %v5781 = vsel %vm5780, %v5777, %v5779
    %v5782 = vrot.slane %v5781, 4
    %vm5783 = vcmp.lt.s32.totalorder %v5781, %v5782
    %v5784 = vsel %vm5783, %v5781, %v5782
    %v5785 = vrot.slane %v5784, 2
    %vm5786 = vcmp.lt.s32.totalorder %v5784, %v5785
    %v5787 = vsel %vm5786, %v5784, %v5785
    %v5788 = vrot.slane %v5787, 1
    %vm5789 = vcmp.lt.s32.totalorder %v5787, %v5788
    %v5790 = vsel %vm5789, %v5787, %v5788
    %v5792 = vrot.slane %v5438, 1
    %v5795 = vadd.f32 %v5627, %v5438
    %v5796 = vadd.f32 %v5648, %v5792
    %v5797 = vlaneseq
    %v5798 = vshrl.u32 %v5797, 7
    %v5799 = vsub.s32 0, %v5798
    %v5800 = vrot.slane %v5269, %v5799
    %5802 = vbcast.lane.b32.xlu0 %v5800, 256
    %v5803 = vpop.permute.xlu0 %5802
    %s5805 = sor.u32 256, 8
    %5806 = vbcast.lane.b32.xlu0 %v5800, %s5805
    %v5807 = vpop.permute.xlu0 %5806
    %s5809 = sor.u32 256, 16
    %5810 = vbcast.lane.b32.xlu0 %v5800, %s5809
    %v5811 = vpop.permute.xlu0 %5810
    %s5813 = sor.u32 256, 24
    %5814 = vbcast.lane.b32.xlu0 %v5800, %s5813
    %v5815 = vpop.permute.xlu0 %5814
    %s5817 = sor.u32 256, 32
    %5818 = vbcast.lane.b32.xlu0 %v5800, %s5817
    %v5819 = vpop.permute.xlu0 %5818
    %s5821 = sor.u32 256, 40
    %5822 = vbcast.lane.b32.xlu0 %v5800, %s5821
    %v5823 = vpop.permute.xlu0 %5822
    %s5825 = sor.u32 256, 48
    %5826 = vbcast.lane.b32.xlu0 %v5800, %s5825
    %v5827 = vpop.permute.xlu0 %5826
    %s5829 = sor.u32 256, 56
    %5830 = vbcast.lane.b32.xlu0 %v5800, %s5829
    %v5831 = vpop.permute.xlu0 %5830
    %s5833 = sor.u32 256, 64
    %5834 = vbcast.lane.b32.xlu0 %v5800, %s5833
    %v5835 = vpop.permute.xlu0 %5834
    %s5837 = sor.u32 256, 72
    %5838 = vbcast.lane.b32.xlu0 %v5800, %s5837
    %v5839 = vpop.permute.xlu0 %5838
    %s5841 = sor.u32 256, 80
    %5842 = vbcast.lane.b32.xlu0 %v5800, %s5841
    %v5843 = vpop.permute.xlu0 %5842
    %s5845 = sor.u32 256, 88
    %5846 = vbcast.lane.b32.xlu0 %v5800, %s5845
    %v5847 = vpop.permute.xlu0 %5846
    %s5849 = sor.u32 256, 96
    %5850 = vbcast.lane.b32.xlu0 %v5800, %s5849
    %v5851 = vpop.permute.xlu0 %5850
    %s5853 = sor.u32 256, 104
    %5854 = vbcast.lane.b32.xlu0 %v5800, %s5853
    %v5855 = vpop.permute.xlu0 %5854
    %s5857 = sor.u32 256, 112
    %5858 = vbcast.lane.b32.xlu0 %v5800, %s5857
    %v5859 = vpop.permute.xlu0 %5858
    %s5861 = sor.u32 256, 120
    %5862 = vbcast.lane.b32.xlu0 %v5800, %s5861
    %v5863 = vpop.permute.xlu0 %5862
    %v5864 = vlaneseq
    %v5865 = vshrl.u32 %v5864, 7
    %v5866 = vsub.s32 0, %v5865
    %v5867 = vrot.slane %v5270, %v5866
    %5869 = vbcast.lane.b32.xlu0 %v5867, 256
    %v5870 = vpop.permute.xlu0 %5869
    %s5872 = sor.u32 256, 8
    %5873 = vbcast.lane.b32.xlu0 %v5867, %s5872
    %v5874 = vpop.permute.xlu0 %5873
    %s5876 = sor.u32 256, 16
    %5877 = vbcast.lane.b32.xlu0 %v5867, %s5876
    %v5878 = vpop.permute.xlu0 %5877
    %s5880 = sor.u32 256, 24
    %5881 = vbcast.lane.b32.xlu0 %v5867, %s5880
    %v5882 = vpop.permute.xlu0 %5881
    %s5884 = sor.u32 256, 32
    %5885 = vbcast.lane.b32.xlu0 %v5867, %s5884
    %v5886 = vpop.permute.xlu0 %5885
    %s5888 = sor.u32 256, 40
    %5889 = vbcast.lane.b32.xlu0 %v5867, %s5888
    %v5890 = vpop.permute.xlu0 %5889
    %s5892 = sor.u32 256, 48
    %5893 = vbcast.lane.b32.xlu0 %v5867, %s5892
    %v5894 = vpop.permute.xlu0 %5893
    %s5896 = sor.u32 256, 56
    %5897 = vbcast.lane.b32.xlu0 %v5867, %s5896
    %v5898 = vpop.permute.xlu0 %5897
    %s5900 = sor.u32 256, 64
    %5901 = vbcast.lane.b32.xlu0 %v5867, %s5900
    %v5902 = vpop.permute.xlu0 %5901
    %s5904 = sor.u32 256, 72
    %5905 = vbcast.lane.b32.xlu0 %v5867, %s5904
    %v5906 = vpop.permute.xlu0 %5905
    %s5908 = sor.u32 256, 80
    %5909 = vbcast.lane.b32.xlu0 %v5867, %s5908
    %v5910 = vpop.permute.xlu0 %5909
    %s5912 = sor.u32 256, 88
    %5913 = vbcast.lane.b32.xlu0 %v5867, %s5912
    %v5914 = vpop.permute.xlu0 %5913
    %s5916 = sor.u32 256, 96
    %5917 = vbcast.lane.b32.xlu0 %v5867, %s5916
    %v5918 = vpop.permute.xlu0 %5917
    %s5920 = sor.u32 256, 104
    %5921 = vbcast.lane.b32.xlu0 %v5867, %s5920
    %v5922 = vpop.permute.xlu0 %5921
    %s5924 = sor.u32 256, 112
    %5925 = vbcast.lane.b32.xlu0 %v5867, %s5924
    %v5926 = vpop.permute.xlu0 %5925
    %s5928 = sor.u32 256, 120
    %5929 = vbcast.lane.b32.xlu0 %v5867, %s5928
    %v5930 = vpop.permute.xlu0 %5929
    %v5931 = vadd.f32 %v5803, %v146
    %v5932 = vadd.f32 %v5807, %v147
    %v5933 = vadd.f32 %v5811, %v148
    %v5934 = vadd.f32 %v5815, %v149
    %v5935 = vadd.f32 %v5819, %v150
    %v5936 = vadd.f32 %v5823, %v151
    %v5937 = vadd.f32 %v5827, %v152
    %v5938 = vadd.f32 %v5831, %v153
    %v5939 = vadd.f32 %v5835, %v154
    %v5940 = vadd.f32 %v5839, %v155
    %v5941 = vadd.f32 %v5843, %v156
    %v5942 = vadd.f32 %v5847, %v157
    %v5943 = vadd.f32 %v5851, %v158
    %v5944 = vadd.f32 %v5855, %v159
    %v5945 = vadd.f32 %v5859, %v160
    %v5946 = vadd.f32 %v5863, %v161
    %v5947 = vadd.f32 %v5870, %v146
    %v5948 = vadd.f32 %v5874, %v147
    %v5949 = vadd.f32 %v5878, %v148
    %v5950 = vadd.f32 %v5882, %v149
    %v5951 = vadd.f32 %v5886, %v150
    %v5952 = vadd.f32 %v5890, %v151
    %v5953 = vadd.f32 %v5894, %v152
    %v5954 = vadd.f32 %v5898, %v153
    %v5955 = vadd.f32 %v5902, %v154
    %v5956 = vadd.f32 %v5906, %v155
    %v5957 = vadd.f32 %v5910, %v156
    %v5958 = vadd.f32 %v5914, %v157
    %v5959 = vadd.f32 %v5918, %v158
    %v5960 = vadd.f32 %v5922, %v159
    %v5961 = vadd.f32 %v5926, %v160
    %v5962 = vadd.f32 %v5930, %v161
    %v5963 = vmax.f32 %v5931, %v5933
    %v5964 = vmax.f32 %v5932, %v5934
    %v5965 = vmax.f32 %v5963, %v5935
    %v5966 = vmax.f32 %v5964, %v5936
    %v5967 = vmax.f32 %v5965, %v5937
    %v5968 = vmax.f32 %v5966, %v5938
    %v5969 = vmax.f32 %v5967, %v5939
    %v5970 = vmax.f32 %v5968, %v5940
    %v5971 = vmax.f32 %v5969, %v5941
    %v5972 = vmax.f32 %v5970, %v5942
    %v5973 = vmax.f32 %v5971, %v5943
    %v5974 = vmax.f32 %v5972, %v5944
    %v5975 = vmax.f32 %v5973, %v5945
    %v5976 = vmax.f32 %v5974, %v5946
    %v5977 = vmax.f32 %v5975, %v5976
    %v5978 = vrot.slane %v5977, 4
    %v5979 = vmax.f32 %v5977, %v5978
    %v5980 = vrot.slane %v5979, 2
    %v5981 = vmax.f32 %v5979, %v5980
    %v5982 = vrot.slane %v5981, 1
    %v5983 = vmax.f32 %v5981, %v5982
    %v5984 = vmax.f32 %v5947, %v5949
    %v5985 = vmax.f32 %v5948, %v5950
    %v5986 = vmax.f32 %v5984, %v5951
    %v5987 = vmax.f32 %v5985, %v5952
    %v5988 = vmax.f32 %v5986, %v5953
    %v5989 = vmax.f32 %v5987, %v5954
    %v5990 = vmax.f32 %v5988, %v5955
    %v5991 = vmax.f32 %v5989, %v5956
    %v5992 = vmax.f32 %v5990, %v5957
    %v5993 = vmax.f32 %v5991, %v5958
    %v5994 = vmax.f32 %v5992, %v5959
    %v5995 = vmax.f32 %v5993, %v5960
    %v5996 = vmax.f32 %v5994, %v5961
    %v5997 = vmax.f32 %v5995, %v5962
    %v5998 = vmax.f32 %v5996, %v5997
    %v5999 = vrot.slane %v5998, 4
    %v6000 = vmax.f32 %v5998, %v5999
    %v6001 = vrot.slane %v6000, 2
    %v6002 = vmax.f32 %v6000, %v6001
    %v6003 = vrot.slane %v6002, 1
    %v6004 = vmax.f32 %v6002, %v6003
    %v6005 = vsub.f32 %v5931, %v5983
    %v6006 = vsub.f32 %v5932, %v5983
    %v6007 = vsub.f32 %v5933, %v5983
    %v6008 = vsub.f32 %v5934, %v5983
    %v6009 = vsub.f32 %v5935, %v5983
    %v6010 = vsub.f32 %v5936, %v5983
    %v6011 = vsub.f32 %v5937, %v5983
    %v6012 = vsub.f32 %v5938, %v5983
    %v6013 = vsub.f32 %v5939, %v5983
    %v6014 = vsub.f32 %v5940, %v5983
    %v6015 = vsub.f32 %v5941, %v5983
    %v6016 = vsub.f32 %v5942, %v5983
    %v6017 = vsub.f32 %v5943, %v5983
    %v6018 = vsub.f32 %v5944, %v5983
    %v6019 = vsub.f32 %v5945, %v5983
    %v6020 = vsub.f32 %v5946, %v5983
    %v6021 = vsub.f32 %v5947, %v6004
    %v6022 = vsub.f32 %v5948, %v6004
    %v6023 = vsub.f32 %v5949, %v6004
    %v6024 = vsub.f32 %v5950, %v6004
    %v6025 = vsub.f32 %v5951, %v6004
    %v6026 = vsub.f32 %v5952, %v6004
    %v6027 = vsub.f32 %v5953, %v6004
    %v6028 = vsub.f32 %v5954, %v6004
    %v6029 = vsub.f32 %v5955, %v6004
    %v6030 = vsub.f32 %v5956, %v6004
    %v6031 = vsub.f32 %v5957, %v6004
    %v6032 = vsub.f32 %v5958, %v6004
    %v6033 = vsub.f32 %v5959, %v6004
    %v6034 = vsub.f32 %v5960, %v6004
    %v6035 = vsub.f32 %v5961, %v6004
    %v6036 = vsub.f32 %v5962, %v6004
    %v6037 = vmul.f32 %v6005, 1.442695
    %v6038 = vpow.pop %v6037
    %v6039 = vmul.f32 %v6006, 1.442695
    %v6040 = vpow.pop %v6039
    %v6041 = vmul.f32 %v6007, 1.442695
    %v6042 = vpow.pop %v6041
    %v6043 = vmul.f32 %v6008, 1.442695
    %v6044 = vpow.pop %v6043
    %v6045 = vmul.f32 %v6009, 1.442695
    %v6046 = vpow.pop %v6045
    %v6047 = vmul.f32 %v6010, 1.442695
    %v6048 = vpow.pop %v6047
    %v6049 = vmul.f32 %v6011, 1.442695
    %v6050 = vpow.pop %v6049
    %v6051 = vmul.f32 %v6012, 1.442695
    %v6052 = vpow.pop %v6051
    %v6053 = vmul.f32 %v6013, 1.442695
    %v6054 = vpow.pop %v6053
    %v6055 = vmul.f32 %v6014, 1.442695
    %v6056 = vpow.pop %v6055
    %v6057 = vmul.f32 %v6015, 1.442695
    %v6058 = vpow.pop %v6057
    %v6059 = vmul.f32 %v6016, 1.442695
    %v6060 = vpow.pop %v6059
    %v6061 = vmul.f32 %v6017, 1.442695
    %v6062 = vpow.pop %v6061
    %v6063 = vmul.f32 %v6018, 1.442695
    %v6064 = vpow.pop %v6063
    %v6065 = vmul.f32 %v6019, 1.442695
    %v6066 = vpow.pop %v6065
    %v6067 = vmul.f32 %v6020, 1.442695
    %v6068 = vpow.pop %v6067
    %v6069 = vmul.f32 %v6021, 1.442695
    %v6070 = vpow.pop %v6069
    %v6071 = vmul.f32 %v6022, 1.442695
    %v6072 = vpow.pop %v6071
    %v6073 = vmul.f32 %v6023, 1.442695
    %v6074 = vpow.pop %v6073
    %v6075 = vmul.f32 %v6024, 1.442695
    %v6076 = vpow.pop %v6075
    %v6077 = vmul.f32 %v6025, 1.442695
    %v6078 = vpow.pop %v6077
    %v6079 = vmul.f32 %v6026, 1.442695
    %v6080 = vpow.pop %v6079
    %v6081 = vmul.f32 %v6027, 1.442695
    %v6082 = vpow.pop %v6081
    %v6083 = vmul.f32 %v6028, 1.442695
    %v6084 = vpow.pop %v6083
    %v6085 = vmul.f32 %v6029, 1.442695
    %v6086 = vpow.pop %v6085
    %v6087 = vmul.f32 %v6030, 1.442695
    %v6088 = vpow.pop %v6087
    %v6089 = vmul.f32 %v6031, 1.442695
    %v6090 = vpow.pop %v6089
    %v6091 = vmul.f32 %v6032, 1.442695
    %v6092 = vpow.pop %v6091
    %v6093 = vmul.f32 %v6033, 1.442695
    %v6094 = vpow.pop %v6093
    %v6095 = vmul.f32 %v6034, 1.442695
    %v6096 = vpow.pop %v6095
    %v6097 = vmul.f32 %v6035, 1.442695
    %v6098 = vpow.pop %v6097
    %v6099 = vmul.f32 %v6036, 1.442695
    %v6100 = vpow.pop %v6099
    %v6101 = vadd.f32 %v6038, %v6040
    %v6102 = vadd.f32 %v6101, %v6042
    %v6103 = vadd.f32 %v6102, %v6044
    %v6104 = vadd.f32 %v6103, %v6046
    %v6105 = vadd.f32 %v6104, %v6048
    %v6106 = vadd.f32 %v6105, %v6050
    %v6107 = vadd.f32 %v6106, %v6052
    %v6108 = vadd.f32 %v6107, %v6054
    %v6109 = vadd.f32 %v6108, %v6056
    %v6110 = vadd.f32 %v6109, %v6058
    %v6111 = vadd.f32 %v6110, %v6060
    %v6112 = vadd.f32 %v6111, %v6062
    %v6113 = vadd.f32 %v6112, %v6064
    %v6114 = vadd.f32 %v6113, %v6066
    %v6115 = vadd.f32 %v6114, %v6068
    %v6116 = vrot.slane %v6115, 4
    %v6117 = vadd.f32 %v6115, %v6116
    %v6118 = vrot.slane %v6117, 2
    %v6119 = vadd.f32 %v6117, %v6118
    %v6120 = vrot.slane %v6119, 1
    %v6121 = vadd.f32 %v6119, %v6120
    %v6122 = vadd.f32 %v6070, %v6072
    %v6123 = vadd.f32 %v6122, %v6074
    %v6124 = vadd.f32 %v6123, %v6076
    %v6125 = vadd.f32 %v6124, %v6078
    %v6126 = vadd.f32 %v6125, %v6080
    %v6127 = vadd.f32 %v6126, %v6082
    %v6128 = vadd.f32 %v6127, %v6084
    %v6129 = vadd.f32 %v6128, %v6086
    %v6130 = vadd.f32 %v6129, %v6088
    %v6131 = vadd.f32 %v6130, %v6090
    %v6132 = vadd.f32 %v6131, %v6092
    %v6133 = vadd.f32 %v6132, %v6094
    %v6134 = vadd.f32 %v6133, %v6096
    %v6135 = vadd.f32 %v6134, %v6098
    %v6136 = vadd.f32 %v6135, %v6100
    %v6137 = vrot.slane %v6136, 4
    %v6138 = vadd.f32 %v6136, %v6137
    %v6139 = vrot.slane %v6138, 2
    %v6140 = vadd.f32 %v6138, %v6139
    %v6141 = vrot.slane %v6140, 1
    %v6142 = vadd.f32 %v6140, %v6141
    %v6143 = vlog2.pop %v6121
    %v6144 = vmul.f32 %v6143, 0.6931472
    %v6145 = vlog2.pop %v6142
    %v6146 = vmul.f32 %v6145, 0.6931472
    %v6147 = vadd.f32 %v5983, %v6144
    %v6148 = vadd.f32 %v6004, %v6146
    %v6149 = vadd.f32 %v6147, %v5438
    %v6150 = vadd.f32 %v6148, %v5792
    %vm6151 = vcmp.eq.s32.totalorder %v165, 7
    %v6152 = vsel %vm6151, %v145, 0
    %v6153 = vsel %vm270, %v6152, 0
    %v6154 = vand.u32 %v6153, 65535
    %v6155 = vshrl.u32 %v6153, 16
    %v6156 = vcvt.s32.f32 %v6154
    %v6157 = vcvt.s32.f32 %v6155
    %6158 = vadd.xlane.f32.xlu0 %v6156
    %v6159 = vpop.xlane.xlu0 %6158
    %6160 = vadd.xlane.f32.xlu0 %v6157
    %v6161 = vpop.xlane.xlu0 %6160
    %v6162 = vcvt.f32.s32 %v6159
    %v6163 = vcvt.f32.s32 %v6161
    %v6164 = vshll.u32 %v6163, 16
    %v6165 = vadd.s32 %v6164, %v6162
    %vm6166 = vcmp.eq.s32.totalorder %v165, %v6165
    %v6167 = vsel %vm6166, 1, 0
    %v6168 = vcvt.s32.f32 %v6167
    %6169 = vmatprep.subr.mxu0 0.0
    %6170 = vmatpush1.msra.mxu0 %v146
    %6171 = vmatprep.subr.mxu0 0.0
    %6172 = vmatpush1.msra.mxu0 %v147
    %6173 = vmatprep.subr.mxu0 0.0
    %6174 = vmatpush1.msra.mxu0 %v148
    %6175 = vmatprep.subr.mxu0 0.0
    %6176 = vmatpush1.msra.mxu0 %v149
    %6177 = vmatprep.subr.mxu0 0.0
    %6178 = vmatpush1.msra.mxu0 %v150
    %6179 = vmatprep.subr.mxu0 0.0
    %6180 = vmatpush1.msra.mxu0 %v151
    %6181 = vmatprep.subr.mxu0 0.0
    %6182 = vmatpush1.msra.mxu0 %v152
    %6183 = vmatprep.subr.mxu0 0.0
    %6184 = vmatpush1.msra.mxu0 %v153
    %6185 = vmatprep.subr.mxu0 0.0
    %6186 = vmatpush1.msra.mxu0 %v154
    %6187 = vmatprep.subr.mxu0 0.0
    %6188 = vmatpush1.msra.mxu0 %v155
    %6189 = vmatprep.subr.mxu0 0.0
    %6190 = vmatpush1.msra.mxu0 %v156
    %6191 = vmatprep.subr.mxu0 0.0
    %6192 = vmatpush1.msra.mxu0 %v157
    %6193 = vmatprep.subr.mxu0 0.0
    %6194 = vmatpush1.msra.mxu0 %v158
    %6195 = vmatprep.subr.mxu0 0.0
    %6196 = vmatpush1.msra.mxu0 %v159
    %6197 = vmatprep.subr.mxu0 0.0
    %6198 = vmatpush1.msra.mxu0 %v160
    %6199 = vmatprep.subr.mxu0 0.0
    %6200 = vmatpush1.msra.mxu0 %v161
    %6201 = vmatprep.subr.mxu0 0.0
    %6202 = vmatpush1.msra.mxu0 0.0
    %6203 = vmatprep.subr.mxu0 0.0
    %6204 = vmatpush1.msra.mxu0 0.0
    %6205 = vmatprep.subr.mxu0 0.0
    %6206 = vmatpush1.msra.mxu0 0.0
    %6207 = vmatprep.subr.mxu0 0.0
    %6208 = vmatpush1.msra.mxu0 0.0
    %6209 = vmatprep.subr.mxu0 0.0
    %6210 = vmatpush1.msra.mxu0 0.0
    %6211 = vmatprep.subr.mxu0 0.0
    %6212 = vmatpush1.msra.mxu0 0.0
    %6213 = vmatprep.subr.mxu0 0.0
    %6214 = vmatpush1.msra.mxu0 0.0
    %6215 = vmatprep.subr.mxu0 0.0
    %6216 = vmatpush1.msra.mxu0 0.0
    %6217 = vmatprep.subr.mxu0 0.0
    %6218 = vmatpush1.msra.mxu0 0.0
    %6219 = vmatprep.subr.mxu0 0.0
    %6220 = vmatpush1.msra.mxu0 0.0
    %6221 = vmatprep.subr.mxu0 0.0
    %6222 = vmatpush1.msra.mxu0 0.0
    %6223 = vmatprep.subr.mxu0 0.0
    %6224 = vmatpush1.msra.mxu0 0.0
    %6225 = vmatprep.subr.mxu0 0.0
    %6226 = vmatpush1.msra.mxu0 0.0
    %6227 = vmatprep.subr.mxu0 0.0
    %6228 = vmatpush1.msra.mxu0 0.0
    %6229 = vmatprep.subr.mxu0 0.0
    %6230 = vmatpush1.msra.mxu0 0.0
    %6231 = vmatprep.subr.mxu0 0.0
    %6232 = vmatpush1.msra.mxu0 0.0
    %6233 = vmatprep.mubr.f32.mxu0 0.0
    %6234 = vmatmul.mubr.f32.gmra.mrb[0].mxu0 %v5288
    %v6235 = vpop.f32.mrb[0].mxu0
    %v6236 = vadd.f32 %v5438, %v6235
    %v6237 = vpop.f32.mrb[0].mxu0
    %6238 = vdwg.mxu0
    %v6239 = vmul.f32 %v6236, %v6168
    %v6240 = vsel %vm288, %v6239, 0.0
    %6241 = vadd.xlane.f32.xlu0 %v6240
    %v6242 = vpop.xlane.xlu0 %6241
    %v6243 = vadd.f32 %v5363, %v6242
    %v6245 = vlaneseq
    %v6246 = vshrl.u32 %v6245, 7
    %v6247 = vsub.s32 0, %v6246
    %v6248 = vrot.slane %v163, %v6247
    %v6250 = vmul.f32 %v6248, %v6168
    %v6251 = vsel %vm288, %v6250, 0.0
    %6252 = vadd.xlane.f32.xlu0 %v6251
    %v6253 = vpop.xlane.xlu0 %6252
    %v6254 = vadd.f32 %v6243, %v6253
    %v6255 = vadd.f32 %v6149, %v6248
    %v6256 = vadd.f32 %v6150, %v6248
    %v6259 = vrot.slane %v6256, 7
    %vm6260 = vcmask 1041409
    %v6261 = vsel %vm6260, %v6259, %v6255
    %v6263 = vsel %vm288, %v6261, -inf
    %6264 = vmax.xlane.f32.xlu0 %v6263
    %v6265 = vpop.xlane.xlu0 %6264
    %v6267 = vrot.slane %v6265, 1
    %v6270 = vsub.f32 %v6255, %v6265
    %v6271 = vsub.f32 %v6256, %v6267
    %v6272 = vmul.f32 %v6270, 1.442695
    %v6273 = vpow.pop %v6272
    %v6274 = vmul.f32 %v6271, 1.442695
    %v6275 = vpow.pop %v6274
    %v6278 = vrot.slane %v6275, 7
    %v6279 = vsel %vm6260, %v6278, %v6273
    %v6281 = vsel %vm288, %v6279, 0.0
    %6282 = vadd.xlane.f32.xlu0 %v6281
    %v6283 = vpop.xlane.xlu0 %6282
    %v6284 = vlog2.pop %v6283
    %v6285 = vmul.f32 %v6284, 0.6931472
    %v6286 = vadd.f32 %v6265, %v6285
    %v6287 = vsub.f32 %v6254, %v6286
    %vm6288 = vcmask 1024
    %6289 = vst.msk [vmem:[%s8] sm:$0x3] %vm6288, %v6287
    %v6290 = vadd.f32 %v5795, %v6248
    %v6291 = vadd.f32 %v5796, %v6248
    %v6294 = vrot.slane %v6291, 7
    %v6295 = vsel %vm6260, %v6294, %v6290
    %v6297 = vsel %vm288, %v6295, -inf
    %6298 = vmax.xlane.f32.xlu0 %v6297
    %v6299 = vpop.xlane.xlu0 %6298
    %v6301 = vrot.slane %v6299, 1
    %vm6304 = vcmp.ge.f32.partialorder %v6290, %v6299
    %vm6305 = vcmp.ge.f32.partialorder %v6291, %v6301
    %v6306 = vsel %vm6304, %v165, 128
    %v6307 = vsel %vm6305, %v165, 128
    %v6308 = vrot.slane %v6307, 7
    %v6309 = vsel %vm6260, %v6308, %v6306
    %v6310 = vsel %vm288, %v6309, 2147483647
    %v6311 = vand.u32 %v6310, 65535
    %v6312 = vshra.s32 %v6310, 16
    %v6313 = vcvt.s32.f32 %v6311
    %v6314 = vcvt.s32.f32 %v6312
    %6315 = vmin.xlane.f32.xlu0 %v6314
    %v6316 = vpop.xlane.xlu0 %6315
    %vm6317 = vcmp.eq.f32.partialorder %v6314, %v6316
    %v6318 = vsel %vm6317, %v6313, inf
    %6319 = vmin.xlane.f32.xlu0 %v6318
    %v6320 = vpop.xlane.xlu0 %6319
    %v6321 = vcvt.f32.s32 %v6320
    %v6322 = vcvt.f32.s32 %v6316
    %v6323 = vshll.u32 %v6322, 16
    %v6324 = vadd.s32 %v6323, %v6321
    %vm6325 = vcmp.eq.s32.totalorder %v165, %v6324
    %v6326 = vsel %vm6260, %v5790, %v5751
    %v6327 = vsel %vm6325, %v6326, 0
    %v6328 = vsel %vm288, %v6327, 0
    %v6329 = vand.u32 %v6328, 65535
    %v6330 = vshrl.u32 %v6328, 16
    %v6331 = vcvt.s32.f32 %v6329
    %v6332 = vcvt.s32.f32 %v6330
    %6333 = vadd.xlane.f32.xlu0 %v6331
    %v6334 = vpop.xlane.xlu0 %6333
    %6335 = vadd.xlane.f32.xlu0 %v6332
    %v6336 = vpop.xlane.xlu0 %6335
    %v6337 = vcvt.f32.s32 %v6334
    %v6338 = vcvt.f32.s32 %v6336
    %v6339 = vshll.u32 %v6338, 16
    %v6340 = vadd.s32 %v6339, %v6337
    %vm6341 = vcmp.eq.s32.totalorder %v165, %v6340
    %v6342 = vsel %vm6260, %v4910, %v4871
    %v6343 = vsel %vm6341, %v6342, 0
    %v6344 = vsel %vm288, %v6343, 0
    %v6345 = vand.u32 %v6344, 65535
    %v6346 = vshrl.u32 %v6344, 16
    %v6347 = vcvt.s32.f32 %v6345
    %v6348 = vcvt.s32.f32 %v6346
    %6349 = vadd.xlane.f32.xlu0 %v6347
    %v6350 = vpop.xlane.xlu0 %6349
    %6351 = vadd.xlane.f32.xlu0 %v6348
    %v6352 = vpop.xlane.xlu0 %6351
    %v6353 = vcvt.f32.s32 %v6350
    %v6354 = vcvt.f32.s32 %v6352
    %v6355 = vshll.u32 %v6354, 16
    %v6356 = vadd.s32 %v6355, %v6353
    %vm6357 = vcmp.eq.s32.totalorder %v165, %v6356
    %v6358 = vsel %vm6260, %v4030, %v3991
    %v6359 = vsel %vm6357, %v6358, 0
    %v6360 = vsel %vm288, %v6359, 0
    %v6361 = vand.u32 %v6360, 65535
    %v6362 = vshrl.u32 %v6360, 16
    %v6363 = vcvt.s32.f32 %v6361
    %v6364 = vcvt.s32.f32 %v6362
    %6365 = vadd.xlane.f32.xlu0 %v6363
    %v6366 = vpop.xlane.xlu0 %6365
    %6367 = vadd.xlane.f32.xlu0 %v6364
    %v6368 = vpop.xlane.xlu0 %6367
    %v6369 = vcvt.f32.s32 %v6366
    %v6370 = vcvt.f32.s32 %v6368
    %v6371 = vshll.u32 %v6370, 16
    %v6372 = vadd.s32 %v6371, %v6369
    %vm6373 = vcmp.eq.s32.totalorder %v165, %v6372
    %v6374 = vsel %vm6260, %v3150, %v3111
    %v6375 = vsel %vm6373, %v6374, 0
    %v6376 = vsel %vm288, %v6375, 0
    %v6377 = vand.u32 %v6376, 65535
    %v6378 = vshrl.u32 %v6376, 16
    %v6379 = vcvt.s32.f32 %v6377
    %v6380 = vcvt.s32.f32 %v6378
    %6381 = vadd.xlane.f32.xlu0 %v6379
    %v6382 = vpop.xlane.xlu0 %6381
    %6383 = vadd.xlane.f32.xlu0 %v6380
    %v6384 = vpop.xlane.xlu0 %6383
    %v6385 = vcvt.f32.s32 %v6382
    %v6386 = vcvt.f32.s32 %v6384
    %v6387 = vshll.u32 %v6386, 16
    %v6388 = vadd.s32 %v6387, %v6385
    %vm6389 = vcmp.eq.s32.totalorder %v165, %v6388
    %v6390 = vsel %vm6260, %v2270, %v2231
    %v6391 = vsel %vm6389, %v6390, 0
    %v6392 = vsel %vm288, %v6391, 0
    %v6393 = vand.u32 %v6392, 65535
    %v6394 = vshrl.u32 %v6392, 16
    %v6395 = vcvt.s32.f32 %v6393
    %v6396 = vcvt.s32.f32 %v6394
    %6397 = vadd.xlane.f32.xlu0 %v6395
    %v6398 = vpop.xlane.xlu0 %6397
    %6399 = vadd.xlane.f32.xlu0 %v6396
    %v6400 = vpop.xlane.xlu0 %6399
    %v6401 = vcvt.f32.s32 %v6398
    %v6402 = vcvt.f32.s32 %v6400
    %v6403 = vshll.u32 %v6402, 16
    %v6404 = vadd.s32 %v6403, %v6401
    %vm6405 = vcmp.eq.s32.totalorder %v165, %v6404
    %v6406 = vsel %vm6260, %v1390, %v1351
    %v6407 = vsel %vm6405, %v6406, 0
    %v6408 = vsel %vm288, %v6407, 0
    %v6409 = vand.u32 %v6408, 65535
    %v6410 = vshrl.u32 %v6408, 16
    %v6411 = vcvt.s32.f32 %v6409
    %v6412 = vcvt.s32.f32 %v6410
    %6413 = vadd.xlane.f32.xlu0 %v6411
    %v6414 = vpop.xlane.xlu0 %6413
    %6415 = vadd.xlane.f32.xlu0 %v6412
    %v6416 = vpop.xlane.xlu0 %6415
    %v6417 = vcvt.f32.s32 %v6414
    %v6418 = vcvt.f32.s32 %v6416
    %v6419 = vshll.u32 %v6418, 16
    %v6420 = vadd.s32 %v6419, %v6417
    %vm6421 = vcmp.eq.s32.totalorder %v165, %v6420
    %v6422 = vsel %vm6260, %v718, %v679
    %v6423 = vsel %vm6421, %v6422, 0
    %v6424 = vsel %vm288, %v6423, 0
    %v6425 = vand.u32 %v6424, 65535
    %v6426 = vshrl.u32 %v6424, 16
    %v6427 = vcvt.s32.f32 %v6425
    %v6428 = vcvt.s32.f32 %v6426
    %6429 = vadd.xlane.f32.xlu0 %v6427
    %v6430 = vpop.xlane.xlu0 %6429
    %6431 = vadd.xlane.f32.xlu0 %v6428
    %v6432 = vpop.xlane.xlu0 %6431
    %v6433 = vcvt.f32.s32 %v6430
    %v6434 = vcvt.f32.s32 %v6432
    %v6435 = vshll.u32 %v6434, 16
    %v6436 = vadd.s32 %v6435, %v6433
    %v6437 = vsel %vm268, %v6436, 0
    %v6438 = vsel %vm871, %v6420, 0
    %v6439 = vadd.s32 %v6437, %v6438
    %v6440 = vsel %vm1751, %v6404, 0
    %v6441 = vadd.s32 %v6439, %v6440
    %v6442 = vsel %vm2631, %v6388, 0
    %v6443 = vadd.s32 %v6441, %v6442
    %v6444 = vsel %vm3511, %v6372, 0
    %v6445 = vadd.s32 %v6443, %v6444
    %v6446 = vsel %vm4391, %v6356, 0
    %v6447 = vadd.s32 %v6445, %v6446
    %v6448 = vsel %vm5271, %v6340, 0
    %v6449 = vadd.s32 %v6447, %v6448
    %v6450 = vsel %vm6151, %v6324, 0
    %v6451 = vadd.s32 %v6449, %v6450
    %6452 = vst.msk [vmem:[#allocation2] sm:$0x3] %vm270, %v6451
    // Predicated region
    $region30: #{bert_crf_forward.7} parent=1 // pred_check
      _
    $region31: #{bert_crf_forward.7} parent=1 // pred_check_branch
      %6454 = sbr.rel (0) target = $region33
    $region32: #{bert_crf_forward.7} parent=1 // pred_region
      %s6456 = ssub.s32 32, 32
      %6457 = vsyncadd [#allocation3], %s6456
      %s6459 = sshll.u32 [#allocation2], 4
      %s6460 = int_to_ptr.vmem [resolvable:$true] %s6459
      %6462 = dma.vmem_to_hbm [thread:$0]  %s6460, 32, %s7, [#allocation3]
    $region33: #{bert_crf_forward.7} parent=1 // pred_fallthru
      _
    // Predicated region
    $region34: #{bert_crf_forward.7} parent=1 // pred_check
      _
    $region35: #{bert_crf_forward.7} parent=1 // pred_check_branch
      %6464 = sbr.rel (0) target = $region37
    $region36: #{bert_crf_forward.7} parent=1 // pred_region
      _
    $region37: #{bert_crf_forward.7} parent=1 // pred_fallthru
      _
    // Predicated region
    $region38: #{bert_crf_forward.7} parent=1 // pred_check
      _
    $region39: #{bert_crf_forward.7} parent=1 // pred_check_branch
      %6466 = sbr.rel (0) target = $region41
    $region40: #{bert_crf_forward.7} parent=1 // pred_region
      %6467 = dma.done [#allocation3], 32
    $region41: #{bert_crf_forward.7} parent=1 // pred_fallthru
      _
    // Predicated region
    $region42: #{bert_crf_forward.7} parent=1 // pred_check
      _
    $region43: #{bert_crf_forward.7} parent=1 // pred_check_branch
      %6469 = sbr.rel (0) target = $region45
    $region44: #{bert_crf_forward.7} parent=1 // pred_region
      _
    $region45: #{bert_crf_forward.7} parent=1 // pred_fallthru
      _
    %6470 = vsyncpa [#allocation3], 1

</llo_original>
